<compile_context>
chip_gen: v6e
topology: v6e:2x2x1
jax: 0.10.0
libtpu: 0.0.40
codegen_flags: <defaults>
</compile_context>

<pallas_src>
import functools

import jax
import jax.numpy as jnp
from jax import lax
from jax.experimental import pallas as pl
from jax.experimental.pallas import tpu as pltpu

NUM_CLASSES = 102
PRED_PAD = 128       # classifier output padded to a lane-dense 128 width
FEAT_DIM = 2048      # i3d feature dim consumed by mlp.fc1
HID_DIM = 512        # mlp.fc1 out
EMB_DIM = 128        # mlp.fc2 out (final_embedding_size)
STEM_DIM = 64        # backbone stem channels
BN_EPS = 1e-5
L2_EPS = 1e-12


def _round_up(x, m):
    return (x + m - 1) // m * m


def _vmem_limit_bytes():
    """Generation-aware scoped-VMEM limit (v7x: 64 MiB physical; v5e/v6e: 128)."""
    try:
        cap = int(pltpu.get_tpu_info().vmem_capacity_bytes)
    except Exception:
        cap = 64 * 1024 * 1024            # conservative fallback (v7x-safe)
    return max(32 * 1024 * 1024, min(cap * 3 // 4, 110 * 1024 * 1024))


def _plan(thw, max_tile):
    """Pick (tile, n_outer, n_inner, padded_thw, chunk) for the THW reduction."""
    max_tile = max(128, (int(max_tile) // 128) * 128)
    if thw <= max_tile:
        tile = _round_up(thw, 128)
        n_tiles = 1
    else:
        tile = max_tile
        n_tiles = -(-thw // tile)         # cdiv; only the last block is partial
    # Opportunistic megacore split (v7x has 2 TCs); single core otherwise.
    n_outer = 2 if (n_tiles >= 2 and n_tiles % 2 == 0) else 1
    n_inner = n_tiles // n_outer
    padded = tile * n_tiles
    chunk = 512 if tile % 512 == 0 else 128
    return tile, n_outer, n_inner, padded, chunk


# ----------------------------------------------------------------------------
# Launch 1: conv stem (MXU) + ReLU + global-average-pool partial sums
#   grid = (n_outer "parallel", n_inner "arbitrary")
# ----------------------------------------------------------------------------
def _stem_pool_kernel(x_ref, ws_ref, bs_ref, out_ref, *,
                      n_inner, tile, chunk, thw, needs_mask):
    o = pl.program_id(0)
    i = pl.program_id(1)

    @pl.when(i == 0)
    def _():
        out_ref[...] = jnp.zeros_like(out_ref)

    B = x_ref.shape[0]
    wsT = ws_ref[...]                                    # (64, C) bf16
    # hoist the lane-broadcast of the bias out of the chunk loop
    bias_b = jnp.broadcast_to(bs_ref[...], (STEM_DIM, chunk))   # (64, chunk) f32
    tile_base = (o * n_inner + i) * tile                 # scalar lane offset

    def chunk_body(c, acc):
        off = pl.multiple_of(c * chunk, chunk)
        rows = []
        for b in range(B):                               # B is tiny & static
            xc = x_ref[b, :, pl.ds(off, chunk)]          # (C, chunk) bf16
            if needs_mask:
                lane = lax.broadcasted_iota(jnp.int32, (1, chunk), 1)
                valid = (tile_base + off + lane) < thw
                # mask the *input* (3 rows) -- much cheaper than masking the
                # 64-channel output; masked lanes then contribute exactly
                # ReLU(b_stem), which the epilogue subtracts analytically.
                xc = jnp.where(valid, xc, jnp.zeros((), xc.dtype))
            # 3->64 contraction on the MXU (bf16 in, f32 accumulation)
            hb = jnp.dot(wsT, xc, preferred_element_type=jnp.float32)
            hb = jnp.maximum(hb + bias_b, 0.0)           # bias + ReLU on VPU
            rows.append(jnp.sum(hb, axis=-1))            # XLU lane reduce -> (64,)
        return acc + jnp.stack(rows, axis=0)             # (B, 64)

    part = lax.fori_loop(0, tile // chunk, chunk_body,
                         jnp.zeros((B, STEM_DIM), jnp.float32))
    out_ref[...] += part[jnp.newaxis]


def stem_pool(xt, w_stemT, b_stem_col, *, thw, tile, n_outer, n_inner, chunk):
    B, C, _ = xt.shape
    padded = tile * n_outer * n_inner
    kernel = functools.partial(
        _stem_pool_kernel, n_inner=n_inner, tile=tile, chunk=chunk,
        thw=thw, needs_mask=(padded != thw))

    return pl.pallas_call(
        kernel,
        out_shape=jax.ShapeDtypeStruct((n_outer, B, STEM_DIM), jnp.float32),
        grid_spec=pltpu.PrefetchScalarGridSpec(
            num_scalar_prefetch=0,
            grid=(n_outer, n_inner),
            in_specs=[
                pl.BlockSpec((B, C, tile), lambda o, i: (0, 0, o * n_inner + i)),
                pl.BlockSpec((STEM_DIM, C), lambda o, i: (0, 0)),   # stem W (bf16)
                pl.BlockSpec((STEM_DIM, 1), lambda o, i: (0, 0)),   # stem b (f32)
            ],
            out_specs=pl.BlockSpec((1, B, STEM_DIM), lambda o, i: (o, 0, 0)),
        ),
        compiler_params=pltpu.CompilerParams(
            dimension_semantics=("parallel", "arbitrary"),
            vmem_limit_bytes=_vmem_limit_bytes()),
    )(xt, w_stemT, b_stem_col)


# ----------------------------------------------------------------------------
# Launch 2: epilogue -- pool finalize + feature proj + classifier + mlp head
#   (no grid: everything fits VMEM, runs once)
# ----------------------------------------------------------------------------
def _head_kernel(psum_ref, bs_ref, wp_ref, bp_ref, wfc_ref, bfc_ref,
                 w1_ref, b1_ref, g1_ref, be1_ref, w2_ref, g2_ref, be2_ref,
                 pred_ref, emb_ref, *, inv_thw, n_pad):
    f32 = jnp.float32
    # combine per-core partial sums; subtract the exact contribution of the
    # masked/padded lanes (each contributed ReLU(b_stem)); divide by true THW
    s = jnp.sum(psum_ref[...], axis=0)                       # (B, 64)
    s = s - n_pad * jnp.maximum(bs_ref[...], 0.0)
    pooled = s * inv_thw

    # projection to the 2048-d I3D feature (never leaves VMEM)
    feat = jnp.dot(pooled, wp_ref[...].astype(f32),
                   preferred_element_type=f32) + bp_ref[...]
    # classifier head, lane-dense 128-wide store (sliced to 102 outside)
    pred_ref[...] = jnp.dot(feat, wfc_ref[...].astype(f32),
                            preferred_element_type=f32) + bfc_ref[...]

    # mlp head: fc1 -> BN1 (batch stats) -> ReLU -> fc2 -> BN2 -> L2-normalize
    h1 = jnp.dot(feat, w1_ref[...].astype(f32),
                 preferred_element_type=f32) + b1_ref[...]
    mu1 = jnp.mean(h1, axis=0, keepdims=True)
    var1 = jnp.mean((h1 - mu1) ** 2, axis=0, keepdims=True)
    h1 = (h1 - mu1) * lax.rsqrt(var1 + BN_EPS) * g1_ref[...] + be1_ref[...]
    h1 = jnp.maximum(h1, 0.0)

    z = jnp.dot(h1, w2_ref[...].astype(f32), preferred_element_type=f32)
    mu2 = jnp.mean(z, axis=0, keepdims=True)
    var2 = jnp.mean((z - mu2) ** 2, axis=0, keepdims=True)
    z = (z - mu2) * lax.rsqrt(var2 + BN_EPS) * g2_ref[...] + be2_ref[...]

    nrm = jnp.sqrt(jnp.sum(z * z, axis=1, keepdims=True))
    emb_ref[...] = z / jnp.maximum(nrm, L2_EPS)


def head(psum, p, *, thw, n_pad):
    B = psum.shape[1]
    kernel = functools.partial(_head_kernel,
                               inv_thw=1.0 / float(thw), n_pad=float(n_pad))
    return pl.pallas_call(
        kernel,
        out_shape=(jax.ShapeDtypeStruct((B, PRED_PAD), jnp.float32),
                   jax.ShapeDtypeStruct((B, EMB_DIM), jnp.float32)),
    )(psum, p["b_stem"], p["w_proj"], p["b_proj"], p["w_fc"], p["b_fc"],
      p["w1"], p["b1"], p["g1"], p["be1"], p["w2"], p["g2"], p["be2"])


# ----------------------------------------------------------------------------
# Parameter init (deterministic) + top-level forward + pure-JAX reference
# ----------------------------------------------------------------------------
def init_params(key, in_ch=3):
    ks = jax.random.split(key, 13)

    def lin(k, fan_in, fan_out):
        return (jax.random.normal(k, (fan_in, fan_out), jnp.float32)
                / jnp.sqrt(jnp.float32(fan_in)))

    def vec(k, n, scale=0.05):
        return scale * jax.random.normal(k, (1, n), jnp.float32)

    # classifier padded to 128 lanes (extra columns are exact zeros)
    w_fc = jnp.pad(lin(ks[2], FEAT_DIM, NUM_CLASSES),
                   ((0, 0), (0, PRED_PAD - NUM_CLASSES)))
    b_fc = jnp.pad(vec(ks[5], NUM_CLASSES),
                   ((0, 0), (0, PRED_PAD - NUM_CLASSES)))
    bf16 = jnp.bfloat16
    return {
        # backbone stand-in (matmul weights stored bf16: half the HBM/VMEM)
        "w_stem": lin(ks[0], in_ch, STEM_DIM).astype(bf16),
        "b_stem": vec(ks[3], STEM_DIM),
        "w_proj": lin(ks[1], STEM_DIM, FEAT_DIM).astype(bf16),
        "b_proj": vec(ks[4], FEAT_DIM),
        "w_fc": w_fc.astype(bf16),
        "b_fc": b_fc,
        # mlp head: Linear(2048,512), BN(512), Linear(512,128,bias=False), BN(128)
        "w1": lin(ks[6], FEAT_DIM, HID_DIM).astype(bf16),
        "b1": vec(ks[7], HID_DIM),
        "g1": 1.0 + vec(ks[8], HID_DIM, 0.1),
        "be1": vec(ks[9], HID_DIM),
        "w2": lin(ks[10], HID_DIM, EMB_DIM).astype(bf16),
        "g2": 1.0 + vec(ks[11], EMB_DIM, 0.1),
        "be2": vec(ks[12], EMB_DIM),
    }


@functools.partial(jax.jit, static_argnames=("max_tile",))
def wrapper_i3d_forward(x, params, max_tile=32768):
    """x: (B, C, T, H, W) float32 (PyTorch NCDHW). Returns (pred, embedding)."""
    B, C, T, H, W = x.shape
    thw = T * H * W
    tile, n_outer, n_inner, padded, chunk = _plan(thw, max_tile)

    # NCDHW -> (B, C, THW) is a free reshape (no transpose); bf16 halves the
    # dominant HBM read.  All accumulation stays f32 in-kernel.
    xt = x.reshape(B, C, thw).astype(jnp.bfloat16)
    w_stemT = params["w_stem"].T                          # (64, C) bf16, tiny
    b_stem_col = params["b_stem"].reshape(STEM_DIM, 1)    # (64, 1) f32

    psum = stem_pool(xt, w_stemT, b_stem_col, thw=thw, tile=tile,
                     n_outer=n_outer, n_inner=n_inner, chunk=chunk)
    pred_pad, emb = head(psum, params, thw=thw, n_pad=padded - thw)
    return pred_pad[:, :NUM_CLASSES], emb


def reference_forward(x, p):
    """Pure-JAX reference for sanity-checking the fused kernels."""
    B, C, T, H, W = x.shape
    xt = x.reshape(B, C, -1).astype(jnp.bfloat16).astype(jnp.float32)
    h = jnp.einsum("cd,bct->bdt", p["w_stem"], xt)
    h = jnp.maximum(h + p["b_stem"][:, :, None], 0.0)
    pooled = jnp.mean(h, axis=-1)
    feat = pooled @ p["w_proj"] + p["b_proj"]
    pred = (feat @ p["w_fc"] + p["b_fc"])[:, :NUM_CLASSES]
    h1 = feat @ p["w1"] + p["b1"]
    mu1 = h1.mean(0, keepdims=True)
    var1 = ((h1 - mu1) ** 2).mean(0, keepdims=True)
    h1 = jnp.maximum((h1 - mu1) * lax.rsqrt(var1 + BN_EPS) * p["g1"] + p["be1"], 0.0)
    z = h1 @ p["w2"]
    mu2 = z.mean(0, keepdims=True)
    var2 = ((z - mu2) ** 2).mean(0, keepdims=True)
    z = (z - mu2) * lax.rsqrt(var2 + BN_EPS) * p["g2"] + p["be2"]
    nrm = jnp.sqrt(jnp.sum(z * z, axis=1, keepdims=True))
    return pred, z / jnp.maximum(nrm, L2_EPS)


if __name__ == "__main__":
    key = jax.random.PRNGKey(0)
    xk, pk, xk2 = jax.random.split(key, 3)
    B, C, T, H, W = 2, 3, 4, 16, 16                       # THW = 1024
    x = jax.random.normal(xk, (B, C, T, H, W), jnp.float32)
    params = init_params(pk, in_ch=C)
    pred_ref, _ = reference_forward(x, params)

    # (1) small tiles -> (2, 2) grid: exercises the megacore split, the
    #     arbitrary-axis accumulator, and the MXU stem.
    pred, emb = wrapper_i3d_forward(x, params, max_tile=256)
    jax.block_until_ready((pred, emb))
    assert pred.shape == (B, NUM_CLASSES)
    assert emb.shape == (B, EMB_DIM)
    norms = jnp.linalg.norm(emb, axis=1)
    assert bool(jnp.all(jnp.abs(norms - 1.0) < 1e-3))
    assert bool(jnp.max(jnp.abs(pred - pred_ref)) < 3e-2)

    # (2) default large-tile path: single block covering all of THW.
    pred_d, emb_d = wrapper_i3d_forward(x, params)
    jax.block_until_ready((pred_d, emb_d))
    assert bool(jnp.max(jnp.abs(pred_d - pred_ref)) < 3e-2)

    # (3) ragged THW (900, not a multiple of 128): exercises edge-block
    #     masking + the analytic ReLU(b_stem) pad correction.
    x2 = jax.random.normal(xk2, (B, C, T, 15, 15), jnp.float32)
    pred2, emb2 = wrapper_i3d_forward(x2, params, max_tile=256)
    jax.block_until_ready((pred2, emb2))
    pred2_ref, _ = reference_forward(x2, params)
    assert bool(jnp.max(jnp.abs(pred2 - pred2_ref)) < 3e-2)
    norms2 = jnp.linalg.norm(emb2, axis=1)
    assert bool(jnp.all(jnp.abs(norms2 - 1.0) < 1e-3))

    # (emb not compared element-wise: BatchNorm over batch=2 is tie-sensitive.)
    print("KERNEL_OK")
</pallas_src>

<mosaic_0001>
module attributes {stable_mosaic.version = 11 : i64} {
  func.func @_stem_pool_kernel(%arg0: i32, %arg1: i32, %arg2: memref<2x3x256xbf16, #tpu.memory_space<vmem>>, %arg3: memref<64x3xbf16, #tpu.memory_space<vmem>>, %arg4: memref<64x1xf32, #tpu.memory_space<vmem>>, %arg5: memref<1x2x64xf32, #tpu.memory_space<vmem>>) attributes {dimension_semantics = [#tpu.dimension_semantics<parallel>, #tpu.dimension_semantics<arbitrary>], iteration_bounds = array<i64: 2, 2>, scalar_prefetch = 0 : i64, scratch_operands = 0 : i64, tpu.core_type = #tpu.core_type<tc>, window_params = [{transform_indices = @transform_0, window_bounds = array<i64: 2, 3, 256>}, {pipeline_mode = #tpu.pipeline_mode<synchronous>, transform_indices = @transform_1, window_bounds = array<i64: 64, 3>}, {pipeline_mode = #tpu.pipeline_mode<synchronous>, transform_indices = @transform_2, window_bounds = array<i64: 64, 1>}, {transform_indices = @transform_3, window_bounds = array<i64: 1, 2, 64>}]} {
    %c0_i32 = arith.constant 0 : i32
    %0 = arith.cmpi eq, %arg1, %c0_i32 : i32
    %1 = arith.extui %0 : i1 to i32
    %c0_i32_0 = arith.constant 0 : i32
    %2 = arith.cmpi ne, %1, %c0_i32_0 : i32
    scf.if %2 {
      %cst_12 = arith.constant 0.000000e+00 : f32
      %14 = vector.broadcast %cst_12 : f32 to vector<1x2x64xf32>
      %c0_13 = arith.constant 0 : index
      %c0_14 = arith.constant 0 : index
      %c0_15 = arith.constant 0 : index
      %15 = vector.load %arg5[%c0_13, %c0_14, %c0_15] : memref<1x2x64xf32, #tpu.memory_space<vmem>>, vector<1x2x64xf32>
      tpu.vector_store %arg5[%c0_13, %c0_14, %c0_15], %14 {strides = array<i32>} : memref<1x2x64xf32, #tpu.memory_space<vmem>>, vector<1x2x64xf32>,
    } else {
    }
    %c0 = arith.constant 0 : index
    %c0_1 = arith.constant 0 : index
    %3 = vector.load %arg3[%c0, %c0_1] : memref<64x3xbf16, #tpu.memory_space<vmem>>, vector<64x3xbf16>
    %c0_2 = arith.constant 0 : index
    %c0_3 = arith.constant 0 : index
    %4 = vector.load %arg4[%c0_2, %c0_3] : memref<64x1xf32, #tpu.memory_space<vmem>>, vector<64x1xf32>
    %5 = vector.shape_cast %4 : vector<64x1xf32> to vector<64x1xf32>
    %6 = vector.broadcast %5 : vector<64x1xf32> to vector<64x128xf32>
    %cst = arith.constant 0.000000e+00 : f32
    %7 = vector.broadcast %cst : f32 to vector<2x64xf32>
    %c0_i32_4 = arith.constant 0 : i32
    %c2_i32 = arith.constant 2 : i32
    %8 = arith.addi %c0_i32_4, %c2_i32 : i32
    %c1_i32 = arith.constant 1 : i32
    %9 = scf.for %arg6 = %c0_i32_4 to %8 step %c1_i32 iter_args(%arg7 = %7) -> (vector<2x64xf32>)  : i32 {
      %c128_i32 = arith.constant 128 : i32
      %14 = arith.muli %arg6, %c128_i32 : i32
      %15 = tpu.assume_multiple %14, 128 : i32
      %c0_12 = arith.constant 0 : index
      %c0_13 = arith.constant 0 : index
      %16 = arith.index_cast %15 : i32 to index
      %17 = vector.load %arg2[%c0_12, %c0_13, %16] : memref<2x3x256xbf16, #tpu.memory_space<vmem>>, vector<1x3x128xbf16>
      %18 = vector.shape_cast %17 : vector<1x3x128xbf16> to vector<3x128xbf16>
      %cst_14 = arith.constant dense<0.000000e+00> : vector<64x128xf32>
      %19 = tpu.matmul %3, %18, %cst_14 {dimension_numbers = #tpu.dot_dimension_numbers<[1], [0], [0], [1], [0, 0, 1, 1], [], []>} : vector<64x3xbf16>, vector<3x128xbf16>, vector<64x128xf32> -> vector<64x128xf32>
      %20 = arith.addf %19, %6 : vector<64x128xf32>
      %cst_15 = arith.constant 0.000000e+00 : f32
      %21 = vector.broadcast %cst_15 : f32 to vector<64x128xf32>
      %22 = arith.maximumf %20, %21 : vector<64x128xf32>
      %cst_16 = arith.constant dense<0.000000e+00> : vector<64xf32>
      %23 = vector.multi_reduction <add>, %22, %cst_16 [1] : vector<64x128xf32> to vector<64xf32>
      %c1 = arith.constant 1 : index
      %c0_17 = arith.constant 0 : index
      %24 = arith.index_cast %15 : i32 to index
      %25 = vector.load %arg2[%c1, %c0_17, %24] : memref<2x3x256xbf16, #tpu.memory_space<vmem>>, vector<1x3x128xbf16>
      %26 = vector.shape_cast %25 : vector<1x3x128xbf16> to vector<3x128xbf16>
      %cst_18 = arith.constant dense<0.000000e+00> : vector<64x128xf32>
      %27 = tpu.matmul %3, %26, %cst_18 {dimension_numbers = #tpu.dot_dimension_numbers<[1], [0], [0], [1], [0, 0, 1, 1], [], []>} : vector<64x3xbf16>, vector<3x128xbf16>, vector<64x128xf32> -> vector<64x128xf32>
      %28 = arith.addf %27, %6 : vector<64x128xf32>
      %cst_19 = arith.constant 0.000000e+00 : f32
      %29 = vector.broadcast %cst_19 : f32 to vector<64x128xf32>
      %30 = arith.maximumf %28, %29 : vector<64x128xf32>
      %cst_20 = arith.constant dense<0.000000e+00> : vector<64xf32>
      %31 = vector.multi_reduction <add>, %30, %cst_20 [1] : vector<64x128xf32> to vector<64xf32>
      %32 = vector.shape_cast %23 : vector<64xf32> to vector<1x64xf32>
      %33 = vector.shape_cast %31 : vector<64xf32> to vector<1x64xf32>
      %34 = tpu.concatenate %32, %33 in 0 : vector<1x64xf32>, vector<1x64xf32> -> vector<2x64xf32>
      %35 = arith.addf %arg7, %34 : vector<2x64xf32>
      scf.yield %35 : vector<2x64xf32>
    }
    %c2_i32_5 = arith.constant 2 : i32
    %c0_6 = arith.constant 0 : index
    %c0_7 = arith.constant 0 : index
    %c0_8 = arith.constant 0 : index
    %10 = vector.load %arg5[%c0_6, %c0_7, %c0_8] : memref<1x2x64xf32, #tpu.memory_space<vmem>>, vector<1x2x64xf32>
    %11 = vector.shape_cast %9 : vector<2x64xf32> to vector<1x2x64xf32>
    %12 = arith.addf %10, %11 : vector<1x2x64xf32>
    %c0_9 = arith.constant 0 : index
    %c0_10 = arith.constant 0 : index
    %c0_11 = arith.constant 0 : index
    %13 = vector.load %arg5[%c0_9, %c0_10, %c0_11] : memref<1x2x64xf32, #tpu.memory_space<vmem>>, vector<1x2x64xf32>
    tpu.vector_store %arg5[%c0_9, %c0_10, %c0_11], %12 {strides = array<i32>} : memref<1x2x64xf32, #tpu.memory_space<vmem>>, vector<1x2x64xf32>,
    return
  }
  func.func @transform_0(%arg0: i32, %arg1: i32) -> (i32, i32, i32) {
    %c2_i32 = arith.constant 2 : i32
    %0 = arith.muli %arg0, %c2_i32 : i32
    %1 = arith.addi %0, %arg1 : i32
    %c0_i32 = arith.constant 0 : i32
    %c0_i32_0 = arith.constant 0 : i32
    %c0_i32_1 = arith.constant 0 : i32
    return %c0_i32, %c0_i32_0, %1 : i32, i32, i32
  }
  func.func @transform_1(%arg0: i32, %arg1: i32) -> (i32, i32) {
    %c0_i32 = arith.constant 0 : i32
    %c0_i32_0 = arith.constant 0 : i32
    %c0_i32_1 = arith.constant 0 : i32
    return %c0_i32, %c0_i32_0 : i32, i32
  }
  func.func @transform_2(%arg0: i32, %arg1: i32) -> (i32, i32) {
    %c0_i32 = arith.constant 0 : i32
    %c0_i32_0 = arith.constant 0 : i32
    %c0_i32_1 = arith.constant 0 : i32
    return %c0_i32, %c0_i32_0 : i32, i32
  }
  func.func @transform_3(%arg0: i32, %arg1: i32) -> (i32, i32, i32) {
    %c0_i32 = arith.constant 0 : i32
    %c0_i32_0 = arith.constant 0 : i32
    %c0_i32_1 = arith.constant 0 : i32
    return %arg0, %c0_i32, %c0_i32_0 : i32, i32, i32
  }
}

module attributes {stable_mosaic.version = 11 : i64} {
  func.func @_head_kernel(%arg0: memref<2x2x64xf32, #tpu.memory_space<vmem>>, %arg1: memref<1x64xf32, #tpu.memory_space<vmem>>, %arg2: memref<64x2048xbf16, #tpu.memory_space<vmem>>, %arg3: memref<1x2048xf32, #tpu.memory_space<vmem>>, %arg4: memref<2048x128xbf16, #tpu.memory_space<vmem>>, %arg5: memref<1x128xf32, #tpu.memory_space<vmem>>, %arg6: memref<2048x512xbf16, #tpu.memory_space<vmem>>, %arg7: memref<1x512xf32, #tpu.memory_space<vmem>>, %arg8: memref<1x512xf32, #tpu.memory_space<vmem>>, %arg9: memref<1x512xf32, #tpu.memory_space<vmem>>, %arg10: memref<512x128xbf16, #tpu.memory_space<vmem>>, %arg11: memref<1x128xf32, #tpu.memory_space<vmem>>, %arg12: memref<1x128xf32, #tpu.memory_space<vmem>>, %arg13: memref<2x128xf32, #tpu.memory_space<vmem>>, %arg14: memref<2x128xf32, #tpu.memory_space<vmem>>) attributes {dimension_semantics = [], scalar_prefetch = 0 : i64, scratch_operands = 0 : i64, tpu.core_type = #tpu.core_type<tc>} {
    %c0 = arith.constant 0 : index
    %c0_0 = arith.constant 0 : index
    %c0_1 = arith.constant 0 : index
    %0 = vector.load %arg0[%c0, %c0_0, %c0_1] : memref<2x2x64xf32, #tpu.memory_space<vmem>>, vector<2x2x64xf32>
    %cst = arith.constant dense<0.000000e+00> : vector<2x64xf32>
    %1 = vector.multi_reduction <add>, %0, %cst [0] : vector<2x2x64xf32> to vector<2x64xf32>
    %c0_2 = arith.constant 0 : index
    %c0_3 = arith.constant 0 : index
    %2 = vector.load %arg1[%c0_2, %c0_3] : memref<1x64xf32, #tpu.memory_space<vmem>>, vector<1x64xf32>
    %cst_4 = arith.constant 0.000000e+00 : f32
    %3 = vector.broadcast %cst_4 : f32 to vector<1x64xf32>
    %4 = arith.maximumf %2, %3 : vector<1x64xf32>
    %cst_5 = arith.constant 0.000000e+00 : f32
    %5 = vector.broadcast %cst_5 : f32 to vector<1x64xf32>
    %6 = arith.mulf %5, %4 : vector<1x64xf32>
    %7 = vector.broadcast %6 : vector<1x64xf32> to vector<2x64xf32>
    %8 = arith.subf %1, %7 : vector<2x64xf32>
    %cst_6 = arith.constant 9.765625E-4 : f32
    %9 = vector.broadcast %cst_6 : f32 to vector<2x64xf32>
    %10 = arith.mulf %8, %9 : vector<2x64xf32>
    %c0_7 = arith.constant 0 : index
    %c0_8 = arith.constant 0 : index
    %11 = vector.load %arg2[%c0_7, %c0_8] : memref<64x2048xbf16, #tpu.memory_space<vmem>>, vector<64x2048xbf16>
    %12 = arith.extf %11 : vector<64x2048xbf16> to vector<64x2048xf32>
    %cst_9 = arith.constant dense<0.000000e+00> : vector<2x2048xf32>
    %13 = tpu.matmul %10, %12, %cst_9 {dimension_numbers = #tpu.dot_dimension_numbers<[1], [0], [0], [1], [0, 0, 1, 1], [], []>} : vector<2x64xf32>, vector<64x2048xf32>, vector<2x2048xf32> -> vector<2x2048xf32>
    %c0_10 = arith.constant 0 : index
    %c0_11 = arith.constant 0 : index
    %14 = vector.load %arg3[%c0_10, %c0_11] : memref<1x2048xf32, #tpu.memory_space<vmem>>, vector<1x2048xf32>
    %15 = vector.broadcast %14 : vector<1x2048xf32> to vector<2x2048xf32>
    %16 = arith.addf %13, %15 : vector<2x2048xf32>
    %c0_12 = arith.constant 0 : index
    %c0_13 = arith.constant 0 : index
    %17 = vector.load %arg4[%c0_12, %c0_13] : memref<2048x128xbf16, #tpu.memory_space<vmem>>, vector<2048x128xbf16>
    %18 = arith.extf %17 : vector<2048x128xbf16> to vector<2048x128xf32>
    %cst_14 = arith.constant dense<0.000000e+00> : vector<2x128xf32>
    %19 = tpu.matmul %16, %18, %cst_14 {dimension_numbers = #tpu.dot_dimension_numbers<[1], [0], [0], [1], [0, 0, 1, 1], [], []>} : vector<2x2048xf32>, vector<2048x128xf32>, vector<2x128xf32> -> vector<2x128xf32>
    %c0_15 = arith.constant 0 : index
    %c0_16 = arith.constant 0 : index
    %20 = vector.load %arg5[%c0_15, %c0_16] : memref<1x128xf32, #tpu.memory_space<vmem>>, vector<1x128xf32>
    %21 = vector.broadcast %20 : vector<1x128xf32> to vector<2x128xf32>
    %22 = arith.addf %19, %21 : vector<2x128xf32>
    %c0_17 = arith.constant 0 : index
    %c0_18 = arith.constant 0 : index
    %23 = vector.load %arg13[%c0_17, %c0_18] : memref<2x128xf32, #tpu.memory_space<vmem>>, vector<2x128xf32>
    tpu.vector_store %arg13[%c0_17, %c0_18], %22 {strides = array<i32>} : memref<2x128xf32, #tpu.memory_space<vmem>>, vector<2x128xf32>,
    %c0_19 = arith.constant 0 : index
    %c0_20 = arith.constant 0 : index
    %24 = vector.load %arg6[%c0_19, %c0_20] : memref<2048x512xbf16, #tpu.memory_space<vmem>>, vector<2048x512xbf16>
    %25 = arith.extf %24 : vector<2048x512xbf16> to vector<2048x512xf32>
    %cst_21 = arith.constant dense<0.000000e+00> : vector<2x512xf32>
    %26 = tpu.matmul %16, %25, %cst_21 {dimension_numbers = #tpu.dot_dimension_numbers<[1], [0], [0], [1], [0, 0, 1, 1], [], []>} : vector<2x2048xf32>, vector<2048x512xf32>, vector<2x512xf32> -> vector<2x512xf32>
    %c0_22 = arith.constant 0 : index
    %c0_23 = arith.constant 0 : index
    %27 = vector.load %arg7[%c0_22, %c0_23] : memref<1x512xf32, #tpu.memory_space<vmem>>, vector<1x512xf32>
    %28 = vector.broadcast %27 : vector<1x512xf32> to vector<2x512xf32>
    %29 = arith.addf %26, %28 : vector<2x512xf32>
    %cst_24 = arith.constant dense<0.000000e+00> : vector<512xf32>
    %30 = vector.multi_reduction <add>, %29, %cst_24 [0] : vector<2x512xf32> to vector<512xf32>
    %31 = vector.shape_cast %30 : vector<512xf32> to vector<1x512xf32>
    %cst_25 = arith.constant 2.000000e+00 : f32
    %32 = vector.broadcast %cst_25 : f32 to vector<1x512xf32>
    %33 = arith.divf %31, %32 : vector<1x512xf32>
    %34 = vector.broadcast %33 : vector<1x512xf32> to vector<2x512xf32>
    %35 = arith.subf %29, %34 : vector<2x512xf32>
    %36 = arith.mulf %35, %35 : vector<2x512xf32>
    %cst_26 = arith.constant dense<0.000000e+00> : vector<512xf32>
    %37 = vector.multi_reduction <add>, %36, %cst_26 [0] : vector<2x512xf32> to vector<512xf32>
    %38 = vector.shape_cast %37 : vector<512xf32> to vector<1x512xf32>
    %cst_27 = arith.constant 2.000000e+00 : f32
    %39 = vector.broadcast %cst_27 : f32 to vector<1x512xf32>
    %40 = arith.divf %38, %39 : vector<1x512xf32>
    %41 = vector.broadcast %33 : vector<1x512xf32> to vector<2x512xf32>
    %42 = arith.subf %29, %41 : vector<2x512xf32>
    %cst_28 = arith.constant 9.99999974E-6 : f32
    %43 = vector.broadcast %cst_28 : f32 to vector<1x512xf32>
    %44 = arith.addf %40, %43 : vector<1x512xf32>
    %45 = math.rsqrt %44 : vector<1x512xf32>
    %46 = vector.broadcast %45 : vector<1x512xf32> to vector<2x512xf32>
    %47 = arith.mulf %42, %46 : vector<2x512xf32>
    %c0_29 = arith.constant 0 : index
    %c0_30 = arith.constant 0 : index
    %48 = vector.load %arg8[%c0_29, %c0_30] : memref<1x512xf32, #tpu.memory_space<vmem>>, vector<1x512xf32>
    %49 = vector.broadcast %48 : vector<1x512xf32> to vector<2x512xf32>
    %50 = arith.mulf %47, %49 : vector<2x512xf32>
    %c0_31 = arith.constant 0 : index
    %c0_32 = arith.constant 0 : index
    %51 = vector.load %arg9[%c0_31, %c0_32] : memref<1x512xf32, #tpu.memory_space<vmem>>, vector<1x512xf32>
    %52 = vector.broadcast %51 : vector<1x512xf32> to vector<2x512xf32>
    %53 = arith.addf %50, %52 : vector<2x512xf32>
    %cst_33 = arith.constant 0.000000e+00 : f32
    %54 = vector.broadcast %cst_33 : f32 to vector<2x512xf32>
    %55 = arith.maximumf %53, %54 : vector<2x512xf32>
    %c0_34 = arith.constant 0 : index
    %c0_35 = arith.constant 0 : index
    %56 = vector.load %arg10[%c0_34, %c0_35] : memref<512x128xbf16, #tpu.memory_space<vmem>>, vector<512x128xbf16>
    %57 = arith.extf %56 : vector<512x128xbf16> to vector<512x128xf32>
    %cst_36 = arith.constant dense<0.000000e+00> : vector<2x128xf32>
    %58 = tpu.matmul %55, %57, %cst_36 {dimension_numbers = #tpu.dot_dimension_numbers<[1], [0], [0], [1], [0, 0, 1, 1], [], []>} : vector<2x512xf32>, vector<512x128xf32>, vector<2x128xf32> -> vector<2x128xf32>
    %cst_37 = arith.constant dense<0.000000e+00> : vector<128xf32>
    %59 = vector.multi_reduction <add>, %58, %cst_37 [0] : vector<2x128xf32> to vector<128xf32>
    %60 = vector.shape_cast %59 : vector<128xf32> to vector<1x128xf32>
    %cst_38 = arith.constant 2.000000e+00 : f32
    %61 = vector.broadcast %cst_38 : f32 to vector<1x128xf32>
    %62 = arith.divf %60, %61 : vector<1x128xf32>
    %63 = vector.broadcast %62 : vector<1x128xf32> to vector<2x128xf32>
    %64 = arith.subf %58, %63 : vector<2x128xf32>
    %65 = arith.mulf %64, %64 : vector<2x128xf32>
    %cst_39 = arith.constant dense<0.000000e+00> : vector<128xf32>
    %66 = vector.multi_reduction <add>, %65, %cst_39 [0] : vector<2x128xf32> to vector<128xf32>
    %67 = vector.shape_cast %66 : vector<128xf32> to vector<1x128xf32>
    %cst_40 = arith.constant 2.000000e+00 : f32
    %68 = vector.broadcast %cst_40 : f32 to vector<1x128xf32>
    %69 = arith.divf %67, %68 : vector<1x128xf32>
    %70 = vector.broadcast %62 : vector<1x128xf32> to vector<2x128xf32>
    %71 = arith.subf %58, %70 : vector<2x128xf32>
    %cst_41 = arith.constant 9.99999974E-6 : f32
    %72 = vector.broadcast %cst_41 : f32 to vector<1x128xf32>
    %73 = arith.addf %69, %72 : vector<1x128xf32>
    %74 = math.rsqrt %73 : vector<1x128xf32>
    %75 = vector.broadcast %74 : vector<1x128xf32> to vector<2x128xf32>
    %76 = arith.mulf %71, %75 : vector<2x128xf32>
    %c0_42 = arith.constant 0 : index
    %c0_43 = arith.constant 0 : index
    %77 = vector.load %arg11[%c0_42, %c0_43] : memref<1x128xf32, #tpu.memory_space<vmem>>, vector<1x128xf32>
    %78 = vector.broadcast %77 : vector<1x128xf32> to vector<2x128xf32>
    %79 = arith.mulf %76, %78 : vector<2x128xf32>
    %c0_44 = arith.constant 0 : index
    %c0_45 = arith.constant 0 : index
    %80 = vector.load %arg12[%c0_44, %c0_45] : memref<1x128xf32, #tpu.memory_space<vmem>>, vector<1x128xf32>
    %81 = vector.broadcast %80 : vector<1x128xf32> to vector<2x128xf32>
    %82 = arith.addf %79, %81 : vector<2x128xf32>
    %83 = arith.mulf %82, %82 : vector<2x128xf32>
    %cst_46 = arith.constant dense<0.000000e+00> : vector<2xf32>
    %84 = vector.multi_reduction <add>, %83, %cst_46 [1] : vector<2x128xf32> to vector<2xf32>
    %85 = vector.shape_cast %84 : vector<2xf32> to vector<2x1xf32>
    %86 = math.sqrt %85 : vector<2x1xf32>
    %cst_47 = arith.constant 9.99999996E-13 : f32
    %87 = vector.broadcast %cst_47 : f32 to vector<2x1xf32>
    %88 = arith.maximumf %86, %87 : vector<2x1xf32>
    %89 = vector.broadcast %88 : vector<2x1xf32> to vector<2x128xf32>
    %90 = arith.divf %82, %89 : vector<2x128xf32>
    %c0_48 = arith.constant 0 : index
    %c0_49 = arith.constant 0 : index
    %91 = vector.load %arg14[%c0_48, %c0_49] : memref<2x128xf32, #tpu.memory_space<vmem>>, vector<2x128xf32>
    tpu.vector_store %arg14[%c0_48, %c0_49], %90 {strides = array<i32>} : memref<2x128xf32, #tpu.memory_space<vmem>>, vector<2x128xf32>,
    return
  }
}

</mosaic_0001>

<llo_original>
// kernel: wrapper_i3d_forward.2
$region0: #{wrapper_i3d_forward.2}
  #allocation0 [shape = 'u32[]', space=smem, size = 0x4, offset = 0x4, fixed_abs, tag = 'smem constant byte address 0x4 - core index']
  #allocation1 [shape = 'u32[144,128]{1,0:T(1,128)}', space=vmem, size = 0x12000, scoped, tag = 'internal scratch']
  %s0 = inlined_call_operand.vmem [shape: bf16[2,3,1024], index: 0, kind: input, shape index: {}]
  %s1 = inlined_call_operand.vmem [shape: bf16[64,3], index: 1, kind: input, shape index: {}]
  %s2 = inlined_call_operand.vmem [shape: f32[64,1], index: 2, kind: input, shape index: {}]
  %s3 = inlined_call_operand.vmem [shape: f32[2,2,64], index: 3, kind: output, shape index: {}]
  %s4 = sld [smem:[#allocation0]]
  $region97: #{wrapper_i3d_forward.2} parent=0
    _
  %s6 = ssub.s32 1, %s4
  %s7 = scalar_select 0, %s6, %s4
  $region1: #{wrapper_i3d_forward.2} parent=0
    #allocation2 [shape = 'u8[8192]{0}', space=vmem, size = 0x2000, scoped, tag = 'input window, operand 0']
    loop: start=0, step=1, limit=6
    $region2: #{wrapper_i3d_forward.2} parent=1 // loop_pre_header
      _
    $region3: #{wrapper_i3d_forward.2} parent=1 // loop_header
      %s9 = sphi 0, %s13
      %p10 = scmp.ge.s32.totalorder %s9, 6
      %s16 = sphi 0, %s28
      %s17 = sphi 0, %s24
      %s18 = sphi 0, %s16
      %s19 = sphi 0, %s17
      %s20 = sphi 0, %s18
      %s21 = sphi 0, %s19
      %s35 = sphi 0, %s37
      %s38 = sphi 0, %s35
      %s39 = sphi 0, %s38
      %s55 = sphi 0, %s39
      %s59 = sphi 0, %s59
      %s61 = sphi 0, %s59
      %s62 = sphi 0, %s61
      %s76 = sphi 0, %s62
      %s80 = sphi 0, %s80
      %s82 = sphi 0, %s80
      %s83 = sphi 0, %s82
      %s97 = sphi 0, %s83
      %s103 = sphi 0, %s105
      %s106 = sphi 0, %s103
      %s107 = sphi 0, %s106
      %s123 = sphi 0, %s107
    $region4: #{wrapper_i3d_forward.2} parent=1 // loop_header_branch
      %12 = sbr.rel (%p10) target = $region8
    $region5: #{wrapper_i3d_forward.2} parent=1 // loop_body
      %s14 = ssub.s32 %s9, 1
      %s15 = ssub.s32 %s9, 2
      %s22 = sadd.s32 1, %s17
      %p23 = scmp.ge.s32.totalorder %s22, 2
      %s24 = scalar_select %p23, 0, %s22
      %s25 = sadd.s32 1, %s16
      %s26 = scalar_select %p23, %s25, %s16
      %p27 = scmp.ge.s32.totalorder %s26, 2
      %s28 = scalar_select %p27, 0, %s26
      %s29 = smul.u32 %s16, 2
      %s30 = sadd.s32 %s29, %s17
      %s31 = smul.u32 %s28, 2
      %s32 = sadd.s32 %s31, %s24
      %s33 = ssub.s32 %s30, %s32
      %p34 = scmp.eq.s32.totalorder %s33, 0
      %s36 = sadd.s32 %s35, 1
      %s37 = scalar_select %p34, %s35, %s36
      %p40 = pneg %p34
      %p41 = scmp.eq.s32.totalorder %s9, 3
      %p42 = por %p40, %p41
      %p43 = scmp.ne.s32.totalorder %s35, %s38
      %p44 = scmp.eq.s32.totalorder %s9, 0
      %p45 = por %p43, %p44
      %p46 = scmp.ne.s32.totalorder %s35, %s38
      %p47 = scmp.eq.s32.totalorder %s14, 3
      %p48 = por %p46, %p47
      %p49 = scmp.ne.s32.totalorder %s38, %s39
      %p50 = scmp.eq.s32.totalorder %s14, 0
      %p51 = por %p49, %p50
      %p52 = scmp.ne.s32.totalorder %s38, %s39
      %p53 = scmp.eq.s32.totalorder %s15, 3
      %p54 = por %p52, %p53
      %p56 = scmp.ne.s32.totalorder %s39, %s55
      %p57 = scmp.eq.s32.totalorder %s15, 0
      %p58 = por %p56, %p57
      %s60 = sadd.s32 %s59, 1
      %p63 = scmp.eq.s32.totalorder %s9, 3
      %p64 = scmp.ne.s32.totalorder %s59, %s61
      %p65 = scmp.eq.s32.totalorder %s9, 0
      %p66 = por %p64, %p65
      %p67 = scmp.ne.s32.totalorder %s59, %s61
      %p68 = scmp.eq.s32.totalorder %s14, 3
      %p69 = por %p67, %p68
      %p70 = scmp.ne.s32.totalorder %s61, %s62
      %p71 = scmp.eq.s32.totalorder %s14, 0
      %p72 = por %p70, %p71
      %p73 = scmp.ne.s32.totalorder %s61, %s62
      %p74 = scmp.eq.s32.totalorder %s15, 3
      %p75 = por %p73, %p74
      %p77 = scmp.ne.s32.totalorder %s62, %s76
      %p78 = scmp.eq.s32.totalorder %s15, 0
      %p79 = por %p77, %p78
      %s81 = sadd.s32 %s80, 1
      %p84 = scmp.eq.s32.totalorder %s9, 3
      %p85 = scmp.ne.s32.totalorder %s80, %s82
      %p86 = scmp.eq.s32.totalorder %s9, 0
      %p87 = por %p85, %p86
      %p88 = scmp.ne.s32.totalorder %s80, %s82
      %p89 = scmp.eq.s32.totalorder %s14, 3
      %p90 = por %p88, %p89
      %p91 = scmp.ne.s32.totalorder %s82, %s83
      %p92 = scmp.eq.s32.totalorder %s14, 0
      %p93 = por %p91, %p92
      %p94 = scmp.ne.s32.totalorder %s82, %s83
      %p95 = scmp.eq.s32.totalorder %s15, 3
      %p96 = por %p94, %p95
      %p98 = scmp.ne.s32.totalorder %s83, %s97
      %p99 = scmp.eq.s32.totalorder %s15, 0
      %p100 = por %p98, %p99
      %s101 = ssub.s32 %s16, %s28
      %p102 = scmp.eq.s32.totalorder %s101, 0
      %s104 = sadd.s32 %s103, 1
      %s105 = scalar_select %p102, %s103, %s104
      %p108 = pneg %p102
      %p109 = scmp.eq.s32.totalorder %s9, 3
      %p110 = por %p108, %p109
      %p111 = scmp.ne.s32.totalorder %s103, %s106
      %p112 = scmp.eq.s32.totalorder %s9, 0
      %p113 = por %p111, %p112
      %p114 = scmp.ne.s32.totalorder %s103, %s106
      %p115 = scmp.eq.s32.totalorder %s14, 3
      %p116 = por %p114, %p115
      %p117 = scmp.ne.s32.totalorder %s106, %s107
      %p118 = scmp.eq.s32.totalorder %s14, 0
      %p119 = por %p117, %p118
      %p120 = scmp.ne.s32.totalorder %s106, %s107
      %p121 = scmp.eq.s32.totalorder %s15, 3
      %p122 = por %p120, %p121
      %p124 = scmp.ne.s32.totalorder %s107, %s123
      %p125 = scmp.eq.s32.totalorder %s15, 0
      %p126 = por %p124, %p125
      %p127 = scmp.le.s32.totalorder 1, %s9
      %p128 = scmp.lt.s32.totalorder %s9, 5
      %p129 = pnand %p127, %p128
      %p130 = pneg %p129
      // Predicated region
      $region9: #{wrapper_i3d_forward.2} parent=5 // pred_check
        _
      $region10: #{wrapper_i3d_forward.2} parent=5 // pred_check_branch
        %132 = sbr.rel (%p129) target = $region12
      $region11: #{wrapper_i3d_forward.2} parent=5 // pred_region
        %s133 = ssub.s32 %s9, 1
        // Predicated region
        $region13: #{wrapper_i3d_forward.2} parent=11 // pred_check
          %p134 = pneg %p72
        $region14: #{wrapper_i3d_forward.2} parent=11 // pred_check_branch
          %136 = sbr.rel (%p134) target = $region16
        $region15: #{wrapper_i3d_forward.2} parent=11 // pred_region
          _
        $region16: #{wrapper_i3d_forward.2} parent=11 // pred_fallthru
          _
        // Predicated region
        $region17: #{wrapper_i3d_forward.2} parent=11 // pred_check
          %p137 = pneg %p93
        $region18: #{wrapper_i3d_forward.2} parent=11 // pred_check_branch
          %139 = sbr.rel (%p137) target = $region20
        $region19: #{wrapper_i3d_forward.2} parent=11 // pred_region
          _
        $region20: #{wrapper_i3d_forward.2} parent=11 // pred_fallthru
          _
      $region12: #{wrapper_i3d_forward.2} parent=5 // pred_fallthru
        _
      %p140 = scmp.lt.s32.totalorder %s9, 4
      // Predicated region
      $region21: #{wrapper_i3d_forward.2} parent=5 // pred_check
        %p141 = pneg %p140
      $region22: #{wrapper_i3d_forward.2} parent=5 // pred_check_branch
        %143 = sbr.rel (%p141) target = $region24
      $region23: #{wrapper_i3d_forward.2} parent=5 // pred_region
        // Predicated region
        $region25: #{wrapper_i3d_forward.2} parent=23 // pred_check
          %p144 = pneg %p45
        $region26: #{wrapper_i3d_forward.2} parent=23 // pred_check_branch
          %146 = sbr.rel (%p144) target = $region28
        $region27: #{wrapper_i3d_forward.2} parent=23 // pred_region
          %s147 = sand.u32 %s35, 1
          %s148 = sand.u32 %s35, 1
          %s149 = smul.addr %s148, 8
          %s150 = scalar_lea.vmem [#allocation2], %s149
          %s151 = smul.u32 %s16, 2
          %s152 = sadd.s32 %s151, %s17
          %s153 = smul.u32 2, %s152
          %s154 = smul.addr %s153, 2
          %s155 = scalar_lea.vmem %s0, %s154
          // Predicated region
          $region29: #{wrapper_i3d_forward.2} parent=27 // pred_check
            _
          $region30: #{wrapper_i3d_forward.2} parent=27 // pred_check_branch
            %157 = sbr.rel (0) target = $region32
          $region31: #{wrapper_i3d_forward.2} parent=27 // pred_region
            // Predicated region
            $region33: #{wrapper_i3d_forward.2} parent=31 // pred_check
              _
            $region34: #{wrapper_i3d_forward.2} parent=31 // pred_check_branch
              %159 = sbr.rel target = $region36
            $region35: #{wrapper_i3d_forward.2} parent=31 // pred_region
              // Predicated region
              $region48: #{wrapper_i3d_forward.2} parent=35 // pred_check
                _
              $region49: #{wrapper_i3d_forward.2} parent=35 // pred_check_branch
                %177 = sbr.rel (0) target = $region51
              $region50: #{wrapper_i3d_forward.2} parent=35 // pred_region
                loop: start=0, step=1, limit=1
                $region52: #{wrapper_i3d_forward.2} parent=50 // loop_pre_header
                  _
                $region53: #{wrapper_i3d_forward.2} parent=50 // loop_header
                  %s179 = sphi 0, %s183
                  %p180 = scmp.ge.s32.totalorder %s179, 1
                  %s184 = sphi %s155, %s155
                  %s185 = sphi %s150, %s150
                $region54: #{wrapper_i3d_forward.2} parent=50 // loop_header_branch
                  %182 = sbr.rel (%p180) target = $region58
                $region55: #{wrapper_i3d_forward.2} parent=50 // loop_body
                  _
                $region56: #{wrapper_i3d_forward.2} parent=50 // loop_footer
                  %s183 = sadd.s32 1, %s179
                $region57: #{wrapper_i3d_forward.2} parent=50 // loop_footer_branch
                  %178 = sbr.rel target = $region53
                $region58: #{wrapper_i3d_forward.2} parent=50 // loop_exit
                  _
                %s187 = ssub.s32 16, 1
                loop: start=0, step=1, limit=1
                $region59: #{wrapper_i3d_forward.2} parent=50 // loop_pre_header
                  _
                $region60: #{wrapper_i3d_forward.2} parent=50 // loop_header
                  %s189 = sphi 0, %s193
                  %p190 = scmp.ge.s32.totalorder %s189, 1
                  %s194 = sphi %s155, %s155
                  %s195 = sphi %s150, %s150
                $region61: #{wrapper_i3d_forward.2} parent=50 // loop_header_branch
                  %192 = sbr.rel (%p190) target = $region65
                $region62: #{wrapper_i3d_forward.2} parent=50 // loop_body
                  %v196 = vld [vmem:[%s194] sm:%s187]
                  %197 = vst [vmem:[%s195] sm:%s187] %v196
                  %v198 = vld [vmem:[%s194 + $0x10] sm:%s187]
                  %199 = vst [vmem:[%s195 + $0x4] sm:%s187] %v198
                $region63: #{wrapper_i3d_forward.2} parent=50 // loop_footer
                  %s193 = sadd.s32 1, %s189
                $region64: #{wrapper_i3d_forward.2} parent=50 // loop_footer_branch
                  %188 = sbr.rel target = $region60
                $region65: #{wrapper_i3d_forward.2} parent=50 // loop_exit
                  _
              $region51: #{wrapper_i3d_forward.2} parent=35 // pred_fallthru
                _
            $region36: #{wrapper_i3d_forward.2} parent=31 // pred_fallthru
              _
            // Predicated region
            $region37: #{wrapper_i3d_forward.2} parent=31 // pred_check
              _
            $region38: #{wrapper_i3d_forward.2} parent=31 // pred_check_branch
              %161 = sbr.rel (0) target = $region40
            $region39: #{wrapper_i3d_forward.2} parent=31 // pred_region
              %s163 = ssub.s32 16, 1
              loop: start=0, step=1, limit=1
              $region41: #{wrapper_i3d_forward.2} parent=39 // loop_pre_header
                _
              $region42: #{wrapper_i3d_forward.2} parent=39 // loop_header
                %s165 = sphi 0, %s169
                %p166 = scmp.ge.s32.totalorder %s165, 1
                %s170 = sphi %s155, %s155
                %s171 = sphi %s150, %s150
              $region43: #{wrapper_i3d_forward.2} parent=39 // loop_header_branch
                %168 = sbr.rel (%p166) target = $region47
              $region44: #{wrapper_i3d_forward.2} parent=39 // loop_body
                %v172 = vld [vmem:[%s170] sm:%s163]
                %173 = vst [vmem:[%s171] sm:%s163] %v172
                %v174 = vld [vmem:[%s170 + $0x10] sm:%s163]
                %175 = vst [vmem:[%s171 + $0x4] sm:%s163] %v174
              $region45: #{wrapper_i3d_forward.2} parent=39 // loop_footer
                %s169 = sadd.s32 1, %s165
              $region46: #{wrapper_i3d_forward.2} parent=39 // loop_footer_branch
                %164 = sbr.rel target = $region42
              $region47: #{wrapper_i3d_forward.2} parent=39 // loop_exit
                _
            $region40: #{wrapper_i3d_forward.2} parent=31 // pred_fallthru
              _
          $region32: #{wrapper_i3d_forward.2} parent=27 // pred_fallthru
            _
          %200 = vnop
        $region28: #{wrapper_i3d_forward.2} parent=23 // pred_fallthru
          _
      $region24: #{wrapper_i3d_forward.2} parent=5 // pred_fallthru
        _
      %p201 = scmp.le.s32.totalorder 1, %s9
      %p202 = scmp.lt.s32.totalorder %s9, 5
      %p203 = pnand %p201, %p202
      %p204 = pneg %p203
      // Predicated region
      $region66: #{wrapper_i3d_forward.2} parent=5 // pred_check
        _
      $region67: #{wrapper_i3d_forward.2} parent=5 // pred_check_branch
        %206 = sbr.rel (%p203) target = $region69
      $region68: #{wrapper_i3d_forward.2} parent=5 // pred_region
        %s207 = ssub.s32 %s9, 1
        %s208 = sand.u32 %s38, 1
        %s209 = sand.u32 %s38, 1
        %s210 = smul.addr %s209, 8
        %s211 = scalar_lea.vmem [#allocation2], %s210
        // Predicated region
        $region70: #{wrapper_i3d_forward.2} parent=68 // pred_check
          %p212 = pneg %p51
        $region71: #{wrapper_i3d_forward.2} parent=68 // pred_check_branch
          %214 = sbr.rel (%p212) target = $region73
        $region72: #{wrapper_i3d_forward.2} parent=68 // pred_region
          _
        $region73: #{wrapper_i3d_forward.2} parent=68 // pred_fallthru
          _
        %s215 = sand.u32 %s38, 1
        %s216 = sand.u32 %s38, 1
        %s217 = smul.addr %s216, 8
        %s218 = scalar_lea.vmem [#allocation2], %s217
        %p219 = pneg %p51
        %p220 = pneg %p48
        %p221 = pneg %p72
        %p222 = pneg %p69
        %p223 = pneg %p93
        %p224 = pneg %p90
        %p225 = pneg %p119
        %p226 = pneg %p116
        %p227 = scmp.lt.s32.totalorder %s18, 1
        %s228 = scalar_select %p227, %s18, 1
        %s229 = smul.addr %s228, 2
        %s230 = scalar_lea.vmem %s3, %s229
        %s231 = smul.u32 %s18, 2
        %s232 = sadd.s32 %s231, %s19
        %s233 = smul.u32 2, %s232
        %p234 = scmp.lt.s32.totalorder %s18, 1
        %s235 = scalar_select %p234, %s18, 1
        %s236 = smul.addr %s235, 2
        %s237 = scalar_lea.vmem %s3, %s236
        %p239 = scmp.eq.s32.totalorder %s19, 0
        // Predicated region
        $region74: #{wrapper_i3d_forward.2} parent=68 // pred_check
          %p240 = pneg %p239
        $region75: #{wrapper_i3d_forward.2} parent=68 // pred_check_branch
          %242 = sbr.rel (%p240) target = $region77
        $region76: #{wrapper_i3d_forward.2} parent=68 // pred_region
          %vm243 = vcmask 517120
          %244 = vst.msk [vmem:[%s237] sm:$0x3] %vm243, 0.0
        $region77: #{wrapper_i3d_forward.2} parent=68 // pred_fallthru
          _
        %v245 = vld [vmem:[%s1] sm:$0xf]
        %v246 = vld [vmem:[%s1 + $0x4] sm:$0xf]
        %v247 = vld [vmem:[%s1 + $0x8] sm:$0xf]
        %v248 = vld [vmem:[%s1 + $0xc] sm:$0xf]
        %v249 = vld [vmem:[%s1 + $0x10] sm:$0xf]
        %v250 = vld [vmem:[%s1 + $0x14] sm:$0xf]
        %v251 = vld [vmem:[%s1 + $0x18] sm:$0xf]
        %v252 = vld [vmem:[%s1 + $0x1c] sm:$0xf]
        %v253 = vld [vmem:[%s2] sm:$0xff]
        %v254 = vld [vmem:[%s2 + $0x8] sm:$0xff]
        %v255 = vld [vmem:[%s2 + $0x10] sm:$0xff]
        %v256 = vld [vmem:[%s2 + $0x18] sm:$0xff]
        %v257 = vld [vmem:[%s2 + $0x20] sm:$0xff]
        %v258 = vld [vmem:[%s2 + $0x28] sm:$0xff]
        %v259 = vld [vmem:[%s2 + $0x30] sm:$0xff]
        %v260 = vld [vmem:[%s2 + $0x38] sm:$0xff]
        %262 = vset.pattern.permute.xlu0 0
        %263 = vperm.xlu0 %262, %v253
        %v264 = vpop.permute.xlu0 %263
        %267 = vset.pattern.permute.xlu0 0
        %268 = vperm.xlu0 %267, %v254
        %v269 = vpop.permute.xlu0 %268
        %272 = vset.pattern.permute.xlu0 0
        %273 = vperm.xlu0 %272, %v255
        %v274 = vpop.permute.xlu0 %273
        %277 = vset.pattern.permute.xlu0 0
        %278 = vperm.xlu0 %277, %v256
        %v279 = vpop.permute.xlu0 %278
        %282 = vset.pattern.permute.xlu0 0
        %283 = vperm.xlu0 %282, %v257
        %v284 = vpop.permute.xlu0 %283
        %287 = vset.pattern.permute.xlu0 0
        %288 = vperm.xlu0 %287, %v258
        %v289 = vpop.permute.xlu0 %288
        %292 = vset.pattern.permute.xlu0 0
        %293 = vperm.xlu0 %292, %v259
        %v294 = vpop.permute.xlu0 %293
        %297 = vset.pattern.permute.xlu0 0
        %298 = vperm.xlu0 %297, %v260
        %v299 = vpop.permute.xlu0 %298
        loop: start=0, step=1, limit=2
        $region78: #{wrapper_i3d_forward.2} parent=68 // loop_pre_header
          _
        $region79: #{wrapper_i3d_forward.2} parent=68 // loop_header
          %s302 = sphi 0, %s306
          %p303 = scmp.ge.s32.totalorder %s302, 2
          %v307 = vphi 0.0, %v652
        $region80: #{wrapper_i3d_forward.2} parent=68 // loop_header_branch
          %305 = sbr.rel (%p303) target = $region84
        $region81: #{wrapper_i3d_forward.2} parent=68 // loop_body
          %s308 = smul.u32 %s302, 128
          %s309 = sshra.s32 %s308, 7
          %s310 = sand.u32 %s308, 127
          %s311 = smul.addr %s309, 2
          %s312 = scalar_lea.vmem %s211, %s311 [#allocation2]
          %v313 = vld [vmem:[%s312] sm:$0x3]
          %v322 = vunpack.c.l.b16 %v245
          %v323 = vunpack.c.l.b16 %v246
          %v324 = vunpack.c.l.b16 %v247
          %v325 = vunpack.c.l.b16 %v248
          %v326 = vunpack.c.l.b16 %v249
          %v327 = vunpack.c.l.b16 %v250
          %v328 = vunpack.c.l.b16 %v251
          %v329 = vunpack.c.l.b16 %v252
          %v330 = vpack.c.b16 %v323, %v322
          %v331 = vpack.c.b16 %v325, %v324
          %v332 = vpack.c.b16 %v327, %v326
          %v333 = vpack.c.b16 %v329, %v328
          %vm334 = vcmask 23552
          %v336 = vsel %vm334, %v330, 0
          %v339 = vsel %vm334, %v331, 0
          %v342 = vsel %vm334, %v332, 0
          %v345 = vsel %vm334, %v333, 0
          %vm347 = vcmask 1040384
          %vm348 = vcmask 1041408
          %v349 = vsel %vm347, 4294967295, 65535
          %v350 = vsel %vm348, %v349, 0
          %v352 = vand.u32 %v313, %v350
          %354 = vmatprep.subr.bf16.mxu0 0
          %355 = vmatpush1.bf16.msra.mxu0 0
          %356 = vmatprep.subr.bf16.mxu0 0
          %357 = vmatpush1.bf16.msra.mxu0 0
          %358 = vmatprep.subr.bf16.mxu0 0
          %359 = vmatpush1.bf16.msra.mxu0 0
          %360 = vmatprep.subr.bf16.mxu0 0
          %361 = vmatpush1.bf16.msra.mxu0 0
          %362 = vmatprep.subr.bf16.mxu0 0
          %363 = vmatpush1.bf16.msra.mxu0 0
          %364 = vmatprep.subr.bf16.mxu0 0
          %365 = vmatpush1.bf16.msra.mxu0 0
          %366 = vmatprep.subr.bf16.mxu0 0
          %367 = vmatpush1.bf16.msra.mxu0 0
          %368 = vmatprep.subr.bf16.mxu0 0
          %369 = vmatpush1.bf16.msra.mxu0 %v352
          %370 = vmatprep.subr.bf16.mxu0 0
          %371 = vmatpush2.bf16.msra.mxu0 0
          %372 = vmatprep.subr.bf16.mxu0 0
          %373 = vmatpush2.bf16.msra.mxu0 0
          %374 = vmatprep.subr.bf16.mxu0 0
          %375 = vmatpush2.bf16.msra.mxu0 0
          %376 = vmatprep.subr.bf16.mxu0 0
          %377 = vmatpush2.bf16.msra.mxu0 0
          %378 = vmatprep.subr.bf16.mxu0 0
          %379 = vmatpush2.bf16.msra.mxu0 0
          %380 = vmatprep.subr.bf16.mxu0 0
          %381 = vmatpush2.bf16.msra.mxu0 0
          %382 = vmatprep.subr.bf16.mxu0 0
          %383 = vmatpush2.bf16.msra.mxu0 0
          %384 = vmatprep.subr.bf16.mxu0 0
          %385 = vmatpush2.bf16.msra.mxu0 0
          %386 = vmatprep.mubr.bf16.mxu0 0
          %387 = vmatmul.mubr.bf16.gmra.mxu0 %v336
          %v388 = vpop.f32.mrf.mxu0
          %v389 = vadd.f32 %v264, %v388
          %v390 = vpop.f32.mrf.mxu0
          %v391 = vpop.f32.mrf.mxu0
          %v392 = vadd.f32 %v269, %v391
          %v393 = vpop.f32.mrf.mxu0
          %394 = vmatprep.mubr.bf16.mxu0 0
          %395 = vmatmul.mubr.bf16.gmra.mxu0 %v339
          %v396 = vpop.f32.mrf.mxu0
          %v397 = vadd.f32 %v274, %v396
          %v398 = vpop.f32.mrf.mxu0
          %v399 = vpop.f32.mrf.mxu0
          %v400 = vadd.f32 %v279, %v399
          %v401 = vpop.f32.mrf.mxu0
          %402 = vmatprep.mubr.bf16.mxu0 0
          %403 = vmatmul.mubr.bf16.gmra.mxu0 %v342
          %v404 = vpop.f32.mrf.mxu0
          %v405 = vadd.f32 %v284, %v404
          %v406 = vpop.f32.mrf.mxu0
          %v407 = vpop.f32.mrf.mxu0
          %v408 = vadd.f32 %v289, %v407
          %v409 = vpop.f32.mrf.mxu0
          %410 = vmatprep.mubr.bf16.mxu0 0
          %411 = vmatmul.mubr.bf16.gmra.mxu0 %v345
          %v412 = vpop.f32.mrf.mxu0
          %v413 = vadd.f32 %v294, %v412
          %v414 = vpop.f32.mrf.mxu0
          %v415 = vpop.f32.mrf.mxu0
          %v416 = vadd.f32 %v299, %v415
          %v417 = vpop.f32.mrf.mxu0
          %418 = vdwg.mxu0
          %v419 = vmax.f32 %v389, 0.0
          %v420 = vmax.f32 %v392, 0.0
          %v421 = vmax.f32 %v397, 0.0
          %v422 = vmax.f32 %v400, 0.0
          %v423 = vmax.f32 %v405, 0.0
          %v424 = vmax.f32 %v408, 0.0
          %v425 = vmax.f32 %v413, 0.0
          %v426 = vmax.f32 %v416, 0.0
          %427 = vadd.xlane.f32.xlu0 %v419
          %v428 = vpop.xlane.xlu0 %427
          %429 = vadd.xlane.f32.xlu0 %v420
          %v430 = vpop.xlane.xlu0 %429
          %431 = vadd.xlane.f32.xlu0 %v421
          %v432 = vpop.xlane.xlu0 %431
          %433 = vadd.xlane.f32.xlu0 %v422
          %v434 = vpop.xlane.xlu0 %433
          %435 = vadd.xlane.f32.xlu0 %v423
          %v436 = vpop.xlane.xlu0 %435
          %437 = vadd.xlane.f32.xlu0 %v424
          %v438 = vpop.xlane.xlu0 %437
          %439 = vadd.xlane.f32.xlu0 %v425
          %v440 = vpop.xlane.xlu0 %439
          %441 = vadd.xlane.f32.xlu0 %v426
          %v442 = vpop.xlane.xlu0 %441
          %s443 = sadd.s32 %s309, 2
          %s444 = smul.addr %s443, 2
          %s445 = scalar_lea.vmem %s211, %s444 [#allocation2]
          %v446 = vld [vmem:[%s445] sm:$0x3]
          %v448 = vand.u32 %v446, %v350
          %450 = vmatprep.subr.bf16.mxu0 0
          %451 = vmatpush1.bf16.msra.mxu0 0
          %452 = vmatprep.subr.bf16.mxu0 0
          %453 = vmatpush1.bf16.msra.mxu0 0
          %454 = vmatprep.subr.bf16.mxu0 0
          %455 = vmatpush1.bf16.msra.mxu0 0
          %456 = vmatprep.subr.bf16.mxu0 0
          %457 = vmatpush1.bf16.msra.mxu0 0
          %458 = vmatprep.subr.bf16.mxu0 0
          %459 = vmatpush1.bf16.msra.mxu0 0
          %460 = vmatprep.subr.bf16.mxu0 0
          %461 = vmatpush1.bf16.msra.mxu0 0
          %462 = vmatprep.subr.bf16.mxu0 0
          %463 = vmatpush1.bf16.msra.mxu0 0
          %464 = vmatprep.subr.bf16.mxu0 0
          %465 = vmatpush1.bf16.msra.mxu0 %v448
          %466 = vmatprep.subr.bf16.mxu0 0
          %467 = vmatpush2.bf16.msra.mxu0 0
          %468 = vmatprep.subr.bf16.mxu0 0
          %469 = vmatpush2.bf16.msra.mxu0 0
          %470 = vmatprep.subr.bf16.mxu0 0
          %471 = vmatpush2.bf16.msra.mxu0 0
          %472 = vmatprep.subr.bf16.mxu0 0
          %473 = vmatpush2.bf16.msra.mxu0 0
          %474 = vmatprep.subr.bf16.mxu0 0
          %475 = vmatpush2.bf16.msra.mxu0 0
          %476 = vmatprep.subr.bf16.mxu0 0
          %477 = vmatpush2.bf16.msra.mxu0 0
          %478 = vmatprep.subr.bf16.mxu0 0
          %479 = vmatpush2.bf16.msra.mxu0 0
          %480 = vmatprep.subr.bf16.mxu0 0
          %481 = vmatpush2.bf16.msra.mxu0 0
          %482 = vmatprep.mubr.bf16.mxu0 0
          %483 = vmatmul.mubr.bf16.gmra.mxu0 %v336
          %v484 = vpop.f32.mrf.mxu0
          %v485 = vadd.f32 %v264, %v484
          %v486 = vpop.f32.mrf.mxu0
          %v487 = vpop.f32.mrf.mxu0
          %v488 = vadd.f32 %v269, %v487
          %v489 = vpop.f32.mrf.mxu0
          %490 = vmatprep.mubr.bf16.mxu0 0
          %491 = vmatmul.mubr.bf16.gmra.mxu0 %v339
          %v492 = vpop.f32.mrf.mxu0
          %v493 = vadd.f32 %v274, %v492
          %v494 = vpop.f32.mrf.mxu0
          %v495 = vpop.f32.mrf.mxu0
          %v496 = vadd.f32 %v279, %v495
          %v497 = vpop.f32.mrf.mxu0
          %498 = vmatprep.mubr.bf16.mxu0 0
          %499 = vmatmul.mubr.bf16.gmra.mxu0 %v342
          %v500 = vpop.f32.mrf.mxu0
          %v501 = vadd.f32 %v284, %v500
          %v502 = vpop.f32.mrf.mxu0
          %v503 = vpop.f32.mrf.mxu0
          %v504 = vadd.f32 %v289, %v503
          %v505 = vpop.f32.mrf.mxu0
          %506 = vmatprep.mubr.bf16.mxu0 0
          %507 = vmatmul.mubr.bf16.gmra.mxu0 %v345
          %v508 = vpop.f32.mrf.mxu0
          %v509 = vadd.f32 %v294, %v508
          %v510 = vpop.f32.mrf.mxu0
          %v511 = vpop.f32.mrf.mxu0
          %v512 = vadd.f32 %v299, %v511
          %v513 = vpop.f32.mrf.mxu0
          %514 = vdwg.mxu0
          %v515 = vmax.f32 %v485, 0.0
          %v516 = vmax.f32 %v488, 0.0
          %v517 = vmax.f32 %v493, 0.0
          %v518 = vmax.f32 %v496, 0.0
          %v519 = vmax.f32 %v501, 0.0
          %v520 = vmax.f32 %v504, 0.0
          %v521 = vmax.f32 %v509, 0.0
          %v522 = vmax.f32 %v512, 0.0
          %523 = vadd.xlane.f32.xlu0 %v515
          %v524 = vpop.xlane.xlu0 %523
          %525 = vadd.xlane.f32.xlu0 %v516
          %v526 = vpop.xlane.xlu0 %525
          %527 = vadd.xlane.f32.xlu0 %v517
          %v528 = vpop.xlane.xlu0 %527
          %529 = vadd.xlane.f32.xlu0 %v518
          %v530 = vpop.xlane.xlu0 %529
          %531 = vadd.xlane.f32.xlu0 %v519
          %v532 = vpop.xlane.xlu0 %531
          %533 = vadd.xlane.f32.xlu0 %v520
          %v534 = vpop.xlane.xlu0 %533
          %535 = vadd.xlane.f32.xlu0 %v521
          %v536 = vpop.xlane.xlu0 %535
          %537 = vadd.xlane.f32.xlu0 %v522
          %v538 = vpop.xlane.xlu0 %537
          %v547 = vlaneseq
          %v548 = vand.u32 %v547, 127
          %v549 = vlaneseq
          %v550 = vshrl.u32 %v549, 7
          %v551 = vsub.s32 %v548, %v550
          %v552 = vrot.slane %v428, %v551
          %v553 = vadd.s32 %v548, 4294967288
          %v554 = vlaneseq
          %v555 = vshrl.u32 %v554, 7
          %v556 = vsub.s32 %v553, %v555
          %v557 = vrot.slane %v430, %v556
          %vm558 = vcmask 130112
          %v559 = vsel %vm558, %v557, %v552
          %v560 = vadd.s32 %v548, 4294967280
          %v561 = vlaneseq
          %v562 = vshrl.u32 %v561, 7
          %v563 = vsub.s32 %v560, %v562
          %v564 = vrot.slane %v432, %v563
          %vm565 = vcmask 195712
          %v566 = vsel %vm565, %v564, %v559
          %v567 = vadd.s32 %v548, 4294967272
          %v568 = vlaneseq
          %v569 = vshrl.u32 %v568, 7
          %v570 = vsub.s32 %v567, %v569
          %v571 = vrot.slane %v434, %v570
          %vm572 = vcmask 261312
          %v573 = vsel %vm572, %v571, %v566
          %v574 = vadd.s32 %v548, 4294967264
          %v575 = vlaneseq
          %v576 = vshrl.u32 %v575, 7
          %v577 = vsub.s32 %v574, %v576
          %v578 = vrot.slane %v436, %v577
          %vm579 = vcmask 326912
          %v580 = vsel %vm579, %v578, %v573
          %v581 = vadd.s32 %v548, 4294967256
          %v582 = vlaneseq
          %v583 = vshrl.u32 %v582, 7
          %v584 = vsub.s32 %v581, %v583
          %v585 = vrot.slane %v438, %v584
          %vm586 = vcmask 392512
          %v587 = vsel %vm586, %v585, %v580
          %v588 = vadd.s32 %v548, 4294967248
          %v589 = vlaneseq
          %v590 = vshrl.u32 %v589, 7
          %v591 = vsub.s32 %v588, %v590
          %v592 = vrot.slane %v440, %v591
          %vm593 = vcmask 458112
          %v594 = vsel %vm593, %v592, %v587
          %v595 = vadd.s32 %v548, 4294967240
          %v596 = vlaneseq
          %v597 = vshrl.u32 %v596, 7
          %v598 = vsub.s32 %v595, %v597
          %v599 = vrot.slane %v442, %v598
          %vm600 = vcmask 523712
          %v601 = vsel %vm600, %v599, %v594
          %v611 = vlaneseq
          %v612 = vshrl.u32 %v611, 7
          %v613 = vsub.s32 %v548, %v612
          %v614 = vrot.slane %v524, %v613
          %v615 = vlaneseq
          %v616 = vshrl.u32 %v615, 7
          %v617 = vsub.s32 %v553, %v616
          %v618 = vrot.slane %v526, %v617
          %v619 = vsel %vm558, %v618, %v614
          %v620 = vlaneseq
          %v621 = vshrl.u32 %v620, 7
          %v622 = vsub.s32 %v560, %v621
          %v623 = vrot.slane %v528, %v622
          %v624 = vsel %vm565, %v623, %v619
          %v625 = vlaneseq
          %v626 = vshrl.u32 %v625, 7
          %v627 = vsub.s32 %v567, %v626
          %v628 = vrot.slane %v530, %v627
          %v629 = vsel %vm572, %v628, %v624
          %v630 = vlaneseq
          %v631 = vshrl.u32 %v630, 7
          %v632 = vsub.s32 %v574, %v631
          %v633 = vrot.slane %v532, %v632
          %v634 = vsel %vm579, %v633, %v629
          %v635 = vlaneseq
          %v636 = vshrl.u32 %v635, 7
          %v637 = vsub.s32 %v581, %v636
          %v638 = vrot.slane %v534, %v637
          %v639 = vsel %vm586, %v638, %v634
          %v640 = vlaneseq
          %v641 = vshrl.u32 %v640, 7
          %v642 = vsub.s32 %v588, %v641
          %v643 = vrot.slane %v536, %v642
          %v644 = vsel %vm593, %v643, %v639
          %v645 = vlaneseq
          %v646 = vshrl.u32 %v645, 7
          %v647 = vsub.s32 %v595, %v646
          %v648 = vrot.slane %v538, %v647
          %v649 = vsel %vm600, %v648, %v644
          %v651 = vsel %vm347, %v601, %v649
          %v652 = vadd.f32 %v307, %v651
        $region82: #{wrapper_i3d_forward.2} parent=68 // loop_footer
          %s306 = sadd.s32 1, %s302
        $region83: #{wrapper_i3d_forward.2} parent=68 // loop_footer_branch
          %301 = sbr.rel target = $region79
        $region84: #{wrapper_i3d_forward.2} parent=68 // loop_exit
          _
        %v653 = vld [vmem:[%s237] sm:$0x3]
        %v654 = vadd.f32 %v653, %v307
        %vm655 = vcmask 517120
        %656 = vst.msk [vmem:[%s237] sm:$0x3] %vm655, %v654
        %p657 = scmp.lt.s32.totalorder %s18, 1
        %s658 = scalar_select %p657, %s18, 1
        %s659 = smul.addr %s658, 2
        %s660 = scalar_lea.vmem %s3, %s659
        // Predicated region
        $region85: #{wrapper_i3d_forward.2} parent=68 // pred_check
          %p661 = pneg %p116
        $region86: #{wrapper_i3d_forward.2} parent=68 // pred_check_branch
          %663 = sbr.rel (%p661) target = $region88
        $region87: #{wrapper_i3d_forward.2} parent=68 // pred_region
          _
        $region88: #{wrapper_i3d_forward.2} parent=68 // pred_fallthru
          _
      $region69: #{wrapper_i3d_forward.2} parent=5 // pred_fallthru
        _
      %p664 = scmp.le.s32.totalorder 2, %s9
      // Predicated region
      $region89: #{wrapper_i3d_forward.2} parent=5 // pred_check
        %p665 = pneg %p664
      $region90: #{wrapper_i3d_forward.2} parent=5 // pred_check_branch
        %667 = sbr.rel (%p665) target = $region92
      $region91: #{wrapper_i3d_forward.2} parent=5 // pred_region
        %s668 = ssub.s32 %s9, 2
        // Predicated region
        $region93: #{wrapper_i3d_forward.2} parent=91 // pred_check
          %p669 = pneg %p122
        $region94: #{wrapper_i3d_forward.2} parent=91 // pred_check_branch
          %671 = sbr.rel (%p669) target = $region96
        $region95: #{wrapper_i3d_forward.2} parent=91 // pred_region
          %p672 = scmp.lt.s32.totalorder %s20, 1
          %s673 = scalar_select %p672, %s20, 1
          %s674 = smul.addr %s673, 2
          %s675 = scalar_lea.vmem %s3, %s674
        $region96: #{wrapper_i3d_forward.2} parent=91 // pred_fallthru
          _
      $region92: #{wrapper_i3d_forward.2} parent=5 // pred_fallthru
        _
    $region6: #{wrapper_i3d_forward.2} parent=1 // loop_footer
      %s13 = sadd.s32 1, %s9
    $region7: #{wrapper_i3d_forward.2} parent=1 // loop_footer_branch
      %8 = sbr.rel target = $region3
    $region8: #{wrapper_i3d_forward.2} parent=1 // loop_exit
      _

// kernel: wrapper_i3d_forward.3
$region0: #{wrapper_i3d_forward.3}
  #allocation0 [shape = 'u32[]', space=smem, size = 0x4, offset = 0x4, fixed_abs, tag = 'smem constant byte address 0x4 - core index']
  #allocation1 [shape = 'u32[144,128]{1,0:T(1,128)}', space=vmem, size = 0x12000, scoped, tag = 'internal scratch']
  %s0 = inlined_call_operand.vmem [shape: f32[2,2,64], index: 0, kind: input, shape index: {}]
  %s1 = inlined_call_operand.hbm [shape: f32[1,64], index: 1, kind: input, shape index: {}]
  %s2 = inlined_call_operand.hbm [shape: bf16[64,2048], index: 2, kind: input, shape index: {}]
  %s3 = inlined_call_operand.hbm [shape: f32[1,2048], index: 3, kind: input, shape index: {}]
  %s4 = inlined_call_operand.hbm [shape: bf16[2048,128], index: 4, kind: input, shape index: {}]
  %s5 = inlined_call_operand.hbm [shape: f32[1,128], index: 5, kind: input, shape index: {}]
  %s6 = inlined_call_operand.hbm [shape: bf16[2048,512], index: 6, kind: input, shape index: {}]
  %s7 = inlined_call_operand.hbm [shape: f32[1,512], index: 7, kind: input, shape index: {}]
  %s8 = inlined_call_operand.hbm [shape: f32[1,512], index: 8, kind: input, shape index: {}]
  %s9 = inlined_call_operand.hbm [shape: f32[1,512], index: 9, kind: input, shape index: {}]
  %s10 = inlined_call_operand.hbm [shape: bf16[512,128], index: 10, kind: input, shape index: {}]
  %s11 = inlined_call_operand.hbm [shape: f32[1,128], index: 11, kind: input, shape index: {}]
  %s12 = inlined_call_operand.hbm [shape: f32[1,128], index: 12, kind: input, shape index: {}]
  %s13 = inlined_call_operand.hbm [shape: f32[2,128], index: 13, kind: output, shape index: {0}]
  %s14 = inlined_call_operand.hbm [shape: f32[2,128], index: 14, kind: output, shape index: {1}]
  %15 = xla_tuple %s13, %s14
  %s16 = sld [smem:[#allocation0]]
  $region118: #{wrapper_i3d_forward.3} parent=0
    _
  %s18 = ssub.s32 1, %s16
  %s19 = scalar_select 0, %s18, %s16
  $region1: #{wrapper_i3d_forward.3} parent=0
    #allocation2 [shape = 'u8[512]{0}', space=vmem, size = 0x400, scoped, tag = 'input window, operand 1, single buffered']
    #allocation3 [shape = 's32[1]{0}', space=sflag, size = 0x4, scoped, tag = 'scoped memory for wrapper_i3d_forward.3']
    #allocation4 [shape = 's32[1]{0}', space=sflag, size = 0x4, scoped, tag = 'scoped memory for wrapper_i3d_forward.3']
    #allocation5 [shape = 'u8[262144]{0}', space=vmem, size = 0x40000, scoped, tag = 'input window, operand 2, single buffered']
    #allocation6 [shape = 's32[1]{0}', space=sflag, size = 0x4, scoped, tag = 'scoped memory for wrapper_i3d_forward.3']
    #allocation7 [shape = 'u8[8192]{0}', space=vmem, size = 0x2000, scoped, tag = 'input window, operand 3, single buffered']
    #allocation8 [shape = 'u8[524288]{0}', space=vmem, size = 0x80000, scoped, tag = 'input window, operand 4, single buffered']
    #allocation9 [shape = 's32[1]{0}', space=sflag, size = 0x4, scoped, tag = 'scoped memory for wrapper_i3d_forward.3']
    #allocation10 [shape = 'u8[512]{0}', space=vmem, size = 0x400, scoped, tag = 'input window, operand 5, single buffered']
    #allocation11 [shape = 'u8[2097152]{0}', space=vmem, size = 0x200000, scoped, tag = 'input window, operand 6, single buffered']
    #allocation12 [shape = 's32[1]{0}', space=sflag, size = 0x4, scoped, tag = 'scoped memory for wrapper_i3d_forward.3']
    #allocation13 [shape = 'u8[2048]{0}', space=vmem, size = 0x800, scoped, tag = 'input window, operand 7, single buffered']
    #allocation14 [shape = 'u8[2048]{0}', space=vmem, size = 0x800, scoped, tag = 'input window, operand 8, single buffered']
    #allocation15 [shape = 's32[1]{0}', space=sflag, size = 0x4, scoped, tag = 'scoped memory for wrapper_i3d_forward.3']
    #allocation16 [shape = 'u8[2048]{0}', space=vmem, size = 0x800, scoped, tag = 'input window, operand 9, single buffered']
    #allocation17 [shape = 'u8[131072]{0}', space=vmem, size = 0x20000, scoped, tag = 'input window, operand 10, single buffered']
    #allocation18 [shape = 's32[1]{0}', space=sflag, size = 0x4, scoped, tag = 'scoped memory for wrapper_i3d_forward.3']
    #allocation19 [shape = 'u8[512]{0}', space=vmem, size = 0x400, scoped, tag = 'input window, operand 11, single buffered']
    #allocation20 [shape = 'u8[512]{0}', space=vmem, size = 0x400, scoped, tag = 'input window, operand 12, single buffered']
    #allocation21 [shape = 's32[1]{0}', space=sflag, size = 0x4, scoped, tag = 'scoped memory for wrapper_i3d_forward.3']
    #allocation22 [shape = 'u8[1024]{0}', space=vmem, size = 0x400, scoped, tag = 'output window, operand 0, single buffered']
    #allocation23 [shape = 'u8[1024]{0}', space=vmem, size = 0x400, scoped, tag = 'output window, operand 1, single buffered']
    #allocation24 [shape = 's32[1]{0}', space=sflag, size = 0x4, scoped, tag = 'scoped memory for wrapper_i3d_forward.3']
    %20 = vsyncpa [#allocation3], 0
    %21 = vsyncpa [#allocation6], 0
    %22 = vsyncpa [#allocation9], 0
    %23 = vsyncpa [#allocation12], 0
    %24 = vsyncpa [#allocation15], 0
    %25 = vsyncpa [#allocation18], 0
    %26 = vsyncpa [#allocation21], 0
    %27 = vsyncpa [#allocation4], 0
    %28 = vsyncpa [#allocation24], 0
    // Predicated region
    $region2: #{wrapper_i3d_forward.3} parent=1 // pred_check
      _
    $region3: #{wrapper_i3d_forward.3} parent=1 // pred_check_branch
      %30 = sbr.rel (0) target = $region5
    $region4: #{wrapper_i3d_forward.3} parent=1 // pred_region
      _
    $region5: #{wrapper_i3d_forward.3} parent=1 // pred_fallthru
      _
    // Predicated region
    $region6: #{wrapper_i3d_forward.3} parent=1 // pred_check
      _
    $region7: #{wrapper_i3d_forward.3} parent=1 // pred_check_branch
      %32 = sbr.rel (0) target = $region9
    $region8: #{wrapper_i3d_forward.3} parent=1 // pred_region
      %s34 = ssub.s32 16, 16
      %35 = vsyncadd [#allocation3], %s34
      %s37 = sshll.u32 [#allocation2], 4
      %s38 = int_to_ptr.vmem [resolvable:$true] %s37
      %40 = dma.hbm_to_vmem [thread:$0]  %s1, 16, %s38, [#allocation3]
    $region9: #{wrapper_i3d_forward.3} parent=1 // pred_fallthru
      _
    // Predicated region
    $region10: #{wrapper_i3d_forward.3} parent=1 // pred_check
      _
    $region11: #{wrapper_i3d_forward.3} parent=1 // pred_check_branch
      %42 = sbr.rel (0) target = $region13
    $region12: #{wrapper_i3d_forward.3} parent=1 // pred_region
      %s44 = ssub.s32 8192, 8192
      %45 = vsyncadd [#allocation6], %s44
      %s46 = sshll.u32 [#allocation5], 4
      %s47 = int_to_ptr.vmem [resolvable:$true] %s46
      %52 = dma.hbm_to_vmem [thread:$0]  %s2, 8192, %s47, [#allocation6], 1024, 1024, 64
    $region13: #{wrapper_i3d_forward.3} parent=1 // pred_fallthru
      _
    // Predicated region
    $region14: #{wrapper_i3d_forward.3} parent=1 // pred_check
      _
    $region15: #{wrapper_i3d_forward.3} parent=1 // pred_check_branch
      %54 = sbr.rel (0) target = $region17
    $region16: #{wrapper_i3d_forward.3} parent=1 // pred_region
      %s56 = ssub.s32 256, 256
      %57 = vsyncadd [#allocation6], %s56
      %s59 = sshll.u32 [#allocation7], 4
      %s60 = int_to_ptr.vmem [resolvable:$true] %s59
      %62 = dma.hbm_to_vmem [thread:$0]  %s3, 256, %s60, [#allocation6]
    $region17: #{wrapper_i3d_forward.3} parent=1 // pred_fallthru
      _
    // Predicated region
    $region18: #{wrapper_i3d_forward.3} parent=1 // pred_check
      _
    $region19: #{wrapper_i3d_forward.3} parent=1 // pred_check_branch
      %64 = sbr.rel (0) target = $region21
    $region20: #{wrapper_i3d_forward.3} parent=1 // pred_region
      %s66 = ssub.s32 16384, 16384
      %67 = vsyncadd [#allocation9], %s66
      %s68 = sshll.u32 [#allocation8], 4
      %s69 = int_to_ptr.vmem [resolvable:$true] %s68
      %74 = dma.hbm_to_vmem [thread:$0]  %s4, 16384, %s69, [#allocation9], 64, 64, 4
    $region21: #{wrapper_i3d_forward.3} parent=1 // pred_fallthru
      _
    // Predicated region
    $region22: #{wrapper_i3d_forward.3} parent=1 // pred_check
      _
    $region23: #{wrapper_i3d_forward.3} parent=1 // pred_check_branch
      %76 = sbr.rel (0) target = $region25
    $region24: #{wrapper_i3d_forward.3} parent=1 // pred_region
      %s78 = ssub.s32 16, 16
      %79 = vsyncadd [#allocation9], %s78
      %s81 = sshll.u32 [#allocation10], 4
      %s82 = int_to_ptr.vmem [resolvable:$true] %s81
      %84 = dma.hbm_to_vmem [thread:$0]  %s5, 16, %s82, [#allocation9]
    $region25: #{wrapper_i3d_forward.3} parent=1 // pred_fallthru
      _
    // Predicated region
    $region26: #{wrapper_i3d_forward.3} parent=1 // pred_check
      _
    $region27: #{wrapper_i3d_forward.3} parent=1 // pred_check_branch
      %86 = sbr.rel (0) target = $region29
    $region28: #{wrapper_i3d_forward.3} parent=1 // pred_region
      %s88 = ssub.s32 65536, 65536
      %89 = vsyncadd [#allocation12], %s88
      %s90 = sshll.u32 [#allocation11], 4
      %s91 = int_to_ptr.vmem [resolvable:$true] %s90
      %96 = dma.hbm_to_vmem [thread:$0]  %s6, 65536, %s91, [#allocation12], 256, 256, 16
    $region29: #{wrapper_i3d_forward.3} parent=1 // pred_fallthru
      _
    // Predicated region
    $region30: #{wrapper_i3d_forward.3} parent=1 // pred_check
      _
    $region31: #{wrapper_i3d_forward.3} parent=1 // pred_check_branch
      %98 = sbr.rel (0) target = $region33
    $region32: #{wrapper_i3d_forward.3} parent=1 // pred_region
      %s100 = ssub.s32 64, 64
      %101 = vsyncadd [#allocation12], %s100
      %s103 = sshll.u32 [#allocation13], 4
      %s104 = int_to_ptr.vmem [resolvable:$true] %s103
      %106 = dma.hbm_to_vmem [thread:$0]  %s7, 64, %s104, [#allocation12]
    $region33: #{wrapper_i3d_forward.3} parent=1 // pred_fallthru
      _
    // Predicated region
    $region34: #{wrapper_i3d_forward.3} parent=1 // pred_check
      _
    $region35: #{wrapper_i3d_forward.3} parent=1 // pred_check_branch
      %108 = sbr.rel (0) target = $region37
    $region36: #{wrapper_i3d_forward.3} parent=1 // pred_region
      %s110 = ssub.s32 64, 64
      %111 = vsyncadd [#allocation15], %s110
      %s113 = sshll.u32 [#allocation14], 4
      %s114 = int_to_ptr.vmem [resolvable:$true] %s113
      %116 = dma.hbm_to_vmem [thread:$0]  %s8, 64, %s114, [#allocation15]
    $region37: #{wrapper_i3d_forward.3} parent=1 // pred_fallthru
      _
    // Predicated region
    $region38: #{wrapper_i3d_forward.3} parent=1 // pred_check
      _
    $region39: #{wrapper_i3d_forward.3} parent=1 // pred_check_branch
      %118 = sbr.rel (0) target = $region41
    $region40: #{wrapper_i3d_forward.3} parent=1 // pred_region
      %s120 = ssub.s32 64, 64
      %121 = vsyncadd [#allocation15], %s120
      %s123 = sshll.u32 [#allocation16], 4
      %s124 = int_to_ptr.vmem [resolvable:$true] %s123
      %126 = dma.hbm_to_vmem [thread:$0]  %s9, 64, %s124, [#allocation15]
    $region41: #{wrapper_i3d_forward.3} parent=1 // pred_fallthru
      _
    // Predicated region
    $region42: #{wrapper_i3d_forward.3} parent=1 // pred_check
      _
    $region43: #{wrapper_i3d_forward.3} parent=1 // pred_check_branch
      %128 = sbr.rel (0) target = $region45
    $region44: #{wrapper_i3d_forward.3} parent=1 // pred_region
      %s130 = ssub.s32 4096, 4096
      %131 = vsyncadd [#allocation18], %s130
      %s132 = sshll.u32 [#allocation17], 4
      %s133 = int_to_ptr.vmem [resolvable:$true] %s132
      %138 = dma.hbm_to_vmem [thread:$0]  %s10, 4096, %s133, [#allocation18], 64, 64, 4
    $region45: #{wrapper_i3d_forward.3} parent=1 // pred_fallthru
      _
    // Predicated region
    $region46: #{wrapper_i3d_forward.3} parent=1 // pred_check
      _
    $region47: #{wrapper_i3d_forward.3} parent=1 // pred_check_branch
      %140 = sbr.rel (0) target = $region49
    $region48: #{wrapper_i3d_forward.3} parent=1 // pred_region
      %s142 = ssub.s32 16, 16
      %143 = vsyncadd [#allocation18], %s142
      %s145 = sshll.u32 [#allocation19], 4
      %s146 = int_to_ptr.vmem [resolvable:$true] %s145
      %148 = dma.hbm_to_vmem [thread:$0]  %s11, 16, %s146, [#allocation18]
    $region49: #{wrapper_i3d_forward.3} parent=1 // pred_fallthru
      _
    // Predicated region
    $region50: #{wrapper_i3d_forward.3} parent=1 // pred_check
      _
    $region51: #{wrapper_i3d_forward.3} parent=1 // pred_check_branch
      %150 = sbr.rel (0) target = $region53
    $region52: #{wrapper_i3d_forward.3} parent=1 // pred_region
      %s152 = ssub.s32 16, 16
      %153 = vsyncadd [#allocation21], %s152
      %s155 = sshll.u32 [#allocation20], 4
      %s156 = int_to_ptr.vmem [resolvable:$true] %s155
      %158 = dma.hbm_to_vmem [thread:$0]  %s12, 16, %s156, [#allocation21]
    $region53: #{wrapper_i3d_forward.3} parent=1 // pred_fallthru
      _
    // Predicated region
    $region54: #{wrapper_i3d_forward.3} parent=1 // pred_check
      _
    $region55: #{wrapper_i3d_forward.3} parent=1 // pred_check_branch
      %160 = sbr.rel (0) target = $region57
    $region56: #{wrapper_i3d_forward.3} parent=1 // pred_region
      %161 = dma.done [#allocation3], 16
    $region57: #{wrapper_i3d_forward.3} parent=1 // pred_fallthru
      _
    // Predicated region
    $region58: #{wrapper_i3d_forward.3} parent=1 // pred_check
      _
    $region59: #{wrapper_i3d_forward.3} parent=1 // pred_check_branch
      %163 = sbr.rel (0) target = $region61
    $region60: #{wrapper_i3d_forward.3} parent=1 // pred_region
      %164 = dma.done [#allocation6], 8192
    $region61: #{wrapper_i3d_forward.3} parent=1 // pred_fallthru
      _
    // Predicated region
    $region62: #{wrapper_i3d_forward.3} parent=1 // pred_check
      _
    $region63: #{wrapper_i3d_forward.3} parent=1 // pred_check_branch
      %166 = sbr.rel (0) target = $region65
    $region64: #{wrapper_i3d_forward.3} parent=1 // pred_region
      %167 = dma.done [#allocation6], 256
    $region65: #{wrapper_i3d_forward.3} parent=1 // pred_fallthru
      _
    // Predicated region
    $region66: #{wrapper_i3d_forward.3} parent=1 // pred_check
      _
    $region67: #{wrapper_i3d_forward.3} parent=1 // pred_check_branch
      %169 = sbr.rel (0) target = $region69
    $region68: #{wrapper_i3d_forward.3} parent=1 // pred_region
      %170 = dma.done [#allocation9], 16384
    $region69: #{wrapper_i3d_forward.3} parent=1 // pred_fallthru
      _
    // Predicated region
    $region70: #{wrapper_i3d_forward.3} parent=1 // pred_check
      _
    $region71: #{wrapper_i3d_forward.3} parent=1 // pred_check_branch
      %172 = sbr.rel (0) target = $region73
    $region72: #{wrapper_i3d_forward.3} parent=1 // pred_region
      %173 = dma.done [#allocation9], 16
    $region73: #{wrapper_i3d_forward.3} parent=1 // pred_fallthru
      _
    // Predicated region
    $region74: #{wrapper_i3d_forward.3} parent=1 // pred_check
      _
    $region75: #{wrapper_i3d_forward.3} parent=1 // pred_check_branch
      %175 = sbr.rel (0) target = $region77
    $region76: #{wrapper_i3d_forward.3} parent=1 // pred_region
      %176 = dma.done [#allocation12], 65536
    $region77: #{wrapper_i3d_forward.3} parent=1 // pred_fallthru
      _
    // Predicated region
    $region78: #{wrapper_i3d_forward.3} parent=1 // pred_check
      _
    $region79: #{wrapper_i3d_forward.3} parent=1 // pred_check_branch
      %178 = sbr.rel (0) target = $region81
    $region80: #{wrapper_i3d_forward.3} parent=1 // pred_region
      %179 = dma.done [#allocation12], 64
    $region81: #{wrapper_i3d_forward.3} parent=1 // pred_fallthru
      _
    // Predicated region
    $region82: #{wrapper_i3d_forward.3} parent=1 // pred_check
      _
    $region83: #{wrapper_i3d_forward.3} parent=1 // pred_check_branch
      %181 = sbr.rel (0) target = $region85
    $region84: #{wrapper_i3d_forward.3} parent=1 // pred_region
      %182 = dma.done [#allocation15], 64
    $region85: #{wrapper_i3d_forward.3} parent=1 // pred_fallthru
      _
    // Predicated region
    $region86: #{wrapper_i3d_forward.3} parent=1 // pred_check
      _
    $region87: #{wrapper_i3d_forward.3} parent=1 // pred_check_branch
      %184 = sbr.rel (0) target = $region89
    $region88: #{wrapper_i3d_forward.3} parent=1 // pred_region
      %185 = dma.done [#allocation15], 64
    $region89: #{wrapper_i3d_forward.3} parent=1 // pred_fallthru
      _
    // Predicated region
    $region90: #{wrapper_i3d_forward.3} parent=1 // pred_check
      _
    $region91: #{wrapper_i3d_forward.3} parent=1 // pred_check_branch
      %187 = sbr.rel (0) target = $region93
    $region92: #{wrapper_i3d_forward.3} parent=1 // pred_region
      %188 = dma.done [#allocation18], 4096
    $region93: #{wrapper_i3d_forward.3} parent=1 // pred_fallthru
      _
    // Predicated region
    $region94: #{wrapper_i3d_forward.3} parent=1 // pred_check
      _
    $region95: #{wrapper_i3d_forward.3} parent=1 // pred_check_branch
      %190 = sbr.rel (0) target = $region97
    $region96: #{wrapper_i3d_forward.3} parent=1 // pred_region
      %191 = dma.done [#allocation18], 16
    $region97: #{wrapper_i3d_forward.3} parent=1 // pred_fallthru
      _
    // Predicated region
    $region98: #{wrapper_i3d_forward.3} parent=1 // pred_check
      _
    $region99: #{wrapper_i3d_forward.3} parent=1 // pred_check_branch
      %193 = sbr.rel (0) target = $region101
    $region100: #{wrapper_i3d_forward.3} parent=1 // pred_region
      %194 = dma.done [#allocation21], 16
    $region101: #{wrapper_i3d_forward.3} parent=1 // pred_fallthru
      _
    %v195 = vld [vmem:[%s0] sm:$0x3]
    %v196 = vld [vmem:[%s0 + $0x2] sm:$0x3]
    %vm197 = vcmask 517120
    %v198 = vsel %vm197, %v195, 0.0
    %v199 = vsel %vm197, %v196, 0.0
    %v200 = vadd.f32 %v198, %v199
    %v201 = vld [vmem:[#allocation2] sm:$0x1]
    %v202 = vmax.f32 %v201, 0.0
    %v203 = vmul.f32 %v202, 0.0
    %v205 = vlaneseq
    %v206 = vshrl.u32 %v205, 7
    %v207 = vsub.s32 0, %v206
    %v208 = vrot.slane %v203, %v207
    %v210 = vsub.f32 %v200, %v208
    %v211 = vmul.f32 %v210, 0.0009765625
    %v212 = vld [vmem:[#allocation5] sm:$0xff]
    %v213 = vld [vmem:[#allocation5 + $0x8] sm:$0xff]
    %v214 = vld [vmem:[#allocation5 + $0x10] sm:$0xff]
    %v215 = vld [vmem:[#allocation5 + $0x18] sm:$0xff]
    %v216 = vld [vmem:[#allocation5 + $0x20] sm:$0xff]
    %v217 = vld [vmem:[#allocation5 + $0x28] sm:$0xff]
    %v218 = vld [vmem:[#allocation5 + $0x30] sm:$0xff]
    %v219 = vld [vmem:[#allocation5 + $0x38] sm:$0xff]
    %v220 = vld [vmem:[#allocation5 + $0x40] sm:$0xff]
    %v221 = vld [vmem:[#allocation5 + $0x48] sm:$0xff]
    %v222 = vld [vmem:[#allocation5 + $0x50] sm:$0xff]
    %v223 = vld [vmem:[#allocation5 + $0x58] sm:$0xff]
    %v224 = vld [vmem:[#allocation5 + $0x60] sm:$0xff]
    %v225 = vld [vmem:[#allocation5 + $0x68] sm:$0xff]
    %v226 = vld [vmem:[#allocation5 + $0x70] sm:$0xff]
    %v227 = vld [vmem:[#allocation5 + $0x78] sm:$0xff]
    %v228 = vld [vmem:[#allocation5 + $0x80] sm:$0xff]
    %v229 = vld [vmem:[#allocation5 + $0x88] sm:$0xff]
    %v230 = vld [vmem:[#allocation5 + $0x90] sm:$0xff]
    %v231 = vld [vmem:[#allocation5 + $0x98] sm:$0xff]
    %v232 = vld [vmem:[#allocation5 + $0xa0] sm:$0xff]
    %v233 = vld [vmem:[#allocation5 + $0xa8] sm:$0xff]
    %v234 = vld [vmem:[#allocation5 + $0xb0] sm:$0xff]
    %v235 = vld [vmem:[#allocation5 + $0xb8] sm:$0xff]
    %v236 = vld [vmem:[#allocation5 + $0xc0] sm:$0xff]
    %v237 = vld [vmem:[#allocation5 + $0xc8] sm:$0xff]
    %v238 = vld [vmem:[#allocation5 + $0xd0] sm:$0xff]
    %v239 = vld [vmem:[#allocation5 + $0xd8] sm:$0xff]
    %v240 = vld [vmem:[#allocation5 + $0xe0] sm:$0xff]
    %v241 = vld [vmem:[#allocation5 + $0xe8] sm:$0xff]
    %v242 = vld [vmem:[#allocation5 + $0xf0] sm:$0xff]
    %v243 = vld [vmem:[#allocation5 + $0xf8] sm:$0xff]
    %v244 = vld [vmem:[#allocation5 + $0x100] sm:$0xff]
    %v245 = vld [vmem:[#allocation5 + $0x108] sm:$0xff]
    %v246 = vld [vmem:[#allocation5 + $0x110] sm:$0xff]
    %v247 = vld [vmem:[#allocation5 + $0x118] sm:$0xff]
    %v248 = vld [vmem:[#allocation5 + $0x120] sm:$0xff]
    %v249 = vld [vmem:[#allocation5 + $0x128] sm:$0xff]
    %v250 = vld [vmem:[#allocation5 + $0x130] sm:$0xff]
    %v251 = vld [vmem:[#allocation5 + $0x138] sm:$0xff]
    %v252 = vld [vmem:[#allocation5 + $0x140] sm:$0xff]
    %v253 = vld [vmem:[#allocation5 + $0x148] sm:$0xff]
    %v254 = vld [vmem:[#allocation5 + $0x150] sm:$0xff]
    %v255 = vld [vmem:[#allocation5 + $0x158] sm:$0xff]
    %v256 = vld [vmem:[#allocation5 + $0x160] sm:$0xff]
    %v257 = vld [vmem:[#allocation5 + $0x168] sm:$0xff]
    %v258 = vld [vmem:[#allocation5 + $0x170] sm:$0xff]
    %v259 = vld [vmem:[#allocation5 + $0x178] sm:$0xff]
    %v260 = vld [vmem:[#allocation5 + $0x180] sm:$0xff]
    %v261 = vld [vmem:[#allocation5 + $0x188] sm:$0xff]
    %v262 = vld [vmem:[#allocation5 + $0x190] sm:$0xff]
    %v263 = vld [vmem:[#allocation5 + $0x198] sm:$0xff]
    %v264 = vld [vmem:[#allocation5 + $0x1a0] sm:$0xff]
    %v265 = vld [vmem:[#allocation5 + $0x1a8] sm:$0xff]
    %v266 = vld [vmem:[#allocation5 + $0x1b0] sm:$0xff]
    %v267 = vld [vmem:[#allocation5 + $0x1b8] sm:$0xff]
    %v268 = vld [vmem:[#allocation5 + $0x1c0] sm:$0xff]
    %v269 = vld [vmem:[#allocation5 + $0x1c8] sm:$0xff]
    %v270 = vld [vmem:[#allocation5 + $0x1d0] sm:$0xff]
    %v271 = vld [vmem:[#allocation5 + $0x1d8] sm:$0xff]
    %v272 = vld [vmem:[#allocation5 + $0x1e0] sm:$0xff]
    %v273 = vld [vmem:[#allocation5 + $0x1e8] sm:$0xff]
    %v274 = vld [vmem:[#allocation5 + $0x1f0] sm:$0xff]
    %v275 = vld [vmem:[#allocation5 + $0x1f8] sm:$0xff]
    %v276 = vunpack.c.l.bf16 %v212
    %v277 = vunpack.c.h.bf16 %v212
    %v278 = vunpack.c.l.bf16 %v213
    %v279 = vunpack.c.h.bf16 %v213
    %v280 = vunpack.c.l.bf16 %v214
    %v281 = vunpack.c.h.bf16 %v214
    %v282 = vunpack.c.l.bf16 %v215
    %v283 = vunpack.c.h.bf16 %v215
    %v284 = vunpack.c.l.bf16 %v216
    %v285 = vunpack.c.h.bf16 %v216
    %v286 = vunpack.c.l.bf16 %v217
    %v287 = vunpack.c.h.bf16 %v217
    %v288 = vunpack.c.l.bf16 %v218
    %v289 = vunpack.c.h.bf16 %v218
    %v290 = vunpack.c.l.bf16 %v219
    %v291 = vunpack.c.h.bf16 %v219
    %v292 = vunpack.c.l.bf16 %v220
    %v293 = vunpack.c.h.bf16 %v220
    %v294 = vunpack.c.l.bf16 %v221
    %v295 = vunpack.c.h.bf16 %v221
    %v296 = vunpack.c.l.bf16 %v222
    %v297 = vunpack.c.h.bf16 %v222
    %v298 = vunpack.c.l.bf16 %v223
    %v299 = vunpack.c.h.bf16 %v223
    %v300 = vunpack.c.l.bf16 %v224
    %v301 = vunpack.c.h.bf16 %v224
    %v302 = vunpack.c.l.bf16 %v225
    %v303 = vunpack.c.h.bf16 %v225
    %v304 = vunpack.c.l.bf16 %v226
    %v305 = vunpack.c.h.bf16 %v226
    %v306 = vunpack.c.l.bf16 %v227
    %v307 = vunpack.c.h.bf16 %v227
    %v308 = vunpack.c.l.bf16 %v228
    %v309 = vunpack.c.h.bf16 %v228
    %v310 = vunpack.c.l.bf16 %v229
    %v311 = vunpack.c.h.bf16 %v229
    %v312 = vunpack.c.l.bf16 %v230
    %v313 = vunpack.c.h.bf16 %v230
    %v314 = vunpack.c.l.bf16 %v231
    %v315 = vunpack.c.h.bf16 %v231
    %v316 = vunpack.c.l.bf16 %v232
    %v317 = vunpack.c.h.bf16 %v232
    %v318 = vunpack.c.l.bf16 %v233
    %v319 = vunpack.c.h.bf16 %v233
    %v320 = vunpack.c.l.bf16 %v234
    %v321 = vunpack.c.h.bf16 %v234
    %v322 = vunpack.c.l.bf16 %v235
    %v323 = vunpack.c.h.bf16 %v235
    %v324 = vunpack.c.l.bf16 %v236
    %v325 = vunpack.c.h.bf16 %v236
    %v326 = vunpack.c.l.bf16 %v237
    %v327 = vunpack.c.h.bf16 %v237
    %v328 = vunpack.c.l.bf16 %v238
    %v329 = vunpack.c.h.bf16 %v238
    %v330 = vunpack.c.l.bf16 %v239
    %v331 = vunpack.c.h.bf16 %v239
    %v332 = vunpack.c.l.bf16 %v240
    %v333 = vunpack.c.h.bf16 %v240
    %v334 = vunpack.c.l.bf16 %v241
    %v335 = vunpack.c.h.bf16 %v241
    %v336 = vunpack.c.l.bf16 %v242
    %v337 = vunpack.c.h.bf16 %v242
    %v338 = vunpack.c.l.bf16 %v243
    %v339 = vunpack.c.h.bf16 %v243
    %v340 = vunpack.c.l.bf16 %v244
    %v341 = vunpack.c.h.bf16 %v244
    %v342 = vunpack.c.l.bf16 %v245
    %v343 = vunpack.c.h.bf16 %v245
    %v344 = vunpack.c.l.bf16 %v246
    %v345 = vunpack.c.h.bf16 %v246
    %v346 = vunpack.c.l.bf16 %v247
    %v347 = vunpack.c.h.bf16 %v247
    %v348 = vunpack.c.l.bf16 %v248
    %v349 = vunpack.c.h.bf16 %v248
    %v350 = vunpack.c.l.bf16 %v249
    %v351 = vunpack.c.h.bf16 %v249
    %v352 = vunpack.c.l.bf16 %v250
    %v353 = vunpack.c.h.bf16 %v250
    %v354 = vunpack.c.l.bf16 %v251
    %v355 = vunpack.c.h.bf16 %v251
    %v356 = vunpack.c.l.bf16 %v252
    %v357 = vunpack.c.h.bf16 %v252
    %v358 = vunpack.c.l.bf16 %v253
    %v359 = vunpack.c.h.bf16 %v253
    %v360 = vunpack.c.l.bf16 %v254
    %v361 = vunpack.c.h.bf16 %v254
    %v362 = vunpack.c.l.bf16 %v255
    %v363 = vunpack.c.h.bf16 %v255
    %v364 = vunpack.c.l.bf16 %v256
    %v365 = vunpack.c.h.bf16 %v256
    %v366 = vunpack.c.l.bf16 %v257
    %v367 = vunpack.c.h.bf16 %v257
    %v368 = vunpack.c.l.bf16 %v258
    %v369 = vunpack.c.h.bf16 %v258
    %v370 = vunpack.c.l.bf16 %v259
    %v371 = vunpack.c.h.bf16 %v259
    %v372 = vunpack.c.l.bf16 %v260
    %v373 = vunpack.c.h.bf16 %v260
    %v374 = vunpack.c.l.bf16 %v261
    %v375 = vunpack.c.h.bf16 %v261
    %v376 = vunpack.c.l.bf16 %v262
    %v377 = vunpack.c.h.bf16 %v262
    %v378 = vunpack.c.l.bf16 %v263
    %v379 = vunpack.c.h.bf16 %v263
    %v380 = vunpack.c.l.bf16 %v264
    %v381 = vunpack.c.h.bf16 %v264
    %v382 = vunpack.c.l.bf16 %v265
    %v383 = vunpack.c.h.bf16 %v265
    %v384 = vunpack.c.l.bf16 %v266
    %v385 = vunpack.c.h.bf16 %v266
    %v386 = vunpack.c.l.bf16 %v267
    %v387 = vunpack.c.h.bf16 %v267
    %v388 = vunpack.c.l.bf16 %v268
    %v389 = vunpack.c.h.bf16 %v268
    %v390 = vunpack.c.l.bf16 %v269
    %v391 = vunpack.c.h.bf16 %v269
    %v392 = vunpack.c.l.bf16 %v270
    %v393 = vunpack.c.h.bf16 %v270
    %v394 = vunpack.c.l.bf16 %v271
    %v395 = vunpack.c.h.bf16 %v271
    %v396 = vunpack.c.l.bf16 %v272
    %v397 = vunpack.c.h.bf16 %v272
    %v398 = vunpack.c.l.bf16 %v273
    %v399 = vunpack.c.h.bf16 %v273
    %v400 = vunpack.c.l.bf16 %v274
    %v401 = vunpack.c.h.bf16 %v274
    %v402 = vunpack.c.l.bf16 %v275
    %v403 = vunpack.c.h.bf16 %v275
    %v404 = vld [vmem:[#allocation7] sm:$0xff]
    %v405 = vld [vmem:[#allocation7 + $0x8] sm:$0xff]
    %v408 = vlaneseq
    %v409 = vshrl.u32 %v408, 7
    %v410 = vsub.s32 0, %v409
    %v411 = vrot.slane %v404, %v410
    %v412 = vlaneseq
    %v413 = vshrl.u32 %v412, 7
    %v414 = vsub.s32 1, %v413
    %v415 = vrot.slane %v404, %v414
    %v416 = vlaneseq
    %v417 = vshrl.u32 %v416, 7
    %v418 = vsub.s32 2, %v417
    %v419 = vrot.slane %v404, %v418
    %v420 = vlaneseq
    %v421 = vshrl.u32 %v420, 7
    %v422 = vsub.s32 3, %v421
    %v423 = vrot.slane %v404, %v422
    %v424 = vlaneseq
    %v425 = vshrl.u32 %v424, 7
    %v426 = vsub.s32 4, %v425
    %v427 = vrot.slane %v404, %v426
    %v428 = vlaneseq
    %v429 = vshrl.u32 %v428, 7
    %v430 = vsub.s32 5, %v429
    %v431 = vrot.slane %v404, %v430
    %v432 = vlaneseq
    %v433 = vshrl.u32 %v432, 7
    %v434 = vsub.s32 6, %v433
    %v435 = vrot.slane %v404, %v434
    %v436 = vlaneseq
    %v437 = vshrl.u32 %v436, 7
    %v438 = vsub.s32 7, %v437
    %v439 = vrot.slane %v404, %v438
    %v440 = vlaneseq
    %v441 = vshrl.u32 %v440, 7
    %v442 = vsub.s32 0, %v441
    %v443 = vrot.slane %v405, %v442
    %v444 = vlaneseq
    %v445 = vshrl.u32 %v444, 7
    %v446 = vsub.s32 1, %v445
    %v447 = vrot.slane %v405, %v446
    %v448 = vlaneseq
    %v449 = vshrl.u32 %v448, 7
    %v450 = vsub.s32 2, %v449
    %v451 = vrot.slane %v405, %v450
    %v452 = vlaneseq
    %v453 = vshrl.u32 %v452, 7
    %v454 = vsub.s32 3, %v453
    %v455 = vrot.slane %v405, %v454
    %v456 = vlaneseq
    %v457 = vshrl.u32 %v456, 7
    %v458 = vsub.s32 4, %v457
    %v459 = vrot.slane %v405, %v458
    %v460 = vlaneseq
    %v461 = vshrl.u32 %v460, 7
    %v462 = vsub.s32 5, %v461
    %v463 = vrot.slane %v405, %v462
    %v464 = vlaneseq
    %v465 = vshrl.u32 %v464, 7
    %v466 = vsub.s32 6, %v465
    %v467 = vrot.slane %v405, %v466
    %v468 = vlaneseq
    %v469 = vshrl.u32 %v468, 7
    %v470 = vsub.s32 7, %v469
    %v471 = vrot.slane %v405, %v470
    %vm488 = vcmask 523264
    %v490 = vsel %vm488, %v211, 0
    %492 = vmatprep.subr.mxu0 0.0
    %493 = vmatpush1.msra.mxu0 0.0
    %494 = vmatprep.subr.mxu0 0.0
    %495 = vmatpush1.msra.mxu0 0.0
    %496 = vmatprep.subr.mxu0 0.0
    %497 = vmatpush1.msra.mxu0 0.0
    %498 = vmatprep.subr.mxu0 0.0
    %499 = vmatpush1.msra.mxu0 0.0
    %500 = vmatprep.subr.mxu0 0.0
    %501 = vmatpush1.msra.mxu0 0.0
    %502 = vmatprep.subr.mxu0 0.0
    %503 = vmatpush1.msra.mxu0 0.0
    %504 = vmatprep.subr.mxu0 0.0
    %505 = vmatpush1.msra.mxu0 0.0
    %506 = vmatprep.subr.mxu0 0.0
    %507 = vmatpush1.msra.mxu0 0.0
    %508 = vmatprep.subr.mxu0 %v389
    %509 = vmatpush1.msra.mxu0 %v388
    %510 = vmatprep.subr.mxu0 %v373
    %511 = vmatpush1.msra.mxu0 %v372
    %512 = vmatprep.subr.mxu0 %v357
    %513 = vmatpush1.msra.mxu0 %v356
    %514 = vmatprep.subr.mxu0 %v341
    %515 = vmatpush1.msra.mxu0 %v340
    %516 = vmatprep.subr.mxu0 %v325
    %517 = vmatpush1.msra.mxu0 %v324
    %518 = vmatprep.subr.mxu0 %v309
    %519 = vmatpush1.msra.mxu0 %v308
    %520 = vmatprep.subr.mxu0 %v293
    %521 = vmatpush1.msra.mxu0 %v292
    %522 = vmatprep.subr.mxu0 %v277
    %523 = vmatpush1.msra.mxu0 %v276
    %524 = vmatprep.subr.mxu0 0.0
    %525 = vmatpush2.msra.mxu0 0.0
    %526 = vmatprep.subr.mxu0 0.0
    %527 = vmatpush2.msra.mxu0 0.0
    %528 = vmatprep.subr.mxu0 0.0
    %529 = vmatpush2.msra.mxu0 0.0
    %530 = vmatprep.subr.mxu0 0.0
    %531 = vmatpush2.msra.mxu0 0.0
    %532 = vmatprep.subr.mxu0 0.0
    %533 = vmatpush2.msra.mxu0 0.0
    %534 = vmatprep.subr.mxu0 0.0
    %535 = vmatpush2.msra.mxu0 0.0
    %536 = vmatprep.subr.mxu0 0.0
    %537 = vmatpush2.msra.mxu0 0.0
    %538 = vmatprep.subr.mxu0 0.0
    %539 = vmatpush2.msra.mxu0 0.0
    %540 = vmatprep.subr.mxu0 0.0
    %541 = vmatpush2.msra.mxu0 0.0
    %542 = vmatprep.subr.mxu0 0.0
    %543 = vmatpush2.msra.mxu0 0.0
    %544 = vmatprep.subr.mxu0 0.0
    %545 = vmatpush2.msra.mxu0 0.0
    %546 = vmatprep.subr.mxu0 0.0
    %547 = vmatpush2.msra.mxu0 0.0
    %548 = vmatprep.subr.mxu0 0.0
    %549 = vmatpush2.msra.mxu0 0.0
    %550 = vmatprep.subr.mxu0 0.0
    %551 = vmatpush2.msra.mxu0 0.0
    %552 = vmatprep.subr.mxu0 0.0
    %553 = vmatpush2.msra.mxu0 0.0
    %554 = vmatprep.subr.mxu0 0.0
    %555 = vmatpush2.msra.mxu0 0.0
    %556 = vmatprep.mubr.f32.mxu0 0.0
    %557 = vmatmul.mubr.f32.gmra.mxu0 %v490
    %v558 = vpop.f32.mrf.mxu0
    %v559 = vadd.f32 %v411, %v558
    %v560 = vpop.f32.mrf.mxu0
    %v561 = vadd.f32 %v415, %v560
    %562 = vdwg.mxu0
    %563 = vmatprep.subr.mxu0 0.0
    %564 = vmatpush1.msra.mxu0 0.0
    %565 = vmatprep.subr.mxu0 0.0
    %566 = vmatpush1.msra.mxu0 0.0
    %567 = vmatprep.subr.mxu0 0.0
    %568 = vmatpush1.msra.mxu0 0.0
    %569 = vmatprep.subr.mxu0 0.0
    %570 = vmatpush1.msra.mxu0 0.0
    %571 = vmatprep.subr.mxu0 0.0
    %572 = vmatpush1.msra.mxu0 0.0
    %573 = vmatprep.subr.mxu0 0.0
    %574 = vmatpush1.msra.mxu0 0.0
    %575 = vmatprep.subr.mxu0 0.0
    %576 = vmatpush1.msra.mxu0 0.0
    %577 = vmatprep.subr.mxu0 0.0
    %578 = vmatpush1.msra.mxu0 0.0
    %579 = vmatprep.subr.mxu0 %v391
    %580 = vmatpush1.msra.mxu0 %v390
    %581 = vmatprep.subr.mxu0 %v375
    %582 = vmatpush1.msra.mxu0 %v374
    %583 = vmatprep.subr.mxu0 %v359
    %584 = vmatpush1.msra.mxu0 %v358
    %585 = vmatprep.subr.mxu0 %v343
    %586 = vmatpush1.msra.mxu0 %v342
    %587 = vmatprep.subr.mxu0 %v327
    %588 = vmatpush1.msra.mxu0 %v326
    %589 = vmatprep.subr.mxu0 %v311
    %590 = vmatpush1.msra.mxu0 %v310
    %591 = vmatprep.subr.mxu0 %v295
    %592 = vmatpush1.msra.mxu0 %v294
    %593 = vmatprep.subr.mxu0 %v279
    %594 = vmatpush1.msra.mxu0 %v278
    %595 = vmatprep.subr.mxu0 0.0
    %596 = vmatpush2.msra.mxu0 0.0
    %597 = vmatprep.subr.mxu0 0.0
    %598 = vmatpush2.msra.mxu0 0.0
    %599 = vmatprep.subr.mxu0 0.0
    %600 = vmatpush2.msra.mxu0 0.0
    %601 = vmatprep.subr.mxu0 0.0
    %602 = vmatpush2.msra.mxu0 0.0
    %603 = vmatprep.subr.mxu0 0.0
    %604 = vmatpush2.msra.mxu0 0.0
    %605 = vmatprep.subr.mxu0 0.0
    %606 = vmatpush2.msra.mxu0 0.0
    %607 = vmatprep.subr.mxu0 0.0
    %608 = vmatpush2.msra.mxu0 0.0
    %609 = vmatprep.subr.mxu0 0.0
    %610 = vmatpush2.msra.mxu0 0.0
    %611 = vmatprep.subr.mxu0 0.0
    %612 = vmatpush2.msra.mxu0 0.0
    %613 = vmatprep.subr.mxu0 0.0
    %614 = vmatpush2.msra.mxu0 0.0
    %615 = vmatprep.subr.mxu0 0.0
    %616 = vmatpush2.msra.mxu0 0.0
    %617 = vmatprep.subr.mxu0 0.0
    %618 = vmatpush2.msra.mxu0 0.0
    %619 = vmatprep.subr.mxu0 0.0
    %620 = vmatpush2.msra.mxu0 0.0
    %621 = vmatprep.subr.mxu0 0.0
    %622 = vmatpush2.msra.mxu0 0.0
    %623 = vmatprep.subr.mxu0 0.0
    %624 = vmatpush2.msra.mxu0 0.0
    %625 = vmatprep.subr.mxu0 0.0
    %626 = vmatpush2.msra.mxu0 0.0
    %627 = vmatprep.mubr.f32.mxu0 0.0
    %628 = vmatmul.mubr.f32.gmra.mxu0 %v490
    %v629 = vpop.f32.mrf.mxu0
    %v630 = vadd.f32 %v419, %v629
    %v631 = vpop.f32.mrf.mxu0
    %v632 = vadd.f32 %v423, %v631
    %633 = vdwg.mxu0
    %634 = vmatprep.subr.mxu0 0.0
    %635 = vmatpush1.msra.mxu0 0.0
    %636 = vmatprep.subr.mxu0 0.0
    %637 = vmatpush1.msra.mxu0 0.0
    %638 = vmatprep.subr.mxu0 0.0
    %639 = vmatpush1.msra.mxu0 0.0
    %640 = vmatprep.subr.mxu0 0.0
    %641 = vmatpush1.msra.mxu0 0.0
    %642 = vmatprep.subr.mxu0 0.0
    %643 = vmatpush1.msra.mxu0 0.0
    %644 = vmatprep.subr.mxu0 0.0
    %645 = vmatpush1.msra.mxu0 0.0
    %646 = vmatprep.subr.mxu0 0.0
    %647 = vmatpush1.msra.mxu0 0.0
    %648 = vmatprep.subr.mxu0 0.0
    %649 = vmatpush1.msra.mxu0 0.0
    %650 = vmatprep.subr.mxu0 %v393
    %651 = vmatpush1.msra.mxu0 %v392
    %652 = vmatprep.subr.mxu0 %v377
    %653 = vmatpush1.msra.mxu0 %v376
    %654 = vmatprep.subr.mxu0 %v361
    %655 = vmatpush1.msra.mxu0 %v360
    %656 = vmatprep.subr.mxu0 %v345
    %657 = vmatpush1.msra.mxu0 %v344
    %658 = vmatprep.subr.mxu0 %v329
    %659 = vmatpush1.msra.mxu0 %v328
    %660 = vmatprep.subr.mxu0 %v313
    %661 = vmatpush1.msra.mxu0 %v312
    %662 = vmatprep.subr.mxu0 %v297
    %663 = vmatpush1.msra.mxu0 %v296
    %664 = vmatprep.subr.mxu0 %v281
    %665 = vmatpush1.msra.mxu0 %v280
    %666 = vmatprep.subr.mxu0 0.0
    %667 = vmatpush2.msra.mxu0 0.0
    %668 = vmatprep.subr.mxu0 0.0
    %669 = vmatpush2.msra.mxu0 0.0
    %670 = vmatprep.subr.mxu0 0.0
    %671 = vmatpush2.msra.mxu0 0.0
    %672 = vmatprep.subr.mxu0 0.0
    %673 = vmatpush2.msra.mxu0 0.0
    %674 = vmatprep.subr.mxu0 0.0
    %675 = vmatpush2.msra.mxu0 0.0
    %676 = vmatprep.subr.mxu0 0.0
    %677 = vmatpush2.msra.mxu0 0.0
    %678 = vmatprep.subr.mxu0 0.0
    %679 = vmatpush2.msra.mxu0 0.0
    %680 = vmatprep.subr.mxu0 0.0
    %681 = vmatpush2.msra.mxu0 0.0
    %682 = vmatprep.subr.mxu0 0.0
    %683 = vmatpush2.msra.mxu0 0.0
    %684 = vmatprep.subr.mxu0 0.0
    %685 = vmatpush2.msra.mxu0 0.0
    %686 = vmatprep.subr.mxu0 0.0
    %687 = vmatpush2.msra.mxu0 0.0
    %688 = vmatprep.subr.mxu0 0.0
    %689 = vmatpush2.msra.mxu0 0.0
    %690 = vmatprep.subr.mxu0 0.0
    %691 = vmatpush2.msra.mxu0 0.0
    %692 = vmatprep.subr.mxu0 0.0
    %693 = vmatpush2.msra.mxu0 0.0
    %694 = vmatprep.subr.mxu0 0.0
    %695 = vmatpush2.msra.mxu0 0.0
    %696 = vmatprep.subr.mxu0 0.0
    %697 = vmatpush2.msra.mxu0 0.0
    %698 = vmatprep.mubr.f32.mxu0 0.0
    %699 = vmatmul.mubr.f32.gmra.mxu0 %v490
    %v700 = vpop.f32.mrf.mxu0
    %v701 = vadd.f32 %v427, %v700
    %v702 = vpop.f32.mrf.mxu0
    %v703 = vadd.f32 %v431, %v702
    %704 = vdwg.mxu0
    %705 = vmatprep.subr.mxu0 0.0
    %706 = vmatpush1.msra.mxu0 0.0
    %707 = vmatprep.subr.mxu0 0.0
    %708 = vmatpush1.msra.mxu0 0.0
    %709 = vmatprep.subr.mxu0 0.0
    %710 = vmatpush1.msra.mxu0 0.0
    %711 = vmatprep.subr.mxu0 0.0
    %712 = vmatpush1.msra.mxu0 0.0
    %713 = vmatprep.subr.mxu0 0.0
    %714 = vmatpush1.msra.mxu0 0.0
    %715 = vmatprep.subr.mxu0 0.0
    %716 = vmatpush1.msra.mxu0 0.0
    %717 = vmatprep.subr.mxu0 0.0
    %718 = vmatpush1.msra.mxu0 0.0
    %719 = vmatprep.subr.mxu0 0.0
    %720 = vmatpush1.msra.mxu0 0.0
    %721 = vmatprep.subr.mxu0 %v395
    %722 = vmatpush1.msra.mxu0 %v394
    %723 = vmatprep.subr.mxu0 %v379
    %724 = vmatpush1.msra.mxu0 %v378
    %725 = vmatprep.subr.mxu0 %v363
    %726 = vmatpush1.msra.mxu0 %v362
    %727 = vmatprep.subr.mxu0 %v347
    %728 = vmatpush1.msra.mxu0 %v346
    %729 = vmatprep.subr.mxu0 %v331
    %730 = vmatpush1.msra.mxu0 %v330
    %731 = vmatprep.subr.mxu0 %v315
    %732 = vmatpush1.msra.mxu0 %v314
    %733 = vmatprep.subr.mxu0 %v299
    %734 = vmatpush1.msra.mxu0 %v298
    %735 = vmatprep.subr.mxu0 %v283
    %736 = vmatpush1.msra.mxu0 %v282
    %737 = vmatprep.subr.mxu0 0.0
    %738 = vmatpush2.msra.mxu0 0.0
    %739 = vmatprep.subr.mxu0 0.0
    %740 = vmatpush2.msra.mxu0 0.0
    %741 = vmatprep.subr.mxu0 0.0
    %742 = vmatpush2.msra.mxu0 0.0
    %743 = vmatprep.subr.mxu0 0.0
    %744 = vmatpush2.msra.mxu0 0.0
    %745 = vmatprep.subr.mxu0 0.0
    %746 = vmatpush2.msra.mxu0 0.0
    %747 = vmatprep.subr.mxu0 0.0
    %748 = vmatpush2.msra.mxu0 0.0
    %749 = vmatprep.subr.mxu0 0.0
    %750 = vmatpush2.msra.mxu0 0.0
    %751 = vmatprep.subr.mxu0 0.0
    %752 = vmatpush2.msra.mxu0 0.0
    %753 = vmatprep.subr.mxu0 0.0
    %754 = vmatpush2.msra.mxu0 0.0
    %755 = vmatprep.subr.mxu0 0.0
    %756 = vmatpush2.msra.mxu0 0.0
    %757 = vmatprep.subr.mxu0 0.0
    %758 = vmatpush2.msra.mxu0 0.0
    %759 = vmatprep.subr.mxu0 0.0
    %760 = vmatpush2.msra.mxu0 0.0
    %761 = vmatprep.subr.mxu0 0.0
    %762 = vmatpush2.msra.mxu0 0.0
    %763 = vmatprep.subr.mxu0 0.0
    %764 = vmatpush2.msra.mxu0 0.0
    %765 = vmatprep.subr.mxu0 0.0
    %766 = vmatpush2.msra.mxu0 0.0
    %767 = vmatprep.subr.mxu0 0.0
    %768 = vmatpush2.msra.mxu0 0.0
    %769 = vmatprep.mubr.f32.mxu0 0.0
    %770 = vmatmul.mubr.f32.gmra.mxu0 %v490
    %v771 = vpop.f32.mrf.mxu0
    %v772 = vadd.f32 %v435, %v771
    %v773 = vpop.f32.mrf.mxu0
    %v774 = vadd.f32 %v439, %v773
    %775 = vdwg.mxu0
    %776 = vmatprep.subr.mxu0 0.0
    %777 = vmatpush1.msra.mxu0 0.0
    %778 = vmatprep.subr.mxu0 0.0
    %779 = vmatpush1.msra.mxu0 0.0
    %780 = vmatprep.subr.mxu0 0.0
    %781 = vmatpush1.msra.mxu0 0.0
    %782 = vmatprep.subr.mxu0 0.0
    %783 = vmatpush1.msra.mxu0 0.0
    %784 = vmatprep.subr.mxu0 0.0
    %785 = vmatpush1.msra.mxu0 0.0
    %786 = vmatprep.subr.mxu0 0.0
    %787 = vmatpush1.msra.mxu0 0.0
    %788 = vmatprep.subr.mxu0 0.0
    %789 = vmatpush1.msra.mxu0 0.0
    %790 = vmatprep.subr.mxu0 0.0
    %791 = vmatpush1.msra.mxu0 0.0
    %792 = vmatprep.subr.mxu0 %v397
    %793 = vmatpush1.msra.mxu0 %v396
    %794 = vmatprep.subr.mxu0 %v381
    %795 = vmatpush1.msra.mxu0 %v380
    %796 = vmatprep.subr.mxu0 %v365
    %797 = vmatpush1.msra.mxu0 %v364
    %798 = vmatprep.subr.mxu0 %v349
    %799 = vmatpush1.msra.mxu0 %v348
    %800 = vmatprep.subr.mxu0 %v333
    %801 = vmatpush1.msra.mxu0 %v332
    %802 = vmatprep.subr.mxu0 %v317
    %803 = vmatpush1.msra.mxu0 %v316
    %804 = vmatprep.subr.mxu0 %v301
    %805 = vmatpush1.msra.mxu0 %v300
    %806 = vmatprep.subr.mxu0 %v285
    %807 = vmatpush1.msra.mxu0 %v284
    %808 = vmatprep.subr.mxu0 0.0
    %809 = vmatpush2.msra.mxu0 0.0
    %810 = vmatprep.subr.mxu0 0.0
    %811 = vmatpush2.msra.mxu0 0.0
    %812 = vmatprep.subr.mxu0 0.0
    %813 = vmatpush2.msra.mxu0 0.0
    %814 = vmatprep.subr.mxu0 0.0
    %815 = vmatpush2.msra.mxu0 0.0
    %816 = vmatprep.subr.mxu0 0.0
    %817 = vmatpush2.msra.mxu0 0.0
    %818 = vmatprep.subr.mxu0 0.0
    %819 = vmatpush2.msra.mxu0 0.0
    %820 = vmatprep.subr.mxu0 0.0
    %821 = vmatpush2.msra.mxu0 0.0
    %822 = vmatprep.subr.mxu0 0.0
    %823 = vmatpush2.msra.mxu0 0.0
    %824 = vmatprep.subr.mxu0 0.0
    %825 = vmatpush2.msra.mxu0 0.0
    %826 = vmatprep.subr.mxu0 0.0
    %827 = vmatpush2.msra.mxu0 0.0
    %828 = vmatprep.subr.mxu0 0.0
    %829 = vmatpush2.msra.mxu0 0.0
    %830 = vmatprep.subr.mxu0 0.0
    %831 = vmatpush2.msra.mxu0 0.0
    %832 = vmatprep.subr.mxu0 0.0
    %833 = vmatpush2.msra.mxu0 0.0
    %834 = vmatprep.subr.mxu0 0.0
    %835 = vmatpush2.msra.mxu0 0.0
    %836 = vmatprep.subr.mxu0 0.0
    %837 = vmatpush2.msra.mxu0 0.0
    %838 = vmatprep.subr.mxu0 0.0
    %839 = vmatpush2.msra.mxu0 0.0
    %840 = vmatprep.mubr.f32.mxu0 0.0
    %841 = vmatmul.mubr.f32.gmra.mxu0 %v490
    %v842 = vpop.f32.mrf.mxu0
    %v843 = vadd.f32 %v443, %v842
    %v844 = vpop.f32.mrf.mxu0
    %v845 = vadd.f32 %v447, %v844
    %846 = vdwg.mxu0
    %847 = vmatprep.subr.mxu0 0.0
    %848 = vmatpush1.msra.mxu0 0.0
    %849 = vmatprep.subr.mxu0 0.0
    %850 = vmatpush1.msra.mxu0 0.0
    %851 = vmatprep.subr.mxu0 0.0
    %852 = vmatpush1.msra.mxu0 0.0
    %853 = vmatprep.subr.mxu0 0.0
    %854 = vmatpush1.msra.mxu0 0.0
    %855 = vmatprep.subr.mxu0 0.0
    %856 = vmatpush1.msra.mxu0 0.0
    %857 = vmatprep.subr.mxu0 0.0
    %858 = vmatpush1.msra.mxu0 0.0
    %859 = vmatprep.subr.mxu0 0.0
    %860 = vmatpush1.msra.mxu0 0.0
    %861 = vmatprep.subr.mxu0 0.0
    %862 = vmatpush1.msra.mxu0 0.0
    %863 = vmatprep.subr.mxu0 %v399
    %864 = vmatpush1.msra.mxu0 %v398
    %865 = vmatprep.subr.mxu0 %v383
    %866 = vmatpush1.msra.mxu0 %v382
    %867 = vmatprep.subr.mxu0 %v367
    %868 = vmatpush1.msra.mxu0 %v366
    %869 = vmatprep.subr.mxu0 %v351
    %870 = vmatpush1.msra.mxu0 %v350
    %871 = vmatprep.subr.mxu0 %v335
    %872 = vmatpush1.msra.mxu0 %v334
    %873 = vmatprep.subr.mxu0 %v319
    %874 = vmatpush1.msra.mxu0 %v318
    %875 = vmatprep.subr.mxu0 %v303
    %876 = vmatpush1.msra.mxu0 %v302
    %877 = vmatprep.subr.mxu0 %v287
    %878 = vmatpush1.msra.mxu0 %v286
    %879 = vmatprep.subr.mxu0 0.0
    %880 = vmatpush2.msra.mxu0 0.0
    %881 = vmatprep.subr.mxu0 0.0
    %882 = vmatpush2.msra.mxu0 0.0
    %883 = vmatprep.subr.mxu0 0.0
    %884 = vmatpush2.msra.mxu0 0.0
    %885 = vmatprep.subr.mxu0 0.0
    %886 = vmatpush2.msra.mxu0 0.0
    %887 = vmatprep.subr.mxu0 0.0
    %888 = vmatpush2.msra.mxu0 0.0
    %889 = vmatprep.subr.mxu0 0.0
    %890 = vmatpush2.msra.mxu0 0.0
    %891 = vmatprep.subr.mxu0 0.0
    %892 = vmatpush2.msra.mxu0 0.0
    %893 = vmatprep.subr.mxu0 0.0
    %894 = vmatpush2.msra.mxu0 0.0
    %895 = vmatprep.subr.mxu0 0.0
    %896 = vmatpush2.msra.mxu0 0.0
    %897 = vmatprep.subr.mxu0 0.0
    %898 = vmatpush2.msra.mxu0 0.0
    %899 = vmatprep.subr.mxu0 0.0
    %900 = vmatpush2.msra.mxu0 0.0
    %901 = vmatprep.subr.mxu0 0.0
    %902 = vmatpush2.msra.mxu0 0.0
    %903 = vmatprep.subr.mxu0 0.0
    %904 = vmatpush2.msra.mxu0 0.0
    %905 = vmatprep.subr.mxu0 0.0
    %906 = vmatpush2.msra.mxu0 0.0
    %907 = vmatprep.subr.mxu0 0.0
    %908 = vmatpush2.msra.mxu0 0.0
    %909 = vmatprep.subr.mxu0 0.0
    %910 = vmatpush2.msra.mxu0 0.0
    %911 = vmatprep.mubr.f32.mxu0 0.0
    %912 = vmatmul.mubr.f32.gmra.mxu0 %v490
    %v913 = vpop.f32.mrf.mxu0
    %v914 = vadd.f32 %v451, %v913
    %v915 = vpop.f32.mrf.mxu0
    %v916 = vadd.f32 %v455, %v915
    %917 = vdwg.mxu0
    %918 = vmatprep.subr.mxu0 0.0
    %919 = vmatpush1.msra.mxu0 0.0
    %920 = vmatprep.subr.mxu0 0.0
    %921 = vmatpush1.msra.mxu0 0.0
    %922 = vmatprep.subr.mxu0 0.0
    %923 = vmatpush1.msra.mxu0 0.0
    %924 = vmatprep.subr.mxu0 0.0
    %925 = vmatpush1.msra.mxu0 0.0
    %926 = vmatprep.subr.mxu0 0.0
    %927 = vmatpush1.msra.mxu0 0.0
    %928 = vmatprep.subr.mxu0 0.0
    %929 = vmatpush1.msra.mxu0 0.0
    %930 = vmatprep.subr.mxu0 0.0
    %931 = vmatpush1.msra.mxu0 0.0
    %932 = vmatprep.subr.mxu0 0.0
    %933 = vmatpush1.msra.mxu0 0.0
    %934 = vmatprep.subr.mxu0 %v401
    %935 = vmatpush1.msra.mxu0 %v400
    %936 = vmatprep.subr.mxu0 %v385
    %937 = vmatpush1.msra.mxu0 %v384
    %938 = vmatprep.subr.mxu0 %v369
    %939 = vmatpush1.msra.mxu0 %v368
    %940 = vmatprep.subr.mxu0 %v353
    %941 = vmatpush1.msra.mxu0 %v352
    %942 = vmatprep.subr.mxu0 %v337
    %943 = vmatpush1.msra.mxu0 %v336
    %944 = vmatprep.subr.mxu0 %v321
    %945 = vmatpush1.msra.mxu0 %v320
    %946 = vmatprep.subr.mxu0 %v305
    %947 = vmatpush1.msra.mxu0 %v304
    %948 = vmatprep.subr.mxu0 %v289
    %949 = vmatpush1.msra.mxu0 %v288
    %950 = vmatprep.subr.mxu0 0.0
    %951 = vmatpush2.msra.mxu0 0.0
    %952 = vmatprep.subr.mxu0 0.0
    %953 = vmatpush2.msra.mxu0 0.0
    %954 = vmatprep.subr.mxu0 0.0
    %955 = vmatpush2.msra.mxu0 0.0
    %956 = vmatprep.subr.mxu0 0.0
    %957 = vmatpush2.msra.mxu0 0.0
    %958 = vmatprep.subr.mxu0 0.0
    %959 = vmatpush2.msra.mxu0 0.0
    %960 = vmatprep.subr.mxu0 0.0
    %961 = vmatpush2.msra.mxu0 0.0
    %962 = vmatprep.subr.mxu0 0.0
    %963 = vmatpush2.msra.mxu0 0.0
    %964 = vmatprep.subr.mxu0 0.0
    %965 = vmatpush2.msra.mxu0 0.0
    %966 = vmatprep.subr.mxu0 0.0
    %967 = vmatpush2.msra.mxu0 0.0
    %968 = vmatprep.subr.mxu0 0.0
    %969 = vmatpush2.msra.mxu0 0.0
    %970 = vmatprep.subr.mxu0 0.0
    %971 = vmatpush2.msra.mxu0 0.0
    %972 = vmatprep.subr.mxu0 0.0
    %973 = vmatpush2.msra.mxu0 0.0
    %974 = vmatprep.subr.mxu0 0.0
    %975 = vmatpush2.msra.mxu0 0.0
    %976 = vmatprep.subr.mxu0 0.0
    %977 = vmatpush2.msra.mxu0 0.0
    %978 = vmatprep.subr.mxu0 0.0
    %979 = vmatpush2.msra.mxu0 0.0
    %980 = vmatprep.subr.mxu0 0.0
    %981 = vmatpush2.msra.mxu0 0.0
    %982 = vmatprep.mubr.f32.mxu0 0.0
    %983 = vmatmul.mubr.f32.gmra.mxu0 %v490
    %v984 = vpop.f32.mrf.mxu0
    %v985 = vadd.f32 %v459, %v984
    %v986 = vpop.f32.mrf.mxu0
    %v987 = vadd.f32 %v463, %v986
    %988 = vdwg.mxu0
    %989 = vmatprep.subr.mxu0 0.0
    %990 = vmatpush1.msra.mxu0 0.0
    %991 = vmatprep.subr.mxu0 0.0
    %992 = vmatpush1.msra.mxu0 0.0
    %993 = vmatprep.subr.mxu0 0.0
    %994 = vmatpush1.msra.mxu0 0.0
    %995 = vmatprep.subr.mxu0 0.0
    %996 = vmatpush1.msra.mxu0 0.0
    %997 = vmatprep.subr.mxu0 0.0
    %998 = vmatpush1.msra.mxu0 0.0
    %999 = vmatprep.subr.mxu0 0.0
    %1000 = vmatpush1.msra.mxu0 0.0
    %1001 = vmatprep.subr.mxu0 0.0
    %1002 = vmatpush1.msra.mxu0 0.0
    %1003 = vmatprep.subr.mxu0 0.0
    %1004 = vmatpush1.msra.mxu0 0.0
    %1005 = vmatprep.subr.mxu0 %v403
    %1006 = vmatpush1.msra.mxu0 %v402
    %1007 = vmatprep.subr.mxu0 %v387
    %1008 = vmatpush1.msra.mxu0 %v386
    %1009 = vmatprep.subr.mxu0 %v371
    %1010 = vmatpush1.msra.mxu0 %v370
    %1011 = vmatprep.subr.mxu0 %v355
    %1012 = vmatpush1.msra.mxu0 %v354
    %1013 = vmatprep.subr.mxu0 %v339
    %1014 = vmatpush1.msra.mxu0 %v338
    %1015 = vmatprep.subr.mxu0 %v323
    %1016 = vmatpush1.msra.mxu0 %v322
    %1017 = vmatprep.subr.mxu0 %v307
    %1018 = vmatpush1.msra.mxu0 %v306
    %1019 = vmatprep.subr.mxu0 %v291
    %1020 = vmatpush1.msra.mxu0 %v290
    %1021 = vmatprep.subr.mxu0 0.0
    %1022 = vmatpush2.msra.mxu0 0.0
    %1023 = vmatprep.subr.mxu0 0.0
    %1024 = vmatpush2.msra.mxu0 0.0
    %1025 = vmatprep.subr.mxu0 0.0
    %1026 = vmatpush2.msra.mxu0 0.0
    %1027 = vmatprep.subr.mxu0 0.0
    %1028 = vmatpush2.msra.mxu0 0.0
    %1029 = vmatprep.subr.mxu0 0.0
    %1030 = vmatpush2.msra.mxu0 0.0
    %1031 = vmatprep.subr.mxu0 0.0
    %1032 = vmatpush2.msra.mxu0 0.0
    %1033 = vmatprep.subr.mxu0 0.0
    %1034 = vmatpush2.msra.mxu0 0.0
    %1035 = vmatprep.subr.mxu0 0.0
    %1036 = vmatpush2.msra.mxu0 0.0
    %1037 = vmatprep.subr.mxu0 0.0
    %1038 = vmatpush2.msra.mxu0 0.0
    %1039 = vmatprep.subr.mxu0 0.0
    %1040 = vmatpush2.msra.mxu0 0.0
    %1041 = vmatprep.subr.mxu0 0.0
    %1042 = vmatpush2.msra.mxu0 0.0
    %1043 = vmatprep.subr.mxu0 0.0
    %1044 = vmatpush2.msra.mxu0 0.0
    %1045 = vmatprep.subr.mxu0 0.0
    %1046 = vmatpush2.msra.mxu0 0.0
    %1047 = vmatprep.subr.mxu0 0.0
    %1048 = vmatpush2.msra.mxu0 0.0
    %1049 = vmatprep.subr.mxu0 0.0
    %1050 = vmatpush2.msra.mxu0 0.0
    %1051 = vmatprep.subr.mxu0 0.0
    %1052 = vmatpush2.msra.mxu0 0.0
    %1053 = vmatprep.mubr.f32.mxu0 0.0
    %1054 = vmatmul.mubr.f32.gmra.mxu0 %v490
    %v1055 = vpop.f32.mrf.mxu0
    %v1056 = vadd.f32 %v467, %v1055
    %v1057 = vpop.f32.mrf.mxu0
    %v1058 = vadd.f32 %v471, %v1057
    %1059 = vdwg.mxu0
    %v1060 = vld [vmem:[#allocation8] sm:$0xf]
    %v1061 = vld [vmem:[#allocation8 + $0x4] sm:$0xf]
    %v1062 = vld [vmem:[#allocation8 + $0x8] sm:$0xf]
    %v1063 = vld [vmem:[#allocation8 + $0xc] sm:$0xf]
    %v1064 = vld [vmem:[#allocation8 + $0x10] sm:$0xf]
    %v1065 = vld [vmem:[#allocation8 + $0x14] sm:$0xf]
    %v1066 = vld [vmem:[#allocation8 + $0x18] sm:$0xf]
    %v1067 = vld [vmem:[#allocation8 + $0x1c] sm:$0xf]
    %v1068 = vld [vmem:[#allocation8 + $0x20] sm:$0xf]
    %v1069 = vld [vmem:[#allocation8 + $0x24] sm:$0xf]
    %v1070 = vld [vmem:[#allocation8 + $0x28] sm:$0xf]
    %v1071 = vld [vmem:[#allocation8 + $0x2c] sm:$0xf]
    %v1072 = vld [vmem:[#allocation8 + $0x30] sm:$0xf]
    %v1073 = vld [vmem:[#allocation8 + $0x34] sm:$0xf]
    %v1074 = vld [vmem:[#allocation8 + $0x38] sm:$0xf]
    %v1075 = vld [vmem:[#allocation8 + $0x3c] sm:$0xf]
    %v1076 = vld [vmem:[#allocation8 + $0x40] sm:$0xf]
    %v1077 = vld [vmem:[#allocation8 + $0x44] sm:$0xf]
    %v1078 = vld [vmem:[#allocation8 + $0x48] sm:$0xf]
    %v1079 = vld [vmem:[#allocation8 + $0x4c] sm:$0xf]
    %v1080 = vld [vmem:[#allocation8 + $0x50] sm:$0xf]
    %v1081 = vld [vmem:[#allocation8 + $0x54] sm:$0xf]
    %v1082 = vld [vmem:[#allocation8 + $0x58] sm:$0xf]
    %v1083 = vld [vmem:[#allocation8 + $0x5c] sm:$0xf]
    %v1084 = vld [vmem:[#allocation8 + $0x60] sm:$0xf]
    %v1085 = vld [vmem:[#allocation8 + $0x64] sm:$0xf]
    %v1086 = vld [vmem:[#allocation8 + $0x68] sm:$0xf]
    %v1087 = vld [vmem:[#allocation8 + $0x6c] sm:$0xf]
    %v1088 = vld [vmem:[#allocation8 + $0x70] sm:$0xf]
    %v1089 = vld [vmem:[#allocation8 + $0x74] sm:$0xf]
    %v1090 = vld [vmem:[#allocation8 + $0x78] sm:$0xf]
    %v1091 = vld [vmem:[#allocation8 + $0x7c] sm:$0xf]
    %v1092 = vld [vmem:[#allocation8 + $0x80] sm:$0xf]
    %v1093 = vld [vmem:[#allocation8 + $0x84] sm:$0xf]
    %v1094 = vld [vmem:[#allocation8 + $0x88] sm:$0xf]
    %v1095 = vld [vmem:[#allocation8 + $0x8c] sm:$0xf]
    %v1096 = vld [vmem:[#allocation8 + $0x90] sm:$0xf]
    %v1097 = vld [vmem:[#allocation8 + $0x94] sm:$0xf]
    %v1098 = vld [vmem:[#allocation8 + $0x98] sm:$0xf]
    %v1099 = vld [vmem:[#allocation8 + $0x9c] sm:$0xf]
    %v1100 = vld [vmem:[#allocation8 + $0xa0] sm:$0xf]
    %v1101 = vld [vmem:[#allocation8 + $0xa4] sm:$0xf]
    %v1102 = vld [vmem:[#allocation8 + $0xa8] sm:$0xf]
    %v1103 = vld [vmem:[#allocation8 + $0xac] sm:$0xf]
    %v1104 = vld [vmem:[#allocation8 + $0xb0] sm:$0xf]
    %v1105 = vld [vmem:[#allocation8 + $0xb4] sm:$0xf]
    %v1106 = vld [vmem:[#allocation8 + $0xb8] sm:$0xf]
    %v1107 = vld [vmem:[#allocation8 + $0xbc] sm:$0xf]
    %v1108 = vld [vmem:[#allocation8 + $0xc0] sm:$0xf]
    %v1109 = vld [vmem:[#allocation8 + $0xc4] sm:$0xf]
    %v1110 = vld [vmem:[#allocation8 + $0xc8] sm:$0xf]
    %v1111 = vld [vmem:[#allocation8 + $0xcc] sm:$0xf]
    %v1112 = vld [vmem:[#allocation8 + $0xd0] sm:$0xf]
    %v1113 = vld [vmem:[#allocation8 + $0xd4] sm:$0xf]
    %v1114 = vld [vmem:[#allocation8 + $0xd8] sm:$0xf]
    %v1115 = vld [vmem:[#allocation8 + $0xdc] sm:$0xf]
    %v1116 = vld [vmem:[#allocation8 + $0xe0] sm:$0xf]
    %v1117 = vld [vmem:[#allocation8 + $0xe4] sm:$0xf]
    %v1118 = vld [vmem:[#allocation8 + $0xe8] sm:$0xf]
    %v1119 = vld [vmem:[#allocation8 + $0xec] sm:$0xf]
    %v1120 = vld [vmem:[#allocation8 + $0xf0] sm:$0xf]
    %v1121 = vld [vmem:[#allocation8 + $0xf4] sm:$0xf]
    %v1122 = vld [vmem:[#allocation8 + $0xf8] sm:$0xf]
    %v1123 = vld [vmem:[#allocation8 + $0xfc] sm:$0xf]
    %v1124 = vld [vmem:[#allocation8 + $0x100] sm:$0xf]
    %v1125 = vld [vmem:[#allocation8 + $0x104] sm:$0xf]
    %v1126 = vld [vmem:[#allocation8 + $0x108] sm:$0xf]
    %v1127 = vld [vmem:[#allocation8 + $0x10c] sm:$0xf]
    %v1128 = vld [vmem:[#allocation8 + $0x110] sm:$0xf]
    %v1129 = vld [vmem:[#allocation8 + $0x114] sm:$0xf]
    %v1130 = vld [vmem:[#allocation8 + $0x118] sm:$0xf]
    %v1131 = vld [vmem:[#allocation8 + $0x11c] sm:$0xf]
    %v1132 = vld [vmem:[#allocation8 + $0x120] sm:$0xf]
    %v1133 = vld [vmem:[#allocation8 + $0x124] sm:$0xf]
    %v1134 = vld [vmem:[#allocation8 + $0x128] sm:$0xf]
    %v1135 = vld [vmem:[#allocation8 + $0x12c] sm:$0xf]
    %v1136 = vld [vmem:[#allocation8 + $0x130] sm:$0xf]
    %v1137 = vld [vmem:[#allocation8 + $0x134] sm:$0xf]
    %v1138 = vld [vmem:[#allocation8 + $0x138] sm:$0xf]
    %v1139 = vld [vmem:[#allocation8 + $0x13c] sm:$0xf]
    %v1140 = vld [vmem:[#allocation8 + $0x140] sm:$0xf]
    %v1141 = vld [vmem:[#allocation8 + $0x144] sm:$0xf]
    %v1142 = vld [vmem:[#allocation8 + $0x148] sm:$0xf]
    %v1143 = vld [vmem:[#allocation8 + $0x14c] sm:$0xf]
    %v1144 = vld [vmem:[#allocation8 + $0x150] sm:$0xf]
    %v1145 = vld [vmem:[#allocation8 + $0x154] sm:$0xf]
    %v1146 = vld [vmem:[#allocation8 + $0x158] sm:$0xf]
    %v1147 = vld [vmem:[#allocation8 + $0x15c] sm:$0xf]
    %v1148 = vld [vmem:[#allocation8 + $0x160] sm:$0xf]
    %v1149 = vld [vmem:[#allocation8 + $0x164] sm:$0xf]
    %v1150 = vld [vmem:[#allocation8 + $0x168] sm:$0xf]
    %v1151 = vld [vmem:[#allocation8 + $0x16c] sm:$0xf]
    %v1152 = vld [vmem:[#allocation8 + $0x170] sm:$0xf]
    %v1153 = vld [vmem:[#allocation8 + $0x174] sm:$0xf]
    %v1154 = vld [vmem:[#allocation8 + $0x178] sm:$0xf]
    %v1155 = vld [vmem:[#allocation8 + $0x17c] sm:$0xf]
    %v1156 = vld [vmem:[#allocation8 + $0x180] sm:$0xf]
    %v1157 = vld [vmem:[#allocation8 + $0x184] sm:$0xf]
    %v1158 = vld [vmem:[#allocation8 + $0x188] sm:$0xf]
    %v1159 = vld [vmem:[#allocation8 + $0x18c] sm:$0xf]
    %v1160 = vld [vmem:[#allocation8 + $0x190] sm:$0xf]
    %v1161 = vld [vmem:[#allocation8 + $0x194] sm:$0xf]
    %v1162 = vld [vmem:[#allocation8 + $0x198] sm:$0xf]
    %v1163 = vld [vmem:[#allocation8 + $0x19c] sm:$0xf]
    %v1164 = vld [vmem:[#allocation8 + $0x1a0] sm:$0xf]
    %v1165 = vld [vmem:[#allocation8 + $0x1a4] sm:$0xf]
    %v1166 = vld [vmem:[#allocation8 + $0x1a8] sm:$0xf]
    %v1167 = vld [vmem:[#allocation8 + $0x1ac] sm:$0xf]
    %v1168 = vld [vmem:[#allocation8 + $0x1b0] sm:$0xf]
    %v1169 = vld [vmem:[#allocation8 + $0x1b4] sm:$0xf]
    %v1170 = vld [vmem:[#allocation8 + $0x1b8] sm:$0xf]
    %v1171 = vld [vmem:[#allocation8 + $0x1bc] sm:$0xf]
    %v1172 = vld [vmem:[#allocation8 + $0x1c0] sm:$0xf]
    %v1173 = vld [vmem:[#allocation8 + $0x1c4] sm:$0xf]
    %v1174 = vld [vmem:[#allocation8 + $0x1c8] sm:$0xf]
    %v1175 = vld [vmem:[#allocation8 + $0x1cc] sm:$0xf]
    %v1176 = vld [vmem:[#allocation8 + $0x1d0] sm:$0xf]
    %v1177 = vld [vmem:[#allocation8 + $0x1d4] sm:$0xf]
    %v1178 = vld [vmem:[#allocation8 + $0x1d8] sm:$0xf]
    %v1179 = vld [vmem:[#allocation8 + $0x1dc] sm:$0xf]
    %v1180 = vld [vmem:[#allocation8 + $0x1e0] sm:$0xf]
    %v1181 = vld [vmem:[#allocation8 + $0x1e4] sm:$0xf]
    %v1182 = vld [vmem:[#allocation8 + $0x1e8] sm:$0xf]
    %v1183 = vld [vmem:[#allocation8 + $0x1ec] sm:$0xf]
    %v1184 = vld [vmem:[#allocation8 + $0x1f0] sm:$0xf]
    %v1185 = vld [vmem:[#allocation8 + $0x1f4] sm:$0xf]
    %v1186 = vld [vmem:[#allocation8 + $0x1f8] sm:$0xf]
    %v1187 = vld [vmem:[#allocation8 + $0x1fc] sm:$0xf]
    %v1188 = vld [vmem:[#allocation8 + $0x200] sm:$0xf]
    %v1189 = vld [vmem:[#allocation8 + $0x204] sm:$0xf]
    %v1190 = vld [vmem:[#allocation8 + $0x208] sm:$0xf]
    %v1191 = vld [vmem:[#allocation8 + $0x20c] sm:$0xf]
    %v1192 = vld [vmem:[#allocation8 + $0x210] sm:$0xf]
    %v1193 = vld [vmem:[#allocation8 + $0x214] sm:$0xf]
    %v1194 = vld [vmem:[#allocation8 + $0x218] sm:$0xf]
    %v1195 = vld [vmem:[#allocation8 + $0x21c] sm:$0xf]
    %v1196 = vld [vmem:[#allocation8 + $0x220] sm:$0xf]
    %v1197 = vld [vmem:[#allocation8 + $0x224] sm:$0xf]
    %v1198 = vld [vmem:[#allocation8 + $0x228] sm:$0xf]
    %v1199 = vld [vmem:[#allocation8 + $0x22c] sm:$0xf]
    %v1200 = vld [vmem:[#allocation8 + $0x230] sm:$0xf]
    %v1201 = vld [vmem:[#allocation8 + $0x234] sm:$0xf]
    %v1202 = vld [vmem:[#allocation8 + $0x238] sm:$0xf]
    %v1203 = vld [vmem:[#allocation8 + $0x23c] sm:$0xf]
    %v1204 = vld [vmem:[#allocation8 + $0x240] sm:$0xf]
    %v1205 = vld [vmem:[#allocation8 + $0x244] sm:$0xf]
    %v1206 = vld [vmem:[#allocation8 + $0x248] sm:$0xf]
    %v1207 = vld [vmem:[#allocation8 + $0x24c] sm:$0xf]
    %v1208 = vld [vmem:[#allocation8 + $0x250] sm:$0xf]
    %v1209 = vld [vmem:[#allocation8 + $0x254] sm:$0xf]
    %v1210 = vld [vmem:[#allocation8 + $0x258] sm:$0xf]
    %v1211 = vld [vmem:[#allocation8 + $0x25c] sm:$0xf]
    %v1212 = vld [vmem:[#allocation8 + $0x260] sm:$0xf]
    %v1213 = vld [vmem:[#allocation8 + $0x264] sm:$0xf]
    %v1214 = vld [vmem:[#allocation8 + $0x268] sm:$0xf]
    %v1215 = vld [vmem:[#allocation8 + $0x26c] sm:$0xf]
    %v1216 = vld [vmem:[#allocation8 + $0x270] sm:$0xf]
    %v1217 = vld [vmem:[#allocation8 + $0x274] sm:$0xf]
    %v1218 = vld [vmem:[#allocation8 + $0x278] sm:$0xf]
    %v1219 = vld [vmem:[#allocation8 + $0x27c] sm:$0xf]
    %v1220 = vld [vmem:[#allocation8 + $0x280] sm:$0xf]
    %v1221 = vld [vmem:[#allocation8 + $0x284] sm:$0xf]
    %v1222 = vld [vmem:[#allocation8 + $0x288] sm:$0xf]
    %v1223 = vld [vmem:[#allocation8 + $0x28c] sm:$0xf]
    %v1224 = vld [vmem:[#allocation8 + $0x290] sm:$0xf]
    %v1225 = vld [vmem:[#allocation8 + $0x294] sm:$0xf]
    %v1226 = vld [vmem:[#allocation8 + $0x298] sm:$0xf]
    %v1227 = vld [vmem:[#allocation8 + $0x29c] sm:$0xf]
    %v1228 = vld [vmem:[#allocation8 + $0x2a0] sm:$0xf]
    %v1229 = vld [vmem:[#allocation8 + $0x2a4] sm:$0xf]
    %v1230 = vld [vmem:[#allocation8 + $0x2a8] sm:$0xf]
    %v1231 = vld [vmem:[#allocation8 + $0x2ac] sm:$0xf]
    %v1232 = vld [vmem:[#allocation8 + $0x2b0] sm:$0xf]
    %v1233 = vld [vmem:[#allocation8 + $0x2b4] sm:$0xf]
    %v1234 = vld [vmem:[#allocation8 + $0x2b8] sm:$0xf]
    %v1235 = vld [vmem:[#allocation8 + $0x2bc] sm:$0xf]
    %v1236 = vld [vmem:[#allocation8 + $0x2c0] sm:$0xf]
    %v1237 = vld [vmem:[#allocation8 + $0x2c4] sm:$0xf]
    %v1238 = vld [vmem:[#allocation8 + $0x2c8] sm:$0xf]
    %v1239 = vld [vmem:[#allocation8 + $0x2cc] sm:$0xf]
    %v1240 = vld [vmem:[#allocation8 + $0x2d0] sm:$0xf]
    %v1241 = vld [vmem:[#allocation8 + $0x2d4] sm:$0xf]
    %v1242 = vld [vmem:[#allocation8 + $0x2d8] sm:$0xf]
    %v1243 = vld [vmem:[#allocation8 + $0x2dc] sm:$0xf]
    %v1244 = vld [vmem:[#allocation8 + $0x2e0] sm:$0xf]
    %v1245 = vld [vmem:[#allocation8 + $0x2e4] sm:$0xf]
    %v1246 = vld [vmem:[#allocation8 + $0x2e8] sm:$0xf]
    %v1247 = vld [vmem:[#allocation8 + $0x2ec] sm:$0xf]
    %v1248 = vld [vmem:[#allocation8 + $0x2f0] sm:$0xf]
    %v1249 = vld [vmem:[#allocation8 + $0x2f4] sm:$0xf]
    %v1250 = vld [vmem:[#allocation8 + $0x2f8] sm:$0xf]
    %v1251 = vld [vmem:[#allocation8 + $0x2fc] sm:$0xf]
    %v1252 = vld [vmem:[#allocation8 + $0x300] sm:$0xf]
    %v1253 = vld [vmem:[#allocation8 + $0x304] sm:$0xf]
    %v1254 = vld [vmem:[#allocation8 + $0x308] sm:$0xf]
    %v1255 = vld [vmem:[#allocation8 + $0x30c] sm:$0xf]
    %v1256 = vld [vmem:[#allocation8 + $0x310] sm:$0xf]
    %v1257 = vld [vmem:[#allocation8 + $0x314] sm:$0xf]
    %v1258 = vld [vmem:[#allocation8 + $0x318] sm:$0xf]
    %v1259 = vld [vmem:[#allocation8 + $0x31c] sm:$0xf]
    %v1260 = vld [vmem:[#allocation8 + $0x320] sm:$0xf]
    %v1261 = vld [vmem:[#allocation8 + $0x324] sm:$0xf]
    %v1262 = vld [vmem:[#allocation8 + $0x328] sm:$0xf]
    %v1263 = vld [vmem:[#allocation8 + $0x32c] sm:$0xf]
    %v1264 = vld [vmem:[#allocation8 + $0x330] sm:$0xf]
    %v1265 = vld [vmem:[#allocation8 + $0x334] sm:$0xf]
    %v1266 = vld [vmem:[#allocation8 + $0x338] sm:$0xf]
    %v1267 = vld [vmem:[#allocation8 + $0x33c] sm:$0xf]
    %v1268 = vld [vmem:[#allocation8 + $0x340] sm:$0xf]
    %v1269 = vld [vmem:[#allocation8 + $0x344] sm:$0xf]
    %v1270 = vld [vmem:[#allocation8 + $0x348] sm:$0xf]
    %v1271 = vld [vmem:[#allocation8 + $0x34c] sm:$0xf]
    %v1272 = vld [vmem:[#allocation8 + $0x350] sm:$0xf]
    %v1273 = vld [vmem:[#allocation8 + $0x354] sm:$0xf]
    %v1274 = vld [vmem:[#allocation8 + $0x358] sm:$0xf]
    %v1275 = vld [vmem:[#allocation8 + $0x35c] sm:$0xf]
    %v1276 = vld [vmem:[#allocation8 + $0x360] sm:$0xf]
    %v1277 = vld [vmem:[#allocation8 + $0x364] sm:$0xf]
    %v1278 = vld [vmem:[#allocation8 + $0x368] sm:$0xf]
    %v1279 = vld [vmem:[#allocation8 + $0x36c] sm:$0xf]
    %v1280 = vld [vmem:[#allocation8 + $0x370] sm:$0xf]
    %v1281 = vld [vmem:[#allocation8 + $0x374] sm:$0xf]
    %v1282 = vld [vmem:[#allocation8 + $0x378] sm:$0xf]
    %v1283 = vld [vmem:[#allocation8 + $0x37c] sm:$0xf]
    %v1284 = vld [vmem:[#allocation8 + $0x380] sm:$0xf]
    %v1285 = vld [vmem:[#allocation8 + $0x384] sm:$0xf]
    %v1286 = vld [vmem:[#allocation8 + $0x388] sm:$0xf]
    %v1287 = vld [vmem:[#allocation8 + $0x38c] sm:$0xf]
    %v1288 = vld [vmem:[#allocation8 + $0x390] sm:$0xf]
    %v1289 = vld [vmem:[#allocation8 + $0x394] sm:$0xf]
    %v1290 = vld [vmem:[#allocation8 + $0x398] sm:$0xf]
    %v1291 = vld [vmem:[#allocation8 + $0x39c] sm:$0xf]
    %v1292 = vld [vmem:[#allocation8 + $0x3a0] sm:$0xf]
    %v1293 = vld [vmem:[#allocation8 + $0x3a4] sm:$0xf]
    %v1294 = vld [vmem:[#allocation8 + $0x3a8] sm:$0xf]
    %v1295 = vld [vmem:[#allocation8 + $0x3ac] sm:$0xf]
    %v1296 = vld [vmem:[#allocation8 + $0x3b0] sm:$0xf]
    %v1297 = vld [vmem:[#allocation8 + $0x3b4] sm:$0xf]
    %v1298 = vld [vmem:[#allocation8 + $0x3b8] sm:$0xf]
    %v1299 = vld [vmem:[#allocation8 + $0x3bc] sm:$0xf]
    %v1300 = vld [vmem:[#allocation8 + $0x3c0] sm:$0xf]
    %v1301 = vld [vmem:[#allocation8 + $0x3c4] sm:$0xf]
    %v1302 = vld [vmem:[#allocation8 + $0x3c8] sm:$0xf]
    %v1303 = vld [vmem:[#allocation8 + $0x3cc] sm:$0xf]
    %v1304 = vld [vmem:[#allocation8 + $0x3d0] sm:$0xf]
    %v1305 = vld [vmem:[#allocation8 + $0x3d4] sm:$0xf]
    %v1306 = vld [vmem:[#allocation8 + $0x3d8] sm:$0xf]
    %v1307 = vld [vmem:[#allocation8 + $0x3dc] sm:$0xf]
    %v1308 = vld [vmem:[#allocation8 + $0x3e0] sm:$0xf]
    %v1309 = vld [vmem:[#allocation8 + $0x3e4] sm:$0xf]
    %v1310 = vld [vmem:[#allocation8 + $0x3e8] sm:$0xf]
    %v1311 = vld [vmem:[#allocation8 + $0x3ec] sm:$0xf]
    %v1312 = vld [vmem:[#allocation8 + $0x3f0] sm:$0xf]
    %v1313 = vld [vmem:[#allocation8 + $0x3f4] sm:$0xf]
    %v1314 = vld [vmem:[#allocation8 + $0x3f8] sm:$0xf]
    %v1315 = vld [vmem:[#allocation8 + $0x3fc] sm:$0xf]
    %v1316 = vunpack.c.l.bf16 %v1060
    %v1317 = vunpack.c.l.bf16 %v1061
    %v1318 = vunpack.c.l.bf16 %v1062
    %v1319 = vunpack.c.l.bf16 %v1063
    %v1320 = vunpack.c.l.bf16 %v1064
    %v1321 = vunpack.c.l.bf16 %v1065
    %v1322 = vunpack.c.l.bf16 %v1066
    %v1323 = vunpack.c.l.bf16 %v1067
    %v1324 = vunpack.c.l.bf16 %v1068
    %v1325 = vunpack.c.l.bf16 %v1069
    %v1326 = vunpack.c.l.bf16 %v1070
    %v1327 = vunpack.c.l.bf16 %v1071
    %v1328 = vunpack.c.l.bf16 %v1072
    %v1329 = vunpack.c.l.bf16 %v1073
    %v1330 = vunpack.c.l.bf16 %v1074
    %v1331 = vunpack.c.l.bf16 %v1075
    %v1332 = vunpack.c.l.bf16 %v1076
    %v1333 = vunpack.c.l.bf16 %v1077
    %v1334 = vunpack.c.l.bf16 %v1078
    %v1335 = vunpack.c.l.bf16 %v1079
    %v1336 = vunpack.c.l.bf16 %v1080
    %v1337 = vunpack.c.l.bf16 %v1081
    %v1338 = vunpack.c.l.bf16 %v1082
    %v1339 = vunpack.c.l.bf16 %v1083
    %v1340 = vunpack.c.l.bf16 %v1084
    %v1341 = vunpack.c.l.bf16 %v1085
    %v1342 = vunpack.c.l.bf16 %v1086
    %v1343 = vunpack.c.l.bf16 %v1087
    %v1344 = vunpack.c.l.bf16 %v1088
    %v1345 = vunpack.c.l.bf16 %v1089
    %v1346 = vunpack.c.l.bf16 %v1090
    %v1347 = vunpack.c.l.bf16 %v1091
    %v1348 = vunpack.c.l.bf16 %v1092
    %v1349 = vunpack.c.l.bf16 %v1093
    %v1350 = vunpack.c.l.bf16 %v1094
    %v1351 = vunpack.c.l.bf16 %v1095
    %v1352 = vunpack.c.l.bf16 %v1096
    %v1353 = vunpack.c.l.bf16 %v1097
    %v1354 = vunpack.c.l.bf16 %v1098
    %v1355 = vunpack.c.l.bf16 %v1099
    %v1356 = vunpack.c.l.bf16 %v1100
    %v1357 = vunpack.c.l.bf16 %v1101
    %v1358 = vunpack.c.l.bf16 %v1102
    %v1359 = vunpack.c.l.bf16 %v1103
    %v1360 = vunpack.c.l.bf16 %v1104
    %v1361 = vunpack.c.l.bf16 %v1105
    %v1362 = vunpack.c.l.bf16 %v1106
    %v1363 = vunpack.c.l.bf16 %v1107
    %v1364 = vunpack.c.l.bf16 %v1108
    %v1365 = vunpack.c.l.bf16 %v1109
    %v1366 = vunpack.c.l.bf16 %v1110
    %v1367 = vunpack.c.l.bf16 %v1111
    %v1368 = vunpack.c.l.bf16 %v1112
    %v1369 = vunpack.c.l.bf16 %v1113
    %v1370 = vunpack.c.l.bf16 %v1114
    %v1371 = vunpack.c.l.bf16 %v1115
    %v1372 = vunpack.c.l.bf16 %v1116
    %v1373 = vunpack.c.l.bf16 %v1117
    %v1374 = vunpack.c.l.bf16 %v1118
    %v1375 = vunpack.c.l.bf16 %v1119
    %v1376 = vunpack.c.l.bf16 %v1120
    %v1377 = vunpack.c.l.bf16 %v1121
    %v1378 = vunpack.c.l.bf16 %v1122
    %v1379 = vunpack.c.l.bf16 %v1123
    %v1380 = vunpack.c.l.bf16 %v1124
    %v1381 = vunpack.c.l.bf16 %v1125
    %v1382 = vunpack.c.l.bf16 %v1126
    %v1383 = vunpack.c.l.bf16 %v1127
    %v1384 = vunpack.c.l.bf16 %v1128
    %v1385 = vunpack.c.l.bf16 %v1129
    %v1386 = vunpack.c.l.bf16 %v1130
    %v1387 = vunpack.c.l.bf16 %v1131
    %v1388 = vunpack.c.l.bf16 %v1132
    %v1389 = vunpack.c.l.bf16 %v1133
    %v1390 = vunpack.c.l.bf16 %v1134
    %v1391 = vunpack.c.l.bf16 %v1135
    %v1392 = vunpack.c.l.bf16 %v1136
    %v1393 = vunpack.c.l.bf16 %v1137
    %v1394 = vunpack.c.l.bf16 %v1138
    %v1395 = vunpack.c.l.bf16 %v1139
    %v1396 = vunpack.c.l.bf16 %v1140
    %v1397 = vunpack.c.l.bf16 %v1141
    %v1398 = vunpack.c.l.bf16 %v1142
    %v1399 = vunpack.c.l.bf16 %v1143
    %v1400 = vunpack.c.l.bf16 %v1144
    %v1401 = vunpack.c.l.bf16 %v1145
    %v1402 = vunpack.c.l.bf16 %v1146
    %v1403 = vunpack.c.l.bf16 %v1147
    %v1404 = vunpack.c.l.bf16 %v1148
    %v1405 = vunpack.c.l.bf16 %v1149
    %v1406 = vunpack.c.l.bf16 %v1150
    %v1407 = vunpack.c.l.bf16 %v1151
    %v1408 = vunpack.c.l.bf16 %v1152
    %v1409 = vunpack.c.l.bf16 %v1153
    %v1410 = vunpack.c.l.bf16 %v1154
    %v1411 = vunpack.c.l.bf16 %v1155
    %v1412 = vunpack.c.l.bf16 %v1156
    %v1413 = vunpack.c.l.bf16 %v1157
    %v1414 = vunpack.c.l.bf16 %v1158
    %v1415 = vunpack.c.l.bf16 %v1159
    %v1416 = vunpack.c.l.bf16 %v1160
    %v1417 = vunpack.c.l.bf16 %v1161
    %v1418 = vunpack.c.l.bf16 %v1162
    %v1419 = vunpack.c.l.bf16 %v1163
    %v1420 = vunpack.c.l.bf16 %v1164
    %v1421 = vunpack.c.l.bf16 %v1165
    %v1422 = vunpack.c.l.bf16 %v1166
    %v1423 = vunpack.c.l.bf16 %v1167
    %v1424 = vunpack.c.l.bf16 %v1168
    %v1425 = vunpack.c.l.bf16 %v1169
    %v1426 = vunpack.c.l.bf16 %v1170
    %v1427 = vunpack.c.l.bf16 %v1171
    %v1428 = vunpack.c.l.bf16 %v1172
    %v1429 = vunpack.c.l.bf16 %v1173
    %v1430 = vunpack.c.l.bf16 %v1174
    %v1431 = vunpack.c.l.bf16 %v1175
    %v1432 = vunpack.c.l.bf16 %v1176
    %v1433 = vunpack.c.l.bf16 %v1177
    %v1434 = vunpack.c.l.bf16 %v1178
    %v1435 = vunpack.c.l.bf16 %v1179
    %v1436 = vunpack.c.l.bf16 %v1180
    %v1437 = vunpack.c.l.bf16 %v1181
    %v1438 = vunpack.c.l.bf16 %v1182
    %v1439 = vunpack.c.l.bf16 %v1183
    %v1440 = vunpack.c.l.bf16 %v1184
    %v1441 = vunpack.c.l.bf16 %v1185
    %v1442 = vunpack.c.l.bf16 %v1186
    %v1443 = vunpack.c.l.bf16 %v1187
    %v1444 = vunpack.c.l.bf16 %v1188
    %v1445 = vunpack.c.l.bf16 %v1189
    %v1446 = vunpack.c.l.bf16 %v1190
    %v1447 = vunpack.c.l.bf16 %v1191
    %v1448 = vunpack.c.l.bf16 %v1192
    %v1449 = vunpack.c.l.bf16 %v1193
    %v1450 = vunpack.c.l.bf16 %v1194
    %v1451 = vunpack.c.l.bf16 %v1195
    %v1452 = vunpack.c.l.bf16 %v1196
    %v1453 = vunpack.c.l.bf16 %v1197
    %v1454 = vunpack.c.l.bf16 %v1198
    %v1455 = vunpack.c.l.bf16 %v1199
    %v1456 = vunpack.c.l.bf16 %v1200
    %v1457 = vunpack.c.l.bf16 %v1201
    %v1458 = vunpack.c.l.bf16 %v1202
    %v1459 = vunpack.c.l.bf16 %v1203
    %v1460 = vunpack.c.l.bf16 %v1204
    %v1461 = vunpack.c.l.bf16 %v1205
    %v1462 = vunpack.c.l.bf16 %v1206
    %v1463 = vunpack.c.l.bf16 %v1207
    %v1464 = vunpack.c.l.bf16 %v1208
    %v1465 = vunpack.c.l.bf16 %v1209
    %v1466 = vunpack.c.l.bf16 %v1210
    %v1467 = vunpack.c.l.bf16 %v1211
    %v1468 = vunpack.c.l.bf16 %v1212
    %v1469 = vunpack.c.l.bf16 %v1213
    %v1470 = vunpack.c.l.bf16 %v1214
    %v1471 = vunpack.c.l.bf16 %v1215
    %v1472 = vunpack.c.l.bf16 %v1216
    %v1473 = vunpack.c.l.bf16 %v1217
    %v1474 = vunpack.c.l.bf16 %v1218
    %v1475 = vunpack.c.l.bf16 %v1219
    %v1476 = vunpack.c.l.bf16 %v1220
    %v1477 = vunpack.c.l.bf16 %v1221
    %v1478 = vunpack.c.l.bf16 %v1222
    %v1479 = vunpack.c.l.bf16 %v1223
    %v1480 = vunpack.c.l.bf16 %v1224
    %v1481 = vunpack.c.l.bf16 %v1225
    %v1482 = vunpack.c.l.bf16 %v1226
    %v1483 = vunpack.c.l.bf16 %v1227
    %v1484 = vunpack.c.l.bf16 %v1228
    %v1485 = vunpack.c.l.bf16 %v1229
    %v1486 = vunpack.c.l.bf16 %v1230
    %v1487 = vunpack.c.l.bf16 %v1231
    %v1488 = vunpack.c.l.bf16 %v1232
    %v1489 = vunpack.c.l.bf16 %v1233
    %v1490 = vunpack.c.l.bf16 %v1234
    %v1491 = vunpack.c.l.bf16 %v1235
    %v1492 = vunpack.c.l.bf16 %v1236
    %v1493 = vunpack.c.l.bf16 %v1237
    %v1494 = vunpack.c.l.bf16 %v1238
    %v1495 = vunpack.c.l.bf16 %v1239
    %v1496 = vunpack.c.l.bf16 %v1240
    %v1497 = vunpack.c.l.bf16 %v1241
    %v1498 = vunpack.c.l.bf16 %v1242
    %v1499 = vunpack.c.l.bf16 %v1243
    %v1500 = vunpack.c.l.bf16 %v1244
    %v1501 = vunpack.c.l.bf16 %v1245
    %v1502 = vunpack.c.l.bf16 %v1246
    %v1503 = vunpack.c.l.bf16 %v1247
    %v1504 = vunpack.c.l.bf16 %v1248
    %v1505 = vunpack.c.l.bf16 %v1249
    %v1506 = vunpack.c.l.bf16 %v1250
    %v1507 = vunpack.c.l.bf16 %v1251
    %v1508 = vunpack.c.l.bf16 %v1252
    %v1509 = vunpack.c.l.bf16 %v1253
    %v1510 = vunpack.c.l.bf16 %v1254
    %v1511 = vunpack.c.l.bf16 %v1255
    %v1512 = vunpack.c.l.bf16 %v1256
    %v1513 = vunpack.c.l.bf16 %v1257
    %v1514 = vunpack.c.l.bf16 %v1258
    %v1515 = vunpack.c.l.bf16 %v1259
    %v1516 = vunpack.c.l.bf16 %v1260
    %v1517 = vunpack.c.l.bf16 %v1261
    %v1518 = vunpack.c.l.bf16 %v1262
    %v1519 = vunpack.c.l.bf16 %v1263
    %v1520 = vunpack.c.l.bf16 %v1264
    %v1521 = vunpack.c.l.bf16 %v1265
    %v1522 = vunpack.c.l.bf16 %v1266
    %v1523 = vunpack.c.l.bf16 %v1267
    %v1524 = vunpack.c.l.bf16 %v1268
    %v1525 = vunpack.c.l.bf16 %v1269
    %v1526 = vunpack.c.l.bf16 %v1270
    %v1527 = vunpack.c.l.bf16 %v1271
    %v1528 = vunpack.c.l.bf16 %v1272
    %v1529 = vunpack.c.l.bf16 %v1273
    %v1530 = vunpack.c.l.bf16 %v1274
    %v1531 = vunpack.c.l.bf16 %v1275
    %v1532 = vunpack.c.l.bf16 %v1276
    %v1533 = vunpack.c.l.bf16 %v1277
    %v1534 = vunpack.c.l.bf16 %v1278
    %v1535 = vunpack.c.l.bf16 %v1279
    %v1536 = vunpack.c.l.bf16 %v1280
    %v1537 = vunpack.c.l.bf16 %v1281
    %v1538 = vunpack.c.l.bf16 %v1282
    %v1539 = vunpack.c.l.bf16 %v1283
    %v1540 = vunpack.c.l.bf16 %v1284
    %v1541 = vunpack.c.l.bf16 %v1285
    %v1542 = vunpack.c.l.bf16 %v1286
    %v1543 = vunpack.c.l.bf16 %v1287
    %v1544 = vunpack.c.l.bf16 %v1288
    %v1545 = vunpack.c.l.bf16 %v1289
    %v1546 = vunpack.c.l.bf16 %v1290
    %v1547 = vunpack.c.l.bf16 %v1291
    %v1548 = vunpack.c.l.bf16 %v1292
    %v1549 = vunpack.c.l.bf16 %v1293
    %v1550 = vunpack.c.l.bf16 %v1294
    %v1551 = vunpack.c.l.bf16 %v1295
    %v1552 = vunpack.c.l.bf16 %v1296
    %v1553 = vunpack.c.l.bf16 %v1297
    %v1554 = vunpack.c.l.bf16 %v1298
    %v1555 = vunpack.c.l.bf16 %v1299
    %v1556 = vunpack.c.l.bf16 %v1300
    %v1557 = vunpack.c.l.bf16 %v1301
    %v1558 = vunpack.c.l.bf16 %v1302
    %v1559 = vunpack.c.l.bf16 %v1303
    %v1560 = vunpack.c.l.bf16 %v1304
    %v1561 = vunpack.c.l.bf16 %v1305
    %v1562 = vunpack.c.l.bf16 %v1306
    %v1563 = vunpack.c.l.bf16 %v1307
    %v1564 = vunpack.c.l.bf16 %v1308
    %v1565 = vunpack.c.l.bf16 %v1309
    %v1566 = vunpack.c.l.bf16 %v1310
    %v1567 = vunpack.c.l.bf16 %v1311
    %v1568 = vunpack.c.l.bf16 %v1312
    %v1569 = vunpack.c.l.bf16 %v1313
    %v1570 = vunpack.c.l.bf16 %v1314
    %v1571 = vunpack.c.l.bf16 %v1315
    %v1572 = vld [vmem:[#allocation10] sm:$0x1]
    %v1574 = vlaneseq
    %v1575 = vshrl.u32 %v1574, 7
    %v1576 = vsub.s32 0, %v1575
    %v1577 = vrot.slane %v1572, %v1576
    %1579 = vmatprep.subr.mxu0 0.0
    %1580 = vmatpush1.msra.mxu0 %v1331
    %1581 = vmatprep.subr.mxu0 0.0
    %1582 = vmatpush1.msra.mxu0 %v1330
    %1583 = vmatprep.subr.mxu0 0.0
    %1584 = vmatpush1.msra.mxu0 %v1329
    %1585 = vmatprep.subr.mxu0 0.0
    %1586 = vmatpush1.msra.mxu0 %v1328
    %1587 = vmatprep.subr.mxu0 0.0
    %1588 = vmatpush1.msra.mxu0 %v1327
    %1589 = vmatprep.subr.mxu0 0.0
    %1590 = vmatpush1.msra.mxu0 %v1326
    %1591 = vmatprep.subr.mxu0 0.0
    %1592 = vmatpush1.msra.mxu0 %v1325
    %1593 = vmatprep.subr.mxu0 0.0
    %1594 = vmatpush1.msra.mxu0 %v1324
    %1595 = vmatprep.subr.mxu0 0.0
    %1596 = vmatpush1.msra.mxu0 %v1323
    %1597 = vmatprep.subr.mxu0 0.0
    %1598 = vmatpush1.msra.mxu0 %v1322
    %1599 = vmatprep.subr.mxu0 0.0
    %1600 = vmatpush1.msra.mxu0 %v1321
    %1601 = vmatprep.subr.mxu0 0.0
    %1602 = vmatpush1.msra.mxu0 %v1320
    %1603 = vmatprep.subr.mxu0 0.0
    %1604 = vmatpush1.msra.mxu0 %v1319
    %1605 = vmatprep.subr.mxu0 0.0
    %1606 = vmatpush1.msra.mxu0 %v1318
    %1607 = vmatprep.subr.mxu0 0.0
    %1608 = vmatpush1.msra.mxu0 %v1317
    %1609 = vmatprep.subr.mxu0 0.0
    %1610 = vmatpush1.msra.mxu0 %v1316
    %1611 = vmatprep.subr.mxu0 0.0
    %1612 = vmatpush2.msra.mxu0 %v1347
    %1613 = vmatprep.subr.mxu0 0.0
    %1614 = vmatpush2.msra.mxu0 %v1346
    %1615 = vmatprep.subr.mxu0 0.0
    %1616 = vmatpush2.msra.mxu0 %v1345
    %1617 = vmatprep.subr.mxu0 0.0
    %1618 = vmatpush2.msra.mxu0 %v1344
    %1619 = vmatprep.subr.mxu0 0.0
    %1620 = vmatpush2.msra.mxu0 %v1343
    %1621 = vmatprep.subr.mxu0 0.0
    %1622 = vmatpush2.msra.mxu0 %v1342
    %1623 = vmatprep.subr.mxu0 0.0
    %1624 = vmatpush2.msra.mxu0 %v1341
    %1625 = vmatprep.subr.mxu0 0.0
    %1626 = vmatpush2.msra.mxu0 %v1340
    %1627 = vmatprep.subr.mxu0 0.0
    %1628 = vmatpush2.msra.mxu0 %v1339
    %1629 = vmatprep.subr.mxu0 0.0
    %1630 = vmatpush2.msra.mxu0 %v1338
    %1631 = vmatprep.subr.mxu0 0.0
    %1632 = vmatpush2.msra.mxu0 %v1337
    %1633 = vmatprep.subr.mxu0 0.0
    %1634 = vmatpush2.msra.mxu0 %v1336
    %1635 = vmatprep.subr.mxu0 0.0
    %1636 = vmatpush2.msra.mxu0 %v1335
    %1637 = vmatprep.subr.mxu0 0.0
    %1638 = vmatpush2.msra.mxu0 %v1334
    %1639 = vmatprep.subr.mxu0 0.0
    %1640 = vmatpush2.msra.mxu0 %v1333
    %1641 = vmatprep.subr.mxu0 0.0
    %1642 = vmatpush2.msra.mxu0 %v1332
    %1643 = vmatprep.mubr.f32.mxu0 %v561
    %1644 = vmatmul.mubr.f32.gmra.mxu0 %v559
    %v1645 = vpop.f32.mrf.mxu0
    %v1646 = vadd.f32 %v1577, %v1645
    %v1647 = vpop.f32.mrf.mxu0
    %1648 = vdwg.mxu0
    %1649 = vmatprep.subr.mxu0 0.0
    %1650 = vmatpush1.msra.mxu0 %v1363
    %1651 = vmatprep.subr.mxu0 0.0
    %1652 = vmatpush1.msra.mxu0 %v1362
    %1653 = vmatprep.subr.mxu0 0.0
    %1654 = vmatpush1.msra.mxu0 %v1361
    %1655 = vmatprep.subr.mxu0 0.0
    %1656 = vmatpush1.msra.mxu0 %v1360
    %1657 = vmatprep.subr.mxu0 0.0
    %1658 = vmatpush1.msra.mxu0 %v1359
    %1659 = vmatprep.subr.mxu0 0.0
    %1660 = vmatpush1.msra.mxu0 %v1358
    %1661 = vmatprep.subr.mxu0 0.0
    %1662 = vmatpush1.msra.mxu0 %v1357
    %1663 = vmatprep.subr.mxu0 0.0
    %1664 = vmatpush1.msra.mxu0 %v1356
    %1665 = vmatprep.subr.mxu0 0.0
    %1666 = vmatpush1.msra.mxu0 %v1355
    %1667 = vmatprep.subr.mxu0 0.0
    %1668 = vmatpush1.msra.mxu0 %v1354
    %1669 = vmatprep.subr.mxu0 0.0
    %1670 = vmatpush1.msra.mxu0 %v1353
    %1671 = vmatprep.subr.mxu0 0.0
    %1672 = vmatpush1.msra.mxu0 %v1352
    %1673 = vmatprep.subr.mxu0 0.0
    %1674 = vmatpush1.msra.mxu0 %v1351
    %1675 = vmatprep.subr.mxu0 0.0
    %1676 = vmatpush1.msra.mxu0 %v1350
    %1677 = vmatprep.subr.mxu0 0.0
    %1678 = vmatpush1.msra.mxu0 %v1349
    %1679 = vmatprep.subr.mxu0 0.0
    %1680 = vmatpush1.msra.mxu0 %v1348
    %1681 = vmatprep.subr.mxu0 0.0
    %1682 = vmatpush2.msra.mxu0 %v1379
    %1683 = vmatprep.subr.mxu0 0.0
    %1684 = vmatpush2.msra.mxu0 %v1378
    %1685 = vmatprep.subr.mxu0 0.0
    %1686 = vmatpush2.msra.mxu0 %v1377
    %1687 = vmatprep.subr.mxu0 0.0
    %1688 = vmatpush2.msra.mxu0 %v1376
    %1689 = vmatprep.subr.mxu0 0.0
    %1690 = vmatpush2.msra.mxu0 %v1375
    %1691 = vmatprep.subr.mxu0 0.0
    %1692 = vmatpush2.msra.mxu0 %v1374
    %1693 = vmatprep.subr.mxu0 0.0
    %1694 = vmatpush2.msra.mxu0 %v1373
    %1695 = vmatprep.subr.mxu0 0.0
    %1696 = vmatpush2.msra.mxu0 %v1372
    %1697 = vmatprep.subr.mxu0 0.0
    %1698 = vmatpush2.msra.mxu0 %v1371
    %1699 = vmatprep.subr.mxu0 0.0
    %1700 = vmatpush2.msra.mxu0 %v1370
    %1701 = vmatprep.subr.mxu0 0.0
    %1702 = vmatpush2.msra.mxu0 %v1369
    %1703 = vmatprep.subr.mxu0 0.0
    %1704 = vmatpush2.msra.mxu0 %v1368
    %1705 = vmatprep.subr.mxu0 0.0
    %1706 = vmatpush2.msra.mxu0 %v1367
    %1707 = vmatprep.subr.mxu0 0.0
    %1708 = vmatpush2.msra.mxu0 %v1366
    %1709 = vmatprep.subr.mxu0 0.0
    %1710 = vmatpush2.msra.mxu0 %v1365
    %1711 = vmatprep.subr.mxu0 0.0
    %1712 = vmatpush2.msra.mxu0 %v1364
    %1713 = vmatprep.mubr.f32.mxu0 %v632
    %1714 = vmatmul.mubr.f32.gmra.mxu0 %v630
    %v1715 = vpop.f32.mrf.mxu0
    %v1716 = vadd.f32 %v1646, %v1715
    %v1717 = vpop.f32.mrf.mxu0
    %1718 = vdwg.mxu0
    %1719 = vmatprep.subr.mxu0 0.0
    %1720 = vmatpush1.msra.mxu0 %v1395
    %1721 = vmatprep.subr.mxu0 0.0
    %1722 = vmatpush1.msra.mxu0 %v1394
    %1723 = vmatprep.subr.mxu0 0.0
    %1724 = vmatpush1.msra.mxu0 %v1393
    %1725 = vmatprep.subr.mxu0 0.0
    %1726 = vmatpush1.msra.mxu0 %v1392
    %1727 = vmatprep.subr.mxu0 0.0
    %1728 = vmatpush1.msra.mxu0 %v1391
    %1729 = vmatprep.subr.mxu0 0.0
    %1730 = vmatpush1.msra.mxu0 %v1390
    %1731 = vmatprep.subr.mxu0 0.0
    %1732 = vmatpush1.msra.mxu0 %v1389
    %1733 = vmatprep.subr.mxu0 0.0
    %1734 = vmatpush1.msra.mxu0 %v1388
    %1735 = vmatprep.subr.mxu0 0.0
    %1736 = vmatpush1.msra.mxu0 %v1387
    %1737 = vmatprep.subr.mxu0 0.0
    %1738 = vmatpush1.msra.mxu0 %v1386
    %1739 = vmatprep.subr.mxu0 0.0
    %1740 = vmatpush1.msra.mxu0 %v1385
    %1741 = vmatprep.subr.mxu0 0.0
    %1742 = vmatpush1.msra.mxu0 %v1384
    %1743 = vmatprep.subr.mxu0 0.0
    %1744 = vmatpush1.msra.mxu0 %v1383
    %1745 = vmatprep.subr.mxu0 0.0
    %1746 = vmatpush1.msra.mxu0 %v1382
    %1747 = vmatprep.subr.mxu0 0.0
    %1748 = vmatpush1.msra.mxu0 %v1381
    %1749 = vmatprep.subr.mxu0 0.0
    %1750 = vmatpush1.msra.mxu0 %v1380
    %1751 = vmatprep.subr.mxu0 0.0
    %1752 = vmatpush2.msra.mxu0 %v1411
    %1753 = vmatprep.subr.mxu0 0.0
    %1754 = vmatpush2.msra.mxu0 %v1410
    %1755 = vmatprep.subr.mxu0 0.0
    %1756 = vmatpush2.msra.mxu0 %v1409
    %1757 = vmatprep.subr.mxu0 0.0
    %1758 = vmatpush2.msra.mxu0 %v1408
    %1759 = vmatprep.subr.mxu0 0.0
    %1760 = vmatpush2.msra.mxu0 %v1407
    %1761 = vmatprep.subr.mxu0 0.0
    %1762 = vmatpush2.msra.mxu0 %v1406
    %1763 = vmatprep.subr.mxu0 0.0
    %1764 = vmatpush2.msra.mxu0 %v1405
    %1765 = vmatprep.subr.mxu0 0.0
    %1766 = vmatpush2.msra.mxu0 %v1404
    %1767 = vmatprep.subr.mxu0 0.0
    %1768 = vmatpush2.msra.mxu0 %v1403
    %1769 = vmatprep.subr.mxu0 0.0
    %1770 = vmatpush2.msra.mxu0 %v1402
    %1771 = vmatprep.subr.mxu0 0.0
    %1772 = vmatpush2.msra.mxu0 %v1401
    %1773 = vmatprep.subr.mxu0 0.0
    %1774 = vmatpush2.msra.mxu0 %v1400
    %1775 = vmatprep.subr.mxu0 0.0
    %1776 = vmatpush2.msra.mxu0 %v1399
    %1777 = vmatprep.subr.mxu0 0.0
    %1778 = vmatpush2.msra.mxu0 %v1398
    %1779 = vmatprep.subr.mxu0 0.0
    %1780 = vmatpush2.msra.mxu0 %v1397
    %1781 = vmatprep.subr.mxu0 0.0
    %1782 = vmatpush2.msra.mxu0 %v1396
    %1783 = vmatprep.mubr.f32.mxu0 %v703
    %1784 = vmatmul.mubr.f32.gmra.mxu0 %v701
    %v1785 = vpop.f32.mrf.mxu0
    %v1786 = vadd.f32 %v1716, %v1785
    %v1787 = vpop.f32.mrf.mxu0
    %1788 = vdwg.mxu0
    %1789 = vmatprep.subr.mxu0 0.0
    %1790 = vmatpush1.msra.mxu0 %v1427
    %1791 = vmatprep.subr.mxu0 0.0
    %1792 = vmatpush1.msra.mxu0 %v1426
    %1793 = vmatprep.subr.mxu0 0.0
    %1794 = vmatpush1.msra.mxu0 %v1425
    %1795 = vmatprep.subr.mxu0 0.0
    %1796 = vmatpush1.msra.mxu0 %v1424
    %1797 = vmatprep.subr.mxu0 0.0
    %1798 = vmatpush1.msra.mxu0 %v1423
    %1799 = vmatprep.subr.mxu0 0.0
    %1800 = vmatpush1.msra.mxu0 %v1422
    %1801 = vmatprep.subr.mxu0 0.0
    %1802 = vmatpush1.msra.mxu0 %v1421
    %1803 = vmatprep.subr.mxu0 0.0
    %1804 = vmatpush1.msra.mxu0 %v1420
    %1805 = vmatprep.subr.mxu0 0.0
    %1806 = vmatpush1.msra.mxu0 %v1419
    %1807 = vmatprep.subr.mxu0 0.0
    %1808 = vmatpush1.msra.mxu0 %v1418
    %1809 = vmatprep.subr.mxu0 0.0
    %1810 = vmatpush1.msra.mxu0 %v1417
    %1811 = vmatprep.subr.mxu0 0.0
    %1812 = vmatpush1.msra.mxu0 %v1416
    %1813 = vmatprep.subr.mxu0 0.0
    %1814 = vmatpush1.msra.mxu0 %v1415
    %1815 = vmatprep.subr.mxu0 0.0
    %1816 = vmatpush1.msra.mxu0 %v1414
    %1817 = vmatprep.subr.mxu0 0.0
    %1818 = vmatpush1.msra.mxu0 %v1413
    %1819 = vmatprep.subr.mxu0 0.0
    %1820 = vmatpush1.msra.mxu0 %v1412
    %1821 = vmatprep.subr.mxu0 0.0
    %1822 = vmatpush2.msra.mxu0 %v1443
    %1823 = vmatprep.subr.mxu0 0.0
    %1824 = vmatpush2.msra.mxu0 %v1442
    %1825 = vmatprep.subr.mxu0 0.0
    %1826 = vmatpush2.msra.mxu0 %v1441
    %1827 = vmatprep.subr.mxu0 0.0
    %1828 = vmatpush2.msra.mxu0 %v1440
    %1829 = vmatprep.subr.mxu0 0.0
    %1830 = vmatpush2.msra.mxu0 %v1439
    %1831 = vmatprep.subr.mxu0 0.0
    %1832 = vmatpush2.msra.mxu0 %v1438
    %1833 = vmatprep.subr.mxu0 0.0
    %1834 = vmatpush2.msra.mxu0 %v1437
    %1835 = vmatprep.subr.mxu0 0.0
    %1836 = vmatpush2.msra.mxu0 %v1436
    %1837 = vmatprep.subr.mxu0 0.0
    %1838 = vmatpush2.msra.mxu0 %v1435
    %1839 = vmatprep.subr.mxu0 0.0
    %1840 = vmatpush2.msra.mxu0 %v1434
    %1841 = vmatprep.subr.mxu0 0.0
    %1842 = vmatpush2.msra.mxu0 %v1433
    %1843 = vmatprep.subr.mxu0 0.0
    %1844 = vmatpush2.msra.mxu0 %v1432
    %1845 = vmatprep.subr.mxu0 0.0
    %1846 = vmatpush2.msra.mxu0 %v1431
    %1847 = vmatprep.subr.mxu0 0.0
    %1848 = vmatpush2.msra.mxu0 %v1430
    %1849 = vmatprep.subr.mxu0 0.0
    %1850 = vmatpush2.msra.mxu0 %v1429
    %1851 = vmatprep.subr.mxu0 0.0
    %1852 = vmatpush2.msra.mxu0 %v1428
    %1853 = vmatprep.mubr.f32.mxu0 %v774
    %1854 = vmatmul.mubr.f32.gmra.mxu0 %v772
    %v1855 = vpop.f32.mrf.mxu0
    %v1856 = vadd.f32 %v1786, %v1855
    %v1857 = vpop.f32.mrf.mxu0
    %1858 = vdwg.mxu0
    %1859 = vmatprep.subr.mxu0 0.0
    %1860 = vmatpush1.msra.mxu0 %v1459
    %1861 = vmatprep.subr.mxu0 0.0
    %1862 = vmatpush1.msra.mxu0 %v1458
    %1863 = vmatprep.subr.mxu0 0.0
    %1864 = vmatpush1.msra.mxu0 %v1457
    %1865 = vmatprep.subr.mxu0 0.0
    %1866 = vmatpush1.msra.mxu0 %v1456
    %1867 = vmatprep.subr.mxu0 0.0
    %1868 = vmatpush1.msra.mxu0 %v1455
    %1869 = vmatprep.subr.mxu0 0.0
    %1870 = vmatpush1.msra.mxu0 %v1454
    %1871 = vmatprep.subr.mxu0 0.0
    %1872 = vmatpush1.msra.mxu0 %v1453
    %1873 = vmatprep.subr.mxu0 0.0
    %1874 = vmatpush1.msra.mxu0 %v1452
    %1875 = vmatprep.subr.mxu0 0.0
    %1876 = vmatpush1.msra.mxu0 %v1451
    %1877 = vmatprep.subr.mxu0 0.0
    %1878 = vmatpush1.msra.mxu0 %v1450
    %1879 = vmatprep.subr.mxu0 0.0
    %1880 = vmatpush1.msra.mxu0 %v1449
    %1881 = vmatprep.subr.mxu0 0.0
    %1882 = vmatpush1.msra.mxu0 %v1448
    %1883 = vmatprep.subr.mxu0 0.0
    %1884 = vmatpush1.msra.mxu0 %v1447
    %1885 = vmatprep.subr.mxu0 0.0
    %1886 = vmatpush1.msra.mxu0 %v1446
    %1887 = vmatprep.subr.mxu0 0.0
    %1888 = vmatpush1.msra.mxu0 %v1445
    %1889 = vmatprep.subr.mxu0 0.0
    %1890 = vmatpush1.msra.mxu0 %v1444
    %1891 = vmatprep.subr.mxu0 0.0
    %1892 = vmatpush2.msra.mxu0 %v1475
    %1893 = vmatprep.subr.mxu0 0.0
    %1894 = vmatpush2.msra.mxu0 %v1474
    %1895 = vmatprep.subr.mxu0 0.0
    %1896 = vmatpush2.msra.mxu0 %v1473
    %1897 = vmatprep.subr.mxu0 0.0
    %1898 = vmatpush2.msra.mxu0 %v1472
    %1899 = vmatprep.subr.mxu0 0.0
    %1900 = vmatpush2.msra.mxu0 %v1471
    %1901 = vmatprep.subr.mxu0 0.0
    %1902 = vmatpush2.msra.mxu0 %v1470
    %1903 = vmatprep.subr.mxu0 0.0
    %1904 = vmatpush2.msra.mxu0 %v1469
    %1905 = vmatprep.subr.mxu0 0.0
    %1906 = vmatpush2.msra.mxu0 %v1468
    %1907 = vmatprep.subr.mxu0 0.0
    %1908 = vmatpush2.msra.mxu0 %v1467
    %1909 = vmatprep.subr.mxu0 0.0
    %1910 = vmatpush2.msra.mxu0 %v1466
    %1911 = vmatprep.subr.mxu0 0.0
    %1912 = vmatpush2.msra.mxu0 %v1465
    %1913 = vmatprep.subr.mxu0 0.0
    %1914 = vmatpush2.msra.mxu0 %v1464
    %1915 = vmatprep.subr.mxu0 0.0
    %1916 = vmatpush2.msra.mxu0 %v1463
    %1917 = vmatprep.subr.mxu0 0.0
    %1918 = vmatpush2.msra.mxu0 %v1462
    %1919 = vmatprep.subr.mxu0 0.0
    %1920 = vmatpush2.msra.mxu0 %v1461
    %1921 = vmatprep.subr.mxu0 0.0
    %1922 = vmatpush2.msra.mxu0 %v1460
    %1923 = vmatprep.mubr.f32.mxu0 %v845
    %1924 = vmatmul.mubr.f32.gmra.mxu0 %v843
    %v1925 = vpop.f32.mrf.mxu0
    %v1926 = vadd.f32 %v1856, %v1925
    %v1927 = vpop.f32.mrf.mxu0
    %1928 = vdwg.mxu0
    %1929 = vmatprep.subr.mxu0 0.0
    %1930 = vmatpush1.msra.mxu0 %v1491
    %1931 = vmatprep.subr.mxu0 0.0
    %1932 = vmatpush1.msra.mxu0 %v1490
    %1933 = vmatprep.subr.mxu0 0.0
    %1934 = vmatpush1.msra.mxu0 %v1489
    %1935 = vmatprep.subr.mxu0 0.0
    %1936 = vmatpush1.msra.mxu0 %v1488
    %1937 = vmatprep.subr.mxu0 0.0
    %1938 = vmatpush1.msra.mxu0 %v1487
    %1939 = vmatprep.subr.mxu0 0.0
    %1940 = vmatpush1.msra.mxu0 %v1486
    %1941 = vmatprep.subr.mxu0 0.0
    %1942 = vmatpush1.msra.mxu0 %v1485
    %1943 = vmatprep.subr.mxu0 0.0
    %1944 = vmatpush1.msra.mxu0 %v1484
    %1945 = vmatprep.subr.mxu0 0.0
    %1946 = vmatpush1.msra.mxu0 %v1483
    %1947 = vmatprep.subr.mxu0 0.0
    %1948 = vmatpush1.msra.mxu0 %v1482
    %1949 = vmatprep.subr.mxu0 0.0
    %1950 = vmatpush1.msra.mxu0 %v1481
    %1951 = vmatprep.subr.mxu0 0.0
    %1952 = vmatpush1.msra.mxu0 %v1480
    %1953 = vmatprep.subr.mxu0 0.0
    %1954 = vmatpush1.msra.mxu0 %v1479
    %1955 = vmatprep.subr.mxu0 0.0
    %1956 = vmatpush1.msra.mxu0 %v1478
    %1957 = vmatprep.subr.mxu0 0.0
    %1958 = vmatpush1.msra.mxu0 %v1477
    %1959 = vmatprep.subr.mxu0 0.0
    %1960 = vmatpush1.msra.mxu0 %v1476
    %1961 = vmatprep.subr.mxu0 0.0
    %1962 = vmatpush2.msra.mxu0 %v1507
    %1963 = vmatprep.subr.mxu0 0.0
    %1964 = vmatpush2.msra.mxu0 %v1506
    %1965 = vmatprep.subr.mxu0 0.0
    %1966 = vmatpush2.msra.mxu0 %v1505
    %1967 = vmatprep.subr.mxu0 0.0
    %1968 = vmatpush2.msra.mxu0 %v1504
    %1969 = vmatprep.subr.mxu0 0.0
    %1970 = vmatpush2.msra.mxu0 %v1503
    %1971 = vmatprep.subr.mxu0 0.0
    %1972 = vmatpush2.msra.mxu0 %v1502
    %1973 = vmatprep.subr.mxu0 0.0
    %1974 = vmatpush2.msra.mxu0 %v1501
    %1975 = vmatprep.subr.mxu0 0.0
    %1976 = vmatpush2.msra.mxu0 %v1500
    %1977 = vmatprep.subr.mxu0 0.0
    %1978 = vmatpush2.msra.mxu0 %v1499
    %1979 = vmatprep.subr.mxu0 0.0
    %1980 = vmatpush2.msra.mxu0 %v1498
    %1981 = vmatprep.subr.mxu0 0.0
    %1982 = vmatpush2.msra.mxu0 %v1497
    %1983 = vmatprep.subr.mxu0 0.0
    %1984 = vmatpush2.msra.mxu0 %v1496
    %1985 = vmatprep.subr.mxu0 0.0
    %1986 = vmatpush2.msra.mxu0 %v1495
    %1987 = vmatprep.subr.mxu0 0.0
    %1988 = vmatpush2.msra.mxu0 %v1494
    %1989 = vmatprep.subr.mxu0 0.0
    %1990 = vmatpush2.msra.mxu0 %v1493
    %1991 = vmatprep.subr.mxu0 0.0
    %1992 = vmatpush2.msra.mxu0 %v1492
    %1993 = vmatprep.mubr.f32.mxu0 %v916
    %1994 = vmatmul.mubr.f32.gmra.mxu0 %v914
    %v1995 = vpop.f32.mrf.mxu0
    %v1996 = vadd.f32 %v1926, %v1995
    %v1997 = vpop.f32.mrf.mxu0
    %1998 = vdwg.mxu0
    %1999 = vmatprep.subr.mxu0 0.0
    %2000 = vmatpush1.msra.mxu0 %v1523
    %2001 = vmatprep.subr.mxu0 0.0
    %2002 = vmatpush1.msra.mxu0 %v1522
    %2003 = vmatprep.subr.mxu0 0.0
    %2004 = vmatpush1.msra.mxu0 %v1521
    %2005 = vmatprep.subr.mxu0 0.0
    %2006 = vmatpush1.msra.mxu0 %v1520
    %2007 = vmatprep.subr.mxu0 0.0
    %2008 = vmatpush1.msra.mxu0 %v1519
    %2009 = vmatprep.subr.mxu0 0.0
    %2010 = vmatpush1.msra.mxu0 %v1518
    %2011 = vmatprep.subr.mxu0 0.0
    %2012 = vmatpush1.msra.mxu0 %v1517
    %2013 = vmatprep.subr.mxu0 0.0
    %2014 = vmatpush1.msra.mxu0 %v1516
    %2015 = vmatprep.subr.mxu0 0.0
    %2016 = vmatpush1.msra.mxu0 %v1515
    %2017 = vmatprep.subr.mxu0 0.0
    %2018 = vmatpush1.msra.mxu0 %v1514
    %2019 = vmatprep.subr.mxu0 0.0
    %2020 = vmatpush1.msra.mxu0 %v1513
    %2021 = vmatprep.subr.mxu0 0.0
    %2022 = vmatpush1.msra.mxu0 %v1512
    %2023 = vmatprep.subr.mxu0 0.0
    %2024 = vmatpush1.msra.mxu0 %v1511
    %2025 = vmatprep.subr.mxu0 0.0
    %2026 = vmatpush1.msra.mxu0 %v1510
    %2027 = vmatprep.subr.mxu0 0.0
    %2028 = vmatpush1.msra.mxu0 %v1509
    %2029 = vmatprep.subr.mxu0 0.0
    %2030 = vmatpush1.msra.mxu0 %v1508
    %2031 = vmatprep.subr.mxu0 0.0
    %2032 = vmatpush2.msra.mxu0 %v1539
    %2033 = vmatprep.subr.mxu0 0.0
    %2034 = vmatpush2.msra.mxu0 %v1538
    %2035 = vmatprep.subr.mxu0 0.0
    %2036 = vmatpush2.msra.mxu0 %v1537
    %2037 = vmatprep.subr.mxu0 0.0
    %2038 = vmatpush2.msra.mxu0 %v1536
    %2039 = vmatprep.subr.mxu0 0.0
    %2040 = vmatpush2.msra.mxu0 %v1535
    %2041 = vmatprep.subr.mxu0 0.0
    %2042 = vmatpush2.msra.mxu0 %v1534
    %2043 = vmatprep.subr.mxu0 0.0
    %2044 = vmatpush2.msra.mxu0 %v1533
    %2045 = vmatprep.subr.mxu0 0.0
    %2046 = vmatpush2.msra.mxu0 %v1532
    %2047 = vmatprep.subr.mxu0 0.0
    %2048 = vmatpush2.msra.mxu0 %v1531
    %2049 = vmatprep.subr.mxu0 0.0
    %2050 = vmatpush2.msra.mxu0 %v1530
    %2051 = vmatprep.subr.mxu0 0.0
    %2052 = vmatpush2.msra.mxu0 %v1529
    %2053 = vmatprep.subr.mxu0 0.0
    %2054 = vmatpush2.msra.mxu0 %v1528
    %2055 = vmatprep.subr.mxu0 0.0
    %2056 = vmatpush2.msra.mxu0 %v1527
    %2057 = vmatprep.subr.mxu0 0.0
    %2058 = vmatpush2.msra.mxu0 %v1526
    %2059 = vmatprep.subr.mxu0 0.0
    %2060 = vmatpush2.msra.mxu0 %v1525
    %2061 = vmatprep.subr.mxu0 0.0
    %2062 = vmatpush2.msra.mxu0 %v1524
    %2063 = vmatprep.mubr.f32.mxu0 %v987
    %2064 = vmatmul.mubr.f32.gmra.mxu0 %v985
    %v2065 = vpop.f32.mrf.mxu0
    %v2066 = vadd.f32 %v1996, %v2065
    %v2067 = vpop.f32.mrf.mxu0
    %2068 = vdwg.mxu0
    %2069 = vmatprep.subr.mxu0 0.0
    %2070 = vmatpush1.msra.mxu0 %v1555
    %2071 = vmatprep.subr.mxu0 0.0
    %2072 = vmatpush1.msra.mxu0 %v1554
    %2073 = vmatprep.subr.mxu0 0.0
    %2074 = vmatpush1.msra.mxu0 %v1553
    %2075 = vmatprep.subr.mxu0 0.0
    %2076 = vmatpush1.msra.mxu0 %v1552
    %2077 = vmatprep.subr.mxu0 0.0
    %2078 = vmatpush1.msra.mxu0 %v1551
    %2079 = vmatprep.subr.mxu0 0.0
    %2080 = vmatpush1.msra.mxu0 %v1550
    %2081 = vmatprep.subr.mxu0 0.0
    %2082 = vmatpush1.msra.mxu0 %v1549
    %2083 = vmatprep.subr.mxu0 0.0
    %2084 = vmatpush1.msra.mxu0 %v1548
    %2085 = vmatprep.subr.mxu0 0.0
    %2086 = vmatpush1.msra.mxu0 %v1547
    %2087 = vmatprep.subr.mxu0 0.0
    %2088 = vmatpush1.msra.mxu0 %v1546
    %2089 = vmatprep.subr.mxu0 0.0
    %2090 = vmatpush1.msra.mxu0 %v1545
    %2091 = vmatprep.subr.mxu0 0.0
    %2092 = vmatpush1.msra.mxu0 %v1544
    %2093 = vmatprep.subr.mxu0 0.0
    %2094 = vmatpush1.msra.mxu0 %v1543
    %2095 = vmatprep.subr.mxu0 0.0
    %2096 = vmatpush1.msra.mxu0 %v1542
    %2097 = vmatprep.subr.mxu0 0.0
    %2098 = vmatpush1.msra.mxu0 %v1541
    %2099 = vmatprep.subr.mxu0 0.0
    %2100 = vmatpush1.msra.mxu0 %v1540
    %2101 = vmatprep.subr.mxu0 0.0
    %2102 = vmatpush2.msra.mxu0 %v1571
    %2103 = vmatprep.subr.mxu0 0.0
    %2104 = vmatpush2.msra.mxu0 %v1570
    %2105 = vmatprep.subr.mxu0 0.0
    %2106 = vmatpush2.msra.mxu0 %v1569
    %2107 = vmatprep.subr.mxu0 0.0
    %2108 = vmatpush2.msra.mxu0 %v1568
    %2109 = vmatprep.subr.mxu0 0.0
    %2110 = vmatpush2.msra.mxu0 %v1567
    %2111 = vmatprep.subr.mxu0 0.0
    %2112 = vmatpush2.msra.mxu0 %v1566
    %2113 = vmatprep.subr.mxu0 0.0
    %2114 = vmatpush2.msra.mxu0 %v1565
    %2115 = vmatprep.subr.mxu0 0.0
    %2116 = vmatpush2.msra.mxu0 %v1564
    %2117 = vmatprep.subr.mxu0 0.0
    %2118 = vmatpush2.msra.mxu0 %v1563
    %2119 = vmatprep.subr.mxu0 0.0
    %2120 = vmatpush2.msra.mxu0 %v1562
    %2121 = vmatprep.subr.mxu0 0.0
    %2122 = vmatpush2.msra.mxu0 %v1561
    %2123 = vmatprep.subr.mxu0 0.0
    %2124 = vmatpush2.msra.mxu0 %v1560
    %2125 = vmatprep.subr.mxu0 0.0
    %2126 = vmatpush2.msra.mxu0 %v1559
    %2127 = vmatprep.subr.mxu0 0.0
    %2128 = vmatpush2.msra.mxu0 %v1558
    %2129 = vmatprep.subr.mxu0 0.0
    %2130 = vmatpush2.msra.mxu0 %v1557
    %2131 = vmatprep.subr.mxu0 0.0
    %2132 = vmatpush2.msra.mxu0 %v1556
    %2133 = vmatprep.mubr.f32.mxu0 %v1058
    %2134 = vmatmul.mubr.f32.gmra.mxu0 %v1056
    %v2135 = vpop.f32.mrf.mxu0
    %v2136 = vadd.f32 %v2066, %v2135
    %v2137 = vpop.f32.mrf.mxu0
    %2138 = vdwg.mxu0
    %2139 = vst [vmem:[#allocation22] sm:$0x3] %v2136
    %v2140 = vld [vmem:[#allocation11] sm:$0xff]
    %v2141 = vld [vmem:[#allocation11 + $0x8] sm:$0xff]
    %v2142 = vld [vmem:[#allocation11 + $0x10] sm:$0xff]
    %v2143 = vld [vmem:[#allocation11 + $0x18] sm:$0xff]
    %v2144 = vld [vmem:[#allocation11 + $0x20] sm:$0xff]
    %v2145 = vld [vmem:[#allocation11 + $0x28] sm:$0xff]
    %v2146 = vld [vmem:[#allocation11 + $0x30] sm:$0xff]
    %v2147 = vld [vmem:[#allocation11 + $0x38] sm:$0xff]
    %v2148 = vld [vmem:[#allocation11 + $0x40] sm:$0xff]
    %v2149 = vld [vmem:[#allocation11 + $0x48] sm:$0xff]
    %v2150 = vld [vmem:[#allocation11 + $0x50] sm:$0xff]
    %v2151 = vld [vmem:[#allocation11 + $0x58] sm:$0xff]
    %v2152 = vld [vmem:[#allocation11 + $0x60] sm:$0xff]
    %v2153 = vld [vmem:[#allocation11 + $0x68] sm:$0xff]
    %v2154 = vld [vmem:[#allocation11 + $0x70] sm:$0xff]
    %v2155 = vld [vmem:[#allocation11 + $0x78] sm:$0xff]
    %v2156 = vld [vmem:[#allocation11 + $0x80] sm:$0xff]
    %v2157 = vld [vmem:[#allocation11 + $0x88] sm:$0xff]
    %v2158 = vld [vmem:[#allocation11 + $0x90] sm:$0xff]
    %v2159 = vld [vmem:[#allocation11 + $0x98] sm:$0xff]
    %v2160 = vld [vmem:[#allocation11 + $0xa0] sm:$0xff]
    %v2161 = vld [vmem:[#allocation11 + $0xa8] sm:$0xff]
    %v2162 = vld [vmem:[#allocation11 + $0xb0] sm:$0xff]
    %v2163 = vld [vmem:[#allocation11 + $0xb8] sm:$0xff]
    %v2164 = vld [vmem:[#allocation11 + $0xc0] sm:$0xff]
    %v2165 = vld [vmem:[#allocation11 + $0xc8] sm:$0xff]
    %v2166 = vld [vmem:[#allocation11 + $0xd0] sm:$0xff]
    %v2167 = vld [vmem:[#allocation11 + $0xd8] sm:$0xff]
    %v2168 = vld [vmem:[#allocation11 + $0xe0] sm:$0xff]
    %v2169 = vld [vmem:[#allocation11 + $0xe8] sm:$0xff]
    %v2170 = vld [vmem:[#allocation11 + $0xf0] sm:$0xff]
    %v2171 = vld [vmem:[#allocation11 + $0xf8] sm:$0xff]
    %v2172 = vld [vmem:[#allocation11 + $0x100] sm:$0xff]
    %v2173 = vld [vmem:[#allocation11 + $0x108] sm:$0xff]
    %v2174 = vld [vmem:[#allocation11 + $0x110] sm:$0xff]
    %v2175 = vld [vmem:[#allocation11 + $0x118] sm:$0xff]
    %v2176 = vld [vmem:[#allocation11 + $0x120] sm:$0xff]
    %v2177 = vld [vmem:[#allocation11 + $0x128] sm:$0xff]
    %v2178 = vld [vmem:[#allocation11 + $0x130] sm:$0xff]
    %v2179 = vld [vmem:[#allocation11 + $0x138] sm:$0xff]
    %v2180 = vld [vmem:[#allocation11 + $0x140] sm:$0xff]
    %v2181 = vld [vmem:[#allocation11 + $0x148] sm:$0xff]
    %v2182 = vld [vmem:[#allocation11 + $0x150] sm:$0xff]
    %v2183 = vld [vmem:[#allocation11 + $0x158] sm:$0xff]
    %v2184 = vld [vmem:[#allocation11 + $0x160] sm:$0xff]
    %v2185 = vld [vmem:[#allocation11 + $0x168] sm:$0xff]
    %v2186 = vld [vmem:[#allocation11 + $0x170] sm:$0xff]
    %v2187 = vld [vmem:[#allocation11 + $0x178] sm:$0xff]
    %v2188 = vld [vmem:[#allocation11 + $0x180] sm:$0xff]
    %v2189 = vld [vmem:[#allocation11 + $0x188] sm:$0xff]
    %v2190 = vld [vmem:[#allocation11 + $0x190] sm:$0xff]
    %v2191 = vld [vmem:[#allocation11 + $0x198] sm:$0xff]
    %v2192 = vld [vmem:[#allocation11 + $0x1a0] sm:$0xff]
    %v2193 = vld [vmem:[#allocation11 + $0x1a8] sm:$0xff]
    %v2194 = vld [vmem:[#allocation11 + $0x1b0] sm:$0xff]
    %v2195 = vld [vmem:[#allocation11 + $0x1b8] sm:$0xff]
    %v2196 = vld [vmem:[#allocation11 + $0x1c0] sm:$0xff]
    %v2197 = vld [vmem:[#allocation11 + $0x1c8] sm:$0xff]
    %v2198 = vld [vmem:[#allocation11 + $0x1d0] sm:$0xff]
    %v2199 = vld [vmem:[#allocation11 + $0x1d8] sm:$0xff]
    %v2200 = vld [vmem:[#allocation11 + $0x1e0] sm:$0xff]
    %v2201 = vld [vmem:[#allocation11 + $0x1e8] sm:$0xff]
    %v2202 = vld [vmem:[#allocation11 + $0x1f0] sm:$0xff]
    %v2203 = vld [vmem:[#allocation11 + $0x1f8] sm:$0xff]
    %v2204 = vld [vmem:[#allocation11 + $0x200] sm:$0xff]
    %v2205 = vld [vmem:[#allocation11 + $0x208] sm:$0xff]
    %v2206 = vld [vmem:[#allocation11 + $0x210] sm:$0xff]
    %v2207 = vld [vmem:[#allocation11 + $0x218] sm:$0xff]
    %v2208 = vld [vmem:[#allocation11 + $0x220] sm:$0xff]
    %v2209 = vld [vmem:[#allocation11 + $0x228] sm:$0xff]
    %v2210 = vld [vmem:[#allocation11 + $0x230] sm:$0xff]
    %v2211 = vld [vmem:[#allocation11 + $0x238] sm:$0xff]
    %v2212 = vld [vmem:[#allocation11 + $0x240] sm:$0xff]
    %v2213 = vld [vmem:[#allocation11 + $0x248] sm:$0xff]
    %v2214 = vld [vmem:[#allocation11 + $0x250] sm:$0xff]
    %v2215 = vld [vmem:[#allocation11 + $0x258] sm:$0xff]
    %v2216 = vld [vmem:[#allocation11 + $0x260] sm:$0xff]
    %v2217 = vld [vmem:[#allocation11 + $0x268] sm:$0xff]
    %v2218 = vld [vmem:[#allocation11 + $0x270] sm:$0xff]
    %v2219 = vld [vmem:[#allocation11 + $0x278] sm:$0xff]
    %v2220 = vld [vmem:[#allocation11 + $0x280] sm:$0xff]
    %v2221 = vld [vmem:[#allocation11 + $0x288] sm:$0xff]
    %v2222 = vld [vmem:[#allocation11 + $0x290] sm:$0xff]
    %v2223 = vld [vmem:[#allocation11 + $0x298] sm:$0xff]
    %v2224 = vld [vmem:[#allocation11 + $0x2a0] sm:$0xff]
    %v2225 = vld [vmem:[#allocation11 + $0x2a8] sm:$0xff]
    %v2226 = vld [vmem:[#allocation11 + $0x2b0] sm:$0xff]
    %v2227 = vld [vmem:[#allocation11 + $0x2b8] sm:$0xff]
    %v2228 = vld [vmem:[#allocation11 + $0x2c0] sm:$0xff]
    %v2229 = vld [vmem:[#allocation11 + $0x2c8] sm:$0xff]
    %v2230 = vld [vmem:[#allocation11 + $0x2d0] sm:$0xff]
    %v2231 = vld [vmem:[#allocation11 + $0x2d8] sm:$0xff]
    %v2232 = vld [vmem:[#allocation11 + $0x2e0] sm:$0xff]
    %v2233 = vld [vmem:[#allocation11 + $0x2e8] sm:$0xff]
    %v2234 = vld [vmem:[#allocation11 + $0x2f0] sm:$0xff]
    %v2235 = vld [vmem:[#allocation11 + $0x2f8] sm:$0xff]
    %v2236 = vld [vmem:[#allocation11 + $0x300] sm:$0xff]
    %v2237 = vld [vmem:[#allocation11 + $0x308] sm:$0xff]
    %v2238 = vld [vmem:[#allocation11 + $0x310] sm:$0xff]
    %v2239 = vld [vmem:[#allocation11 + $0x318] sm:$0xff]
    %v2240 = vld [vmem:[#allocation11 + $0x320] sm:$0xff]
    %v2241 = vld [vmem:[#allocation11 + $0x328] sm:$0xff]
    %v2242 = vld [vmem:[#allocation11 + $0x330] sm:$0xff]
    %v2243 = vld [vmem:[#allocation11 + $0x338] sm:$0xff]
    %v2244 = vld [vmem:[#allocation11 + $0x340] sm:$0xff]
    %v2245 = vld [vmem:[#allocation11 + $0x348] sm:$0xff]
    %v2246 = vld [vmem:[#allocation11 + $0x350] sm:$0xff]
    %v2247 = vld [vmem:[#allocation11 + $0x358] sm:$0xff]
    %v2248 = vld [vmem:[#allocation11 + $0x360] sm:$0xff]
    %v2249 = vld [vmem:[#allocation11 + $0x368] sm:$0xff]
    %v2250 = vld [vmem:[#allocation11 + $0x370] sm:$0xff]
    %v2251 = vld [vmem:[#allocation11 + $0x378] sm:$0xff]
    %v2252 = vld [vmem:[#allocation11 + $0x380] sm:$0xff]
    %v2253 = vld [vmem:[#allocation11 + $0x388] sm:$0xff]
    %v2254 = vld [vmem:[#allocation11 + $0x390] sm:$0xff]
    %v2255 = vld [vmem:[#allocation11 + $0x398] sm:$0xff]
    %v2256 = vld [vmem:[#allocation11 + $0x3a0] sm:$0xff]
    %v2257 = vld [vmem:[#allocation11 + $0x3a8] sm:$0xff]
    %v2258 = vld [vmem:[#allocation11 + $0x3b0] sm:$0xff]
    %v2259 = vld [vmem:[#allocation11 + $0x3b8] sm:$0xff]
    %v2260 = vld [vmem:[#allocation11 + $0x3c0] sm:$0xff]
    %v2261 = vld [vmem:[#allocation11 + $0x3c8] sm:$0xff]
    %v2262 = vld [vmem:[#allocation11 + $0x3d0] sm:$0xff]
    %v2263 = vld [vmem:[#allocation11 + $0x3d8] sm:$0xff]
    %v2264 = vld [vmem:[#allocation11 + $0x3e0] sm:$0xff]
    %v2265 = vld [vmem:[#allocation11 + $0x3e8] sm:$0xff]
    %v2266 = vld [vmem:[#allocation11 + $0x3f0] sm:$0xff]
    %v2267 = vld [vmem:[#allocation11 + $0x3f8] sm:$0xff]
    %v2268 = vld [vmem:[#allocation11 + $0x400] sm:$0xff]
    %v2269 = vld [vmem:[#allocation11 + $0x408] sm:$0xff]
    %v2270 = vld [vmem:[#allocation11 + $0x410] sm:$0xff]
    %v2271 = vld [vmem:[#allocation11 + $0x418] sm:$0xff]
    %v2272 = vld [vmem:[#allocation11 + $0x420] sm:$0xff]
    %v2273 = vld [vmem:[#allocation11 + $0x428] sm:$0xff]
    %v2274 = vld [vmem:[#allocation11 + $0x430] sm:$0xff]
    %v2275 = vld [vmem:[#allocation11 + $0x438] sm:$0xff]
    %v2276 = vld [vmem:[#allocation11 + $0x440] sm:$0xff]
    %v2277 = vld [vmem:[#allocation11 + $0x448] sm:$0xff]
    %v2278 = vld [vmem:[#allocation11 + $0x450] sm:$0xff]
    %v2279 = vld [vmem:[#allocation11 + $0x458] sm:$0xff]
    %v2280 = vld [vmem:[#allocation11 + $0x460] sm:$0xff]
    %v2281 = vld [vmem:[#allocation11 + $0x468] sm:$0xff]
    %v2282 = vld [vmem:[#allocation11 + $0x470] sm:$0xff]
    %v2283 = vld [vmem:[#allocation11 + $0x478] sm:$0xff]
    %v2284 = vld [vmem:[#allocation11 + $0x480] sm:$0xff]
    %v2285 = vld [vmem:[#allocation11 + $0x488] sm:$0xff]
    %v2286 = vld [vmem:[#allocation11 + $0x490] sm:$0xff]
    %v2287 = vld [vmem:[#allocation11 + $0x498] sm:$0xff]
    %v2288 = vld [vmem:[#allocation11 + $0x4a0] sm:$0xff]
    %v2289 = vld [vmem:[#allocation11 + $0x4a8] sm:$0xff]
    %v2290 = vld [vmem:[#allocation11 + $0x4b0] sm:$0xff]
    %v2291 = vld [vmem:[#allocation11 + $0x4b8] sm:$0xff]
    %v2292 = vld [vmem:[#allocation11 + $0x4c0] sm:$0xff]
    %v2293 = vld [vmem:[#allocation11 + $0x4c8] sm:$0xff]
    %v2294 = vld [vmem:[#allocation11 + $0x4d0] sm:$0xff]
    %v2295 = vld [vmem:[#allocation11 + $0x4d8] sm:$0xff]
    %v2296 = vld [vmem:[#allocation11 + $0x4e0] sm:$0xff]
    %v2297 = vld [vmem:[#allocation11 + $0x4e8] sm:$0xff]
    %v2298 = vld [vmem:[#allocation11 + $0x4f0] sm:$0xff]
    %v2299 = vld [vmem:[#allocation11 + $0x4f8] sm:$0xff]
    %v2300 = vld [vmem:[#allocation11 + $0x500] sm:$0xff]
    %v2301 = vld [vmem:[#allocation11 + $0x508] sm:$0xff]
    %v2302 = vld [vmem:[#allocation11 + $0x510] sm:$0xff]
    %v2303 = vld [vmem:[#allocation11 + $0x518] sm:$0xff]
    %v2304 = vld [vmem:[#allocation11 + $0x520] sm:$0xff]
    %v2305 = vld [vmem:[#allocation11 + $0x528] sm:$0xff]
    %v2306 = vld [vmem:[#allocation11 + $0x530] sm:$0xff]
    %v2307 = vld [vmem:[#allocation11 + $0x538] sm:$0xff]
    %v2308 = vld [vmem:[#allocation11 + $0x540] sm:$0xff]
    %v2309 = vld [vmem:[#allocation11 + $0x548] sm:$0xff]
    %v2310 = vld [vmem:[#allocation11 + $0x550] sm:$0xff]
    %v2311 = vld [vmem:[#allocation11 + $0x558] sm:$0xff]
    %v2312 = vld [vmem:[#allocation11 + $0x560] sm:$0xff]
    %v2313 = vld [vmem:[#allocation11 + $0x568] sm:$0xff]
    %v2314 = vld [vmem:[#allocation11 + $0x570] sm:$0xff]
    %v2315 = vld [vmem:[#allocation11 + $0x578] sm:$0xff]
    %v2316 = vld [vmem:[#allocation11 + $0x580] sm:$0xff]
    %v2317 = vld [vmem:[#allocation11 + $0x588] sm:$0xff]
    %v2318 = vld [vmem:[#allocation11 + $0x590] sm:$0xff]
    %v2319 = vld [vmem:[#allocation11 + $0x598] sm:$0xff]
    %v2320 = vld [vmem:[#allocation11 + $0x5a0] sm:$0xff]
    %v2321 = vld [vmem:[#allocation11 + $0x5a8] sm:$0xff]
    %v2322 = vld [vmem:[#allocation11 + $0x5b0] sm:$0xff]
    %v2323 = vld [vmem:[#allocation11 + $0x5b8] sm:$0xff]
    %v2324 = vld [vmem:[#allocation11 + $0x5c0] sm:$0xff]
    %v2325 = vld [vmem:[#allocation11 + $0x5c8] sm:$0xff]
    %v2326 = vld [vmem:[#allocation11 + $0x5d0] sm:$0xff]
    %v2327 = vld [vmem:[#allocation11 + $0x5d8] sm:$0xff]
    %v2328 = vld [vmem:[#allocation11 + $0x5e0] sm:$0xff]
    %v2329 = vld [vmem:[#allocation11 + $0x5e8] sm:$0xff]
    %v2330 = vld [vmem:[#allocation11 + $0x5f0] sm:$0xff]
    %v2331 = vld [vmem:[#allocation11 + $0x5f8] sm:$0xff]
    %v2332 = vld [vmem:[#allocation11 + $0x600] sm:$0xff]
    %v2333 = vld [vmem:[#allocation11 + $0x608] sm:$0xff]
    %v2334 = vld [vmem:[#allocation11 + $0x610] sm:$0xff]
    %v2335 = vld [vmem:[#allocation11 + $0x618] sm:$0xff]
    %v2336 = vld [vmem:[#allocation11 + $0x620] sm:$0xff]
    %v2337 = vld [vmem:[#allocation11 + $0x628] sm:$0xff]
    %v2338 = vld [vmem:[#allocation11 + $0x630] sm:$0xff]
    %v2339 = vld [vmem:[#allocation11 + $0x638] sm:$0xff]
    %v2340 = vld [vmem:[#allocation11 + $0x640] sm:$0xff]
    %v2341 = vld [vmem:[#allocation11 + $0x648] sm:$0xff]
    %v2342 = vld [vmem:[#allocation11 + $0x650] sm:$0xff]
    %v2343 = vld [vmem:[#allocation11 + $0x658] sm:$0xff]
    %v2344 = vld [vmem:[#allocation11 + $0x660] sm:$0xff]
    %v2345 = vld [vmem:[#allocation11 + $0x668] sm:$0xff]
    %v2346 = vld [vmem:[#allocation11 + $0x670] sm:$0xff]
    %v2347 = vld [vmem:[#allocation11 + $0x678] sm:$0xff]
    %v2348 = vld [vmem:[#allocation11 + $0x680] sm:$0xff]
    %v2349 = vld [vmem:[#allocation11 + $0x688] sm:$0xff]
    %v2350 = vld [vmem:[#allocation11 + $0x690] sm:$0xff]
    %v2351 = vld [vmem:[#allocation11 + $0x698] sm:$0xff]
    %v2352 = vld [vmem:[#allocation11 + $0x6a0] sm:$0xff]
    %v2353 = vld [vmem:[#allocation11 + $0x6a8] sm:$0xff]
    %v2354 = vld [vmem:[#allocation11 + $0x6b0] sm:$0xff]
    %v2355 = vld [vmem:[#allocation11 + $0x6b8] sm:$0xff]
    %v2356 = vld [vmem:[#allocation11 + $0x6c0] sm:$0xff]
    %v2357 = vld [vmem:[#allocation11 + $0x6c8] sm:$0xff]
    %v2358 = vld [vmem:[#allocation11 + $0x6d0] sm:$0xff]
    %v2359 = vld [vmem:[#allocation11 + $0x6d8] sm:$0xff]
    %v2360 = vld [vmem:[#allocation11 + $0x6e0] sm:$0xff]
    %v2361 = vld [vmem:[#allocation11 + $0x6e8] sm:$0xff]
    %v2362 = vld [vmem:[#allocation11 + $0x6f0] sm:$0xff]
    %v2363 = vld [vmem:[#allocation11 + $0x6f8] sm:$0xff]
    %v2364 = vld [vmem:[#allocation11 + $0x700] sm:$0xff]
    %v2365 = vld [vmem:[#allocation11 + $0x708] sm:$0xff]
    %v2366 = vld [vmem:[#allocation11 + $0x710] sm:$0xff]
    %v2367 = vld [vmem:[#allocation11 + $0x718] sm:$0xff]
    %v2368 = vld [vmem:[#allocation11 + $0x720] sm:$0xff]
    %v2369 = vld [vmem:[#allocation11 + $0x728] sm:$0xff]
    %v2370 = vld [vmem:[#allocation11 + $0x730] sm:$0xff]
    %v2371 = vld [vmem:[#allocation11 + $0x738] sm:$0xff]
    %v2372 = vld [vmem:[#allocation11 + $0x740] sm:$0xff]
    %v2373 = vld [vmem:[#allocation11 + $0x748] sm:$0xff]
    %v2374 = vld [vmem:[#allocation11 + $0x750] sm:$0xff]
    %v2375 = vld [vmem:[#allocation11 + $0x758] sm:$0xff]
    %v2376 = vld [vmem:[#allocation11 + $0x760] sm:$0xff]
    %v2377 = vld [vmem:[#allocation11 + $0x768] sm:$0xff]
    %v2378 = vld [vmem:[#allocation11 + $0x770] sm:$0xff]
    %v2379 = vld [vmem:[#allocation11 + $0x778] sm:$0xff]
    %v2380 = vld [vmem:[#allocation11 + $0x780] sm:$0xff]
    %v2381 = vld [vmem:[#allocation11 + $0x788] sm:$0xff]
    %v2382 = vld [vmem:[#allocation11 + $0x790] sm:$0xff]
    %v2383 = vld [vmem:[#allocation11 + $0x798] sm:$0xff]
    %v2384 = vld [vmem:[#allocation11 + $0x7a0] sm:$0xff]
    %v2385 = vld [vmem:[#allocation11 + $0x7a8] sm:$0xff]
    %v2386 = vld [vmem:[#allocation11 + $0x7b0] sm:$0xff]
    %v2387 = vld [vmem:[#allocation11 + $0x7b8] sm:$0xff]
    %v2388 = vld [vmem:[#allocation11 + $0x7c0] sm:$0xff]
    %v2389 = vld [vmem:[#allocation11 + $0x7c8] sm:$0xff]
    %v2390 = vld [vmem:[#allocation11 + $0x7d0] sm:$0xff]
    %v2391 = vld [vmem:[#allocation11 + $0x7d8] sm:$0xff]
    %v2392 = vld [vmem:[#allocation11 + $0x7e0] sm:$0xff]
    %v2393 = vld [vmem:[#allocation11 + $0x7e8] sm:$0xff]
    %v2394 = vld [vmem:[#allocation11 + $0x7f0] sm:$0xff]
    %v2395 = vld [vmem:[#allocation11 + $0x7f8] sm:$0xff]
    %v2396 = vld [vmem:[#allocation11 + $0x800] sm:$0xff]
    %v2397 = vld [vmem:[#allocation11 + $0x808] sm:$0xff]
    %v2398 = vld [vmem:[#allocation11 + $0x810] sm:$0xff]
    %v2399 = vld [vmem:[#allocation11 + $0x818] sm:$0xff]
    %v2400 = vld [vmem:[#allocation11 + $0x820] sm:$0xff]
    %v2401 = vld [vmem:[#allocation11 + $0x828] sm:$0xff]
    %v2402 = vld [vmem:[#allocation11 + $0x830] sm:$0xff]
    %v2403 = vld [vmem:[#allocation11 + $0x838] sm:$0xff]
    %v2404 = vld [vmem:[#allocation11 + $0x840] sm:$0xff]
    %v2405 = vld [vmem:[#allocation11 + $0x848] sm:$0xff]
    %v2406 = vld [vmem:[#allocation11 + $0x850] sm:$0xff]
    %v2407 = vld [vmem:[#allocation11 + $0x858] sm:$0xff]
    %v2408 = vld [vmem:[#allocation11 + $0x860] sm:$0xff]
    %v2409 = vld [vmem:[#allocation11 + $0x868] sm:$0xff]
    %v2410 = vld [vmem:[#allocation11 + $0x870] sm:$0xff]
    %v2411 = vld [vmem:[#allocation11 + $0x878] sm:$0xff]
    %v2412 = vld [vmem:[#allocation11 + $0x880] sm:$0xff]
    %v2413 = vld [vmem:[#allocation11 + $0x888] sm:$0xff]
    %v2414 = vld [vmem:[#allocation11 + $0x890] sm:$0xff]
    %v2415 = vld [vmem:[#allocation11 + $0x898] sm:$0xff]
    %v2416 = vld [vmem:[#allocation11 + $0x8a0] sm:$0xff]
    %v2417 = vld [vmem:[#allocation11 + $0x8a8] sm:$0xff]
    %v2418 = vld [vmem:[#allocation11 + $0x8b0] sm:$0xff]
    %v2419 = vld [vmem:[#allocation11 + $0x8b8] sm:$0xff]
    %v2420 = vld [vmem:[#allocation11 + $0x8c0] sm:$0xff]
    %v2421 = vld [vmem:[#allocation11 + $0x8c8] sm:$0xff]
    %v2422 = vld [vmem:[#allocation11 + $0x8d0] sm:$0xff]
    %v2423 = vld [vmem:[#allocation11 + $0x8d8] sm:$0xff]
    %v2424 = vld [vmem:[#allocation11 + $0x8e0] sm:$0xff]
    %v2425 = vld [vmem:[#allocation11 + $0x8e8] sm:$0xff]
    %v2426 = vld [vmem:[#allocation11 + $0x8f0] sm:$0xff]
    %v2427 = vld [vmem:[#allocation11 + $0x8f8] sm:$0xff]
    %v2428 = vld [vmem:[#allocation11 + $0x900] sm:$0xff]
    %v2429 = vld [vmem:[#allocation11 + $0x908] sm:$0xff]
    %v2430 = vld [vmem:[#allocation11 + $0x910] sm:$0xff]
    %v2431 = vld [vmem:[#allocation11 + $0x918] sm:$0xff]
    %v2432 = vld [vmem:[#allocation11 + $0x920] sm:$0xff]
    %v2433 = vld [vmem:[#allocation11 + $0x928] sm:$0xff]
    %v2434 = vld [vmem:[#allocation11 + $0x930] sm:$0xff]
    %v2435 = vld [vmem:[#allocation11 + $0x938] sm:$0xff]
    %v2436 = vld [vmem:[#allocation11 + $0x940] sm:$0xff]
    %v2437 = vld [vmem:[#allocation11 + $0x948] sm:$0xff]
    %v2438 = vld [vmem:[#allocation11 + $0x950] sm:$0xff]
    %v2439 = vld [vmem:[#allocation11 + $0x958] sm:$0xff]
    %v2440 = vld [vmem:[#allocation11 + $0x960] sm:$0xff]
    %v2441 = vld [vmem:[#allocation11 + $0x968] sm:$0xff]
    %v2442 = vld [vmem:[#allocation11 + $0x970] sm:$0xff]
    %v2443 = vld [vmem:[#allocation11 + $0x978] sm:$0xff]
    %v2444 = vld [vmem:[#allocation11 + $0x980] sm:$0xff]
    %v2445 = vld [vmem:[#allocation11 + $0x988] sm:$0xff]
    %v2446 = vld [vmem:[#allocation11 + $0x990] sm:$0xff]
    %v2447 = vld [vmem:[#allocation11 + $0x998] sm:$0xff]
    %v2448 = vld [vmem:[#allocation11 + $0x9a0] sm:$0xff]
    %v2449 = vld [vmem:[#allocation11 + $0x9a8] sm:$0xff]
    %v2450 = vld [vmem:[#allocation11 + $0x9b0] sm:$0xff]
    %v2451 = vld [vmem:[#allocation11 + $0x9b8] sm:$0xff]
    %v2452 = vld [vmem:[#allocation11 + $0x9c0] sm:$0xff]
    %v2453 = vld [vmem:[#allocation11 + $0x9c8] sm:$0xff]
    %v2454 = vld [vmem:[#allocation11 + $0x9d0] sm:$0xff]
    %v2455 = vld [vmem:[#allocation11 + $0x9d8] sm:$0xff]
    %v2456 = vld [vmem:[#allocation11 + $0x9e0] sm:$0xff]
    %v2457 = vld [vmem:[#allocation11 + $0x9e8] sm:$0xff]
    %v2458 = vld [vmem:[#allocation11 + $0x9f0] sm:$0xff]
    %v2459 = vld [vmem:[#allocation11 + $0x9f8] sm:$0xff]
    %v2460 = vld [vmem:[#allocation11 + $0xa00] sm:$0xff]
    %v2461 = vld [vmem:[#allocation11 + $0xa08] sm:$0xff]
    %v2462 = vld [vmem:[#allocation11 + $0xa10] sm:$0xff]
    %v2463 = vld [vmem:[#allocation11 + $0xa18] sm:$0xff]
    %v2464 = vld [vmem:[#allocation11 + $0xa20] sm:$0xff]
    %v2465 = vld [vmem:[#allocation11 + $0xa28] sm:$0xff]
    %v2466 = vld [vmem:[#allocation11 + $0xa30] sm:$0xff]
    %v2467 = vld [vmem:[#allocation11 + $0xa38] sm:$0xff]
    %v2468 = vld [vmem:[#allocation11 + $0xa40] sm:$0xff]
    %v2469 = vld [vmem:[#allocation11 + $0xa48] sm:$0xff]
    %v2470 = vld [vmem:[#allocation11 + $0xa50] sm:$0xff]
    %v2471 = vld [vmem:[#allocation11 + $0xa58] sm:$0xff]
    %v2472 = vld [vmem:[#allocation11 + $0xa60] sm:$0xff]
    %v2473 = vld [vmem:[#allocation11 + $0xa68] sm:$0xff]
    %v2474 = vld [vmem:[#allocation11 + $0xa70] sm:$0xff]
    %v2475 = vld [vmem:[#allocation11 + $0xa78] sm:$0xff]
    %v2476 = vld [vmem:[#allocation11 + $0xa80] sm:$0xff]
    %v2477 = vld [vmem:[#allocation11 + $0xa88] sm:$0xff]
    %v2478 = vld [vmem:[#allocation11 + $0xa90] sm:$0xff]
    %v2479 = vld [vmem:[#allocation11 + $0xa98] sm:$0xff]
    %v2480 = vld [vmem:[#allocation11 + $0xaa0] sm:$0xff]
    %v2481 = vld [vmem:[#allocation11 + $0xaa8] sm:$0xff]
    %v2482 = vld [vmem:[#allocation11 + $0xab0] sm:$0xff]
    %v2483 = vld [vmem:[#allocation11 + $0xab8] sm:$0xff]
    %v2484 = vld [vmem:[#allocation11 + $0xac0] sm:$0xff]
    %v2485 = vld [vmem:[#allocation11 + $0xac8] sm:$0xff]
    %v2486 = vld [vmem:[#allocation11 + $0xad0] sm:$0xff]
    %v2487 = vld [vmem:[#allocation11 + $0xad8] sm:$0xff]
    %v2488 = vld [vmem:[#allocation11 + $0xae0] sm:$0xff]
    %v2489 = vld [vmem:[#allocation11 + $0xae8] sm:$0xff]
    %v2490 = vld [vmem:[#allocation11 + $0xaf0] sm:$0xff]
    %v2491 = vld [vmem:[#allocation11 + $0xaf8] sm:$0xff]
    %v2492 = vld [vmem:[#allocation11 + $0xb00] sm:$0xff]
    %v2493 = vld [vmem:[#allocation11 + $0xb08] sm:$0xff]
    %v2494 = vld [vmem:[#allocation11 + $0xb10] sm:$0xff]
    %v2495 = vld [vmem:[#allocation11 + $0xb18] sm:$0xff]
    %v2496 = vld [vmem:[#allocation11 + $0xb20] sm:$0xff]
    %v2497 = vld [vmem:[#allocation11 + $0xb28] sm:$0xff]
    %v2498 = vld [vmem:[#allocation11 + $0xb30] sm:$0xff]
    %v2499 = vld [vmem:[#allocation11 + $0xb38] sm:$0xff]
    %v2500 = vld [vmem:[#allocation11 + $0xb40] sm:$0xff]
    %v2501 = vld [vmem:[#allocation11 + $0xb48] sm:$0xff]
    %v2502 = vld [vmem:[#allocation11 + $0xb50] sm:$0xff]
    %v2503 = vld [vmem:[#allocation11 + $0xb58] sm:$0xff]
    %v2504 = vld [vmem:[#allocation11 + $0xb60] sm:$0xff]
    %v2505 = vld [vmem:[#allocation11 + $0xb68] sm:$0xff]
    %v2506 = vld [vmem:[#allocation11 + $0xb70] sm:$0xff]
    %v2507 = vld [vmem:[#allocation11 + $0xb78] sm:$0xff]
    %v2508 = vld [vmem:[#allocation11 + $0xb80] sm:$0xff]
    %v2509 = vld [vmem:[#allocation11 + $0xb88] sm:$0xff]
    %v2510 = vld [vmem:[#allocation11 + $0xb90] sm:$0xff]
    %v2511 = vld [vmem:[#allocation11 + $0xb98] sm:$0xff]
    %v2512 = vld [vmem:[#allocation11 + $0xba0] sm:$0xff]
    %v2513 = vld [vmem:[#allocation11 + $0xba8] sm:$0xff]
    %v2514 = vld [vmem:[#allocation11 + $0xbb0] sm:$0xff]
    %v2515 = vld [vmem:[#allocation11 + $0xbb8] sm:$0xff]
    %v2516 = vld [vmem:[#allocation11 + $0xbc0] sm:$0xff]
    %v2517 = vld [vmem:[#allocation11 + $0xbc8] sm:$0xff]
    %v2518 = vld [vmem:[#allocation11 + $0xbd0] sm:$0xff]
    %v2519 = vld [vmem:[#allocation11 + $0xbd8] sm:$0xff]
    %v2520 = vld [vmem:[#allocation11 + $0xbe0] sm:$0xff]
    %v2521 = vld [vmem:[#allocation11 + $0xbe8] sm:$0xff]
    %v2522 = vld [vmem:[#allocation11 + $0xbf0] sm:$0xff]
    %v2523 = vld [vmem:[#allocation11 + $0xbf8] sm:$0xff]
    %v2524 = vld [vmem:[#allocation11 + $0xc00] sm:$0xff]
    %v2525 = vld [vmem:[#allocation11 + $0xc08] sm:$0xff]
    %v2526 = vld [vmem:[#allocation11 + $0xc10] sm:$0xff]
    %v2527 = vld [vmem:[#allocation11 + $0xc18] sm:$0xff]
    %v2528 = vld [vmem:[#allocation11 + $0xc20] sm:$0xff]
    %v2529 = vld [vmem:[#allocation11 + $0xc28] sm:$0xff]
    %v2530 = vld [vmem:[#allocation11 + $0xc30] sm:$0xff]
    %v2531 = vld [vmem:[#allocation11 + $0xc38] sm:$0xff]
    %v2532 = vld [vmem:[#allocation11 + $0xc40] sm:$0xff]
    %v2533 = vld [vmem:[#allocation11 + $0xc48] sm:$0xff]
    %v2534 = vld [vmem:[#allocation11 + $0xc50] sm:$0xff]
    %v2535 = vld [vmem:[#allocation11 + $0xc58] sm:$0xff]
    %v2536 = vld [vmem:[#allocation11 + $0xc60] sm:$0xff]
    %v2537 = vld [vmem:[#allocation11 + $0xc68] sm:$0xff]
    %v2538 = vld [vmem:[#allocation11 + $0xc70] sm:$0xff]
    %v2539 = vld [vmem:[#allocation11 + $0xc78] sm:$0xff]
    %v2540 = vld [vmem:[#allocation11 + $0xc80] sm:$0xff]
    %v2541 = vld [vmem:[#allocation11 + $0xc88] sm:$0xff]
    %v2542 = vld [vmem:[#allocation11 + $0xc90] sm:$0xff]
    %v2543 = vld [vmem:[#allocation11 + $0xc98] sm:$0xff]
    %v2544 = vld [vmem:[#allocation11 + $0xca0] sm:$0xff]
    %v2545 = vld [vmem:[#allocation11 + $0xca8] sm:$0xff]
    %v2546 = vld [vmem:[#allocation11 + $0xcb0] sm:$0xff]
    %v2547 = vld [vmem:[#allocation11 + $0xcb8] sm:$0xff]
    %v2548 = vld [vmem:[#allocation11 + $0xcc0] sm:$0xff]
    %v2549 = vld [vmem:[#allocation11 + $0xcc8] sm:$0xff]
    %v2550 = vld [vmem:[#allocation11 + $0xcd0] sm:$0xff]
    %v2551 = vld [vmem:[#allocation11 + $0xcd8] sm:$0xff]
    %v2552 = vld [vmem:[#allocation11 + $0xce0] sm:$0xff]
    %v2553 = vld [vmem:[#allocation11 + $0xce8] sm:$0xff]
    %v2554 = vld [vmem:[#allocation11 + $0xcf0] sm:$0xff]
    %v2555 = vld [vmem:[#allocation11 + $0xcf8] sm:$0xff]
    %v2556 = vld [vmem:[#allocation11 + $0xd00] sm:$0xff]
    %v2557 = vld [vmem:[#allocation11 + $0xd08] sm:$0xff]
    %v2558 = vld [vmem:[#allocation11 + $0xd10] sm:$0xff]
    %v2559 = vld [vmem:[#allocation11 + $0xd18] sm:$0xff]
    %v2560 = vld [vmem:[#allocation11 + $0xd20] sm:$0xff]
    %v2561 = vld [vmem:[#allocation11 + $0xd28] sm:$0xff]
    %v2562 = vld [vmem:[#allocation11 + $0xd30] sm:$0xff]
    %v2563 = vld [vmem:[#allocation11 + $0xd38] sm:$0xff]
    %v2564 = vld [vmem:[#allocation11 + $0xd40] sm:$0xff]
    %v2565 = vld [vmem:[#allocation11 + $0xd48] sm:$0xff]
    %v2566 = vld [vmem:[#allocation11 + $0xd50] sm:$0xff]
    %v2567 = vld [vmem:[#allocation11 + $0xd58] sm:$0xff]
    %v2568 = vld [vmem:[#allocation11 + $0xd60] sm:$0xff]
    %v2569 = vld [vmem:[#allocation11 + $0xd68] sm:$0xff]
    %v2570 = vld [vmem:[#allocation11 + $0xd70] sm:$0xff]
    %v2571 = vld [vmem:[#allocation11 + $0xd78] sm:$0xff]
    %v2572 = vld [vmem:[#allocation11 + $0xd80] sm:$0xff]
    %v2573 = vld [vmem:[#allocation11 + $0xd88] sm:$0xff]
    %v2574 = vld [vmem:[#allocation11 + $0xd90] sm:$0xff]
    %v2575 = vld [vmem:[#allocation11 + $0xd98] sm:$0xff]
    %v2576 = vld [vmem:[#allocation11 + $0xda0] sm:$0xff]
    %v2577 = vld [vmem:[#allocation11 + $0xda8] sm:$0xff]
    %v2578 = vld [vmem:[#allocation11 + $0xdb0] sm:$0xff]
    %v2579 = vld [vmem:[#allocation11 + $0xdb8] sm:$0xff]
    %v2580 = vld [vmem:[#allocation11 + $0xdc0] sm:$0xff]
    %v2581 = vld [vmem:[#allocation11 + $0xdc8] sm:$0xff]
    %v2582 = vld [vmem:[#allocation11 + $0xdd0] sm:$0xff]
    %v2583 = vld [vmem:[#allocation11 + $0xdd8] sm:$0xff]
    %v2584 = vld [vmem:[#allocation11 + $0xde0] sm:$0xff]
    %v2585 = vld [vmem:[#allocation11 + $0xde8] sm:$0xff]
    %v2586 = vld [vmem:[#allocation11 + $0xdf0] sm:$0xff]
    %v2587 = vld [vmem:[#allocation11 + $0xdf8] sm:$0xff]
    %v2588 = vld [vmem:[#allocation11 + $0xe00] sm:$0xff]
    %v2589 = vld [vmem:[#allocation11 + $0xe08] sm:$0xff]
    %v2590 = vld [vmem:[#allocation11 + $0xe10] sm:$0xff]
    %v2591 = vld [vmem:[#allocation11 + $0xe18] sm:$0xff]
    %v2592 = vld [vmem:[#allocation11 + $0xe20] sm:$0xff]
    %v2593 = vld [vmem:[#allocation11 + $0xe28] sm:$0xff]
    %v2594 = vld [vmem:[#allocation11 + $0xe30] sm:$0xff]
    %v2595 = vld [vmem:[#allocation11 + $0xe38] sm:$0xff]
    %v2596 = vld [vmem:[#allocation11 + $0xe40] sm:$0xff]
    %v2597 = vld [vmem:[#allocation11 + $0xe48] sm:$0xff]
    %v2598 = vld [vmem:[#allocation11 + $0xe50] sm:$0xff]
    %v2599 = vld [vmem:[#allocation11 + $0xe58] sm:$0xff]
    %v2600 = vld [vmem:[#allocation11 + $0xe60] sm:$0xff]
    %v2601 = vld [vmem:[#allocation11 + $0xe68] sm:$0xff]
    %v2602 = vld [vmem:[#allocation11 + $0xe70] sm:$0xff]
    %v2603 = vld [vmem:[#allocation11 + $0xe78] sm:$0xff]
    %v2604 = vld [vmem:[#allocation11 + $0xe80] sm:$0xff]
    %v2605 = vld [vmem:[#allocation11 + $0xe88] sm:$0xff]
    %v2606 = vld [vmem:[#allocation11 + $0xe90] sm:$0xff]
    %v2607 = vld [vmem:[#allocation11 + $0xe98] sm:$0xff]
    %v2608 = vld [vmem:[#allocation11 + $0xea0] sm:$0xff]
    %v2609 = vld [vmem:[#allocation11 + $0xea8] sm:$0xff]
    %v2610 = vld [vmem:[#allocation11 + $0xeb0] sm:$0xff]
    %v2611 = vld [vmem:[#allocation11 + $0xeb8] sm:$0xff]
    %v2612 = vld [vmem:[#allocation11 + $0xec0] sm:$0xff]
    %v2613 = vld [vmem:[#allocation11 + $0xec8] sm:$0xff]
    %v2614 = vld [vmem:[#allocation11 + $0xed0] sm:$0xff]
    %v2615 = vld [vmem:[#allocation11 + $0xed8] sm:$0xff]
    %v2616 = vld [vmem:[#allocation11 + $0xee0] sm:$0xff]
    %v2617 = vld [vmem:[#allocation11 + $0xee8] sm:$0xff]
    %v2618 = vld [vmem:[#allocation11 + $0xef0] sm:$0xff]
    %v2619 = vld [vmem:[#allocation11 + $0xef8] sm:$0xff]
    %v2620 = vld [vmem:[#allocation11 + $0xf00] sm:$0xff]
    %v2621 = vld [vmem:[#allocation11 + $0xf08] sm:$0xff]
    %v2622 = vld [vmem:[#allocation11 + $0xf10] sm:$0xff]
    %v2623 = vld [vmem:[#allocation11 + $0xf18] sm:$0xff]
    %v2624 = vld [vmem:[#allocation11 + $0xf20] sm:$0xff]
    %v2625 = vld [vmem:[#allocation11 + $0xf28] sm:$0xff]
    %v2626 = vld [vmem:[#allocation11 + $0xf30] sm:$0xff]
    %v2627 = vld [vmem:[#allocation11 + $0xf38] sm:$0xff]
    %v2628 = vld [vmem:[#allocation11 + $0xf40] sm:$0xff]
    %v2629 = vld [vmem:[#allocation11 + $0xf48] sm:$0xff]
    %v2630 = vld [vmem:[#allocation11 + $0xf50] sm:$0xff]
    %v2631 = vld [vmem:[#allocation11 + $0xf58] sm:$0xff]
    %v2632 = vld [vmem:[#allocation11 + $0xf60] sm:$0xff]
    %v2633 = vld [vmem:[#allocation11 + $0xf68] sm:$0xff]
    %v2634 = vld [vmem:[#allocation11 + $0xf70] sm:$0xff]
    %v2635 = vld [vmem:[#allocation11 + $0xf78] sm:$0xff]
    %v2636 = vld [vmem:[#allocation11 + $0xf80] sm:$0xff]
    %v2637 = vld [vmem:[#allocation11 + $0xf88] sm:$0xff]
    %v2638 = vld [vmem:[#allocation11 + $0xf90] sm:$0xff]
    %v2639 = vld [vmem:[#allocation11 + $0xf98] sm:$0xff]
    %v2640 = vld [vmem:[#allocation11 + $0xfa0] sm:$0xff]
    %v2641 = vld [vmem:[#allocation11 + $0xfa8] sm:$0xff]
    %v2642 = vld [vmem:[#allocation11 + $0xfb0] sm:$0xff]
    %v2643 = vld [vmem:[#allocation11 + $0xfb8] sm:$0xff]
    %v2644 = vld [vmem:[#allocation11 + $0xfc0] sm:$0xff]
    %v2645 = vld [vmem:[#allocation11 + $0xfc8] sm:$0xff]
    %v2646 = vld [vmem:[#allocation11 + $0xfd0] sm:$0xff]
    %v2647 = vld [vmem:[#allocation11 + $0xfd8] sm:$0xff]
    %v2648 = vld [vmem:[#allocation11 + $0xfe0] sm:$0xff]
    %v2649 = vld [vmem:[#allocation11 + $0xfe8] sm:$0xff]
    %v2650 = vld [vmem:[#allocation11 + $0xff0] sm:$0xff]
    %v2651 = vld [vmem:[#allocation11 + $0xff8] sm:$0xff]
    %v2652 = vunpack.c.l.bf16 %v2140
    %v2653 = vunpack.c.h.bf16 %v2140
    %v2654 = vunpack.c.l.bf16 %v2141
    %v2655 = vunpack.c.h.bf16 %v2141
    %v2656 = vunpack.c.l.bf16 %v2142
    %v2657 = vunpack.c.h.bf16 %v2142
    %v2658 = vunpack.c.l.bf16 %v2143
    %v2659 = vunpack.c.h.bf16 %v2143
    %v2660 = vunpack.c.l.bf16 %v2144
    %v2661 = vunpack.c.h.bf16 %v2144
    %v2662 = vunpack.c.l.bf16 %v2145
    %v2663 = vunpack.c.h.bf16 %v2145
    %v2664 = vunpack.c.l.bf16 %v2146
    %v2665 = vunpack.c.h.bf16 %v2146
    %v2666 = vunpack.c.l.bf16 %v2147
    %v2667 = vunpack.c.h.bf16 %v2147
    %v2668 = vunpack.c.l.bf16 %v2148
    %v2669 = vunpack.c.h.bf16 %v2148
    %v2670 = vunpack.c.l.bf16 %v2149
    %v2671 = vunpack.c.h.bf16 %v2149
    %v2672 = vunpack.c.l.bf16 %v2150
    %v2673 = vunpack.c.h.bf16 %v2150
    %v2674 = vunpack.c.l.bf16 %v2151
    %v2675 = vunpack.c.h.bf16 %v2151
    %v2676 = vunpack.c.l.bf16 %v2152
    %v2677 = vunpack.c.h.bf16 %v2152
    %v2678 = vunpack.c.l.bf16 %v2153
    %v2679 = vunpack.c.h.bf16 %v2153
    %v2680 = vunpack.c.l.bf16 %v2154
    %v2681 = vunpack.c.h.bf16 %v2154
    %v2682 = vunpack.c.l.bf16 %v2155
    %v2683 = vunpack.c.h.bf16 %v2155
    %v2684 = vunpack.c.l.bf16 %v2156
    %v2685 = vunpack.c.h.bf16 %v2156
    %v2686 = vunpack.c.l.bf16 %v2157
    %v2687 = vunpack.c.h.bf16 %v2157
    %v2688 = vunpack.c.l.bf16 %v2158
    %v2689 = vunpack.c.h.bf16 %v2158
    %v2690 = vunpack.c.l.bf16 %v2159
    %v2691 = vunpack.c.h.bf16 %v2159
    %v2692 = vunpack.c.l.bf16 %v2160
    %v2693 = vunpack.c.h.bf16 %v2160
    %v2694 = vunpack.c.l.bf16 %v2161
    %v2695 = vunpack.c.h.bf16 %v2161
    %v2696 = vunpack.c.l.bf16 %v2162
    %v2697 = vunpack.c.h.bf16 %v2162
    %v2698 = vunpack.c.l.bf16 %v2163
    %v2699 = vunpack.c.h.bf16 %v2163
    %v2700 = vunpack.c.l.bf16 %v2164
    %v2701 = vunpack.c.h.bf16 %v2164
    %v2702 = vunpack.c.l.bf16 %v2165
    %v2703 = vunpack.c.h.bf16 %v2165
    %v2704 = vunpack.c.l.bf16 %v2166
    %v2705 = vunpack.c.h.bf16 %v2166
    %v2706 = vunpack.c.l.bf16 %v2167
    %v2707 = vunpack.c.h.bf16 %v2167
    %v2708 = vunpack.c.l.bf16 %v2168
    %v2709 = vunpack.c.h.bf16 %v2168
    %v2710 = vunpack.c.l.bf16 %v2169
    %v2711 = vunpack.c.h.bf16 %v2169
    %v2712 = vunpack.c.l.bf16 %v2170
    %v2713 = vunpack.c.h.bf16 %v2170
    %v2714 = vunpack.c.l.bf16 %v2171
    %v2715 = vunpack.c.h.bf16 %v2171
    %v2716 = vunpack.c.l.bf16 %v2172
    %v2717 = vunpack.c.h.bf16 %v2172
    %v2718 = vunpack.c.l.bf16 %v2173
    %v2719 = vunpack.c.h.bf16 %v2173
    %v2720 = vunpack.c.l.bf16 %v2174
    %v2721 = vunpack.c.h.bf16 %v2174
    %v2722 = vunpack.c.l.bf16 %v2175
    %v2723 = vunpack.c.h.bf16 %v2175
    %v2724 = vunpack.c.l.bf16 %v2176
    %v2725 = vunpack.c.h.bf16 %v2176
    %v2726 = vunpack.c.l.bf16 %v2177
    %v2727 = vunpack.c.h.bf16 %v2177
    %v2728 = vunpack.c.l.bf16 %v2178
    %v2729 = vunpack.c.h.bf16 %v2178
    %v2730 = vunpack.c.l.bf16 %v2179
    %v2731 = vunpack.c.h.bf16 %v2179
    %v2732 = vunpack.c.l.bf16 %v2180
    %v2733 = vunpack.c.h.bf16 %v2180
    %v2734 = vunpack.c.l.bf16 %v2181
    %v2735 = vunpack.c.h.bf16 %v2181
    %v2736 = vunpack.c.l.bf16 %v2182
    %v2737 = vunpack.c.h.bf16 %v2182
    %v2738 = vunpack.c.l.bf16 %v2183
    %v2739 = vunpack.c.h.bf16 %v2183
    %v2740 = vunpack.c.l.bf16 %v2184
    %v2741 = vunpack.c.h.bf16 %v2184
    %v2742 = vunpack.c.l.bf16 %v2185
    %v2743 = vunpack.c.h.bf16 %v2185
    %v2744 = vunpack.c.l.bf16 %v2186
    %v2745 = vunpack.c.h.bf16 %v2186
    %v2746 = vunpack.c.l.bf16 %v2187
    %v2747 = vunpack.c.h.bf16 %v2187
    %v2748 = vunpack.c.l.bf16 %v2188
    %v2749 = vunpack.c.h.bf16 %v2188
    %v2750 = vunpack.c.l.bf16 %v2189
    %v2751 = vunpack.c.h.bf16 %v2189
    %v2752 = vunpack.c.l.bf16 %v2190
    %v2753 = vunpack.c.h.bf16 %v2190
    %v2754 = vunpack.c.l.bf16 %v2191
    %v2755 = vunpack.c.h.bf16 %v2191
    %v2756 = vunpack.c.l.bf16 %v2192
    %v2757 = vunpack.c.h.bf16 %v2192
    %v2758 = vunpack.c.l.bf16 %v2193
    %v2759 = vunpack.c.h.bf16 %v2193
    %v2760 = vunpack.c.l.bf16 %v2194
    %v2761 = vunpack.c.h.bf16 %v2194
    %v2762 = vunpack.c.l.bf16 %v2195
    %v2763 = vunpack.c.h.bf16 %v2195
    %v2764 = vunpack.c.l.bf16 %v2196
    %v2765 = vunpack.c.h.bf16 %v2196
    %v2766 = vunpack.c.l.bf16 %v2197
    %v2767 = vunpack.c.h.bf16 %v2197
    %v2768 = vunpack.c.l.bf16 %v2198
    %v2769 = vunpack.c.h.bf16 %v2198
    %v2770 = vunpack.c.l.bf16 %v2199
    %v2771 = vunpack.c.h.bf16 %v2199
    %v2772 = vunpack.c.l.bf16 %v2200
    %v2773 = vunpack.c.h.bf16 %v2200
    %v2774 = vunpack.c.l.bf16 %v2201
    %v2775 = vunpack.c.h.bf16 %v2201
    %v2776 = vunpack.c.l.bf16 %v2202
    %v2777 = vunpack.c.h.bf16 %v2202
    %v2778 = vunpack.c.l.bf16 %v2203
    %v2779 = vunpack.c.h.bf16 %v2203
    %v2780 = vunpack.c.l.bf16 %v2204
    %v2781 = vunpack.c.h.bf16 %v2204
    %v2782 = vunpack.c.l.bf16 %v2205
    %v2783 = vunpack.c.h.bf16 %v2205
    %v2784 = vunpack.c.l.bf16 %v2206
    %v2785 = vunpack.c.h.bf16 %v2206
    %v2786 = vunpack.c.l.bf16 %v2207
    %v2787 = vunpack.c.h.bf16 %v2207
    %v2788 = vunpack.c.l.bf16 %v2208
    %v2789 = vunpack.c.h.bf16 %v2208
    %v2790 = vunpack.c.l.bf16 %v2209
    %v2791 = vunpack.c.h.bf16 %v2209
    %v2792 = vunpack.c.l.bf16 %v2210
    %v2793 = vunpack.c.h.bf16 %v2210
    %v2794 = vunpack.c.l.bf16 %v2211
    %v2795 = vunpack.c.h.bf16 %v2211
    %v2796 = vunpack.c.l.bf16 %v2212
    %v2797 = vunpack.c.h.bf16 %v2212
    %v2798 = vunpack.c.l.bf16 %v2213
    %v2799 = vunpack.c.h.bf16 %v2213
    %v2800 = vunpack.c.l.bf16 %v2214
    %v2801 = vunpack.c.h.bf16 %v2214
    %v2802 = vunpack.c.l.bf16 %v2215
    %v2803 = vunpack.c.h.bf16 %v2215
    %v2804 = vunpack.c.l.bf16 %v2216
    %v2805 = vunpack.c.h.bf16 %v2216
    %v2806 = vunpack.c.l.bf16 %v2217
    %v2807 = vunpack.c.h.bf16 %v2217
    %v2808 = vunpack.c.l.bf16 %v2218
    %v2809 = vunpack.c.h.bf16 %v2218
    %v2810 = vunpack.c.l.bf16 %v2219
    %v2811 = vunpack.c.h.bf16 %v2219
    %v2812 = vunpack.c.l.bf16 %v2220
    %v2813 = vunpack.c.h.bf16 %v2220
    %v2814 = vunpack.c.l.bf16 %v2221
    %v2815 = vunpack.c.h.bf16 %v2221
    %v2816 = vunpack.c.l.bf16 %v2222
    %v2817 = vunpack.c.h.bf16 %v2222
    %v2818 = vunpack.c.l.bf16 %v2223
    %v2819 = vunpack.c.h.bf16 %v2223
    %v2820 = vunpack.c.l.bf16 %v2224
    %v2821 = vunpack.c.h.bf16 %v2224
    %v2822 = vunpack.c.l.bf16 %v2225
    %v2823 = vunpack.c.h.bf16 %v2225
    %v2824 = vunpack.c.l.bf16 %v2226
    %v2825 = vunpack.c.h.bf16 %v2226
    %v2826 = vunpack.c.l.bf16 %v2227
    %v2827 = vunpack.c.h.bf16 %v2227
    %v2828 = vunpack.c.l.bf16 %v2228
    %v2829 = vunpack.c.h.bf16 %v2228
    %v2830 = vunpack.c.l.bf16 %v2229
    %v2831 = vunpack.c.h.bf16 %v2229
    %v2832 = vunpack.c.l.bf16 %v2230
    %v2833 = vunpack.c.h.bf16 %v2230
    %v2834 = vunpack.c.l.bf16 %v2231
    %v2835 = vunpack.c.h.bf16 %v2231
    %v2836 = vunpack.c.l.bf16 %v2232
    %v2837 = vunpack.c.h.bf16 %v2232
    %v2838 = vunpack.c.l.bf16 %v2233
    %v2839 = vunpack.c.h.bf16 %v2233
    %v2840 = vunpack.c.l.bf16 %v2234
    %v2841 = vunpack.c.h.bf16 %v2234
    %v2842 = vunpack.c.l.bf16 %v2235
    %v2843 = vunpack.c.h.bf16 %v2235
    %v2844 = vunpack.c.l.bf16 %v2236
    %v2845 = vunpack.c.h.bf16 %v2236
    %v2846 = vunpack.c.l.bf16 %v2237
    %v2847 = vunpack.c.h.bf16 %v2237
    %v2848 = vunpack.c.l.bf16 %v2238
    %v2849 = vunpack.c.h.bf16 %v2238
    %v2850 = vunpack.c.l.bf16 %v2239
    %v2851 = vunpack.c.h.bf16 %v2239
    %v2852 = vunpack.c.l.bf16 %v2240
    %v2853 = vunpack.c.h.bf16 %v2240
    %v2854 = vunpack.c.l.bf16 %v2241
    %v2855 = vunpack.c.h.bf16 %v2241
    %v2856 = vunpack.c.l.bf16 %v2242
    %v2857 = vunpack.c.h.bf16 %v2242
    %v2858 = vunpack.c.l.bf16 %v2243
    %v2859 = vunpack.c.h.bf16 %v2243
    %v2860 = vunpack.c.l.bf16 %v2244
    %v2861 = vunpack.c.h.bf16 %v2244
    %v2862 = vunpack.c.l.bf16 %v2245
    %v2863 = vunpack.c.h.bf16 %v2245
    %v2864 = vunpack.c.l.bf16 %v2246
    %v2865 = vunpack.c.h.bf16 %v2246
    %v2866 = vunpack.c.l.bf16 %v2247
    %v2867 = vunpack.c.h.bf16 %v2247
    %v2868 = vunpack.c.l.bf16 %v2248
    %v2869 = vunpack.c.h.bf16 %v2248
    %v2870 = vunpack.c.l.bf16 %v2249
    %v2871 = vunpack.c.h.bf16 %v2249
    %v2872 = vunpack.c.l.bf16 %v2250
    %v2873 = vunpack.c.h.bf16 %v2250
    %v2874 = vunpack.c.l.bf16 %v2251
    %v2875 = vunpack.c.h.bf16 %v2251
    %v2876 = vunpack.c.l.bf16 %v2252
    %v2877 = vunpack.c.h.bf16 %v2252
    %v2878 = vunpack.c.l.bf16 %v2253
    %v2879 = vunpack.c.h.bf16 %v2253
    %v2880 = vunpack.c.l.bf16 %v2254
    %v2881 = vunpack.c.h.bf16 %v2254
    %v2882 = vunpack.c.l.bf16 %v2255
    %v2883 = vunpack.c.h.bf16 %v2255
    %v2884 = vunpack.c.l.bf16 %v2256
    %v2885 = vunpack.c.h.bf16 %v2256
    %v2886 = vunpack.c.l.bf16 %v2257
    %v2887 = vunpack.c.h.bf16 %v2257
    %v2888 = vunpack.c.l.bf16 %v2258
    %v2889 = vunpack.c.h.bf16 %v2258
    %v2890 = vunpack.c.l.bf16 %v2259
    %v2891 = vunpack.c.h.bf16 %v2259
    %v2892 = vunpack.c.l.bf16 %v2260
    %v2893 = vunpack.c.h.bf16 %v2260
    %v2894 = vunpack.c.l.bf16 %v2261
    %v2895 = vunpack.c.h.bf16 %v2261
    %v2896 = vunpack.c.l.bf16 %v2262
    %v2897 = vunpack.c.h.bf16 %v2262
    %v2898 = vunpack.c.l.bf16 %v2263
    %v2899 = vunpack.c.h.bf16 %v2263
    %v2900 = vunpack.c.l.bf16 %v2264
    %v2901 = vunpack.c.h.bf16 %v2264
    %v2902 = vunpack.c.l.bf16 %v2265
    %v2903 = vunpack.c.h.bf16 %v2265
    %v2904 = vunpack.c.l.bf16 %v2266
    %v2905 = vunpack.c.h.bf16 %v2266
    %v2906 = vunpack.c.l.bf16 %v2267
    %v2907 = vunpack.c.h.bf16 %v2267
    %v2908 = vunpack.c.l.bf16 %v2268
    %v2909 = vunpack.c.h.bf16 %v2268
    %v2910 = vunpack.c.l.bf16 %v2269
    %v2911 = vunpack.c.h.bf16 %v2269
    %v2912 = vunpack.c.l.bf16 %v2270
    %v2913 = vunpack.c.h.bf16 %v2270
    %v2914 = vunpack.c.l.bf16 %v2271
    %v2915 = vunpack.c.h.bf16 %v2271
    %v2916 = vunpack.c.l.bf16 %v2272
    %v2917 = vunpack.c.h.bf16 %v2272
    %v2918 = vunpack.c.l.bf16 %v2273
    %v2919 = vunpack.c.h.bf16 %v2273
    %v2920 = vunpack.c.l.bf16 %v2274
    %v2921 = vunpack.c.h.bf16 %v2274
    %v2922 = vunpack.c.l.bf16 %v2275
    %v2923 = vunpack.c.h.bf16 %v2275
    %v2924 = vunpack.c.l.bf16 %v2276
    %v2925 = vunpack.c.h.bf16 %v2276
    %v2926 = vunpack.c.l.bf16 %v2277
    %v2927 = vunpack.c.h.bf16 %v2277
    %v2928 = vunpack.c.l.bf16 %v2278
    %v2929 = vunpack.c.h.bf16 %v2278
    %v2930 = vunpack.c.l.bf16 %v2279
    %v2931 = vunpack.c.h.bf16 %v2279
    %v2932 = vunpack.c.l.bf16 %v2280
    %v2933 = vunpack.c.h.bf16 %v2280
    %v2934 = vunpack.c.l.bf16 %v2281
    %v2935 = vunpack.c.h.bf16 %v2281
    %v2936 = vunpack.c.l.bf16 %v2282
    %v2937 = vunpack.c.h.bf16 %v2282
    %v2938 = vunpack.c.l.bf16 %v2283
    %v2939 = vunpack.c.h.bf16 %v2283
    %v2940 = vunpack.c.l.bf16 %v2284
    %v2941 = vunpack.c.h.bf16 %v2284
    %v2942 = vunpack.c.l.bf16 %v2285
    %v2943 = vunpack.c.h.bf16 %v2285
    %v2944 = vunpack.c.l.bf16 %v2286
    %v2945 = vunpack.c.h.bf16 %v2286
    %v2946 = vunpack.c.l.bf16 %v2287
    %v2947 = vunpack.c.h.bf16 %v2287
    %v2948 = vunpack.c.l.bf16 %v2288
    %v2949 = vunpack.c.h.bf16 %v2288
    %v2950 = vunpack.c.l.bf16 %v2289
    %v2951 = vunpack.c.h.bf16 %v2289
    %v2952 = vunpack.c.l.bf16 %v2290
    %v2953 = vunpack.c.h.bf16 %v2290
    %v2954 = vunpack.c.l.bf16 %v2291
    %v2955 = vunpack.c.h.bf16 %v2291
    %v2956 = vunpack.c.l.bf16 %v2292
    %v2957 = vunpack.c.h.bf16 %v2292
    %v2958 = vunpack.c.l.bf16 %v2293
    %v2959 = vunpack.c.h.bf16 %v2293
    %v2960 = vunpack.c.l.bf16 %v2294
    %v2961 = vunpack.c.h.bf16 %v2294
    %v2962 = vunpack.c.l.bf16 %v2295
    %v2963 = vunpack.c.h.bf16 %v2295
    %v2964 = vunpack.c.l.bf16 %v2296
    %v2965 = vunpack.c.h.bf16 %v2296
    %v2966 = vunpack.c.l.bf16 %v2297
    %v2967 = vunpack.c.h.bf16 %v2297
    %v2968 = vunpack.c.l.bf16 %v2298
    %v2969 = vunpack.c.h.bf16 %v2298
    %v2970 = vunpack.c.l.bf16 %v2299
    %v2971 = vunpack.c.h.bf16 %v2299
    %v2972 = vunpack.c.l.bf16 %v2300
    %v2973 = vunpack.c.h.bf16 %v2300
    %v2974 = vunpack.c.l.bf16 %v2301
    %v2975 = vunpack.c.h.bf16 %v2301
    %v2976 = vunpack.c.l.bf16 %v2302
    %v2977 = vunpack.c.h.bf16 %v2302
    %v2978 = vunpack.c.l.bf16 %v2303
    %v2979 = vunpack.c.h.bf16 %v2303
    %v2980 = vunpack.c.l.bf16 %v2304
    %v2981 = vunpack.c.h.bf16 %v2304
    %v2982 = vunpack.c.l.bf16 %v2305
    %v2983 = vunpack.c.h.bf16 %v2305
    %v2984 = vunpack.c.l.bf16 %v2306
    %v2985 = vunpack.c.h.bf16 %v2306
    %v2986 = vunpack.c.l.bf16 %v2307
    %v2987 = vunpack.c.h.bf16 %v2307
    %v2988 = vunpack.c.l.bf16 %v2308
    %v2989 = vunpack.c.h.bf16 %v2308
    %v2990 = vunpack.c.l.bf16 %v2309
    %v2991 = vunpack.c.h.bf16 %v2309
    %v2992 = vunpack.c.l.bf16 %v2310
    %v2993 = vunpack.c.h.bf16 %v2310
    %v2994 = vunpack.c.l.bf16 %v2311
    %v2995 = vunpack.c.h.bf16 %v2311
    %v2996 = vunpack.c.l.bf16 %v2312
    %v2997 = vunpack.c.h.bf16 %v2312
    %v2998 = vunpack.c.l.bf16 %v2313
    %v2999 = vunpack.c.h.bf16 %v2313
    %v3000 = vunpack.c.l.bf16 %v2314
    %v3001 = vunpack.c.h.bf16 %v2314
    %v3002 = vunpack.c.l.bf16 %v2315
    %v3003 = vunpack.c.h.bf16 %v2315
    %v3004 = vunpack.c.l.bf16 %v2316
    %v3005 = vunpack.c.h.bf16 %v2316
    %v3006 = vunpack.c.l.bf16 %v2317
    %v3007 = vunpack.c.h.bf16 %v2317
    %v3008 = vunpack.c.l.bf16 %v2318
    %v3009 = vunpack.c.h.bf16 %v2318
    %v3010 = vunpack.c.l.bf16 %v2319
    %v3011 = vunpack.c.h.bf16 %v2319
    %v3012 = vunpack.c.l.bf16 %v2320
    %v3013 = vunpack.c.h.bf16 %v2320
    %v3014 = vunpack.c.l.bf16 %v2321
    %v3015 = vunpack.c.h.bf16 %v2321
    %v3016 = vunpack.c.l.bf16 %v2322
    %v3017 = vunpack.c.h.bf16 %v2322
    %v3018 = vunpack.c.l.bf16 %v2323
    %v3019 = vunpack.c.h.bf16 %v2323
    %v3020 = vunpack.c.l.bf16 %v2324
    %v3021 = vunpack.c.h.bf16 %v2324
    %v3022 = vunpack.c.l.bf16 %v2325
    %v3023 = vunpack.c.h.bf16 %v2325
    %v3024 = vunpack.c.l.bf16 %v2326
    %v3025 = vunpack.c.h.bf16 %v2326
    %v3026 = vunpack.c.l.bf16 %v2327
    %v3027 = vunpack.c.h.bf16 %v2327
    %v3028 = vunpack.c.l.bf16 %v2328
    %v3029 = vunpack.c.h.bf16 %v2328
    %v3030 = vunpack.c.l.bf16 %v2329
    %v3031 = vunpack.c.h.bf16 %v2329
    %v3032 = vunpack.c.l.bf16 %v2330
    %v3033 = vunpack.c.h.bf16 %v2330
    %v3034 = vunpack.c.l.bf16 %v2331
    %v3035 = vunpack.c.h.bf16 %v2331
    %v3036 = vunpack.c.l.bf16 %v2332
    %v3037 = vunpack.c.h.bf16 %v2332
    %v3038 = vunpack.c.l.bf16 %v2333
    %v3039 = vunpack.c.h.bf16 %v2333
    %v3040 = vunpack.c.l.bf16 %v2334
    %v3041 = vunpack.c.h.bf16 %v2334
    %v3042 = vunpack.c.l.bf16 %v2335
    %v3043 = vunpack.c.h.bf16 %v2335
    %v3044 = vunpack.c.l.bf16 %v2336
    %v3045 = vunpack.c.h.bf16 %v2336
    %v3046 = vunpack.c.l.bf16 %v2337
    %v3047 = vunpack.c.h.bf16 %v2337
    %v3048 = vunpack.c.l.bf16 %v2338
    %v3049 = vunpack.c.h.bf16 %v2338
    %v3050 = vunpack.c.l.bf16 %v2339
    %v3051 = vunpack.c.h.bf16 %v2339
    %v3052 = vunpack.c.l.bf16 %v2340
    %v3053 = vunpack.c.h.bf16 %v2340
    %v3054 = vunpack.c.l.bf16 %v2341
    %v3055 = vunpack.c.h.bf16 %v2341
    %v3056 = vunpack.c.l.bf16 %v2342
    %v3057 = vunpack.c.h.bf16 %v2342
    %v3058 = vunpack.c.l.bf16 %v2343
    %v3059 = vunpack.c.h.bf16 %v2343
    %v3060 = vunpack.c.l.bf16 %v2344
    %v3061 = vunpack.c.h.bf16 %v2344
    %v3062 = vunpack.c.l.bf16 %v2345
    %v3063 = vunpack.c.h.bf16 %v2345
    %v3064 = vunpack.c.l.bf16 %v2346
    %v3065 = vunpack.c.h.bf16 %v2346
    %v3066 = vunpack.c.l.bf16 %v2347
    %v3067 = vunpack.c.h.bf16 %v2347
    %v3068 = vunpack.c.l.bf16 %v2348
    %v3069 = vunpack.c.h.bf16 %v2348
    %v3070 = vunpack.c.l.bf16 %v2349
    %v3071 = vunpack.c.h.bf16 %v2349
    %v3072 = vunpack.c.l.bf16 %v2350
    %v3073 = vunpack.c.h.bf16 %v2350
    %v3074 = vunpack.c.l.bf16 %v2351
    %v3075 = vunpack.c.h.bf16 %v2351
    %v3076 = vunpack.c.l.bf16 %v2352
    %v3077 = vunpack.c.h.bf16 %v2352
    %v3078 = vunpack.c.l.bf16 %v2353
    %v3079 = vunpack.c.h.bf16 %v2353
    %v3080 = vunpack.c.l.bf16 %v2354
    %v3081 = vunpack.c.h.bf16 %v2354
    %v3082 = vunpack.c.l.bf16 %v2355
    %v3083 = vunpack.c.h.bf16 %v2355
    %v3084 = vunpack.c.l.bf16 %v2356
    %v3085 = vunpack.c.h.bf16 %v2356
    %v3086 = vunpack.c.l.bf16 %v2357
    %v3087 = vunpack.c.h.bf16 %v2357
    %v3088 = vunpack.c.l.bf16 %v2358
    %v3089 = vunpack.c.h.bf16 %v2358
    %v3090 = vunpack.c.l.bf16 %v2359
    %v3091 = vunpack.c.h.bf16 %v2359
    %v3092 = vunpack.c.l.bf16 %v2360
    %v3093 = vunpack.c.h.bf16 %v2360
    %v3094 = vunpack.c.l.bf16 %v2361
    %v3095 = vunpack.c.h.bf16 %v2361
    %v3096 = vunpack.c.l.bf16 %v2362
    %v3097 = vunpack.c.h.bf16 %v2362
    %v3098 = vunpack.c.l.bf16 %v2363
    %v3099 = vunpack.c.h.bf16 %v2363
    %v3100 = vunpack.c.l.bf16 %v2364
    %v3101 = vunpack.c.h.bf16 %v2364
    %v3102 = vunpack.c.l.bf16 %v2365
    %v3103 = vunpack.c.h.bf16 %v2365
    %v3104 = vunpack.c.l.bf16 %v2366
    %v3105 = vunpack.c.h.bf16 %v2366
    %v3106 = vunpack.c.l.bf16 %v2367
    %v3107 = vunpack.c.h.bf16 %v2367
    %v3108 = vunpack.c.l.bf16 %v2368
    %v3109 = vunpack.c.h.bf16 %v2368
    %v3110 = vunpack.c.l.bf16 %v2369
    %v3111 = vunpack.c.h.bf16 %v2369
    %v3112 = vunpack.c.l.bf16 %v2370
    %v3113 = vunpack.c.h.bf16 %v2370
    %v3114 = vunpack.c.l.bf16 %v2371
    %v3115 = vunpack.c.h.bf16 %v2371
    %v3116 = vunpack.c.l.bf16 %v2372
    %v3117 = vunpack.c.h.bf16 %v2372
    %v3118 = vunpack.c.l.bf16 %v2373
    %v3119 = vunpack.c.h.bf16 %v2373
    %v3120 = vunpack.c.l.bf16 %v2374
    %v3121 = vunpack.c.h.bf16 %v2374
    %v3122 = vunpack.c.l.bf16 %v2375
    %v3123 = vunpack.c.h.bf16 %v2375
    %v3124 = vunpack.c.l.bf16 %v2376
    %v3125 = vunpack.c.h.bf16 %v2376
    %v3126 = vunpack.c.l.bf16 %v2377
    %v3127 = vunpack.c.h.bf16 %v2377
    %v3128 = vunpack.c.l.bf16 %v2378
    %v3129 = vunpack.c.h.bf16 %v2378
    %v3130 = vunpack.c.l.bf16 %v2379
    %v3131 = vunpack.c.h.bf16 %v2379
    %v3132 = vunpack.c.l.bf16 %v2380
    %v3133 = vunpack.c.h.bf16 %v2380
    %v3134 = vunpack.c.l.bf16 %v2381
    %v3135 = vunpack.c.h.bf16 %v2381
    %v3136 = vunpack.c.l.bf16 %v2382
    %v3137 = vunpack.c.h.bf16 %v2382
    %v3138 = vunpack.c.l.bf16 %v2383
    %v3139 = vunpack.c.h.bf16 %v2383
    %v3140 = vunpack.c.l.bf16 %v2384
    %v3141 = vunpack.c.h.bf16 %v2384
    %v3142 = vunpack.c.l.bf16 %v2385
    %v3143 = vunpack.c.h.bf16 %v2385
    %v3144 = vunpack.c.l.bf16 %v2386
    %v3145 = vunpack.c.h.bf16 %v2386
    %v3146 = vunpack.c.l.bf16 %v2387
    %v3147 = vunpack.c.h.bf16 %v2387
    %v3148 = vunpack.c.l.bf16 %v2388
    %v3149 = vunpack.c.h.bf16 %v2388
    %v3150 = vunpack.c.l.bf16 %v2389
    %v3151 = vunpack.c.h.bf16 %v2389
    %v3152 = vunpack.c.l.bf16 %v2390
    %v3153 = vunpack.c.h.bf16 %v2390
    %v3154 = vunpack.c.l.bf16 %v2391
    %v3155 = vunpack.c.h.bf16 %v2391
    %v3156 = vunpack.c.l.bf16 %v2392
    %v3157 = vunpack.c.h.bf16 %v2392
    %v3158 = vunpack.c.l.bf16 %v2393
    %v3159 = vunpack.c.h.bf16 %v2393
    %v3160 = vunpack.c.l.bf16 %v2394
    %v3161 = vunpack.c.h.bf16 %v2394
    %v3162 = vunpack.c.l.bf16 %v2395
    %v3163 = vunpack.c.h.bf16 %v2395
    %v3164 = vunpack.c.l.bf16 %v2396
    %v3165 = vunpack.c.h.bf16 %v2396
    %v3166 = vunpack.c.l.bf16 %v2397
    %v3167 = vunpack.c.h.bf16 %v2397
    %v3168 = vunpack.c.l.bf16 %v2398
    %v3169 = vunpack.c.h.bf16 %v2398
    %v3170 = vunpack.c.l.bf16 %v2399
    %v3171 = vunpack.c.h.bf16 %v2399
    %v3172 = vunpack.c.l.bf16 %v2400
    %v3173 = vunpack.c.h.bf16 %v2400
    %v3174 = vunpack.c.l.bf16 %v2401
    %v3175 = vunpack.c.h.bf16 %v2401
    %v3176 = vunpack.c.l.bf16 %v2402
    %v3177 = vunpack.c.h.bf16 %v2402
    %v3178 = vunpack.c.l.bf16 %v2403
    %v3179 = vunpack.c.h.bf16 %v2403
    %v3180 = vunpack.c.l.bf16 %v2404
    %v3181 = vunpack.c.h.bf16 %v2404
    %v3182 = vunpack.c.l.bf16 %v2405
    %v3183 = vunpack.c.h.bf16 %v2405
    %v3184 = vunpack.c.l.bf16 %v2406
    %v3185 = vunpack.c.h.bf16 %v2406
    %v3186 = vunpack.c.l.bf16 %v2407
    %v3187 = vunpack.c.h.bf16 %v2407
    %v3188 = vunpack.c.l.bf16 %v2408
    %v3189 = vunpack.c.h.bf16 %v2408
    %v3190 = vunpack.c.l.bf16 %v2409
    %v3191 = vunpack.c.h.bf16 %v2409
    %v3192 = vunpack.c.l.bf16 %v2410
    %v3193 = vunpack.c.h.bf16 %v2410
    %v3194 = vunpack.c.l.bf16 %v2411
    %v3195 = vunpack.c.h.bf16 %v2411
    %v3196 = vunpack.c.l.bf16 %v2412
    %v3197 = vunpack.c.h.bf16 %v2412
    %v3198 = vunpack.c.l.bf16 %v2413
    %v3199 = vunpack.c.h.bf16 %v2413
    %v3200 = vunpack.c.l.bf16 %v2414
    %v3201 = vunpack.c.h.bf16 %v2414
    %v3202 = vunpack.c.l.bf16 %v2415
    %v3203 = vunpack.c.h.bf16 %v2415
    %v3204 = vunpack.c.l.bf16 %v2416
    %v3205 = vunpack.c.h.bf16 %v2416
    %v3206 = vunpack.c.l.bf16 %v2417
    %v3207 = vunpack.c.h.bf16 %v2417
    %v3208 = vunpack.c.l.bf16 %v2418
    %v3209 = vunpack.c.h.bf16 %v2418
    %v3210 = vunpack.c.l.bf16 %v2419
    %v3211 = vunpack.c.h.bf16 %v2419
    %v3212 = vunpack.c.l.bf16 %v2420
    %v3213 = vunpack.c.h.bf16 %v2420
    %v3214 = vunpack.c.l.bf16 %v2421
    %v3215 = vunpack.c.h.bf16 %v2421
    %v3216 = vunpack.c.l.bf16 %v2422
    %v3217 = vunpack.c.h.bf16 %v2422
    %v3218 = vunpack.c.l.bf16 %v2423
    %v3219 = vunpack.c.h.bf16 %v2423
    %v3220 = vunpack.c.l.bf16 %v2424
    %v3221 = vunpack.c.h.bf16 %v2424
    %v3222 = vunpack.c.l.bf16 %v2425
    %v3223 = vunpack.c.h.bf16 %v2425
    %v3224 = vunpack.c.l.bf16 %v2426
    %v3225 = vunpack.c.h.bf16 %v2426
    %v3226 = vunpack.c.l.bf16 %v2427
    %v3227 = vunpack.c.h.bf16 %v2427
    %v3228 = vunpack.c.l.bf16 %v2428
    %v3229 = vunpack.c.h.bf16 %v2428
    %v3230 = vunpack.c.l.bf16 %v2429
    %v3231 = vunpack.c.h.bf16 %v2429
    %v3232 = vunpack.c.l.bf16 %v2430
    %v3233 = vunpack.c.h.bf16 %v2430
    %v3234 = vunpack.c.l.bf16 %v2431
    %v3235 = vunpack.c.h.bf16 %v2431
    %v3236 = vunpack.c.l.bf16 %v2432
    %v3237 = vunpack.c.h.bf16 %v2432
    %v3238 = vunpack.c.l.bf16 %v2433
    %v3239 = vunpack.c.h.bf16 %v2433
    %v3240 = vunpack.c.l.bf16 %v2434
    %v3241 = vunpack.c.h.bf16 %v2434
    %v3242 = vunpack.c.l.bf16 %v2435
    %v3243 = vunpack.c.h.bf16 %v2435
    %v3244 = vunpack.c.l.bf16 %v2436
    %v3245 = vunpack.c.h.bf16 %v2436
    %v3246 = vunpack.c.l.bf16 %v2437
    %v3247 = vunpack.c.h.bf16 %v2437
    %v3248 = vunpack.c.l.bf16 %v2438
    %v3249 = vunpack.c.h.bf16 %v2438
    %v3250 = vunpack.c.l.bf16 %v2439
    %v3251 = vunpack.c.h.bf16 %v2439
    %v3252 = vunpack.c.l.bf16 %v2440
    %v3253 = vunpack.c.h.bf16 %v2440
    %v3254 = vunpack.c.l.bf16 %v2441
    %v3255 = vunpack.c.h.bf16 %v2441
    %v3256 = vunpack.c.l.bf16 %v2442
    %v3257 = vunpack.c.h.bf16 %v2442
    %v3258 = vunpack.c.l.bf16 %v2443
    %v3259 = vunpack.c.h.bf16 %v2443
    %v3260 = vunpack.c.l.bf16 %v2444
    %v3261 = vunpack.c.h.bf16 %v2444
    %v3262 = vunpack.c.l.bf16 %v2445
    %v3263 = vunpack.c.h.bf16 %v2445
    %v3264 = vunpack.c.l.bf16 %v2446
    %v3265 = vunpack.c.h.bf16 %v2446
    %v3266 = vunpack.c.l.bf16 %v2447
    %v3267 = vunpack.c.h.bf16 %v2447
    %v3268 = vunpack.c.l.bf16 %v2448
    %v3269 = vunpack.c.h.bf16 %v2448
    %v3270 = vunpack.c.l.bf16 %v2449
    %v3271 = vunpack.c.h.bf16 %v2449
    %v3272 = vunpack.c.l.bf16 %v2450
    %v3273 = vunpack.c.h.bf16 %v2450
    %v3274 = vunpack.c.l.bf16 %v2451
    %v3275 = vunpack.c.h.bf16 %v2451
    %v3276 = vunpack.c.l.bf16 %v2452
    %v3277 = vunpack.c.h.bf16 %v2452
    %v3278 = vunpack.c.l.bf16 %v2453
    %v3279 = vunpack.c.h.bf16 %v2453
    %v3280 = vunpack.c.l.bf16 %v2454
    %v3281 = vunpack.c.h.bf16 %v2454
    %v3282 = vunpack.c.l.bf16 %v2455
    %v3283 = vunpack.c.h.bf16 %v2455
    %v3284 = vunpack.c.l.bf16 %v2456
    %v3285 = vunpack.c.h.bf16 %v2456
    %v3286 = vunpack.c.l.bf16 %v2457
    %v3287 = vunpack.c.h.bf16 %v2457
    %v3288 = vunpack.c.l.bf16 %v2458
    %v3289 = vunpack.c.h.bf16 %v2458
    %v3290 = vunpack.c.l.bf16 %v2459
    %v3291 = vunpack.c.h.bf16 %v2459
    %v3292 = vunpack.c.l.bf16 %v2460
    %v3293 = vunpack.c.h.bf16 %v2460
    %v3294 = vunpack.c.l.bf16 %v2461
    %v3295 = vunpack.c.h.bf16 %v2461
    %v3296 = vunpack.c.l.bf16 %v2462
    %v3297 = vunpack.c.h.bf16 %v2462
    %v3298 = vunpack.c.l.bf16 %v2463
    %v3299 = vunpack.c.h.bf16 %v2463
    %v3300 = vunpack.c.l.bf16 %v2464
    %v3301 = vunpack.c.h.bf16 %v2464
    %v3302 = vunpack.c.l.bf16 %v2465
    %v3303 = vunpack.c.h.bf16 %v2465
    %v3304 = vunpack.c.l.bf16 %v2466
    %v3305 = vunpack.c.h.bf16 %v2466
    %v3306 = vunpack.c.l.bf16 %v2467
    %v3307 = vunpack.c.h.bf16 %v2467
    %v3308 = vunpack.c.l.bf16 %v2468
    %v3309 = vunpack.c.h.bf16 %v2468
    %v3310 = vunpack.c.l.bf16 %v2469
    %v3311 = vunpack.c.h.bf16 %v2469
    %v3312 = vunpack.c.l.bf16 %v2470
    %v3313 = vunpack.c.h.bf16 %v2470
    %v3314 = vunpack.c.l.bf16 %v2471
    %v3315 = vunpack.c.h.bf16 %v2471
    %v3316 = vunpack.c.l.bf16 %v2472
    %v3317 = vunpack.c.h.bf16 %v2472
    %v3318 = vunpack.c.l.bf16 %v2473
    %v3319 = vunpack.c.h.bf16 %v2473
    %v3320 = vunpack.c.l.bf16 %v2474
    %v3321 = vunpack.c.h.bf16 %v2474
    %v3322 = vunpack.c.l.bf16 %v2475
    %v3323 = vunpack.c.h.bf16 %v2475
    %v3324 = vunpack.c.l.bf16 %v2476
    %v3325 = vunpack.c.h.bf16 %v2476
    %v3326 = vunpack.c.l.bf16 %v2477
    %v3327 = vunpack.c.h.bf16 %v2477
    %v3328 = vunpack.c.l.bf16 %v2478
    %v3329 = vunpack.c.h.bf16 %v2478
    %v3330 = vunpack.c.l.bf16 %v2479
    %v3331 = vunpack.c.h.bf16 %v2479
    %v3332 = vunpack.c.l.bf16 %v2480
    %v3333 = vunpack.c.h.bf16 %v2480
    %v3334 = vunpack.c.l.bf16 %v2481
    %v3335 = vunpack.c.h.bf16 %v2481
    %v3336 = vunpack.c.l.bf16 %v2482
    %v3337 = vunpack.c.h.bf16 %v2482
    %v3338 = vunpack.c.l.bf16 %v2483
    %v3339 = vunpack.c.h.bf16 %v2483
    %v3340 = vunpack.c.l.bf16 %v2484
    %v3341 = vunpack.c.h.bf16 %v2484
    %v3342 = vunpack.c.l.bf16 %v2485
    %v3343 = vunpack.c.h.bf16 %v2485
    %v3344 = vunpack.c.l.bf16 %v2486
    %v3345 = vunpack.c.h.bf16 %v2486
    %v3346 = vunpack.c.l.bf16 %v2487
    %v3347 = vunpack.c.h.bf16 %v2487
    %v3348 = vunpack.c.l.bf16 %v2488
    %v3349 = vunpack.c.h.bf16 %v2488
    %v3350 = vunpack.c.l.bf16 %v2489
    %v3351 = vunpack.c.h.bf16 %v2489
    %v3352 = vunpack.c.l.bf16 %v2490
    %v3353 = vunpack.c.h.bf16 %v2490
    %v3354 = vunpack.c.l.bf16 %v2491
    %v3355 = vunpack.c.h.bf16 %v2491
    %v3356 = vunpack.c.l.bf16 %v2492
    %v3357 = vunpack.c.h.bf16 %v2492
    %v3358 = vunpack.c.l.bf16 %v2493
    %v3359 = vunpack.c.h.bf16 %v2493
    %v3360 = vunpack.c.l.bf16 %v2494
    %v3361 = vunpack.c.h.bf16 %v2494
    %v3362 = vunpack.c.l.bf16 %v2495
    %v3363 = vunpack.c.h.bf16 %v2495
    %v3364 = vunpack.c.l.bf16 %v2496
    %v3365 = vunpack.c.h.bf16 %v2496
    %v3366 = vunpack.c.l.bf16 %v2497
    %v3367 = vunpack.c.h.bf16 %v2497
    %v3368 = vunpack.c.l.bf16 %v2498
    %v3369 = vunpack.c.h.bf16 %v2498
    %v3370 = vunpack.c.l.bf16 %v2499
    %v3371 = vunpack.c.h.bf16 %v2499
    %v3372 = vunpack.c.l.bf16 %v2500
    %v3373 = vunpack.c.h.bf16 %v2500
    %v3374 = vunpack.c.l.bf16 %v2501
    %v3375 = vunpack.c.h.bf16 %v2501
    %v3376 = vunpack.c.l.bf16 %v2502
    %v3377 = vunpack.c.h.bf16 %v2502
    %v3378 = vunpack.c.l.bf16 %v2503
    %v3379 = vunpack.c.h.bf16 %v2503
    %v3380 = vunpack.c.l.bf16 %v2504
    %v3381 = vunpack.c.h.bf16 %v2504
    %v3382 = vunpack.c.l.bf16 %v2505
    %v3383 = vunpack.c.h.bf16 %v2505
    %v3384 = vunpack.c.l.bf16 %v2506
    %v3385 = vunpack.c.h.bf16 %v2506
    %v3386 = vunpack.c.l.bf16 %v2507
    %v3387 = vunpack.c.h.bf16 %v2507
    %v3388 = vunpack.c.l.bf16 %v2508
    %v3389 = vunpack.c.h.bf16 %v2508
    %v3390 = vunpack.c.l.bf16 %v2509
    %v3391 = vunpack.c.h.bf16 %v2509
    %v3392 = vunpack.c.l.bf16 %v2510
    %v3393 = vunpack.c.h.bf16 %v2510
    %v3394 = vunpack.c.l.bf16 %v2511
    %v3395 = vunpack.c.h.bf16 %v2511
    %v3396 = vunpack.c.l.bf16 %v2512
    %v3397 = vunpack.c.h.bf16 %v2512
    %v3398 = vunpack.c.l.bf16 %v2513
    %v3399 = vunpack.c.h.bf16 %v2513
    %v3400 = vunpack.c.l.bf16 %v2514
    %v3401 = vunpack.c.h.bf16 %v2514
    %v3402 = vunpack.c.l.bf16 %v2515
    %v3403 = vunpack.c.h.bf16 %v2515
    %v3404 = vunpack.c.l.bf16 %v2516
    %v3405 = vunpack.c.h.bf16 %v2516
    %v3406 = vunpack.c.l.bf16 %v2517
    %v3407 = vunpack.c.h.bf16 %v2517
    %v3408 = vunpack.c.l.bf16 %v2518
    %v3409 = vunpack.c.h.bf16 %v2518
    %v3410 = vunpack.c.l.bf16 %v2519
    %v3411 = vunpack.c.h.bf16 %v2519
    %v3412 = vunpack.c.l.bf16 %v2520
    %v3413 = vunpack.c.h.bf16 %v2520
    %v3414 = vunpack.c.l.bf16 %v2521
    %v3415 = vunpack.c.h.bf16 %v2521
    %v3416 = vunpack.c.l.bf16 %v2522
    %v3417 = vunpack.c.h.bf16 %v2522
    %v3418 = vunpack.c.l.bf16 %v2523
    %v3419 = vunpack.c.h.bf16 %v2523
    %v3420 = vunpack.c.l.bf16 %v2524
    %v3421 = vunpack.c.h.bf16 %v2524
    %v3422 = vunpack.c.l.bf16 %v2525
    %v3423 = vunpack.c.h.bf16 %v2525
    %v3424 = vunpack.c.l.bf16 %v2526
    %v3425 = vunpack.c.h.bf16 %v2526
    %v3426 = vunpack.c.l.bf16 %v2527
    %v3427 = vunpack.c.h.bf16 %v2527
    %v3428 = vunpack.c.l.bf16 %v2528
    %v3429 = vunpack.c.h.bf16 %v2528
    %v3430 = vunpack.c.l.bf16 %v2529
    %v3431 = vunpack.c.h.bf16 %v2529
    %v3432 = vunpack.c.l.bf16 %v2530
    %v3433 = vunpack.c.h.bf16 %v2530
    %v3434 = vunpack.c.l.bf16 %v2531
    %v3435 = vunpack.c.h.bf16 %v2531
    %v3436 = vunpack.c.l.bf16 %v2532
    %v3437 = vunpack.c.h.bf16 %v2532
    %v3438 = vunpack.c.l.bf16 %v2533
    %v3439 = vunpack.c.h.bf16 %v2533
    %v3440 = vunpack.c.l.bf16 %v2534
    %v3441 = vunpack.c.h.bf16 %v2534
    %v3442 = vunpack.c.l.bf16 %v2535
    %v3443 = vunpack.c.h.bf16 %v2535
    %v3444 = vunpack.c.l.bf16 %v2536
    %v3445 = vunpack.c.h.bf16 %v2536
    %v3446 = vunpack.c.l.bf16 %v2537
    %v3447 = vunpack.c.h.bf16 %v2537
    %v3448 = vunpack.c.l.bf16 %v2538
    %v3449 = vunpack.c.h.bf16 %v2538
    %v3450 = vunpack.c.l.bf16 %v2539
    %v3451 = vunpack.c.h.bf16 %v2539
    %v3452 = vunpack.c.l.bf16 %v2540
    %v3453 = vunpack.c.h.bf16 %v2540
    %v3454 = vunpack.c.l.bf16 %v2541
    %v3455 = vunpack.c.h.bf16 %v2541
    %v3456 = vunpack.c.l.bf16 %v2542
    %v3457 = vunpack.c.h.bf16 %v2542
    %v3458 = vunpack.c.l.bf16 %v2543
    %v3459 = vunpack.c.h.bf16 %v2543
    %v3460 = vunpack.c.l.bf16 %v2544
    %v3461 = vunpack.c.h.bf16 %v2544
    %v3462 = vunpack.c.l.bf16 %v2545
    %v3463 = vunpack.c.h.bf16 %v2545
    %v3464 = vunpack.c.l.bf16 %v2546
    %v3465 = vunpack.c.h.bf16 %v2546
    %v3466 = vunpack.c.l.bf16 %v2547
    %v3467 = vunpack.c.h.bf16 %v2547
    %v3468 = vunpack.c.l.bf16 %v2548
    %v3469 = vunpack.c.h.bf16 %v2548
    %v3470 = vunpack.c.l.bf16 %v2549
    %v3471 = vunpack.c.h.bf16 %v2549
    %v3472 = vunpack.c.l.bf16 %v2550
    %v3473 = vunpack.c.h.bf16 %v2550
    %v3474 = vunpack.c.l.bf16 %v2551
    %v3475 = vunpack.c.h.bf16 %v2551
    %v3476 = vunpack.c.l.bf16 %v2552
    %v3477 = vunpack.c.h.bf16 %v2552
    %v3478 = vunpack.c.l.bf16 %v2553
    %v3479 = vunpack.c.h.bf16 %v2553
    %v3480 = vunpack.c.l.bf16 %v2554
    %v3481 = vunpack.c.h.bf16 %v2554
    %v3482 = vunpack.c.l.bf16 %v2555
    %v3483 = vunpack.c.h.bf16 %v2555
    %v3484 = vunpack.c.l.bf16 %v2556
    %v3485 = vunpack.c.h.bf16 %v2556
    %v3486 = vunpack.c.l.bf16 %v2557
    %v3487 = vunpack.c.h.bf16 %v2557
    %v3488 = vunpack.c.l.bf16 %v2558
    %v3489 = vunpack.c.h.bf16 %v2558
    %v3490 = vunpack.c.l.bf16 %v2559
    %v3491 = vunpack.c.h.bf16 %v2559
    %v3492 = vunpack.c.l.bf16 %v2560
    %v3493 = vunpack.c.h.bf16 %v2560
    %v3494 = vunpack.c.l.bf16 %v2561
    %v3495 = vunpack.c.h.bf16 %v2561
    %v3496 = vunpack.c.l.bf16 %v2562
    %v3497 = vunpack.c.h.bf16 %v2562
    %v3498 = vunpack.c.l.bf16 %v2563
    %v3499 = vunpack.c.h.bf16 %v2563
    %v3500 = vunpack.c.l.bf16 %v2564
    %v3501 = vunpack.c.h.bf16 %v2564
    %v3502 = vunpack.c.l.bf16 %v2565
    %v3503 = vunpack.c.h.bf16 %v2565
    %v3504 = vunpack.c.l.bf16 %v2566
    %v3505 = vunpack.c.h.bf16 %v2566
    %v3506 = vunpack.c.l.bf16 %v2567
    %v3507 = vunpack.c.h.bf16 %v2567
    %v3508 = vunpack.c.l.bf16 %v2568
    %v3509 = vunpack.c.h.bf16 %v2568
    %v3510 = vunpack.c.l.bf16 %v2569
    %v3511 = vunpack.c.h.bf16 %v2569
    %v3512 = vunpack.c.l.bf16 %v2570
    %v3513 = vunpack.c.h.bf16 %v2570
    %v3514 = vunpack.c.l.bf16 %v2571
    %v3515 = vunpack.c.h.bf16 %v2571
    %v3516 = vunpack.c.l.bf16 %v2572
    %v3517 = vunpack.c.h.bf16 %v2572
    %v3518 = vunpack.c.l.bf16 %v2573
    %v3519 = vunpack.c.h.bf16 %v2573
    %v3520 = vunpack.c.l.bf16 %v2574
    %v3521 = vunpack.c.h.bf16 %v2574
    %v3522 = vunpack.c.l.bf16 %v2575
    %v3523 = vunpack.c.h.bf16 %v2575
    %v3524 = vunpack.c.l.bf16 %v2576
    %v3525 = vunpack.c.h.bf16 %v2576
    %v3526 = vunpack.c.l.bf16 %v2577
    %v3527 = vunpack.c.h.bf16 %v2577
    %v3528 = vunpack.c.l.bf16 %v2578
    %v3529 = vunpack.c.h.bf16 %v2578
    %v3530 = vunpack.c.l.bf16 %v2579
    %v3531 = vunpack.c.h.bf16 %v2579
    %v3532 = vunpack.c.l.bf16 %v2580
    %v3533 = vunpack.c.h.bf16 %v2580
    %v3534 = vunpack.c.l.bf16 %v2581
    %v3535 = vunpack.c.h.bf16 %v2581
    %v3536 = vunpack.c.l.bf16 %v2582
    %v3537 = vunpack.c.h.bf16 %v2582
    %v3538 = vunpack.c.l.bf16 %v2583
    %v3539 = vunpack.c.h.bf16 %v2583
    %v3540 = vunpack.c.l.bf16 %v2584
    %v3541 = vunpack.c.h.bf16 %v2584
    %v3542 = vunpack.c.l.bf16 %v2585
    %v3543 = vunpack.c.h.bf16 %v2585
    %v3544 = vunpack.c.l.bf16 %v2586
    %v3545 = vunpack.c.h.bf16 %v2586
    %v3546 = vunpack.c.l.bf16 %v2587
    %v3547 = vunpack.c.h.bf16 %v2587
    %v3548 = vunpack.c.l.bf16 %v2588
    %v3549 = vunpack.c.h.bf16 %v2588
    %v3550 = vunpack.c.l.bf16 %v2589
    %v3551 = vunpack.c.h.bf16 %v2589
    %v3552 = vunpack.c.l.bf16 %v2590
    %v3553 = vunpack.c.h.bf16 %v2590
    %v3554 = vunpack.c.l.bf16 %v2591
    %v3555 = vunpack.c.h.bf16 %v2591
    %v3556 = vunpack.c.l.bf16 %v2592
    %v3557 = vunpack.c.h.bf16 %v2592
    %v3558 = vunpack.c.l.bf16 %v2593
    %v3559 = vunpack.c.h.bf16 %v2593
    %v3560 = vunpack.c.l.bf16 %v2594
    %v3561 = vunpack.c.h.bf16 %v2594
    %v3562 = vunpack.c.l.bf16 %v2595
    %v3563 = vunpack.c.h.bf16 %v2595
    %v3564 = vunpack.c.l.bf16 %v2596
    %v3565 = vunpack.c.h.bf16 %v2596
    %v3566 = vunpack.c.l.bf16 %v2597
    %v3567 = vunpack.c.h.bf16 %v2597
    %v3568 = vunpack.c.l.bf16 %v2598
    %v3569 = vunpack.c.h.bf16 %v2598
    %v3570 = vunpack.c.l.bf16 %v2599
    %v3571 = vunpack.c.h.bf16 %v2599
    %v3572 = vunpack.c.l.bf16 %v2600
    %v3573 = vunpack.c.h.bf16 %v2600
    %v3574 = vunpack.c.l.bf16 %v2601
    %v3575 = vunpack.c.h.bf16 %v2601
    %v3576 = vunpack.c.l.bf16 %v2602
    %v3577 = vunpack.c.h.bf16 %v2602
    %v3578 = vunpack.c.l.bf16 %v2603
    %v3579 = vunpack.c.h.bf16 %v2603
    %v3580 = vunpack.c.l.bf16 %v2604
    %v3581 = vunpack.c.h.bf16 %v2604
    %v3582 = vunpack.c.l.bf16 %v2605
    %v3583 = vunpack.c.h.bf16 %v2605
    %v3584 = vunpack.c.l.bf16 %v2606
    %v3585 = vunpack.c.h.bf16 %v2606
    %v3586 = vunpack.c.l.bf16 %v2607
    %v3587 = vunpack.c.h.bf16 %v2607
    %v3588 = vunpack.c.l.bf16 %v2608
    %v3589 = vunpack.c.h.bf16 %v2608
    %v3590 = vunpack.c.l.bf16 %v2609
    %v3591 = vunpack.c.h.bf16 %v2609
    %v3592 = vunpack.c.l.bf16 %v2610
    %v3593 = vunpack.c.h.bf16 %v2610
    %v3594 = vunpack.c.l.bf16 %v2611
    %v3595 = vunpack.c.h.bf16 %v2611
    %v3596 = vunpack.c.l.bf16 %v2612
    %v3597 = vunpack.c.h.bf16 %v2612
    %v3598 = vunpack.c.l.bf16 %v2613
    %v3599 = vunpack.c.h.bf16 %v2613
    %v3600 = vunpack.c.l.bf16 %v2614
    %v3601 = vunpack.c.h.bf16 %v2614
    %v3602 = vunpack.c.l.bf16 %v2615
    %v3603 = vunpack.c.h.bf16 %v2615
    %v3604 = vunpack.c.l.bf16 %v2616
    %v3605 = vunpack.c.h.bf16 %v2616
    %v3606 = vunpack.c.l.bf16 %v2617
    %v3607 = vunpack.c.h.bf16 %v2617
    %v3608 = vunpack.c.l.bf16 %v2618
    %v3609 = vunpack.c.h.bf16 %v2618
    %v3610 = vunpack.c.l.bf16 %v2619
    %v3611 = vunpack.c.h.bf16 %v2619
    %v3612 = vunpack.c.l.bf16 %v2620
    %v3613 = vunpack.c.h.bf16 %v2620
    %v3614 = vunpack.c.l.bf16 %v2621
    %v3615 = vunpack.c.h.bf16 %v2621
    %v3616 = vunpack.c.l.bf16 %v2622
    %v3617 = vunpack.c.h.bf16 %v2622
    %v3618 = vunpack.c.l.bf16 %v2623
    %v3619 = vunpack.c.h.bf16 %v2623
    %v3620 = vunpack.c.l.bf16 %v2624
    %v3621 = vunpack.c.h.bf16 %v2624
    %v3622 = vunpack.c.l.bf16 %v2625
    %v3623 = vunpack.c.h.bf16 %v2625
    %v3624 = vunpack.c.l.bf16 %v2626
    %v3625 = vunpack.c.h.bf16 %v2626
    %v3626 = vunpack.c.l.bf16 %v2627
    %v3627 = vunpack.c.h.bf16 %v2627
    %v3628 = vunpack.c.l.bf16 %v2628
    %v3629 = vunpack.c.h.bf16 %v2628
    %v3630 = vunpack.c.l.bf16 %v2629
    %v3631 = vunpack.c.h.bf16 %v2629
    %v3632 = vunpack.c.l.bf16 %v2630
    %v3633 = vunpack.c.h.bf16 %v2630
    %v3634 = vunpack.c.l.bf16 %v2631
    %v3635 = vunpack.c.h.bf16 %v2631
    %v3636 = vunpack.c.l.bf16 %v2632
    %v3637 = vunpack.c.h.bf16 %v2632
    %v3638 = vunpack.c.l.bf16 %v2633
    %v3639 = vunpack.c.h.bf16 %v2633
    %v3640 = vunpack.c.l.bf16 %v2634
    %v3641 = vunpack.c.h.bf16 %v2634
    %v3642 = vunpack.c.l.bf16 %v2635
    %v3643 = vunpack.c.h.bf16 %v2635
    %v3644 = vunpack.c.l.bf16 %v2636
    %v3645 = vunpack.c.h.bf16 %v2636
    %v3646 = vunpack.c.l.bf16 %v2637
    %v3647 = vunpack.c.h.bf16 %v2637
    %v3648 = vunpack.c.l.bf16 %v2638
    %v3649 = vunpack.c.h.bf16 %v2638
    %v3650 = vunpack.c.l.bf16 %v2639
    %v3651 = vunpack.c.h.bf16 %v2639
    %v3652 = vunpack.c.l.bf16 %v2640
    %v3653 = vunpack.c.h.bf16 %v2640
    %v3654 = vunpack.c.l.bf16 %v2641
    %v3655 = vunpack.c.h.bf16 %v2641
    %v3656 = vunpack.c.l.bf16 %v2642
    %v3657 = vunpack.c.h.bf16 %v2642
    %v3658 = vunpack.c.l.bf16 %v2643
    %v3659 = vunpack.c.h.bf16 %v2643
    %v3660 = vunpack.c.l.bf16 %v2644
    %v3661 = vunpack.c.h.bf16 %v2644
    %v3662 = vunpack.c.l.bf16 %v2645
    %v3663 = vunpack.c.h.bf16 %v2645
    %v3664 = vunpack.c.l.bf16 %v2646
    %v3665 = vunpack.c.h.bf16 %v2646
    %v3666 = vunpack.c.l.bf16 %v2647
    %v3667 = vunpack.c.h.bf16 %v2647
    %v3668 = vunpack.c.l.bf16 %v2648
    %v3669 = vunpack.c.h.bf16 %v2648
    %v3670 = vunpack.c.l.bf16 %v2649
    %v3671 = vunpack.c.h.bf16 %v2649
    %v3672 = vunpack.c.l.bf16 %v2650
    %v3673 = vunpack.c.h.bf16 %v2650
    %v3674 = vunpack.c.l.bf16 %v2651
    %v3675 = vunpack.c.h.bf16 %v2651
    %v3676 = vld [vmem:[#allocation13] sm:$0xf]
    %v3678 = vlaneseq
    %v3679 = vshrl.u32 %v3678, 7
    %v3680 = vsub.s32 0, %v3679
    %v3681 = vrot.slane %v3676, %v3680
    %v3682 = vlaneseq
    %v3683 = vshrl.u32 %v3682, 7
    %v3684 = vsub.s32 1, %v3683
    %v3685 = vrot.slane %v3676, %v3684
    %v3686 = vlaneseq
    %v3687 = vshrl.u32 %v3686, 7
    %v3688 = vsub.s32 2, %v3687
    %v3689 = vrot.slane %v3676, %v3688
    %v3690 = vlaneseq
    %v3691 = vshrl.u32 %v3690, 7
    %v3692 = vsub.s32 3, %v3691
    %v3693 = vrot.slane %v3676, %v3692
    %3698 = vmatprep.subr.mxu0 %v2713
    %3699 = vmatpush1.msra.mxu0 %v2712
    %3700 = vmatprep.subr.mxu0 %v2709
    %3701 = vmatpush1.msra.mxu0 %v2708
    %3702 = vmatprep.subr.mxu0 %v2705
    %3703 = vmatpush1.msra.mxu0 %v2704
    %3704 = vmatprep.subr.mxu0 %v2701
    %3705 = vmatpush1.msra.mxu0 %v2700
    %3706 = vmatprep.subr.mxu0 %v2697
    %3707 = vmatpush1.msra.mxu0 %v2696
    %3708 = vmatprep.subr.mxu0 %v2693
    %3709 = vmatpush1.msra.mxu0 %v2692
    %3710 = vmatprep.subr.mxu0 %v2689
    %3711 = vmatpush1.msra.mxu0 %v2688
    %3712 = vmatprep.subr.mxu0 %v2685
    %3713 = vmatpush1.msra.mxu0 %v2684
    %3714 = vmatprep.subr.mxu0 %v2681
    %3715 = vmatpush1.msra.mxu0 %v2680
    %3716 = vmatprep.subr.mxu0 %v2677
    %3717 = vmatpush1.msra.mxu0 %v2676
    %3718 = vmatprep.subr.mxu0 %v2673
    %3719 = vmatpush1.msra.mxu0 %v2672
    %3720 = vmatprep.subr.mxu0 %v2669
    %3721 = vmatpush1.msra.mxu0 %v2668
    %3722 = vmatprep.subr.mxu0 %v2665
    %3723 = vmatpush1.msra.mxu0 %v2664
    %3724 = vmatprep.subr.mxu0 %v2661
    %3725 = vmatpush1.msra.mxu0 %v2660
    %3726 = vmatprep.subr.mxu0 %v2657
    %3727 = vmatpush1.msra.mxu0 %v2656
    %3728 = vmatprep.subr.mxu0 %v2653
    %3729 = vmatpush1.msra.mxu0 %v2652
    %3730 = vmatprep.subr.mxu0 %v2777
    %3731 = vmatpush2.msra.mxu0 %v2776
    %3732 = vmatprep.subr.mxu0 %v2773
    %3733 = vmatpush2.msra.mxu0 %v2772
    %3734 = vmatprep.subr.mxu0 %v2769
    %3735 = vmatpush2.msra.mxu0 %v2768
    %3736 = vmatprep.subr.mxu0 %v2765
    %3737 = vmatpush2.msra.mxu0 %v2764
    %3738 = vmatprep.subr.mxu0 %v2761
    %3739 = vmatpush2.msra.mxu0 %v2760
    %3740 = vmatprep.subr.mxu0 %v2757
    %3741 = vmatpush2.msra.mxu0 %v2756
    %3742 = vmatprep.subr.mxu0 %v2753
    %3743 = vmatpush2.msra.mxu0 %v2752
    %3744 = vmatprep.subr.mxu0 %v2749
    %3745 = vmatpush2.msra.mxu0 %v2748
    %3746 = vmatprep.subr.mxu0 %v2745
    %3747 = vmatpush2.msra.mxu0 %v2744
    %3748 = vmatprep.subr.mxu0 %v2741
    %3749 = vmatpush2.msra.mxu0 %v2740
    %3750 = vmatprep.subr.mxu0 %v2737
    %3751 = vmatpush2.msra.mxu0 %v2736
    %3752 = vmatprep.subr.mxu0 %v2733
    %3753 = vmatpush2.msra.mxu0 %v2732
    %3754 = vmatprep.subr.mxu0 %v2729
    %3755 = vmatpush2.msra.mxu0 %v2728
    %3756 = vmatprep.subr.mxu0 %v2725
    %3757 = vmatpush2.msra.mxu0 %v2724
    %3758 = vmatprep.subr.mxu0 %v2721
    %3759 = vmatpush2.msra.mxu0 %v2720
    %3760 = vmatprep.subr.mxu0 %v2717
    %3761 = vmatpush2.msra.mxu0 %v2716
    %3762 = vmatprep.mubr.f32.mxu0 %v561
    %3763 = vmatmul.mubr.f32.gmra.mxu0 %v559
    %v3764 = vpop.f32.mrf.mxu0
    %v3765 = vadd.f32 %v3681, %v3764
    %v3766 = vpop.f32.mrf.mxu0
    %v3767 = vadd.f32 %v3685, %v3766
    %3768 = vdwg.mxu0
    %3769 = vmatprep.subr.mxu0 %v2841
    %3770 = vmatpush1.msra.mxu0 %v2840
    %3771 = vmatprep.subr.mxu0 %v2837
    %3772 = vmatpush1.msra.mxu0 %v2836
    %3773 = vmatprep.subr.mxu0 %v2833
    %3774 = vmatpush1.msra.mxu0 %v2832
    %3775 = vmatprep.subr.mxu0 %v2829
    %3776 = vmatpush1.msra.mxu0 %v2828
    %3777 = vmatprep.subr.mxu0 %v2825
    %3778 = vmatpush1.msra.mxu0 %v2824
    %3779 = vmatprep.subr.mxu0 %v2821
    %3780 = vmatpush1.msra.mxu0 %v2820
    %3781 = vmatprep.subr.mxu0 %v2817
    %3782 = vmatpush1.msra.mxu0 %v2816
    %3783 = vmatprep.subr.mxu0 %v2813
    %3784 = vmatpush1.msra.mxu0 %v2812
    %3785 = vmatprep.subr.mxu0 %v2809
    %3786 = vmatpush1.msra.mxu0 %v2808
    %3787 = vmatprep.subr.mxu0 %v2805
    %3788 = vmatpush1.msra.mxu0 %v2804
    %3789 = vmatprep.subr.mxu0 %v2801
    %3790 = vmatpush1.msra.mxu0 %v2800
    %3791 = vmatprep.subr.mxu0 %v2797
    %3792 = vmatpush1.msra.mxu0 %v2796
    %3793 = vmatprep.subr.mxu0 %v2793
    %3794 = vmatpush1.msra.mxu0 %v2792
    %3795 = vmatprep.subr.mxu0 %v2789
    %3796 = vmatpush1.msra.mxu0 %v2788
    %3797 = vmatprep.subr.mxu0 %v2785
    %3798 = vmatpush1.msra.mxu0 %v2784
    %3799 = vmatprep.subr.mxu0 %v2781
    %3800 = vmatpush1.msra.mxu0 %v2780
    %3801 = vmatprep.subr.mxu0 %v2905
    %3802 = vmatpush2.msra.mxu0 %v2904
    %3803 = vmatprep.subr.mxu0 %v2901
    %3804 = vmatpush2.msra.mxu0 %v2900
    %3805 = vmatprep.subr.mxu0 %v2897
    %3806 = vmatpush2.msra.mxu0 %v2896
    %3807 = vmatprep.subr.mxu0 %v2893
    %3808 = vmatpush2.msra.mxu0 %v2892
    %3809 = vmatprep.subr.mxu0 %v2889
    %3810 = vmatpush2.msra.mxu0 %v2888
    %3811 = vmatprep.subr.mxu0 %v2885
    %3812 = vmatpush2.msra.mxu0 %v2884
    %3813 = vmatprep.subr.mxu0 %v2881
    %3814 = vmatpush2.msra.mxu0 %v2880
    %3815 = vmatprep.subr.mxu0 %v2877
    %3816 = vmatpush2.msra.mxu0 %v2876
    %3817 = vmatprep.subr.mxu0 %v2873
    %3818 = vmatpush2.msra.mxu0 %v2872
    %3819 = vmatprep.subr.mxu0 %v2869
    %3820 = vmatpush2.msra.mxu0 %v2868
    %3821 = vmatprep.subr.mxu0 %v2865
    %3822 = vmatpush2.msra.mxu0 %v2864
    %3823 = vmatprep.subr.mxu0 %v2861
    %3824 = vmatpush2.msra.mxu0 %v2860
    %3825 = vmatprep.subr.mxu0 %v2857
    %3826 = vmatpush2.msra.mxu0 %v2856
    %3827 = vmatprep.subr.mxu0 %v2853
    %3828 = vmatpush2.msra.mxu0 %v2852
    %3829 = vmatprep.subr.mxu0 %v2849
    %3830 = vmatpush2.msra.mxu0 %v2848
    %3831 = vmatprep.subr.mxu0 %v2845
    %3832 = vmatpush2.msra.mxu0 %v2844
    %3833 = vmatprep.mubr.f32.mxu0 %v632
    %3834 = vmatmul.mubr.f32.gmra.mxu0 %v630
    %v3835 = vpop.f32.mrf.mxu0
    %v3836 = vadd.f32 %v3765, %v3835
    %v3837 = vpop.f32.mrf.mxu0
    %v3838 = vadd.f32 %v3767, %v3837
    %3839 = vdwg.mxu0
    %3840 = vmatprep.subr.mxu0 %v2969
    %3841 = vmatpush1.msra.mxu0 %v2968
    %3842 = vmatprep.subr.mxu0 %v2965
    %3843 = vmatpush1.msra.mxu0 %v2964
    %3844 = vmatprep.subr.mxu0 %v2961
    %3845 = vmatpush1.msra.mxu0 %v2960
    %3846 = vmatprep.subr.mxu0 %v2957
    %3847 = vmatpush1.msra.mxu0 %v2956
    %3848 = vmatprep.subr.mxu0 %v2953
    %3849 = vmatpush1.msra.mxu0 %v2952
    %3850 = vmatprep.subr.mxu0 %v2949
    %3851 = vmatpush1.msra.mxu0 %v2948
    %3852 = vmatprep.subr.mxu0 %v2945
    %3853 = vmatpush1.msra.mxu0 %v2944
    %3854 = vmatprep.subr.mxu0 %v2941
    %3855 = vmatpush1.msra.mxu0 %v2940
    %3856 = vmatprep.subr.mxu0 %v2937
    %3857 = vmatpush1.msra.mxu0 %v2936
    %3858 = vmatprep.subr.mxu0 %v2933
    %3859 = vmatpush1.msra.mxu0 %v2932
    %3860 = vmatprep.subr.mxu0 %v2929
    %3861 = vmatpush1.msra.mxu0 %v2928
    %3862 = vmatprep.subr.mxu0 %v2925
    %3863 = vmatpush1.msra.mxu0 %v2924
    %3864 = vmatprep.subr.mxu0 %v2921
    %3865 = vmatpush1.msra.mxu0 %v2920
    %3866 = vmatprep.subr.mxu0 %v2917
    %3867 = vmatpush1.msra.mxu0 %v2916
    %3868 = vmatprep.subr.mxu0 %v2913
    %3869 = vmatpush1.msra.mxu0 %v2912
    %3870 = vmatprep.subr.mxu0 %v2909
    %3871 = vmatpush1.msra.mxu0 %v2908
    %3872 = vmatprep.subr.mxu0 %v3033
    %3873 = vmatpush2.msra.mxu0 %v3032
    %3874 = vmatprep.subr.mxu0 %v3029
    %3875 = vmatpush2.msra.mxu0 %v3028
    %3876 = vmatprep.subr.mxu0 %v3025
    %3877 = vmatpush2.msra.mxu0 %v3024
    %3878 = vmatprep.subr.mxu0 %v3021
    %3879 = vmatpush2.msra.mxu0 %v3020
    %3880 = vmatprep.subr.mxu0 %v3017
    %3881 = vmatpush2.msra.mxu0 %v3016
    %3882 = vmatprep.subr.mxu0 %v3013
    %3883 = vmatpush2.msra.mxu0 %v3012
    %3884 = vmatprep.subr.mxu0 %v3009
    %3885 = vmatpush2.msra.mxu0 %v3008
    %3886 = vmatprep.subr.mxu0 %v3005
    %3887 = vmatpush2.msra.mxu0 %v3004
    %3888 = vmatprep.subr.mxu0 %v3001
    %3889 = vmatpush2.msra.mxu0 %v3000
    %3890 = vmatprep.subr.mxu0 %v2997
    %3891 = vmatpush2.msra.mxu0 %v2996
    %3892 = vmatprep.subr.mxu0 %v2993
    %3893 = vmatpush2.msra.mxu0 %v2992
    %3894 = vmatprep.subr.mxu0 %v2989
    %3895 = vmatpush2.msra.mxu0 %v2988
    %3896 = vmatprep.subr.mxu0 %v2985
    %3897 = vmatpush2.msra.mxu0 %v2984
    %3898 = vmatprep.subr.mxu0 %v2981
    %3899 = vmatpush2.msra.mxu0 %v2980
    %3900 = vmatprep.subr.mxu0 %v2977
    %3901 = vmatpush2.msra.mxu0 %v2976
    %3902 = vmatprep.subr.mxu0 %v2973
    %3903 = vmatpush2.msra.mxu0 %v2972
    %3904 = vmatprep.mubr.f32.mxu0 %v703
    %3905 = vmatmul.mubr.f32.gmra.mxu0 %v701
    %v3906 = vpop.f32.mrf.mxu0
    %v3907 = vadd.f32 %v3836, %v3906
    %v3908 = vpop.f32.mrf.mxu0
    %v3909 = vadd.f32 %v3838, %v3908
    %3910 = vdwg.mxu0
    %3911 = vmatprep.subr.mxu0 %v3097
    %3912 = vmatpush1.msra.mxu0 %v3096
    %3913 = vmatprep.subr.mxu0 %v3093
    %3914 = vmatpush1.msra.mxu0 %v3092
    %3915 = vmatprep.subr.mxu0 %v3089
    %3916 = vmatpush1.msra.mxu0 %v3088
    %3917 = vmatprep.subr.mxu0 %v3085
    %3918 = vmatpush1.msra.mxu0 %v3084
    %3919 = vmatprep.subr.mxu0 %v3081
    %3920 = vmatpush1.msra.mxu0 %v3080
    %3921 = vmatprep.subr.mxu0 %v3077
    %3922 = vmatpush1.msra.mxu0 %v3076
    %3923 = vmatprep.subr.mxu0 %v3073
    %3924 = vmatpush1.msra.mxu0 %v3072
    %3925 = vmatprep.subr.mxu0 %v3069
    %3926 = vmatpush1.msra.mxu0 %v3068
    %3927 = vmatprep.subr.mxu0 %v3065
    %3928 = vmatpush1.msra.mxu0 %v3064
    %3929 = vmatprep.subr.mxu0 %v3061
    %3930 = vmatpush1.msra.mxu0 %v3060
    %3931 = vmatprep.subr.mxu0 %v3057
    %3932 = vmatpush1.msra.mxu0 %v3056
    %3933 = vmatprep.subr.mxu0 %v3053
    %3934 = vmatpush1.msra.mxu0 %v3052
    %3935 = vmatprep.subr.mxu0 %v3049
    %3936 = vmatpush1.msra.mxu0 %v3048
    %3937 = vmatprep.subr.mxu0 %v3045
    %3938 = vmatpush1.msra.mxu0 %v3044
    %3939 = vmatprep.subr.mxu0 %v3041
    %3940 = vmatpush1.msra.mxu0 %v3040
    %3941 = vmatprep.subr.mxu0 %v3037
    %3942 = vmatpush1.msra.mxu0 %v3036
    %3943 = vmatprep.subr.mxu0 %v3161
    %3944 = vmatpush2.msra.mxu0 %v3160
    %3945 = vmatprep.subr.mxu0 %v3157
    %3946 = vmatpush2.msra.mxu0 %v3156
    %3947 = vmatprep.subr.mxu0 %v3153
    %3948 = vmatpush2.msra.mxu0 %v3152
    %3949 = vmatprep.subr.mxu0 %v3149
    %3950 = vmatpush2.msra.mxu0 %v3148
    %3951 = vmatprep.subr.mxu0 %v3145
    %3952 = vmatpush2.msra.mxu0 %v3144
    %3953 = vmatprep.subr.mxu0 %v3141
    %3954 = vmatpush2.msra.mxu0 %v3140
    %3955 = vmatprep.subr.mxu0 %v3137
    %3956 = vmatpush2.msra.mxu0 %v3136
    %3957 = vmatprep.subr.mxu0 %v3133
    %3958 = vmatpush2.msra.mxu0 %v3132
    %3959 = vmatprep.subr.mxu0 %v3129
    %3960 = vmatpush2.msra.mxu0 %v3128
    %3961 = vmatprep.subr.mxu0 %v3125
    %3962 = vmatpush2.msra.mxu0 %v3124
    %3963 = vmatprep.subr.mxu0 %v3121
    %3964 = vmatpush2.msra.mxu0 %v3120
    %3965 = vmatprep.subr.mxu0 %v3117
    %3966 = vmatpush2.msra.mxu0 %v3116
    %3967 = vmatprep.subr.mxu0 %v3113
    %3968 = vmatpush2.msra.mxu0 %v3112
    %3969 = vmatprep.subr.mxu0 %v3109
    %3970 = vmatpush2.msra.mxu0 %v3108
    %3971 = vmatprep.subr.mxu0 %v3105
    %3972 = vmatpush2.msra.mxu0 %v3104
    %3973 = vmatprep.subr.mxu0 %v3101
    %3974 = vmatpush2.msra.mxu0 %v3100
    %3975 = vmatprep.mubr.f32.mxu0 %v774
    %3976 = vmatmul.mubr.f32.gmra.mxu0 %v772
    %v3977 = vpop.f32.mrf.mxu0
    %v3978 = vadd.f32 %v3907, %v3977
    %v3979 = vpop.f32.mrf.mxu0
    %v3980 = vadd.f32 %v3909, %v3979
    %3981 = vdwg.mxu0
    %3982 = vmatprep.subr.mxu0 %v3225
    %3983 = vmatpush1.msra.mxu0 %v3224
    %3984 = vmatprep.subr.mxu0 %v3221
    %3985 = vmatpush1.msra.mxu0 %v3220
    %3986 = vmatprep.subr.mxu0 %v3217
    %3987 = vmatpush1.msra.mxu0 %v3216
    %3988 = vmatprep.subr.mxu0 %v3213
    %3989 = vmatpush1.msra.mxu0 %v3212
    %3990 = vmatprep.subr.mxu0 %v3209
    %3991 = vmatpush1.msra.mxu0 %v3208
    %3992 = vmatprep.subr.mxu0 %v3205
    %3993 = vmatpush1.msra.mxu0 %v3204
    %3994 = vmatprep.subr.mxu0 %v3201
    %3995 = vmatpush1.msra.mxu0 %v3200
    %3996 = vmatprep.subr.mxu0 %v3197
    %3997 = vmatpush1.msra.mxu0 %v3196
    %3998 = vmatprep.subr.mxu0 %v3193
    %3999 = vmatpush1.msra.mxu0 %v3192
    %4000 = vmatprep.subr.mxu0 %v3189
    %4001 = vmatpush1.msra.mxu0 %v3188
    %4002 = vmatprep.subr.mxu0 %v3185
    %4003 = vmatpush1.msra.mxu0 %v3184
    %4004 = vmatprep.subr.mxu0 %v3181
    %4005 = vmatpush1.msra.mxu0 %v3180
    %4006 = vmatprep.subr.mxu0 %v3177
    %4007 = vmatpush1.msra.mxu0 %v3176
    %4008 = vmatprep.subr.mxu0 %v3173
    %4009 = vmatpush1.msra.mxu0 %v3172
    %4010 = vmatprep.subr.mxu0 %v3169
    %4011 = vmatpush1.msra.mxu0 %v3168
    %4012 = vmatprep.subr.mxu0 %v3165
    %4013 = vmatpush1.msra.mxu0 %v3164
    %4014 = vmatprep.subr.mxu0 %v3289
    %4015 = vmatpush2.msra.mxu0 %v3288
    %4016 = vmatprep.subr.mxu0 %v3285
    %4017 = vmatpush2.msra.mxu0 %v3284
    %4018 = vmatprep.subr.mxu0 %v3281
    %4019 = vmatpush2.msra.mxu0 %v3280
    %4020 = vmatprep.subr.mxu0 %v3277
    %4021 = vmatpush2.msra.mxu0 %v3276
    %4022 = vmatprep.subr.mxu0 %v3273
    %4023 = vmatpush2.msra.mxu0 %v3272
    %4024 = vmatprep.subr.mxu0 %v3269
    %4025 = vmatpush2.msra.mxu0 %v3268
    %4026 = vmatprep.subr.mxu0 %v3265
    %4027 = vmatpush2.msra.mxu0 %v3264
    %4028 = vmatprep.subr.mxu0 %v3261
    %4029 = vmatpush2.msra.mxu0 %v3260
    %4030 = vmatprep.subr.mxu0 %v3257
    %4031 = vmatpush2.msra.mxu0 %v3256
    %4032 = vmatprep.subr.mxu0 %v3253
    %4033 = vmatpush2.msra.mxu0 %v3252
    %4034 = vmatprep.subr.mxu0 %v3249
    %4035 = vmatpush2.msra.mxu0 %v3248
    %4036 = vmatprep.subr.mxu0 %v3245
    %4037 = vmatpush2.msra.mxu0 %v3244
    %4038 = vmatprep.subr.mxu0 %v3241
    %4039 = vmatpush2.msra.mxu0 %v3240
    %4040 = vmatprep.subr.mxu0 %v3237
    %4041 = vmatpush2.msra.mxu0 %v3236
    %4042 = vmatprep.subr.mxu0 %v3233
    %4043 = vmatpush2.msra.mxu0 %v3232
    %4044 = vmatprep.subr.mxu0 %v3229
    %4045 = vmatpush2.msra.mxu0 %v3228
    %4046 = vmatprep.mubr.f32.mxu0 %v845
    %4047 = vmatmul.mubr.f32.gmra.mxu0 %v843
    %v4048 = vpop.f32.mrf.mxu0
    %v4049 = vadd.f32 %v3978, %v4048
    %v4050 = vpop.f32.mrf.mxu0
    %v4051 = vadd.f32 %v3980, %v4050
    %4052 = vdwg.mxu0
    %4053 = vmatprep.subr.mxu0 %v3353
    %4054 = vmatpush1.msra.mxu0 %v3352
    %4055 = vmatprep.subr.mxu0 %v3349
    %4056 = vmatpush1.msra.mxu0 %v3348
    %4057 = vmatprep.subr.mxu0 %v3345
    %4058 = vmatpush1.msra.mxu0 %v3344
    %4059 = vmatprep.subr.mxu0 %v3341
    %4060 = vmatpush1.msra.mxu0 %v3340
    %4061 = vmatprep.subr.mxu0 %v3337
    %4062 = vmatpush1.msra.mxu0 %v3336
    %4063 = vmatprep.subr.mxu0 %v3333
    %4064 = vmatpush1.msra.mxu0 %v3332
    %4065 = vmatprep.subr.mxu0 %v3329
    %4066 = vmatpush1.msra.mxu0 %v3328
    %4067 = vmatprep.subr.mxu0 %v3325
    %4068 = vmatpush1.msra.mxu0 %v3324
    %4069 = vmatprep.subr.mxu0 %v3321
    %4070 = vmatpush1.msra.mxu0 %v3320
    %4071 = vmatprep.subr.mxu0 %v3317
    %4072 = vmatpush1.msra.mxu0 %v3316
    %4073 = vmatprep.subr.mxu0 %v3313
    %4074 = vmatpush1.msra.mxu0 %v3312
    %4075 = vmatprep.subr.mxu0 %v3309
    %4076 = vmatpush1.msra.mxu0 %v3308
    %4077 = vmatprep.subr.mxu0 %v3305
    %4078 = vmatpush1.msra.mxu0 %v3304
    %4079 = vmatprep.subr.mxu0 %v3301
    %4080 = vmatpush1.msra.mxu0 %v3300
    %4081 = vmatprep.subr.mxu0 %v3297
    %4082 = vmatpush1.msra.mxu0 %v3296
    %4083 = vmatprep.subr.mxu0 %v3293
    %4084 = vmatpush1.msra.mxu0 %v3292
    %4085 = vmatprep.subr.mxu0 %v3417
    %4086 = vmatpush2.msra.mxu0 %v3416
    %4087 = vmatprep.subr.mxu0 %v3413
    %4088 = vmatpush2.msra.mxu0 %v3412
    %4089 = vmatprep.subr.mxu0 %v3409
    %4090 = vmatpush2.msra.mxu0 %v3408
    %4091 = vmatprep.subr.mxu0 %v3405
    %4092 = vmatpush2.msra.mxu0 %v3404
    %4093 = vmatprep.subr.mxu0 %v3401
    %4094 = vmatpush2.msra.mxu0 %v3400
    %4095 = vmatprep.subr.mxu0 %v3397
    %4096 = vmatpush2.msra.mxu0 %v3396
    %4097 = vmatprep.subr.mxu0 %v3393
    %4098 = vmatpush2.msra.mxu0 %v3392
    %4099 = vmatprep.subr.mxu0 %v3389
    %4100 = vmatpush2.msra.mxu0 %v3388
    %4101 = vmatprep.subr.mxu0 %v3385
    %4102 = vmatpush2.msra.mxu0 %v3384
    %4103 = vmatprep.subr.mxu0 %v3381
    %4104 = vmatpush2.msra.mxu0 %v3380
    %4105 = vmatprep.subr.mxu0 %v3377
    %4106 = vmatpush2.msra.mxu0 %v3376
    %4107 = vmatprep.subr.mxu0 %v3373
    %4108 = vmatpush2.msra.mxu0 %v3372
    %4109 = vmatprep.subr.mxu0 %v3369
    %4110 = vmatpush2.msra.mxu0 %v3368
    %4111 = vmatprep.subr.mxu0 %v3365
    %4112 = vmatpush2.msra.mxu0 %v3364
    %4113 = vmatprep.subr.mxu0 %v3361
    %4114 = vmatpush2.msra.mxu0 %v3360
    %4115 = vmatprep.subr.mxu0 %v3357
    %4116 = vmatpush2.msra.mxu0 %v3356
    %4117 = vmatprep.mubr.f32.mxu0 %v916
    %4118 = vmatmul.mubr.f32.gmra.mxu0 %v914
    %v4119 = vpop.f32.mrf.mxu0
    %v4120 = vadd.f32 %v4049, %v4119
    %v4121 = vpop.f32.mrf.mxu0
    %v4122 = vadd.f32 %v4051, %v4121
    %4123 = vdwg.mxu0
    %4124 = vmatprep.subr.mxu0 %v3481
    %4125 = vmatpush1.msra.mxu0 %v3480
    %4126 = vmatprep.subr.mxu0 %v3477
    %4127 = vmatpush1.msra.mxu0 %v3476
    %4128 = vmatprep.subr.mxu0 %v3473
    %4129 = vmatpush1.msra.mxu0 %v3472
    %4130 = vmatprep.subr.mxu0 %v3469
    %4131 = vmatpush1.msra.mxu0 %v3468
    %4132 = vmatprep.subr.mxu0 %v3465
    %4133 = vmatpush1.msra.mxu0 %v3464
    %4134 = vmatprep.subr.mxu0 %v3461
    %4135 = vmatpush1.msra.mxu0 %v3460
    %4136 = vmatprep.subr.mxu0 %v3457
    %4137 = vmatpush1.msra.mxu0 %v3456
    %4138 = vmatprep.subr.mxu0 %v3453
    %4139 = vmatpush1.msra.mxu0 %v3452
    %4140 = vmatprep.subr.mxu0 %v3449
    %4141 = vmatpush1.msra.mxu0 %v3448
    %4142 = vmatprep.subr.mxu0 %v3445
    %4143 = vmatpush1.msra.mxu0 %v3444
    %4144 = vmatprep.subr.mxu0 %v3441
    %4145 = vmatpush1.msra.mxu0 %v3440
    %4146 = vmatprep.subr.mxu0 %v3437
    %4147 = vmatpush1.msra.mxu0 %v3436
    %4148 = vmatprep.subr.mxu0 %v3433
    %4149 = vmatpush1.msra.mxu0 %v3432
    %4150 = vmatprep.subr.mxu0 %v3429
    %4151 = vmatpush1.msra.mxu0 %v3428
    %4152 = vmatprep.subr.mxu0 %v3425
    %4153 = vmatpush1.msra.mxu0 %v3424
    %4154 = vmatprep.subr.mxu0 %v3421
    %4155 = vmatpush1.msra.mxu0 %v3420
    %4156 = vmatprep.subr.mxu0 %v3545
    %4157 = vmatpush2.msra.mxu0 %v3544
    %4158 = vmatprep.subr.mxu0 %v3541
    %4159 = vmatpush2.msra.mxu0 %v3540
    %4160 = vmatprep.subr.mxu0 %v3537
    %4161 = vmatpush2.msra.mxu0 %v3536
    %4162 = vmatprep.subr.mxu0 %v3533
    %4163 = vmatpush2.msra.mxu0 %v3532
    %4164 = vmatprep.subr.mxu0 %v3529
    %4165 = vmatpush2.msra.mxu0 %v3528
    %4166 = vmatprep.subr.mxu0 %v3525
    %4167 = vmatpush2.msra.mxu0 %v3524
    %4168 = vmatprep.subr.mxu0 %v3521
    %4169 = vmatpush2.msra.mxu0 %v3520
    %4170 = vmatprep.subr.mxu0 %v3517
    %4171 = vmatpush2.msra.mxu0 %v3516
    %4172 = vmatprep.subr.mxu0 %v3513
    %4173 = vmatpush2.msra.mxu0 %v3512
    %4174 = vmatprep.subr.mxu0 %v3509
    %4175 = vmatpush2.msra.mxu0 %v3508
    %4176 = vmatprep.subr.mxu0 %v3505
    %4177 = vmatpush2.msra.mxu0 %v3504
    %4178 = vmatprep.subr.mxu0 %v3501
    %4179 = vmatpush2.msra.mxu0 %v3500
    %4180 = vmatprep.subr.mxu0 %v3497
    %4181 = vmatpush2.msra.mxu0 %v3496
    %4182 = vmatprep.subr.mxu0 %v3493
    %4183 = vmatpush2.msra.mxu0 %v3492
    %4184 = vmatprep.subr.mxu0 %v3489
    %4185 = vmatpush2.msra.mxu0 %v3488
    %4186 = vmatprep.subr.mxu0 %v3485
    %4187 = vmatpush2.msra.mxu0 %v3484
    %4188 = vmatprep.mubr.f32.mxu0 %v987
    %4189 = vmatmul.mubr.f32.gmra.mxu0 %v985
    %v4190 = vpop.f32.mrf.mxu0
    %v4191 = vadd.f32 %v4120, %v4190
    %v4192 = vpop.f32.mrf.mxu0
    %v4193 = vadd.f32 %v4122, %v4192
    %4194 = vdwg.mxu0
    %4195 = vmatprep.subr.mxu0 %v3609
    %4196 = vmatpush1.msra.mxu0 %v3608
    %4197 = vmatprep.subr.mxu0 %v3605
    %4198 = vmatpush1.msra.mxu0 %v3604
    %4199 = vmatprep.subr.mxu0 %v3601
    %4200 = vmatpush1.msra.mxu0 %v3600
    %4201 = vmatprep.subr.mxu0 %v3597
    %4202 = vmatpush1.msra.mxu0 %v3596
    %4203 = vmatprep.subr.mxu0 %v3593
    %4204 = vmatpush1.msra.mxu0 %v3592
    %4205 = vmatprep.subr.mxu0 %v3589
    %4206 = vmatpush1.msra.mxu0 %v3588
    %4207 = vmatprep.subr.mxu0 %v3585
    %4208 = vmatpush1.msra.mxu0 %v3584
    %4209 = vmatprep.subr.mxu0 %v3581
    %4210 = vmatpush1.msra.mxu0 %v3580
    %4211 = vmatprep.subr.mxu0 %v3577
    %4212 = vmatpush1.msra.mxu0 %v3576
    %4213 = vmatprep.subr.mxu0 %v3573
    %4214 = vmatpush1.msra.mxu0 %v3572
    %4215 = vmatprep.subr.mxu0 %v3569
    %4216 = vmatpush1.msra.mxu0 %v3568
    %4217 = vmatprep.subr.mxu0 %v3565
    %4218 = vmatpush1.msra.mxu0 %v3564
    %4219 = vmatprep.subr.mxu0 %v3561
    %4220 = vmatpush1.msra.mxu0 %v3560
    %4221 = vmatprep.subr.mxu0 %v3557
    %4222 = vmatpush1.msra.mxu0 %v3556
    %4223 = vmatprep.subr.mxu0 %v3553
    %4224 = vmatpush1.msra.mxu0 %v3552
    %4225 = vmatprep.subr.mxu0 %v3549
    %4226 = vmatpush1.msra.mxu0 %v3548
    %4227 = vmatprep.subr.mxu0 %v3673
    %4228 = vmatpush2.msra.mxu0 %v3672
    %4229 = vmatprep.subr.mxu0 %v3669
    %4230 = vmatpush2.msra.mxu0 %v3668
    %4231 = vmatprep.subr.mxu0 %v3665
    %4232 = vmatpush2.msra.mxu0 %v3664
    %4233 = vmatprep.subr.mxu0 %v3661
    %4234 = vmatpush2.msra.mxu0 %v3660
    %4235 = vmatprep.subr.mxu0 %v3657
    %4236 = vmatpush2.msra.mxu0 %v3656
    %4237 = vmatprep.subr.mxu0 %v3653
    %4238 = vmatpush2.msra.mxu0 %v3652
    %4239 = vmatprep.subr.mxu0 %v3649
    %4240 = vmatpush2.msra.mxu0 %v3648
    %4241 = vmatprep.subr.mxu0 %v3645
    %4242 = vmatpush2.msra.mxu0 %v3644
    %4243 = vmatprep.subr.mxu0 %v3641
    %4244 = vmatpush2.msra.mxu0 %v3640
    %4245 = vmatprep.subr.mxu0 %v3637
    %4246 = vmatpush2.msra.mxu0 %v3636
    %4247 = vmatprep.subr.mxu0 %v3633
    %4248 = vmatpush2.msra.mxu0 %v3632
    %4249 = vmatprep.subr.mxu0 %v3629
    %4250 = vmatpush2.msra.mxu0 %v3628
    %4251 = vmatprep.subr.mxu0 %v3625
    %4252 = vmatpush2.msra.mxu0 %v3624
    %4253 = vmatprep.subr.mxu0 %v3621
    %4254 = vmatpush2.msra.mxu0 %v3620
    %4255 = vmatprep.subr.mxu0 %v3617
    %4256 = vmatpush2.msra.mxu0 %v3616
    %4257 = vmatprep.subr.mxu0 %v3613
    %4258 = vmatpush2.msra.mxu0 %v3612
    %4259 = vmatprep.mubr.f32.mxu0 %v1058
    %4260 = vmatmul.mubr.f32.gmra.mxu0 %v1056
    %v4261 = vpop.f32.mrf.mxu0
    %v4262 = vadd.f32 %v4191, %v4261
    %v4263 = vpop.f32.mrf.mxu0
    %v4264 = vadd.f32 %v4193, %v4263
    %4265 = vdwg.mxu0
    %4266 = vmatprep.subr.mxu0 %v2715
    %4267 = vmatpush1.msra.mxu0 %v2714
    %4268 = vmatprep.subr.mxu0 %v2711
    %4269 = vmatpush1.msra.mxu0 %v2710
    %4270 = vmatprep.subr.mxu0 %v2707
    %4271 = vmatpush1.msra.mxu0 %v2706
    %4272 = vmatprep.subr.mxu0 %v2703
    %4273 = vmatpush1.msra.mxu0 %v2702
    %4274 = vmatprep.subr.mxu0 %v2699
    %4275 = vmatpush1.msra.mxu0 %v2698
    %4276 = vmatprep.subr.mxu0 %v2695
    %4277 = vmatpush1.msra.mxu0 %v2694
    %4278 = vmatprep.subr.mxu0 %v2691
    %4279 = vmatpush1.msra.mxu0 %v2690
    %4280 = vmatprep.subr.mxu0 %v2687
    %4281 = vmatpush1.msra.mxu0 %v2686
    %4282 = vmatprep.subr.mxu0 %v2683
    %4283 = vmatpush1.msra.mxu0 %v2682
    %4284 = vmatprep.subr.mxu0 %v2679
    %4285 = vmatpush1.msra.mxu0 %v2678
    %4286 = vmatprep.subr.mxu0 %v2675
    %4287 = vmatpush1.msra.mxu0 %v2674
    %4288 = vmatprep.subr.mxu0 %v2671
    %4289 = vmatpush1.msra.mxu0 %v2670
    %4290 = vmatprep.subr.mxu0 %v2667
    %4291 = vmatpush1.msra.mxu0 %v2666
    %4292 = vmatprep.subr.mxu0 %v2663
    %4293 = vmatpush1.msra.mxu0 %v2662
    %4294 = vmatprep.subr.mxu0 %v2659
    %4295 = vmatpush1.msra.mxu0 %v2658
    %4296 = vmatprep.subr.mxu0 %v2655
    %4297 = vmatpush1.msra.mxu0 %v2654
    %4298 = vmatprep.subr.mxu0 %v2779
    %4299 = vmatpush2.msra.mxu0 %v2778
    %4300 = vmatprep.subr.mxu0 %v2775
    %4301 = vmatpush2.msra.mxu0 %v2774
    %4302 = vmatprep.subr.mxu0 %v2771
    %4303 = vmatpush2.msra.mxu0 %v2770
    %4304 = vmatprep.subr.mxu0 %v2767
    %4305 = vmatpush2.msra.mxu0 %v2766
    %4306 = vmatprep.subr.mxu0 %v2763
    %4307 = vmatpush2.msra.mxu0 %v2762
    %4308 = vmatprep.subr.mxu0 %v2759
    %4309 = vmatpush2.msra.mxu0 %v2758
    %4310 = vmatprep.subr.mxu0 %v2755
    %4311 = vmatpush2.msra.mxu0 %v2754
    %4312 = vmatprep.subr.mxu0 %v2751
    %4313 = vmatpush2.msra.mxu0 %v2750
    %4314 = vmatprep.subr.mxu0 %v2747
    %4315 = vmatpush2.msra.mxu0 %v2746
    %4316 = vmatprep.subr.mxu0 %v2743
    %4317 = vmatpush2.msra.mxu0 %v2742
    %4318 = vmatprep.subr.mxu0 %v2739
    %4319 = vmatpush2.msra.mxu0 %v2738
    %4320 = vmatprep.subr.mxu0 %v2735
    %4321 = vmatpush2.msra.mxu0 %v2734
    %4322 = vmatprep.subr.mxu0 %v2731
    %4323 = vmatpush2.msra.mxu0 %v2730
    %4324 = vmatprep.subr.mxu0 %v2727
    %4325 = vmatpush2.msra.mxu0 %v2726
    %4326 = vmatprep.subr.mxu0 %v2723
    %4327 = vmatpush2.msra.mxu0 %v2722
    %4328 = vmatprep.subr.mxu0 %v2719
    %4329 = vmatpush2.msra.mxu0 %v2718
    %4330 = vmatprep.mubr.f32.mxu0 %v561
    %4331 = vmatmul.mubr.f32.gmra.mxu0 %v559
    %v4332 = vpop.f32.mrf.mxu0
    %v4333 = vadd.f32 %v3689, %v4332
    %v4334 = vpop.f32.mrf.mxu0
    %v4335 = vadd.f32 %v3693, %v4334
    %4336 = vdwg.mxu0
    %4337 = vmatprep.subr.mxu0 %v2843
    %4338 = vmatpush1.msra.mxu0 %v2842
    %4339 = vmatprep.subr.mxu0 %v2839
    %4340 = vmatpush1.msra.mxu0 %v2838
    %4341 = vmatprep.subr.mxu0 %v2835
    %4342 = vmatpush1.msra.mxu0 %v2834
    %4343 = vmatprep.subr.mxu0 %v2831
    %4344 = vmatpush1.msra.mxu0 %v2830
    %4345 = vmatprep.subr.mxu0 %v2827
    %4346 = vmatpush1.msra.mxu0 %v2826
    %4347 = vmatprep.subr.mxu0 %v2823
    %4348 = vmatpush1.msra.mxu0 %v2822
    %4349 = vmatprep.subr.mxu0 %v2819
    %4350 = vmatpush1.msra.mxu0 %v2818
    %4351 = vmatprep.subr.mxu0 %v2815
    %4352 = vmatpush1.msra.mxu0 %v2814
    %4353 = vmatprep.subr.mxu0 %v2811
    %4354 = vmatpush1.msra.mxu0 %v2810
    %4355 = vmatprep.subr.mxu0 %v2807
    %4356 = vmatpush1.msra.mxu0 %v2806
    %4357 = vmatprep.subr.mxu0 %v2803
    %4358 = vmatpush1.msra.mxu0 %v2802
    %4359 = vmatprep.subr.mxu0 %v2799
    %4360 = vmatpush1.msra.mxu0 %v2798
    %4361 = vmatprep.subr.mxu0 %v2795
    %4362 = vmatpush1.msra.mxu0 %v2794
    %4363 = vmatprep.subr.mxu0 %v2791
    %4364 = vmatpush1.msra.mxu0 %v2790
    %4365 = vmatprep.subr.mxu0 %v2787
    %4366 = vmatpush1.msra.mxu0 %v2786
    %4367 = vmatprep.subr.mxu0 %v2783
    %4368 = vmatpush1.msra.mxu0 %v2782
    %4369 = vmatprep.subr.mxu0 %v2907
    %4370 = vmatpush2.msra.mxu0 %v2906
    %4371 = vmatprep.subr.mxu0 %v2903
    %4372 = vmatpush2.msra.mxu0 %v2902
    %4373 = vmatprep.subr.mxu0 %v2899
    %4374 = vmatpush2.msra.mxu0 %v2898
    %4375 = vmatprep.subr.mxu0 %v2895
    %4376 = vmatpush2.msra.mxu0 %v2894
    %4377 = vmatprep.subr.mxu0 %v2891
    %4378 = vmatpush2.msra.mxu0 %v2890
    %4379 = vmatprep.subr.mxu0 %v2887
    %4380 = vmatpush2.msra.mxu0 %v2886
    %4381 = vmatprep.subr.mxu0 %v2883
    %4382 = vmatpush2.msra.mxu0 %v2882
    %4383 = vmatprep.subr.mxu0 %v2879
    %4384 = vmatpush2.msra.mxu0 %v2878
    %4385 = vmatprep.subr.mxu0 %v2875
    %4386 = vmatpush2.msra.mxu0 %v2874
    %4387 = vmatprep.subr.mxu0 %v2871
    %4388 = vmatpush2.msra.mxu0 %v2870
    %4389 = vmatprep.subr.mxu0 %v2867
    %4390 = vmatpush2.msra.mxu0 %v2866
    %4391 = vmatprep.subr.mxu0 %v2863
    %4392 = vmatpush2.msra.mxu0 %v2862
    %4393 = vmatprep.subr.mxu0 %v2859
    %4394 = vmatpush2.msra.mxu0 %v2858
    %4395 = vmatprep.subr.mxu0 %v2855
    %4396 = vmatpush2.msra.mxu0 %v2854
    %4397 = vmatprep.subr.mxu0 %v2851
    %4398 = vmatpush2.msra.mxu0 %v2850
    %4399 = vmatprep.subr.mxu0 %v2847
    %4400 = vmatpush2.msra.mxu0 %v2846
    %4401 = vmatprep.mubr.f32.mxu0 %v632
    %4402 = vmatmul.mubr.f32.gmra.mxu0 %v630
    %v4403 = vpop.f32.mrf.mxu0
    %v4404 = vadd.f32 %v4333, %v4403
    %v4405 = vpop.f32.mrf.mxu0
    %v4406 = vadd.f32 %v4335, %v4405
    %4407 = vdwg.mxu0
    %4408 = vmatprep.subr.mxu0 %v2971
    %4409 = vmatpush1.msra.mxu0 %v2970
    %4410 = vmatprep.subr.mxu0 %v2967
    %4411 = vmatpush1.msra.mxu0 %v2966
    %4412 = vmatprep.subr.mxu0 %v2963
    %4413 = vmatpush1.msra.mxu0 %v2962
    %4414 = vmatprep.subr.mxu0 %v2959
    %4415 = vmatpush1.msra.mxu0 %v2958
    %4416 = vmatprep.subr.mxu0 %v2955
    %4417 = vmatpush1.msra.mxu0 %v2954
    %4418 = vmatprep.subr.mxu0 %v2951
    %4419 = vmatpush1.msra.mxu0 %v2950
    %4420 = vmatprep.subr.mxu0 %v2947
    %4421 = vmatpush1.msra.mxu0 %v2946
    %4422 = vmatprep.subr.mxu0 %v2943
    %4423 = vmatpush1.msra.mxu0 %v2942
    %4424 = vmatprep.subr.mxu0 %v2939
    %4425 = vmatpush1.msra.mxu0 %v2938
    %4426 = vmatprep.subr.mxu0 %v2935
    %4427 = vmatpush1.msra.mxu0 %v2934
    %4428 = vmatprep.subr.mxu0 %v2931
    %4429 = vmatpush1.msra.mxu0 %v2930
    %4430 = vmatprep.subr.mxu0 %v2927
    %4431 = vmatpush1.msra.mxu0 %v2926
    %4432 = vmatprep.subr.mxu0 %v2923
    %4433 = vmatpush1.msra.mxu0 %v2922
    %4434 = vmatprep.subr.mxu0 %v2919
    %4435 = vmatpush1.msra.mxu0 %v2918
    %4436 = vmatprep.subr.mxu0 %v2915
    %4437 = vmatpush1.msra.mxu0 %v2914
    %4438 = vmatprep.subr.mxu0 %v2911
    %4439 = vmatpush1.msra.mxu0 %v2910
    %4440 = vmatprep.subr.mxu0 %v3035
    %4441 = vmatpush2.msra.mxu0 %v3034
    %4442 = vmatprep.subr.mxu0 %v3031
    %4443 = vmatpush2.msra.mxu0 %v3030
    %4444 = vmatprep.subr.mxu0 %v3027
    %4445 = vmatpush2.msra.mxu0 %v3026
    %4446 = vmatprep.subr.mxu0 %v3023
    %4447 = vmatpush2.msra.mxu0 %v3022
    %4448 = vmatprep.subr.mxu0 %v3019
    %4449 = vmatpush2.msra.mxu0 %v3018
    %4450 = vmatprep.subr.mxu0 %v3015
    %4451 = vmatpush2.msra.mxu0 %v3014
    %4452 = vmatprep.subr.mxu0 %v3011
    %4453 = vmatpush2.msra.mxu0 %v3010
    %4454 = vmatprep.subr.mxu0 %v3007
    %4455 = vmatpush2.msra.mxu0 %v3006
    %4456 = vmatprep.subr.mxu0 %v3003
    %4457 = vmatpush2.msra.mxu0 %v3002
    %4458 = vmatprep.subr.mxu0 %v2999
    %4459 = vmatpush2.msra.mxu0 %v2998
    %4460 = vmatprep.subr.mxu0 %v2995
    %4461 = vmatpush2.msra.mxu0 %v2994
    %4462 = vmatprep.subr.mxu0 %v2991
    %4463 = vmatpush2.msra.mxu0 %v2990
    %4464 = vmatprep.subr.mxu0 %v2987
    %4465 = vmatpush2.msra.mxu0 %v2986
    %4466 = vmatprep.subr.mxu0 %v2983
    %4467 = vmatpush2.msra.mxu0 %v2982
    %4468 = vmatprep.subr.mxu0 %v2979
    %4469 = vmatpush2.msra.mxu0 %v2978
    %4470 = vmatprep.subr.mxu0 %v2975
    %4471 = vmatpush2.msra.mxu0 %v2974
    %4472 = vmatprep.mubr.f32.mxu0 %v703
    %4473 = vmatmul.mubr.f32.gmra.mxu0 %v701
    %v4474 = vpop.f32.mrf.mxu0
    %v4475 = vadd.f32 %v4404, %v4474
    %v4476 = vpop.f32.mrf.mxu0
    %v4477 = vadd.f32 %v4406, %v4476
    %4478 = vdwg.mxu0
    %4479 = vmatprep.subr.mxu0 %v3099
    %4480 = vmatpush1.msra.mxu0 %v3098
    %4481 = vmatprep.subr.mxu0 %v3095
    %4482 = vmatpush1.msra.mxu0 %v3094
    %4483 = vmatprep.subr.mxu0 %v3091
    %4484 = vmatpush1.msra.mxu0 %v3090
    %4485 = vmatprep.subr.mxu0 %v3087
    %4486 = vmatpush1.msra.mxu0 %v3086
    %4487 = vmatprep.subr.mxu0 %v3083
    %4488 = vmatpush1.msra.mxu0 %v3082
    %4489 = vmatprep.subr.mxu0 %v3079
    %4490 = vmatpush1.msra.mxu0 %v3078
    %4491 = vmatprep.subr.mxu0 %v3075
    %4492 = vmatpush1.msra.mxu0 %v3074
    %4493 = vmatprep.subr.mxu0 %v3071
    %4494 = vmatpush1.msra.mxu0 %v3070
    %4495 = vmatprep.subr.mxu0 %v3067
    %4496 = vmatpush1.msra.mxu0 %v3066
    %4497 = vmatprep.subr.mxu0 %v3063
    %4498 = vmatpush1.msra.mxu0 %v3062
    %4499 = vmatprep.subr.mxu0 %v3059
    %4500 = vmatpush1.msra.mxu0 %v3058
    %4501 = vmatprep.subr.mxu0 %v3055
    %4502 = vmatpush1.msra.mxu0 %v3054
    %4503 = vmatprep.subr.mxu0 %v3051
    %4504 = vmatpush1.msra.mxu0 %v3050
    %4505 = vmatprep.subr.mxu0 %v3047
    %4506 = vmatpush1.msra.mxu0 %v3046
    %4507 = vmatprep.subr.mxu0 %v3043
    %4508 = vmatpush1.msra.mxu0 %v3042
    %4509 = vmatprep.subr.mxu0 %v3039
    %4510 = vmatpush1.msra.mxu0 %v3038
    %4511 = vmatprep.subr.mxu0 %v3163
    %4512 = vmatpush2.msra.mxu0 %v3162
    %4513 = vmatprep.subr.mxu0 %v3159
    %4514 = vmatpush2.msra.mxu0 %v3158
    %4515 = vmatprep.subr.mxu0 %v3155
    %4516 = vmatpush2.msra.mxu0 %v3154
    %4517 = vmatprep.subr.mxu0 %v3151
    %4518 = vmatpush2.msra.mxu0 %v3150
    %4519 = vmatprep.subr.mxu0 %v3147
    %4520 = vmatpush2.msra.mxu0 %v3146
    %4521 = vmatprep.subr.mxu0 %v3143
    %4522 = vmatpush2.msra.mxu0 %v3142
    %4523 = vmatprep.subr.mxu0 %v3139
    %4524 = vmatpush2.msra.mxu0 %v3138
    %4525 = vmatprep.subr.mxu0 %v3135
    %4526 = vmatpush2.msra.mxu0 %v3134
    %4527 = vmatprep.subr.mxu0 %v3131
    %4528 = vmatpush2.msra.mxu0 %v3130
    %4529 = vmatprep.subr.mxu0 %v3127
    %4530 = vmatpush2.msra.mxu0 %v3126
    %4531 = vmatprep.subr.mxu0 %v3123
    %4532 = vmatpush2.msra.mxu0 %v3122
    %4533 = vmatprep.subr.mxu0 %v3119
    %4534 = vmatpush2.msra.mxu0 %v3118
    %4535 = vmatprep.subr.mxu0 %v3115
    %4536 = vmatpush2.msra.mxu0 %v3114
    %4537 = vmatprep.subr.mxu0 %v3111
    %4538 = vmatpush2.msra.mxu0 %v3110
    %4539 = vmatprep.subr.mxu0 %v3107
    %4540 = vmatpush2.msra.mxu0 %v3106
    %4541 = vmatprep.subr.mxu0 %v3103
    %4542 = vmatpush2.msra.mxu0 %v3102
    %4543 = vmatprep.mubr.f32.mxu0 %v774
    %4544 = vmatmul.mubr.f32.gmra.mxu0 %v772
    %v4545 = vpop.f32.mrf.mxu0
    %v4546 = vadd.f32 %v4475, %v4545
    %v4547 = vpop.f32.mrf.mxu0
    %v4548 = vadd.f32 %v4477, %v4547
    %4549 = vdwg.mxu0
    %4550 = vmatprep.subr.mxu0 %v3227
    %4551 = vmatpush1.msra.mxu0 %v3226
    %4552 = vmatprep.subr.mxu0 %v3223
    %4553 = vmatpush1.msra.mxu0 %v3222
    %4554 = vmatprep.subr.mxu0 %v3219
    %4555 = vmatpush1.msra.mxu0 %v3218
    %4556 = vmatprep.subr.mxu0 %v3215
    %4557 = vmatpush1.msra.mxu0 %v3214
    %4558 = vmatprep.subr.mxu0 %v3211
    %4559 = vmatpush1.msra.mxu0 %v3210
    %4560 = vmatprep.subr.mxu0 %v3207
    %4561 = vmatpush1.msra.mxu0 %v3206
    %4562 = vmatprep.subr.mxu0 %v3203
    %4563 = vmatpush1.msra.mxu0 %v3202
    %4564 = vmatprep.subr.mxu0 %v3199
    %4565 = vmatpush1.msra.mxu0 %v3198
    %4566 = vmatprep.subr.mxu0 %v3195
    %4567 = vmatpush1.msra.mxu0 %v3194
    %4568 = vmatprep.subr.mxu0 %v3191
    %4569 = vmatpush1.msra.mxu0 %v3190
    %4570 = vmatprep.subr.mxu0 %v3187
    %4571 = vmatpush1.msra.mxu0 %v3186
    %4572 = vmatprep.subr.mxu0 %v3183
    %4573 = vmatpush1.msra.mxu0 %v3182
    %4574 = vmatprep.subr.mxu0 %v3179
    %4575 = vmatpush1.msra.mxu0 %v3178
    %4576 = vmatprep.subr.mxu0 %v3175
    %4577 = vmatpush1.msra.mxu0 %v3174
    %4578 = vmatprep.subr.mxu0 %v3171
    %4579 = vmatpush1.msra.mxu0 %v3170
    %4580 = vmatprep.subr.mxu0 %v3167
    %4581 = vmatpush1.msra.mxu0 %v3166
    %4582 = vmatprep.subr.mxu0 %v3291
    %4583 = vmatpush2.msra.mxu0 %v3290
    %4584 = vmatprep.subr.mxu0 %v3287
    %4585 = vmatpush2.msra.mxu0 %v3286
    %4586 = vmatprep.subr.mxu0 %v3283
    %4587 = vmatpush2.msra.mxu0 %v3282
    %4588 = vmatprep.subr.mxu0 %v3279
    %4589 = vmatpush2.msra.mxu0 %v3278
    %4590 = vmatprep.subr.mxu0 %v3275
    %4591 = vmatpush2.msra.mxu0 %v3274
    %4592 = vmatprep.subr.mxu0 %v3271
    %4593 = vmatpush2.msra.mxu0 %v3270
    %4594 = vmatprep.subr.mxu0 %v3267
    %4595 = vmatpush2.msra.mxu0 %v3266
    %4596 = vmatprep.subr.mxu0 %v3263
    %4597 = vmatpush2.msra.mxu0 %v3262
    %4598 = vmatprep.subr.mxu0 %v3259
    %4599 = vmatpush2.msra.mxu0 %v3258
    %4600 = vmatprep.subr.mxu0 %v3255
    %4601 = vmatpush2.msra.mxu0 %v3254
    %4602 = vmatprep.subr.mxu0 %v3251
    %4603 = vmatpush2.msra.mxu0 %v3250
    %4604 = vmatprep.subr.mxu0 %v3247
    %4605 = vmatpush2.msra.mxu0 %v3246
    %4606 = vmatprep.subr.mxu0 %v3243
    %4607 = vmatpush2.msra.mxu0 %v3242
    %4608 = vmatprep.subr.mxu0 %v3239
    %4609 = vmatpush2.msra.mxu0 %v3238
    %4610 = vmatprep.subr.mxu0 %v3235
    %4611 = vmatpush2.msra.mxu0 %v3234
    %4612 = vmatprep.subr.mxu0 %v3231
    %4613 = vmatpush2.msra.mxu0 %v3230
    %4614 = vmatprep.mubr.f32.mxu0 %v845
    %4615 = vmatmul.mubr.f32.gmra.mxu0 %v843
    %v4616 = vpop.f32.mrf.mxu0
    %v4617 = vadd.f32 %v4546, %v4616
    %v4618 = vpop.f32.mrf.mxu0
    %v4619 = vadd.f32 %v4548, %v4618
    %4620 = vdwg.mxu0
    %4621 = vmatprep.subr.mxu0 %v3355
    %4622 = vmatpush1.msra.mxu0 %v3354
    %4623 = vmatprep.subr.mxu0 %v3351
    %4624 = vmatpush1.msra.mxu0 %v3350
    %4625 = vmatprep.subr.mxu0 %v3347
    %4626 = vmatpush1.msra.mxu0 %v3346
    %4627 = vmatprep.subr.mxu0 %v3343
    %4628 = vmatpush1.msra.mxu0 %v3342
    %4629 = vmatprep.subr.mxu0 %v3339
    %4630 = vmatpush1.msra.mxu0 %v3338
    %4631 = vmatprep.subr.mxu0 %v3335
    %4632 = vmatpush1.msra.mxu0 %v3334
    %4633 = vmatprep.subr.mxu0 %v3331
    %4634 = vmatpush1.msra.mxu0 %v3330
    %4635 = vmatprep.subr.mxu0 %v3327
    %4636 = vmatpush1.msra.mxu0 %v3326
    %4637 = vmatprep.subr.mxu0 %v3323
    %4638 = vmatpush1.msra.mxu0 %v3322
    %4639 = vmatprep.subr.mxu0 %v3319
    %4640 = vmatpush1.msra.mxu0 %v3318
    %4641 = vmatprep.subr.mxu0 %v3315
    %4642 = vmatpush1.msra.mxu0 %v3314
    %4643 = vmatprep.subr.mxu0 %v3311
    %4644 = vmatpush1.msra.mxu0 %v3310
    %4645 = vmatprep.subr.mxu0 %v3307
    %4646 = vmatpush1.msra.mxu0 %v3306
    %4647 = vmatprep.subr.mxu0 %v3303
    %4648 = vmatpush1.msra.mxu0 %v3302
    %4649 = vmatprep.subr.mxu0 %v3299
    %4650 = vmatpush1.msra.mxu0 %v3298
    %4651 = vmatprep.subr.mxu0 %v3295
    %4652 = vmatpush1.msra.mxu0 %v3294
    %4653 = vmatprep.subr.mxu0 %v3419
    %4654 = vmatpush2.msra.mxu0 %v3418
    %4655 = vmatprep.subr.mxu0 %v3415
    %4656 = vmatpush2.msra.mxu0 %v3414
    %4657 = vmatprep.subr.mxu0 %v3411
    %4658 = vmatpush2.msra.mxu0 %v3410
    %4659 = vmatprep.subr.mxu0 %v3407
    %4660 = vmatpush2.msra.mxu0 %v3406
    %4661 = vmatprep.subr.mxu0 %v3403
    %4662 = vmatpush2.msra.mxu0 %v3402
    %4663 = vmatprep.subr.mxu0 %v3399
    %4664 = vmatpush2.msra.mxu0 %v3398
    %4665 = vmatprep.subr.mxu0 %v3395
    %4666 = vmatpush2.msra.mxu0 %v3394
    %4667 = vmatprep.subr.mxu0 %v3391
    %4668 = vmatpush2.msra.mxu0 %v3390
    %4669 = vmatprep.subr.mxu0 %v3387
    %4670 = vmatpush2.msra.mxu0 %v3386
    %4671 = vmatprep.subr.mxu0 %v3383
    %4672 = vmatpush2.msra.mxu0 %v3382
    %4673 = vmatprep.subr.mxu0 %v3379
    %4674 = vmatpush2.msra.mxu0 %v3378
    %4675 = vmatprep.subr.mxu0 %v3375
    %4676 = vmatpush2.msra.mxu0 %v3374
    %4677 = vmatprep.subr.mxu0 %v3371
    %4678 = vmatpush2.msra.mxu0 %v3370
    %4679 = vmatprep.subr.mxu0 %v3367
    %4680 = vmatpush2.msra.mxu0 %v3366
    %4681 = vmatprep.subr.mxu0 %v3363
    %4682 = vmatpush2.msra.mxu0 %v3362
    %4683 = vmatprep.subr.mxu0 %v3359
    %4684 = vmatpush2.msra.mxu0 %v3358
    %4685 = vmatprep.mubr.f32.mxu0 %v916
    %4686 = vmatmul.mubr.f32.gmra.mxu0 %v914
    %v4687 = vpop.f32.mrf.mxu0
    %v4688 = vadd.f32 %v4617, %v4687
    %v4689 = vpop.f32.mrf.mxu0
    %v4690 = vadd.f32 %v4619, %v4689
    %4691 = vdwg.mxu0
    %4692 = vmatprep.subr.mxu0 %v3483
    %4693 = vmatpush1.msra.mxu0 %v3482
    %4694 = vmatprep.subr.mxu0 %v3479
    %4695 = vmatpush1.msra.mxu0 %v3478
    %4696 = vmatprep.subr.mxu0 %v3475
    %4697 = vmatpush1.msra.mxu0 %v3474
    %4698 = vmatprep.subr.mxu0 %v3471
    %4699 = vmatpush1.msra.mxu0 %v3470
    %4700 = vmatprep.subr.mxu0 %v3467
    %4701 = vmatpush1.msra.mxu0 %v3466
    %4702 = vmatprep.subr.mxu0 %v3463
    %4703 = vmatpush1.msra.mxu0 %v3462
    %4704 = vmatprep.subr.mxu0 %v3459
    %4705 = vmatpush1.msra.mxu0 %v3458
    %4706 = vmatprep.subr.mxu0 %v3455
    %4707 = vmatpush1.msra.mxu0 %v3454
    %4708 = vmatprep.subr.mxu0 %v3451
    %4709 = vmatpush1.msra.mxu0 %v3450
    %4710 = vmatprep.subr.mxu0 %v3447
    %4711 = vmatpush1.msra.mxu0 %v3446
    %4712 = vmatprep.subr.mxu0 %v3443
    %4713 = vmatpush1.msra.mxu0 %v3442
    %4714 = vmatprep.subr.mxu0 %v3439
    %4715 = vmatpush1.msra.mxu0 %v3438
    %4716 = vmatprep.subr.mxu0 %v3435
    %4717 = vmatpush1.msra.mxu0 %v3434
    %4718 = vmatprep.subr.mxu0 %v3431
    %4719 = vmatpush1.msra.mxu0 %v3430
    %4720 = vmatprep.subr.mxu0 %v3427
    %4721 = vmatpush1.msra.mxu0 %v3426
    %4722 = vmatprep.subr.mxu0 %v3423
    %4723 = vmatpush1.msra.mxu0 %v3422
    %4724 = vmatprep.subr.mxu0 %v3547
    %4725 = vmatpush2.msra.mxu0 %v3546
    %4726 = vmatprep.subr.mxu0 %v3543
    %4727 = vmatpush2.msra.mxu0 %v3542
    %4728 = vmatprep.subr.mxu0 %v3539
    %4729 = vmatpush2.msra.mxu0 %v3538
    %4730 = vmatprep.subr.mxu0 %v3535
    %4731 = vmatpush2.msra.mxu0 %v3534
    %4732 = vmatprep.subr.mxu0 %v3531
    %4733 = vmatpush2.msra.mxu0 %v3530
    %4734 = vmatprep.subr.mxu0 %v3527
    %4735 = vmatpush2.msra.mxu0 %v3526
    %4736 = vmatprep.subr.mxu0 %v3523
    %4737 = vmatpush2.msra.mxu0 %v3522
    %4738 = vmatprep.subr.mxu0 %v3519
    %4739 = vmatpush2.msra.mxu0 %v3518
    %4740 = vmatprep.subr.mxu0 %v3515
    %4741 = vmatpush2.msra.mxu0 %v3514
    %4742 = vmatprep.subr.mxu0 %v3511
    %4743 = vmatpush2.msra.mxu0 %v3510
    %4744 = vmatprep.subr.mxu0 %v3507
    %4745 = vmatpush2.msra.mxu0 %v3506
    %4746 = vmatprep.subr.mxu0 %v3503
    %4747 = vmatpush2.msra.mxu0 %v3502
    %4748 = vmatprep.subr.mxu0 %v3499
    %4749 = vmatpush2.msra.mxu0 %v3498
    %4750 = vmatprep.subr.mxu0 %v3495
    %4751 = vmatpush2.msra.mxu0 %v3494
    %4752 = vmatprep.subr.mxu0 %v3491
    %4753 = vmatpush2.msra.mxu0 %v3490
    %4754 = vmatprep.subr.mxu0 %v3487
    %4755 = vmatpush2.msra.mxu0 %v3486
    %4756 = vmatprep.mubr.f32.mxu0 %v987
    %4757 = vmatmul.mubr.f32.gmra.mxu0 %v985
    %v4758 = vpop.f32.mrf.mxu0
    %v4759 = vadd.f32 %v4688, %v4758
    %v4760 = vpop.f32.mrf.mxu0
    %v4761 = vadd.f32 %v4690, %v4760
    %4762 = vdwg.mxu0
    %4763 = vmatprep.subr.mxu0 %v3611
    %4764 = vmatpush1.msra.mxu0 %v3610
    %4765 = vmatprep.subr.mxu0 %v3607
    %4766 = vmatpush1.msra.mxu0 %v3606
    %4767 = vmatprep.subr.mxu0 %v3603
    %4768 = vmatpush1.msra.mxu0 %v3602
    %4769 = vmatprep.subr.mxu0 %v3599
    %4770 = vmatpush1.msra.mxu0 %v3598
    %4771 = vmatprep.subr.mxu0 %v3595
    %4772 = vmatpush1.msra.mxu0 %v3594
    %4773 = vmatprep.subr.mxu0 %v3591
    %4774 = vmatpush1.msra.mxu0 %v3590
    %4775 = vmatprep.subr.mxu0 %v3587
    %4776 = vmatpush1.msra.mxu0 %v3586
    %4777 = vmatprep.subr.mxu0 %v3583
    %4778 = vmatpush1.msra.mxu0 %v3582
    %4779 = vmatprep.subr.mxu0 %v3579
    %4780 = vmatpush1.msra.mxu0 %v3578
    %4781 = vmatprep.subr.mxu0 %v3575
    %4782 = vmatpush1.msra.mxu0 %v3574
    %4783 = vmatprep.subr.mxu0 %v3571
    %4784 = vmatpush1.msra.mxu0 %v3570
    %4785 = vmatprep.subr.mxu0 %v3567
    %4786 = vmatpush1.msra.mxu0 %v3566
    %4787 = vmatprep.subr.mxu0 %v3563
    %4788 = vmatpush1.msra.mxu0 %v3562
    %4789 = vmatprep.subr.mxu0 %v3559
    %4790 = vmatpush1.msra.mxu0 %v3558
    %4791 = vmatprep.subr.mxu0 %v3555
    %4792 = vmatpush1.msra.mxu0 %v3554
    %4793 = vmatprep.subr.mxu0 %v3551
    %4794 = vmatpush1.msra.mxu0 %v3550
    %4795 = vmatprep.subr.mxu0 %v3675
    %4796 = vmatpush2.msra.mxu0 %v3674
    %4797 = vmatprep.subr.mxu0 %v3671
    %4798 = vmatpush2.msra.mxu0 %v3670
    %4799 = vmatprep.subr.mxu0 %v3667
    %4800 = vmatpush2.msra.mxu0 %v3666
    %4801 = vmatprep.subr.mxu0 %v3663
    %4802 = vmatpush2.msra.mxu0 %v3662
    %4803 = vmatprep.subr.mxu0 %v3659
    %4804 = vmatpush2.msra.mxu0 %v3658
    %4805 = vmatprep.subr.mxu0 %v3655
    %4806 = vmatpush2.msra.mxu0 %v3654
    %4807 = vmatprep.subr.mxu0 %v3651
    %4808 = vmatpush2.msra.mxu0 %v3650
    %4809 = vmatprep.subr.mxu0 %v3647
    %4810 = vmatpush2.msra.mxu0 %v3646
    %4811 = vmatprep.subr.mxu0 %v3643
    %4812 = vmatpush2.msra.mxu0 %v3642
    %4813 = vmatprep.subr.mxu0 %v3639
    %4814 = vmatpush2.msra.mxu0 %v3638
    %4815 = vmatprep.subr.mxu0 %v3635
    %4816 = vmatpush2.msra.mxu0 %v3634
    %4817 = vmatprep.subr.mxu0 %v3631
    %4818 = vmatpush2.msra.mxu0 %v3630
    %4819 = vmatprep.subr.mxu0 %v3627
    %4820 = vmatpush2.msra.mxu0 %v3626
    %4821 = vmatprep.subr.mxu0 %v3623
    %4822 = vmatpush2.msra.mxu0 %v3622
    %4823 = vmatprep.subr.mxu0 %v3619
    %4824 = vmatpush2.msra.mxu0 %v3618
    %4825 = vmatprep.subr.mxu0 %v3615
    %4826 = vmatpush2.msra.mxu0 %v3614
    %4827 = vmatprep.mubr.f32.mxu0 %v1058
    %4828 = vmatmul.mubr.f32.gmra.mxu0 %v1056
    %v4829 = vpop.f32.mrf.mxu0
    %v4830 = vadd.f32 %v4759, %v4829
    %v4831 = vpop.f32.mrf.mxu0
    %v4832 = vadd.f32 %v4761, %v4831
    %4833 = vdwg.mxu0
    %vm4834 = vcmask 1041408
    %v4835 = vsel %vm4834, %v4262, 0.0
    %v4836 = vrot.slane %v4835, 4
    %v4837 = vadd.f32 %v4835, %v4836
    %v4838 = vrot.slane %v4837, 2
    %v4839 = vadd.f32 %v4837, %v4838
    %v4840 = vrot.slane %v4839, 1
    %v4841 = vadd.f32 %v4839, %v4840
    %v4842 = vsel %vm4834, %v4264, 0.0
    %v4843 = vrot.slane %v4842, 4
    %v4844 = vadd.f32 %v4842, %v4843
    %v4845 = vrot.slane %v4844, 2
    %v4846 = vadd.f32 %v4844, %v4845
    %v4847 = vrot.slane %v4846, 1
    %v4848 = vadd.f32 %v4846, %v4847
    %v4849 = vsel %vm4834, %v4830, 0.0
    %v4850 = vrot.slane %v4849, 4
    %v4851 = vadd.f32 %v4849, %v4850
    %v4852 = vrot.slane %v4851, 2
    %v4853 = vadd.f32 %v4851, %v4852
    %v4854 = vrot.slane %v4853, 1
    %v4855 = vadd.f32 %v4853, %v4854
    %v4856 = vsel %vm4834, %v4832, 0.0
    %v4857 = vrot.slane %v4856, 4
    %v4858 = vadd.f32 %v4856, %v4857
    %v4859 = vrot.slane %v4858, 2
    %v4860 = vadd.f32 %v4858, %v4859
    %v4861 = vrot.slane %v4860, 1
    %v4862 = vadd.f32 %v4860, %v4861
    %v4863 = vrcp.pop 2.0
    %v4864 = vmul.f32 %v4841, %v4863
    %v4865 = vmul.f32 %v4848, %v4863
    %v4866 = vmul.f32 %v4855, %v4863
    %v4867 = vmul.f32 %v4862, %v4863
    %v4868 = vsub.f32 %v4262, %v4864
    %v4869 = vsub.f32 %v4264, %v4865
    %v4870 = vsub.f32 %v4830, %v4866
    %v4871 = vsub.f32 %v4832, %v4867
    %v4872 = vmul.f32 %v4868, %v4868
    %v4873 = vmul.f32 %v4869, %v4869
    %v4874 = vmul.f32 %v4870, %v4870
    %v4875 = vmul.f32 %v4871, %v4871
    %v4876 = vsel %vm4834, %v4872, 0.0
    %v4877 = vrot.slane %v4876, 4
    %v4878 = vadd.f32 %v4876, %v4877
    %v4879 = vrot.slane %v4878, 2
    %v4880 = vadd.f32 %v4878, %v4879
    %v4881 = vrot.slane %v4880, 1
    %v4882 = vadd.f32 %v4880, %v4881
    %v4883 = vsel %vm4834, %v4873, 0.0
    %v4884 = vrot.slane %v4883, 4
    %v4885 = vadd.f32 %v4883, %v4884
    %v4886 = vrot.slane %v4885, 2
    %v4887 = vadd.f32 %v4885, %v4886
    %v4888 = vrot.slane %v4887, 1
    %v4889 = vadd.f32 %v4887, %v4888
    %v4890 = vsel %vm4834, %v4874, 0.0
    %v4891 = vrot.slane %v4890, 4
    %v4892 = vadd.f32 %v4890, %v4891
    %v4893 = vrot.slane %v4892, 2
    %v4894 = vadd.f32 %v4892, %v4893
    %v4895 = vrot.slane %v4894, 1
    %v4896 = vadd.f32 %v4894, %v4895
    %v4897 = vsel %vm4834, %v4875, 0.0
    %v4898 = vrot.slane %v4897, 4
    %v4899 = vadd.f32 %v4897, %v4898
    %v4900 = vrot.slane %v4899, 2
    %v4901 = vadd.f32 %v4899, %v4900
    %v4902 = vrot.slane %v4901, 1
    %v4903 = vadd.f32 %v4901, %v4902
    %v4904 = vmul.f32 %v4882, %v4863
    %v4905 = vmul.f32 %v4889, %v4863
    %v4906 = vmul.f32 %v4896, %v4863
    %v4907 = vmul.f32 %v4903, %v4863
    %v4908 = vadd.f32 %v4904, 1e-05
    %v4909 = vadd.f32 %v4905, 1e-05
    %v4910 = vadd.f32 %v4906, 1e-05
    %v4911 = vadd.f32 %v4907, 1e-05
    %v4912 = vrsqrt.pop %v4908
    %v4913 = vrsqrt.pop %v4909
    %v4914 = vrsqrt.pop %v4910
    %v4915 = vrsqrt.pop %v4911
    %v4916 = vmul.f32 %v4868, %v4912
    %v4917 = vmul.f32 %v4869, %v4913
    %v4918 = vmul.f32 %v4870, %v4914
    %v4919 = vmul.f32 %v4871, %v4915
    %v4920 = vld [vmem:[#allocation14] sm:$0xf]
    %v4922 = vlaneseq
    %v4923 = vshrl.u32 %v4922, 7
    %v4924 = vsub.s32 0, %v4923
    %v4925 = vrot.slane %v4920, %v4924
    %v4926 = vlaneseq
    %v4927 = vshrl.u32 %v4926, 7
    %v4928 = vsub.s32 1, %v4927
    %v4929 = vrot.slane %v4920, %v4928
    %v4930 = vlaneseq
    %v4931 = vshrl.u32 %v4930, 7
    %v4932 = vsub.s32 2, %v4931
    %v4933 = vrot.slane %v4920, %v4932
    %v4934 = vlaneseq
    %v4935 = vshrl.u32 %v4934, 7
    %v4936 = vsub.s32 3, %v4935
    %v4937 = vrot.slane %v4920, %v4936
    %v4942 = vmul.f32 %v4916, %v4925
    %v4943 = vmul.f32 %v4917, %v4929
    %v4944 = vmul.f32 %v4918, %v4933
    %v4945 = vmul.f32 %v4919, %v4937
    %v4946 = vld [vmem:[#allocation16] sm:$0xf]
    %v4948 = vlaneseq
    %v4949 = vshrl.u32 %v4948, 7
    %v4950 = vsub.s32 0, %v4949
    %v4951 = vrot.slane %v4946, %v4950
    %v4952 = vlaneseq
    %v4953 = vshrl.u32 %v4952, 7
    %v4954 = vsub.s32 1, %v4953
    %v4955 = vrot.slane %v4946, %v4954
    %v4956 = vlaneseq
    %v4957 = vshrl.u32 %v4956, 7
    %v4958 = vsub.s32 2, %v4957
    %v4959 = vrot.slane %v4946, %v4958
    %v4960 = vlaneseq
    %v4961 = vshrl.u32 %v4960, 7
    %v4962 = vsub.s32 3, %v4961
    %v4963 = vrot.slane %v4946, %v4962
    %v4968 = vadd.f32 %v4942, %v4951
    %v4969 = vadd.f32 %v4943, %v4955
    %v4970 = vadd.f32 %v4944, %v4959
    %v4971 = vadd.f32 %v4945, %v4963
    %v4972 = vmax.f32 %v4968, 0.0
    %v4973 = vmax.f32 %v4969, 0.0
    %v4974 = vmax.f32 %v4970, 0.0
    %v4975 = vmax.f32 %v4971, 0.0
    %v4976 = vld [vmem:[#allocation17] sm:$0xf]
    %v4977 = vld [vmem:[#allocation17 + $0x4] sm:$0xf]
    %v4978 = vld [vmem:[#allocation17 + $0x8] sm:$0xf]
    %v4979 = vld [vmem:[#allocation17 + $0xc] sm:$0xf]
    %v4980 = vld [vmem:[#allocation17 + $0x10] sm:$0xf]
    %v4981 = vld [vmem:[#allocation17 + $0x14] sm:$0xf]
    %v4982 = vld [vmem:[#allocation17 + $0x18] sm:$0xf]
    %v4983 = vld [vmem:[#allocation17 + $0x1c] sm:$0xf]
    %v4984 = vld [vmem:[#allocation17 + $0x20] sm:$0xf]
    %v4985 = vld [vmem:[#allocation17 + $0x24] sm:$0xf]
    %v4986 = vld [vmem:[#allocation17 + $0x28] sm:$0xf]
    %v4987 = vld [vmem:[#allocation17 + $0x2c] sm:$0xf]
    %v4988 = vld [vmem:[#allocation17 + $0x30] sm:$0xf]
    %v4989 = vld [vmem:[#allocation17 + $0x34] sm:$0xf]
    %v4990 = vld [vmem:[#allocation17 + $0x38] sm:$0xf]
    %v4991 = vld [vmem:[#allocation17 + $0x3c] sm:$0xf]
    %v4992 = vld [vmem:[#allocation17 + $0x40] sm:$0xf]
    %v4993 = vld [vmem:[#allocation17 + $0x44] sm:$0xf]
    %v4994 = vld [vmem:[#allocation17 + $0x48] sm:$0xf]
    %v4995 = vld [vmem:[#allocation17 + $0x4c] sm:$0xf]
    %v4996 = vld [vmem:[#allocation17 + $0x50] sm:$0xf]
    %v4997 = vld [vmem:[#allocation17 + $0x54] sm:$0xf]
    %v4998 = vld [vmem:[#allocation17 + $0x58] sm:$0xf]
    %v4999 = vld [vmem:[#allocation17 + $0x5c] sm:$0xf]
    %v5000 = vld [vmem:[#allocation17 + $0x60] sm:$0xf]
    %v5001 = vld [vmem:[#allocation17 + $0x64] sm:$0xf]
    %v5002 = vld [vmem:[#allocation17 + $0x68] sm:$0xf]
    %v5003 = vld [vmem:[#allocation17 + $0x6c] sm:$0xf]
    %v5004 = vld [vmem:[#allocation17 + $0x70] sm:$0xf]
    %v5005 = vld [vmem:[#allocation17 + $0x74] sm:$0xf]
    %v5006 = vld [vmem:[#allocation17 + $0x78] sm:$0xf]
    %v5007 = vld [vmem:[#allocation17 + $0x7c] sm:$0xf]
    %v5008 = vld [vmem:[#allocation17 + $0x80] sm:$0xf]
    %v5009 = vld [vmem:[#allocation17 + $0x84] sm:$0xf]
    %v5010 = vld [vmem:[#allocation17 + $0x88] sm:$0xf]
    %v5011 = vld [vmem:[#allocation17 + $0x8c] sm:$0xf]
    %v5012 = vld [vmem:[#allocation17 + $0x90] sm:$0xf]
    %v5013 = vld [vmem:[#allocation17 + $0x94] sm:$0xf]
    %v5014 = vld [vmem:[#allocation17 + $0x98] sm:$0xf]
    %v5015 = vld [vmem:[#allocation17 + $0x9c] sm:$0xf]
    %v5016 = vld [vmem:[#allocation17 + $0xa0] sm:$0xf]
    %v5017 = vld [vmem:[#allocation17 + $0xa4] sm:$0xf]
    %v5018 = vld [vmem:[#allocation17 + $0xa8] sm:$0xf]
    %v5019 = vld [vmem:[#allocation17 + $0xac] sm:$0xf]
    %v5020 = vld [vmem:[#allocation17 + $0xb0] sm:$0xf]
    %v5021 = vld [vmem:[#allocation17 + $0xb4] sm:$0xf]
    %v5022 = vld [vmem:[#allocation17 + $0xb8] sm:$0xf]
    %v5023 = vld [vmem:[#allocation17 + $0xbc] sm:$0xf]
    %v5024 = vld [vmem:[#allocation17 + $0xc0] sm:$0xf]
    %v5025 = vld [vmem:[#allocation17 + $0xc4] sm:$0xf]
    %v5026 = vld [vmem:[#allocation17 + $0xc8] sm:$0xf]
    %v5027 = vld [vmem:[#allocation17 + $0xcc] sm:$0xf]
    %v5028 = vld [vmem:[#allocation17 + $0xd0] sm:$0xf]
    %v5029 = vld [vmem:[#allocation17 + $0xd4] sm:$0xf]
    %v5030 = vld [vmem:[#allocation17 + $0xd8] sm:$0xf]
    %v5031 = vld [vmem:[#allocation17 + $0xdc] sm:$0xf]
    %v5032 = vld [vmem:[#allocation17 + $0xe0] sm:$0xf]
    %v5033 = vld [vmem:[#allocation17 + $0xe4] sm:$0xf]
    %v5034 = vld [vmem:[#allocation17 + $0xe8] sm:$0xf]
    %v5035 = vld [vmem:[#allocation17 + $0xec] sm:$0xf]
    %v5036 = vld [vmem:[#allocation17 + $0xf0] sm:$0xf]
    %v5037 = vld [vmem:[#allocation17 + $0xf4] sm:$0xf]
    %v5038 = vld [vmem:[#allocation17 + $0xf8] sm:$0xf]
    %v5039 = vld [vmem:[#allocation17 + $0xfc] sm:$0xf]
    %v5040 = vunpack.c.l.bf16 %v4976
    %v5041 = vunpack.c.l.bf16 %v4977
    %v5042 = vunpack.c.l.bf16 %v4978
    %v5043 = vunpack.c.l.bf16 %v4979
    %v5044 = vunpack.c.l.bf16 %v4980
    %v5045 = vunpack.c.l.bf16 %v4981
    %v5046 = vunpack.c.l.bf16 %v4982
    %v5047 = vunpack.c.l.bf16 %v4983
    %v5048 = vunpack.c.l.bf16 %v4984
    %v5049 = vunpack.c.l.bf16 %v4985
    %v5050 = vunpack.c.l.bf16 %v4986
    %v5051 = vunpack.c.l.bf16 %v4987
    %v5052 = vunpack.c.l.bf16 %v4988
    %v5053 = vunpack.c.l.bf16 %v4989
    %v5054 = vunpack.c.l.bf16 %v4990
    %v5055 = vunpack.c.l.bf16 %v4991
    %v5056 = vunpack.c.l.bf16 %v4992
    %v5057 = vunpack.c.l.bf16 %v4993
    %v5058 = vunpack.c.l.bf16 %v4994
    %v5059 = vunpack.c.l.bf16 %v4995
    %v5060 = vunpack.c.l.bf16 %v4996
    %v5061 = vunpack.c.l.bf16 %v4997
    %v5062 = vunpack.c.l.bf16 %v4998
    %v5063 = vunpack.c.l.bf16 %v4999
    %v5064 = vunpack.c.l.bf16 %v5000
    %v5065 = vunpack.c.l.bf16 %v5001
    %v5066 = vunpack.c.l.bf16 %v5002
    %v5067 = vunpack.c.l.bf16 %v5003
    %v5068 = vunpack.c.l.bf16 %v5004
    %v5069 = vunpack.c.l.bf16 %v5005
    %v5070 = vunpack.c.l.bf16 %v5006
    %v5071 = vunpack.c.l.bf16 %v5007
    %v5072 = vunpack.c.l.bf16 %v5008
    %v5073 = vunpack.c.l.bf16 %v5009
    %v5074 = vunpack.c.l.bf16 %v5010
    %v5075 = vunpack.c.l.bf16 %v5011
    %v5076 = vunpack.c.l.bf16 %v5012
    %v5077 = vunpack.c.l.bf16 %v5013
    %v5078 = vunpack.c.l.bf16 %v5014
    %v5079 = vunpack.c.l.bf16 %v5015
    %v5080 = vunpack.c.l.bf16 %v5016
    %v5081 = vunpack.c.l.bf16 %v5017
    %v5082 = vunpack.c.l.bf16 %v5018
    %v5083 = vunpack.c.l.bf16 %v5019
    %v5084 = vunpack.c.l.bf16 %v5020
    %v5085 = vunpack.c.l.bf16 %v5021
    %v5086 = vunpack.c.l.bf16 %v5022
    %v5087 = vunpack.c.l.bf16 %v5023
    %v5088 = vunpack.c.l.bf16 %v5024
    %v5089 = vunpack.c.l.bf16 %v5025
    %v5090 = vunpack.c.l.bf16 %v5026
    %v5091 = vunpack.c.l.bf16 %v5027
    %v5092 = vunpack.c.l.bf16 %v5028
    %v5093 = vunpack.c.l.bf16 %v5029
    %v5094 = vunpack.c.l.bf16 %v5030
    %v5095 = vunpack.c.l.bf16 %v5031
    %v5096 = vunpack.c.l.bf16 %v5032
    %v5097 = vunpack.c.l.bf16 %v5033
    %v5098 = vunpack.c.l.bf16 %v5034
    %v5099 = vunpack.c.l.bf16 %v5035
    %v5100 = vunpack.c.l.bf16 %v5036
    %v5101 = vunpack.c.l.bf16 %v5037
    %v5102 = vunpack.c.l.bf16 %v5038
    %v5103 = vunpack.c.l.bf16 %v5039
    %5104 = vmatprep.subr.mxu0 0.0
    %5105 = vmatpush1.msra.mxu0 %v5055
    %5106 = vmatprep.subr.mxu0 0.0
    %5107 = vmatpush1.msra.mxu0 %v5054
    %5108 = vmatprep.subr.mxu0 0.0
    %5109 = vmatpush1.msra.mxu0 %v5053
    %5110 = vmatprep.subr.mxu0 0.0
    %5111 = vmatpush1.msra.mxu0 %v5052
    %5112 = vmatprep.subr.mxu0 0.0
    %5113 = vmatpush1.msra.mxu0 %v5051
    %5114 = vmatprep.subr.mxu0 0.0
    %5115 = vmatpush1.msra.mxu0 %v5050
    %5116 = vmatprep.subr.mxu0 0.0
    %5117 = vmatpush1.msra.mxu0 %v5049
    %5118 = vmatprep.subr.mxu0 0.0
    %5119 = vmatpush1.msra.mxu0 %v5048
    %5120 = vmatprep.subr.mxu0 0.0
    %5121 = vmatpush1.msra.mxu0 %v5047
    %5122 = vmatprep.subr.mxu0 0.0
    %5123 = vmatpush1.msra.mxu0 %v5046
    %5124 = vmatprep.subr.mxu0 0.0
    %5125 = vmatpush1.msra.mxu0 %v5045
    %5126 = vmatprep.subr.mxu0 0.0
    %5127 = vmatpush1.msra.mxu0 %v5044
    %5128 = vmatprep.subr.mxu0 0.0
    %5129 = vmatpush1.msra.mxu0 %v5043
    %5130 = vmatprep.subr.mxu0 0.0
    %5131 = vmatpush1.msra.mxu0 %v5042
    %5132 = vmatprep.subr.mxu0 0.0
    %5133 = vmatpush1.msra.mxu0 %v5041
    %5134 = vmatprep.subr.mxu0 0.0
    %5135 = vmatpush1.msra.mxu0 %v5040
    %5136 = vmatprep.subr.mxu0 0.0
    %5137 = vmatpush2.msra.mxu0 %v5071
    %5138 = vmatprep.subr.mxu0 0.0
    %5139 = vmatpush2.msra.mxu0 %v5070
    %5140 = vmatprep.subr.mxu0 0.0
    %5141 = vmatpush2.msra.mxu0 %v5069
    %5142 = vmatprep.subr.mxu0 0.0
    %5143 = vmatpush2.msra.mxu0 %v5068
    %5144 = vmatprep.subr.mxu0 0.0
    %5145 = vmatpush2.msra.mxu0 %v5067
    %5146 = vmatprep.subr.mxu0 0.0
    %5147 = vmatpush2.msra.mxu0 %v5066
    %5148 = vmatprep.subr.mxu0 0.0
    %5149 = vmatpush2.msra.mxu0 %v5065
    %5150 = vmatprep.subr.mxu0 0.0
    %5151 = vmatpush2.msra.mxu0 %v5064
    %5152 = vmatprep.subr.mxu0 0.0
    %5153 = vmatpush2.msra.mxu0 %v5063
    %5154 = vmatprep.subr.mxu0 0.0
    %5155 = vmatpush2.msra.mxu0 %v5062
    %5156 = vmatprep.subr.mxu0 0.0
    %5157 = vmatpush2.msra.mxu0 %v5061
    %5158 = vmatprep.subr.mxu0 0.0
    %5159 = vmatpush2.msra.mxu0 %v5060
    %5160 = vmatprep.subr.mxu0 0.0
    %5161 = vmatpush2.msra.mxu0 %v5059
    %5162 = vmatprep.subr.mxu0 0.0
    %5163 = vmatpush2.msra.mxu0 %v5058
    %5164 = vmatprep.subr.mxu0 0.0
    %5165 = vmatpush2.msra.mxu0 %v5057
    %5166 = vmatprep.subr.mxu0 0.0
    %5167 = vmatpush2.msra.mxu0 %v5056
    %5168 = vmatprep.mubr.f32.mxu0 %v4973
    %5169 = vmatmul.mubr.f32.gmra.mxu0 %v4972
    %v5170 = vpop.f32.mrf.mxu0
    %v5171 = vadd.f32 0.0, %v5170
    %v5172 = vpop.f32.mrf.mxu0
    %5173 = vdwg.mxu0
    %5174 = vmatprep.subr.mxu0 0.0
    %5175 = vmatpush1.msra.mxu0 %v5087
    %5176 = vmatprep.subr.mxu0 0.0
    %5177 = vmatpush1.msra.mxu0 %v5086
    %5178 = vmatprep.subr.mxu0 0.0
    %5179 = vmatpush1.msra.mxu0 %v5085
    %5180 = vmatprep.subr.mxu0 0.0
    %5181 = vmatpush1.msra.mxu0 %v5084
    %5182 = vmatprep.subr.mxu0 0.0
    %5183 = vmatpush1.msra.mxu0 %v5083
    %5184 = vmatprep.subr.mxu0 0.0
    %5185 = vmatpush1.msra.mxu0 %v5082
    %5186 = vmatprep.subr.mxu0 0.0
    %5187 = vmatpush1.msra.mxu0 %v5081
    %5188 = vmatprep.subr.mxu0 0.0
    %5189 = vmatpush1.msra.mxu0 %v5080
    %5190 = vmatprep.subr.mxu0 0.0
    %5191 = vmatpush1.msra.mxu0 %v5079
    %5192 = vmatprep.subr.mxu0 0.0
    %5193 = vmatpush1.msra.mxu0 %v5078
    %5194 = vmatprep.subr.mxu0 0.0
    %5195 = vmatpush1.msra.mxu0 %v5077
    %5196 = vmatprep.subr.mxu0 0.0
    %5197 = vmatpush1.msra.mxu0 %v5076
    %5198 = vmatprep.subr.mxu0 0.0
    %5199 = vmatpush1.msra.mxu0 %v5075
    %5200 = vmatprep.subr.mxu0 0.0
    %5201 = vmatpush1.msra.mxu0 %v5074
    %5202 = vmatprep.subr.mxu0 0.0
    %5203 = vmatpush1.msra.mxu0 %v5073
    %5204 = vmatprep.subr.mxu0 0.0
    %5205 = vmatpush1.msra.mxu0 %v5072
    %5206 = vmatprep.subr.mxu0 0.0
    %5207 = vmatpush2.msra.mxu0 %v5103
    %5208 = vmatprep.subr.mxu0 0.0
    %5209 = vmatpush2.msra.mxu0 %v5102
    %5210 = vmatprep.subr.mxu0 0.0
    %5211 = vmatpush2.msra.mxu0 %v5101
    %5212 = vmatprep.subr.mxu0 0.0
    %5213 = vmatpush2.msra.mxu0 %v5100
    %5214 = vmatprep.subr.mxu0 0.0
    %5215 = vmatpush2.msra.mxu0 %v5099
    %5216 = vmatprep.subr.mxu0 0.0
    %5217 = vmatpush2.msra.mxu0 %v5098
    %5218 = vmatprep.subr.mxu0 0.0
    %5219 = vmatpush2.msra.mxu0 %v5097
    %5220 = vmatprep.subr.mxu0 0.0
    %5221 = vmatpush2.msra.mxu0 %v5096
    %5222 = vmatprep.subr.mxu0 0.0
    %5223 = vmatpush2.msra.mxu0 %v5095
    %5224 = vmatprep.subr.mxu0 0.0
    %5225 = vmatpush2.msra.mxu0 %v5094
    %5226 = vmatprep.subr.mxu0 0.0
    %5227 = vmatpush2.msra.mxu0 %v5093
    %5228 = vmatprep.subr.mxu0 0.0
    %5229 = vmatpush2.msra.mxu0 %v5092
    %5230 = vmatprep.subr.mxu0 0.0
    %5231 = vmatpush2.msra.mxu0 %v5091
    %5232 = vmatprep.subr.mxu0 0.0
    %5233 = vmatpush2.msra.mxu0 %v5090
    %5234 = vmatprep.subr.mxu0 0.0
    %5235 = vmatpush2.msra.mxu0 %v5089
    %5236 = vmatprep.subr.mxu0 0.0
    %5237 = vmatpush2.msra.mxu0 %v5088
    %5238 = vmatprep.mubr.f32.mxu0 %v4975
    %5239 = vmatmul.mubr.f32.gmra.mxu0 %v4974
    %v5240 = vpop.f32.mrf.mxu0
    %v5241 = vadd.f32 %v5171, %v5240
    %v5242 = vpop.f32.mrf.mxu0
    %5243 = vdwg.mxu0
    %v5244 = vsel %vm4834, %v5241, 0.0
    %v5245 = vrot.slane %v5244, 4
    %v5246 = vadd.f32 %v5244, %v5245
    %v5247 = vrot.slane %v5246, 2
    %v5248 = vadd.f32 %v5246, %v5247
    %v5249 = vrot.slane %v5248, 1
    %v5250 = vadd.f32 %v5248, %v5249
    %v5251 = vmul.f32 %v5250, %v4863
    %v5252 = vsub.f32 %v5241, %v5251
    %v5253 = vmul.f32 %v5252, %v5252
    %v5254 = vsel %vm4834, %v5253, 0.0
    %v5255 = vrot.slane %v5254, 4
    %v5256 = vadd.f32 %v5254, %v5255
    %v5257 = vrot.slane %v5256, 2
    %v5258 = vadd.f32 %v5256, %v5257
    %v5259 = vrot.slane %v5258, 1
    %v5260 = vadd.f32 %v5258, %v5259
    %v5261 = vmul.f32 %v5260, %v4863
    %v5262 = vadd.f32 %v5261, 1e-05
    %v5263 = vrsqrt.pop %v5262
    %v5264 = vmul.f32 %v5252, %v5263
    %v5265 = vld [vmem:[#allocation19] sm:$0x1]
    %v5267 = vlaneseq
    %v5268 = vshrl.u32 %v5267, 7
    %v5269 = vsub.s32 0, %v5268
    %v5270 = vrot.slane %v5265, %v5269
    %v5272 = vmul.f32 %v5264, %v5270
    %v5273 = vld [vmem:[#allocation20] sm:$0x1]
    %v5275 = vlaneseq
    %v5276 = vshrl.u32 %v5275, 7
    %v5277 = vsub.s32 0, %v5276
    %v5278 = vrot.slane %v5273, %v5277
    %v5280 = vadd.f32 %v5272, %v5278
    %v5281 = vmul.f32 %v5280, %v5280
    %v5282 = vsel %vm4834, %v5281, 0.0
    %5283 = vadd.xlane.f32.xlu0 %v5282
    %v5284 = vpop.xlane.xlu0 %5283
    %v5285 = vrsqrt.pop %v5284
    %v5286 = vmul.f32 %v5284, %v5285
    %vm5287 = vcmp.eq.f32.partialorder %v5284, inf
    %v5288 = vsel %vm5287, %v5284, %v5286
    %vm5289 = vcmp.eq.f32.partialorder %v5284, 0.0
    %v5290 = vand.u32 %v5284, 2147483648
    %v5291 = vsel %vm5289, %v5290, %v5288
    %v5292 = vmax.f32 %v5291, 1e-12
    %v5293 = vrcp.pop %v5292
    %v5294 = vmul.f32 %v5280, %v5293
    %5295 = vst [vmem:[#allocation23] sm:$0x3] %v5294
    // Predicated region
    $region102: #{wrapper_i3d_forward.3} parent=1 // pred_check
      _
    $region103: #{wrapper_i3d_forward.3} parent=1 // pred_check_branch
      %5297 = sbr.rel (0) target = $region105
    $region104: #{wrapper_i3d_forward.3} parent=1 // pred_region
      %s5299 = ssub.s32 32, 32
      %5300 = vsyncadd [#allocation4], %s5299
      %s5302 = sshll.u32 [#allocation22], 4
      %s5303 = int_to_ptr.vmem [resolvable:$true] %s5302
      %5305 = dma.vmem_to_hbm [thread:$0]  %s5303, 32, %s13, [#allocation4]
    $region105: #{wrapper_i3d_forward.3} parent=1 // pred_fallthru
      _
    // Predicated region
    $region106: #{wrapper_i3d_forward.3} parent=1 // pred_check
      _
    $region107: #{wrapper_i3d_forward.3} parent=1 // pred_check_branch
      %5307 = sbr.rel (0) target = $region109
    $region108: #{wrapper_i3d_forward.3} parent=1 // pred_region
      %s5309 = ssub.s32 32, 32
      %5310 = vsyncadd [#allocation24], %s5309
      %s5312 = sshll.u32 [#allocation23], 4
      %s5313 = int_to_ptr.vmem [resolvable:$true] %s5312
      %5315 = dma.vmem_to_hbm [thread:$0]  %s5313, 32, %s14, [#allocation24]
    $region109: #{wrapper_i3d_forward.3} parent=1 // pred_fallthru
      _
    // Predicated region
    $region110: #{wrapper_i3d_forward.3} parent=1 // pred_check
      _
    $region111: #{wrapper_i3d_forward.3} parent=1 // pred_check_branch
      %5317 = sbr.rel (0) target = $region113
    $region112: #{wrapper_i3d_forward.3} parent=1 // pred_region
      %5318 = dma.done [#allocation4], 32
    $region113: #{wrapper_i3d_forward.3} parent=1 // pred_fallthru
      _
    // Predicated region
    $region114: #{wrapper_i3d_forward.3} parent=1 // pred_check
      _
    $region115: #{wrapper_i3d_forward.3} parent=1 // pred_check_branch
      %5320 = sbr.rel (0) target = $region117
    $region116: #{wrapper_i3d_forward.3} parent=1 // pred_region
      %5321 = dma.done [#allocation24], 32
    $region117: #{wrapper_i3d_forward.3} parent=1 // pred_fallthru
      _
    %5322 = vsyncpa [#allocation3], 1
    %5323 = vsyncpa [#allocation6], 1
    %5324 = vsyncpa [#allocation9], 1
    %5325 = vsyncpa [#allocation12], 1
    %5326 = vsyncpa [#allocation15], 1
    %5327 = vsyncpa [#allocation18], 1
    %5328 = vsyncpa [#allocation21], 1
    %5329 = vsyncpa [#allocation4], 1
    %5330 = vsyncpa [#allocation24], 1

</llo_original>
